<compile_context>
chip_gen: v6e
topology: v6e:2x2x1
jax: 0.10.0
libtpu: 0.0.40
codegen_flags: <defaults>
</compile_context>

<pallas_src>
import functools

import jax
import jax.numpy as jnp
import numpy as np
from jax import lax
from jax.experimental import pallas as pl
from jax.experimental.pallas import tpu as pltpu


def _residual_kernel(x_ref, xt_ref, xb_ref, w1_ref, b1_ref, w2_ref, b2_ref,
                     o_ref, h_ref, *, TH, W, C, Cmid_p, cdt, use_roll):
    i = pl.program_id(1)
    n_h = pl.num_programs(1)

    xm = x_ref[0]                                            # (TH, W, C)
    w1 = w1_ref[...]                                         # (C, Cmid_p)  cdt
    b1 = b1_ref[...]                                         # (1, Cmid_p)  f32

    # ---- conv1 (1x1 pointwise): main tile + both halo rows, written directly
    # into the persistent VMEM scratch h_ref (no full-tile concatenate).
    hm = jnp.dot(xm.reshape(TH * W, C).astype(cdt), w1,
                 preferred_element_type=jnp.float32)
    hm = jnp.maximum(hm + b1, 0.0)
    h_ref[pl.ds(1, TH)] = hm.reshape(TH, W, Cmid_p).astype(cdt)

    ht = jnp.dot(xt_ref[0, 0].astype(cdt), w1,
                 preferred_element_type=jnp.float32)         # (W, Cmid_p)
    ht = jnp.where(i > 0, jnp.maximum(ht + b1, 0.0), 0.0)    # out-of-image -> 0
    h_ref[0] = ht.astype(cdt)

    hb = jnp.dot(xb_ref[0, 0].astype(cdt), w1,
                 preferred_element_type=jnp.float32)
    hb = jnp.where(i < n_h - 1, jnp.maximum(hb + b1, 0.0), 0.0)
    h_ref[TH + 1] = hb.astype(cdt)

    h = h_ref[...]                                           # (TH+2, W, Cmid_p) cdt

    # ---- W-axis neighbour taps (zero padding along W), no pad buffer.
    zero = jnp.asarray(0.0, cdt)
    if use_roll:
        col = lax.broadcasted_iota(jnp.int32, (TH + 2, W, 1), 1)
        left = jnp.where(col >= 1, pltpu.roll(h, 1, axis=1), zero)       # h[w-1]
        right = jnp.where(col <= W - 2, pltpu.roll(h, W - 1, axis=1), zero)  # h[w+1]
    else:
        zcol = jnp.zeros((TH + 2, 1, Cmid_p), cdt)
        left = jnp.concatenate([zcol, h[:, :W - 1, :]], axis=1)
        right = jnp.concatenate([h[:, 1:, :], zcol], axis=1)
    taps = (left, h, right)                                  # dx = 0, 1, 2

    # ---- conv2 (3x3): nine MXU pushes, K = Cmid_p, f32 accumulation
    # initialised from the first dot (no zero-fill of acc).
    acc = None
    for dy in range(3):
        for dx in range(3):
            a = taps[dx][dy:dy + TH].reshape(TH * W, Cmid_p)
            d = jnp.dot(a, w2_ref[dy, dx], preferred_element_type=jnp.float32)
            acc = d if acc is None else acc + d

    # ---- bias + ReLU + residual add (f32 epilogue).
    y = jnp.maximum(acc + b2_ref[...], 0.0).reshape(TH, W, C)
    o_ref[0] = (y + xm.astype(jnp.float32)).astype(o_ref.dtype)


def _vmem_capacity_bytes():
    try:
        cap = int(pltpu.get_tpu_info().vmem_capacity_bytes)
        if cap > 0:
            return cap
    except Exception:
        pass
    return 64 * 1024 * 1024          # conservative default (v7x per-core VMEM)


def _step_vmem_bytes(th, W, C, Cmid_p, in_it, c_it):
    io = 2 * 2 * th * W * C * in_it                 # in + out tile, double-buffered
    halo = 2 * 2 * W * C * in_it                    # two 1-row halo views
    wts = 2 * (C * Cmid_p + 9 * Cmid_p * C) * c_it + 2 * (Cmid_p + C) * 4
    h_scr = (th + 2) * W * Cmid_p * c_it            # h scratch
    tps = 2 * (th + 2) * W * Cmid_p * c_it          # left/right taps
    conv1 = (th + 2) * W * Cmid_p * 4               # conv1 f32 results before cast
    acc = 2 * th * W * C * 4                        # acc + f32 epilogue temp
    return io + halo + wts + h_scr + tps + conv1 + acc


def _pick_tile_h(N, H, W, C, Cmid_p, in_it, c_it, budget):
    fitting = [th for th in range(H, 0, -1)
               if H % th == 0 and _step_vmem_bytes(th, W, C, Cmid_p, in_it, c_it) <= budget]
    if not fitting:
        # TODO(synk): add W tiling for feature maps where even one row blows VMEM.
        return 1
    for th in fitting:
        if N * (H // th) >= 2:       # >= 2 grid steps -> both v7x TCs get work
            return th
    return fitting[-1]


def residual_layer_pallas_nhwc(x_nhwc, w1, b1, w2, b2, *, tile_h=None,
                               compute_dtype=jnp.bfloat16):
    """NHWC-native fast path (no layout transposes around the kernel).

    x_nhwc: (N, H, W, C); w1: (Cmid, C, 1, 1); b1: (Cmid,);
    w2: (C, Cmid, 3, 3); b2: (C,)   -- PyTorch Conv2d weight layouts.
    """
    N, H, W, C = x_nhwc.shape
    Cmid = C // 2
    assert w1.shape == (Cmid, C, 1, 1) and w2.shape == (C, Cmid, 3, 3)

    cdt = jnp.dtype(compute_dtype)
    in_it = jnp.dtype(x_nhwc.dtype).itemsize
    c_it = cdt.itemsize
    Cmid_p = ((Cmid + 127) // 128) * 128      # lane-align the mid channels (exact: zero pad)

    cap = _vmem_capacity_bytes()
    budget = int(cap * 0.40)                  # ~26 MiB on v7x, ~51 MiB on v5e/v6e
    vmem_limit = int(min(cap * 0.85, 112 * 1024 * 1024))

    TH = tile_h if tile_h is not None else _pick_tile_h(N, H, W, C, Cmid_p,
                                                        in_it, c_it, budget)
    assert H % TH == 0, f"tile_h={TH} must divide H={H}"
    n_h = H // TH

    # Host-side weight prep (tiny, grid-invariant): pad Cmid with zeros so the
    # kernel always takes the lane-aligned path; pre-cast to the MXU dtype.
    w1_k = jnp.zeros((C, Cmid_p), cdt).at[:, :Cmid].set(
        jnp.transpose(w1[:, :, 0, 0], (1, 0)).astype(cdt))
    b1_k = jnp.zeros((1, Cmid_p), jnp.float32).at[:, :Cmid].set(
        b1.reshape(1, Cmid).astype(jnp.float32))
    w2_k = jnp.zeros((3, 3, Cmid_p, C), cdt).at[:, :, :Cmid, :].set(
        jnp.transpose(w2, (2, 3, 1, 0)).astype(cdt))          # [dy, dx, cin, cout]
    b2_k = b2.reshape(1, C).astype(jnp.float32)

    flops = 2 * N * H * W * Cmid * C * 10     # 1x1 conv + 9-tap 3x3 conv
    bytes_accessed = (2 * x_nhwc.size * in_it + (w1_k.size + w2_k.size) * c_it
                      + (b1_k.size + b2_k.size) * 4)
    cost = pl.CostEstimate(flops=flops, transcendentals=0,
                           bytes_accessed=bytes_accessed)

    def build_call(use_roll, single_buffer_weights):
        kernel = functools.partial(_residual_kernel, TH=TH, W=W, C=C,
                                   Cmid_p=Cmid_p, cdt=cdt, use_roll=use_roll)
        wkw = {"pipeline_mode": pl.Buffered(1)} if single_buffer_weights else {}
        in_specs = [
            pl.BlockSpec((1, TH, W, C), lambda n, i: (n, i, 0, 0)),
            pl.BlockSpec((1, 1, W, C),
                         lambda n, i: (n, jnp.maximum(i * TH - 1, 0), 0, 0)),
            pl.BlockSpec((1, 1, W, C),
                         lambda n, i: (n, jnp.minimum((i + 1) * TH, H - 1), 0, 0)),
            pl.BlockSpec((C, Cmid_p), lambda n, i: (0, 0), **wkw),
            pl.BlockSpec((1, Cmid_p), lambda n, i: (0, 0), **wkw),
            pl.BlockSpec((3, 3, Cmid_p, C), lambda n, i: (0, 0, 0, 0), **wkw),
            pl.BlockSpec((1, C), lambda n, i: (0, 0), **wkw),
        ]
        # TODO(synk): for C < 128 layers, present lane-dense I/O by blocking
        # x/out as (1, TH, W*C) to avoid masked partial stores on the output.
        return pl.pallas_call(
            kernel,
            out_shape=jax.ShapeDtypeStruct((N, H, W, C), x_nhwc.dtype),
            grid_spec=pltpu.PrefetchScalarGridSpec(
                num_scalar_prefetch=0,
                grid=(N, n_h),
                in_specs=in_specs,
                out_specs=pl.BlockSpec((1, TH, W, C), lambda n, i: (n, i, 0, 0)),
                scratch_shapes=[pltpu.VMEM((TH + 2, W, Cmid_p), cdt)],
            ),
            compiler_params=pltpu.CompilerParams(
                dimension_semantics=("parallel", "parallel"),
                vmem_limit_bytes=vmem_limit),
            cost_estimate=cost,
        )(x_nhwc, x_nhwc, x_nhwc, w1_k, b1_k, w2_k, b2_k)

    # Preferred config first (XLU roll taps + single-buffered weights); fall
    # back gracefully if a particular feature fails to lower on this stack.
    attempts = ((True, True), (True, False), (False, True), (False, False))
    last_err = None
    for use_roll, single_buf in attempts:
        try:
            return build_call(use_roll, single_buf)
        except Exception as e:           # per-config lowering fallback
            last_err = e
    raise last_err


def residual_layer_pallas(x_nchw, w1, b1, w2, b2, **kw):
    """PyTorch-layout (NCHW) compatibility wrapper.

    The two transposes cost a full HBM round trip each; keep activations NHWC
    end-to-end in a real model and call residual_layer_pallas_nhwc directly.
    """
    x_nhwc = jnp.transpose(x_nchw, (0, 2, 3, 1))
    out = residual_layer_pallas_nhwc(x_nhwc, w1, b1, w2, b2, **kw)
    return jnp.transpose(out, (0, 3, 1, 2))


def _reference_nchw(x, w1, b1, w2, b2):
    """Pure-JAX NCHW reference matching torch semantics (f32)."""
    dn = ("NCHW", "OIHW", "NCHW")
    h = lax.conv_general_dilated(x, w1, (1, 1), "VALID", dimension_numbers=dn)
    h = jnp.maximum(h + b1[None, :, None, None], 0.0)
    y = lax.conv_general_dilated(h, w2, (1, 1), ((1, 1), (1, 1)),
                                 dimension_numbers=dn)
    y = jnp.maximum(y + b2[None, :, None, None], 0.0)
    return y + x


def _check(name, out, ref, tol=2.5e-2):
    out = np.asarray(out)
    ref = np.asarray(ref)
    err = np.max(np.abs(out - ref))
    scale = np.max(np.abs(ref)) + 1e-6
    assert err / scale < tol, f"{name}: max_err={err:.4g} scale={scale:.4g}"


if __name__ == "__main__":
    key = jax.random.PRNGKey(0)

    # Config 1: toy shape via the NCHW (PyTorch-interface) wrapper.
    N, C, H, W = 2, 4, 16, 16
    Cmid = C // 2
    kx, k1, k2, k3, k4, key = jax.random.split(key, 6)
    x = jax.random.normal(kx, (N, C, H, W), jnp.float32)
    w1 = jax.random.normal(k1, (Cmid, C, 1, 1), jnp.float32) * 0.2
    b1 = jax.random.normal(k2, (Cmid,), jnp.float32) * 0.1
    w2 = jax.random.normal(k3, (C, Cmid, 3, 3), jnp.float32) * 0.2
    b2 = jax.random.normal(k4, (C,), jnp.float32) * 0.1
    ref = _reference_nchw(x, w1, b1, w2, b2)

    out = jax.block_until_ready(
        residual_layer_pallas(x, w1, b1, w2, b2, tile_h=8))
    _check("toy/nchw/tiled", out, ref)
    out = jax.block_until_ready(residual_layer_pallas(x, w1, b1, w2, b2))
    _check("toy/nchw/auto", out, ref)
    out = jax.block_until_ready(
        residual_layer_pallas(x, w1, b1, w2, b2, compute_dtype=jnp.float32))
    _check("toy/nchw/f32", out, ref)

    # Config 2: lane-aligned channels via the transpose-free NHWC fast path.
    N2, C2, H2, W2 = 1, 256, 16, 16
    Cmid2 = C2 // 2
    kx, k1, k2, k3, k4, key = jax.random.split(key, 6)
    x2 = jax.random.normal(kx, (N2, C2, H2, W2), jnp.float32)
    w1_2 = jax.random.normal(k1, (Cmid2, C2, 1, 1), jnp.float32) * 0.05
    b1_2 = jax.random.normal(k2, (Cmid2,), jnp.float32) * 0.1
    w2_2 = jax.random.normal(k3, (C2, Cmid2, 3, 3), jnp.float32) * 0.05
    b2_2 = jax.random.normal(k4, (C2,), jnp.float32) * 0.1
    ref2 = jnp.transpose(_reference_nchw(x2, w1_2, b1_2, w2_2, b2_2), (0, 2, 3, 1))
    x2_nhwc = jnp.transpose(x2, (0, 2, 3, 1))
    out2 = jax.block_until_ready(
        residual_layer_pallas_nhwc(x2_nhwc, w1_2, b1_2, w2_2, b2_2))
    _check("aligned/nhwc/auto", out2, ref2)

    print("KERNEL_OK")
</pallas_src>

<mosaic_0001>
module attributes {stable_mosaic.version = 11 : i64} {
  func.func @_residual_kernel(%arg0: i32, %arg1: i32, %arg2: memref<1x8x16x4xf32, #tpu.memory_space<vmem>>, %arg3: memref<1x1x16x4xf32, #tpu.memory_space<vmem>>, %arg4: memref<1x1x16x4xf32, #tpu.memory_space<vmem>>, %arg5: memref<4x128xbf16, #tpu.memory_space<vmem>>, %arg6: memref<1x128xf32, #tpu.memory_space<vmem>>, %arg7: memref<3x3x128x4xbf16, #tpu.memory_space<vmem>>, %arg8: memref<1x4xf32, #tpu.memory_space<vmem>>, %arg9: memref<1x8x16x4xf32, #tpu.memory_space<vmem>>, %arg10: memref<10x16x128xbf16, #tpu.memory_space<vmem>>) attributes {dimension_semantics = [#tpu.dimension_semantics<parallel>, #tpu.dimension_semantics<parallel>], iteration_bounds = array<i64: 2, 2>, scalar_prefetch = 0 : i64, scratch_operands = 1 : i64, tpu.core_type = #tpu.core_type<tc>, window_params = [{transform_indices = @transform_0, window_bounds = array<i64: 1, 8, 16, 4>}, {transform_indices = @transform_1, window_bounds = array<i64: 1, 1, 16, 4>}, {transform_indices = @transform_2, window_bounds = array<i64: 1, 1, 16, 4>}, {pipeline_mode = #tpu.pipeline_mode<synchronous>, transform_indices = @transform_3, window_bounds = array<i64: 4, 128>}, {pipeline_mode = #tpu.pipeline_mode<synchronous>, transform_indices = @transform_4, window_bounds = array<i64: 1, 128>}, {pipeline_mode = #tpu.pipeline_mode<synchronous>, transform_indices = @transform_5, window_bounds = array<i64: 3, 3, 128, 4>}, {pipeline_mode = #tpu.pipeline_mode<synchronous>, transform_indices = @transform_6, window_bounds = array<i64: 1, 4>}, {transform_indices = @transform_7, window_bounds = array<i64: 1, 8, 16, 4>}]} {
    %c0 = arith.constant 0 : index
    %c0_0 = arith.constant 0 : index
    %c0_1 = arith.constant 0 : index
    %c0_2 = arith.constant 0 : index
    %0 = vector.load %arg2[%c0, %c0_0, %c0_1, %c0_2] : memref<1x8x16x4xf32, #tpu.memory_space<vmem>>, vector<1x8x16x4xf32>
    %1 = vector.shape_cast %0 : vector<1x8x16x4xf32> to vector<8x16x4xf32>
    %c0_3 = arith.constant 0 : index
    %c0_4 = arith.constant 0 : index
    %2 = vector.load %arg5[%c0_3, %c0_4] : memref<4x128xbf16, #tpu.memory_space<vmem>>, vector<4x128xbf16>
    %c0_5 = arith.constant 0 : index
    %c0_6 = arith.constant 0 : index
    %3 = vector.load %arg6[%c0_5, %c0_6] : memref<1x128xf32, #tpu.memory_space<vmem>>, vector<1x128xf32>
    %4 = vector.shape_cast %1 : vector<8x16x4xf32> to vector<128x4xf32>
    %5 = arith.truncf %4 : vector<128x4xf32> to vector<128x4xbf16>
    %cst = arith.constant dense<0.000000e+00> : vector<128x128xf32>
    %6 = tpu.matmul %5, %2, %cst {dimension_numbers = #tpu.dot_dimension_numbers<[1], [0], [0], [1], [0, 0, 1, 1], [], []>} : vector<128x4xbf16>, vector<4x128xbf16>, vector<128x128xf32> -> vector<128x128xf32>
    %7 = vector.broadcast %3 : vector<1x128xf32> to vector<128x128xf32>
    %8 = arith.addf %6, %7 : vector<128x128xf32>
    %cst_7 = arith.constant 0.000000e+00 : f32
    %9 = vector.broadcast %cst_7 : f32 to vector<128x128xf32>
    %10 = arith.maximumf %8, %9 : vector<128x128xf32>
    %11 = vector.shape_cast %10 : vector<128x128xf32> to vector<8x16x128xf32>
    %12 = arith.truncf %11 : vector<8x16x128xf32> to vector<8x16x128xbf16>
    %c1 = arith.constant 1 : index
    %c0_8 = arith.constant 0 : index
    %c0_9 = arith.constant 0 : index
    %13 = vector.load %arg10[%c1, %c0_8, %c0_9] : memref<10x16x128xbf16, #tpu.memory_space<vmem>>, vector<8x16x128xbf16>
    tpu.vector_store %arg10[%c1, %c0_8, %c0_9], %12 {strides = array<i32>} : memref<10x16x128xbf16, #tpu.memory_space<vmem>>, vector<8x16x128xbf16>,
    %c0_10 = arith.constant 0 : index
    %c0_11 = arith.constant 0 : index
    %c0_12 = arith.constant 0 : index
    %c0_13 = arith.constant 0 : index
    %14 = vector.load %arg3[%c0_10, %c0_11, %c0_12, %c0_13] : memref<1x1x16x4xf32, #tpu.memory_space<vmem>>, vector<1x1x16x4xf32>
    %15 = vector.shape_cast %14 : vector<1x1x16x4xf32> to vector<16x4xf32>
    %16 = arith.truncf %15 : vector<16x4xf32> to vector<16x4xbf16>
    %cst_14 = arith.constant dense<0.000000e+00> : vector<16x128xf32>
    %17 = tpu.matmul %16, %2, %cst_14 {dimension_numbers = #tpu.dot_dimension_numbers<[1], [0], [0], [1], [0, 0, 1, 1], [], []>} : vector<16x4xbf16>, vector<4x128xbf16>, vector<16x128xf32> -> vector<16x128xf32>
    %c0_i32 = arith.constant 0 : i32
    %18 = arith.cmpi sgt, %arg1, %c0_i32 : i32
    %19 = vector.broadcast %3 : vector<1x128xf32> to vector<16x128xf32>
    %20 = arith.addf %17, %19 : vector<16x128xf32>
    %cst_15 = arith.constant 0.000000e+00 : f32
    %21 = vector.broadcast %cst_15 : f32 to vector<16x128xf32>
    %22 = arith.maximumf %20, %21 : vector<16x128xf32>
    %cst_16 = arith.constant 0.000000e+00 : f32
    %23 = vector.broadcast %cst_16 : f32 to vector<16x128xf32>
    %24 = arith.select %18, %22, %23 : vector<16x128xf32>
    %25 = arith.truncf %24 : vector<16x128xf32> to vector<16x128xbf16>
    %c0_17 = arith.constant 0 : index
    %c0_18 = arith.constant 0 : index
    %c0_19 = arith.constant 0 : index
    %26 = vector.load %arg10[%c0_17, %c0_18, %c0_19] : memref<10x16x128xbf16, #tpu.memory_space<vmem>>, vector<1x16x128xbf16>
    %27 = vector.shape_cast %26 : vector<1x16x128xbf16> to vector<16x128xbf16>
    %28 = vector.shape_cast %25 : vector<16x128xbf16> to vector<1x16x128xbf16>
    tpu.vector_store %arg10[%c0_17, %c0_18, %c0_19], %28 {strides = array<i32>} : memref<10x16x128xbf16, #tpu.memory_space<vmem>>, vector<1x16x128xbf16>,
    %c0_20 = arith.constant 0 : index
    %c0_21 = arith.constant 0 : index
    %c0_22 = arith.constant 0 : index
    %c0_23 = arith.constant 0 : index
    %29 = vector.load %arg4[%c0_20, %c0_21, %c0_22, %c0_23] : memref<1x1x16x4xf32, #tpu.memory_space<vmem>>, vector<1x1x16x4xf32>
    %30 = vector.shape_cast %29 : vector<1x1x16x4xf32> to vector<16x4xf32>
    %31 = arith.truncf %30 : vector<16x4xf32> to vector<16x4xbf16>
    %cst_24 = arith.constant dense<0.000000e+00> : vector<16x128xf32>
    %32 = tpu.matmul %31, %2, %cst_24 {dimension_numbers = #tpu.dot_dimension_numbers<[1], [0], [0], [1], [0, 0, 1, 1], [], []>} : vector<16x4xbf16>, vector<4x128xbf16>, vector<16x128xf32> -> vector<16x128xf32>
    %c1_i32 = arith.constant 1 : i32
    %33 = arith.cmpi slt, %arg1, %c1_i32 : i32
    %34 = vector.broadcast %3 : vector<1x128xf32> to vector<16x128xf32>
    %35 = arith.addf %32, %34 : vector<16x128xf32>
    %cst_25 = arith.constant 0.000000e+00 : f32
    %36 = vector.broadcast %cst_25 : f32 to vector<16x128xf32>
    %37 = arith.maximumf %35, %36 : vector<16x128xf32>
    %cst_26 = arith.constant 0.000000e+00 : f32
    %38 = vector.broadcast %cst_26 : f32 to vector<16x128xf32>
    %39 = arith.select %33, %37, %38 : vector<16x128xf32>
    %40 = arith.truncf %39 : vector<16x128xf32> to vector<16x128xbf16>
    %c9 = arith.constant 9 : index
    %c0_27 = arith.constant 0 : index
    %c0_28 = arith.constant 0 : index
    %41 = vector.load %arg10[%c9, %c0_27, %c0_28] : memref<10x16x128xbf16, #tpu.memory_space<vmem>>, vector<1x16x128xbf16>
    %42 = vector.shape_cast %41 : vector<1x16x128xbf16> to vector<16x128xbf16>
    %43 = vector.shape_cast %40 : vector<16x128xbf16> to vector<1x16x128xbf16>
    tpu.vector_store %arg10[%c9, %c0_27, %c0_28], %43 {strides = array<i32>} : memref<10x16x128xbf16, #tpu.memory_space<vmem>>, vector<1x16x128xbf16>,
    %c0_29 = arith.constant 0 : index
    %c0_30 = arith.constant 0 : index
    %c0_31 = arith.constant 0 : index
    %44 = vector.load %arg10[%c0_29, %c0_30, %c0_31] : memref<10x16x128xbf16, #tpu.memory_space<vmem>>, vector<10x16x128xbf16>
    %45 = tpu.iota {dimensions = array<i32: 1>} : vector<10x16x1xi32>
    %c1_i32_32 = arith.constant 1 : i32
    %46 = vector.broadcast %c1_i32_32 : i32 to vector<10x16x1xi32>
    %47 = arith.cmpi sge, %45, %46 : vector<10x16x1xi32>
    %c1_i32_33 = arith.constant 1 : i32
    %48 = tpu.dynamic_rotate %44 by %c1_i32_33 dim 1 : vector<10x16x128xbf16>, i32 -> vector<10x16x128xbf16>
    %cst_34 = arith.constant 0.000000e+00 : bf16
    %49 = vector.shape_cast %47 : vector<10x16x1xi1> to vector<10x16x1xi1>
    %50 = vector.broadcast %49 : vector<10x16x1xi1> to vector<10x16x128xi1>
    %51 = vector.broadcast %cst_34 : bf16 to vector<10x16x128xbf16>
    %52 = arith.select %50, %48, %51 : vector<10x16x128xi1>, vector<10x16x128xbf16>
    %c14_i32 = arith.constant 14 : i32
    %53 = vector.broadcast %c14_i32 : i32 to vector<10x16x1xi32>
    %54 = arith.cmpi sle, %45, %53 : vector<10x16x1xi32>
    %c15_i32 = arith.constant 15 : i32
    %55 = tpu.dynamic_rotate %44 by %c15_i32 dim 1 : vector<10x16x128xbf16>, i32 -> vector<10x16x128xbf16>
    %cst_35 = arith.constant 0.000000e+00 : bf16
    %56 = vector.shape_cast %54 : vector<10x16x1xi1> to vector<10x16x1xi1>
    %57 = vector.broadcast %56 : vector<10x16x1xi1> to vector<10x16x128xi1>
    %58 = vector.broadcast %cst_35 : bf16 to vector<10x16x128xbf16>
    %59 = arith.select %57, %55, %58 : vector<10x16x128xi1>, vector<10x16x128xbf16>
    %60 = vector.extract_strided_slice %52 {offsets = [0, 0, 0], sizes = [8, 16, 128], strides = [1, 1, 1]} : vector<10x16x128xbf16> to vector<8x16x128xbf16>
    %61 = vector.shape_cast %60 : vector<8x16x128xbf16> to vector<128x128xbf16>
    %c0_36 = arith.constant 0 : index
    %c0_37 = arith.constant 0 : index
    %c0_38 = arith.constant 0 : index
    %c0_39 = arith.constant 0 : index
    %62 = vector.load %arg7[%c0_36, %c0_37, %c0_38, %c0_39] : memref<3x3x128x4xbf16, #tpu.memory_space<vmem>>, vector<1x1x128x4xbf16>
    %63 = vector.shape_cast %62 : vector<1x1x128x4xbf16> to vector<128x4xbf16>
    %cst_40 = arith.constant dense<0.000000e+00> : vector<128x4xf32>
    %64 = tpu.matmul %61, %63, %cst_40 {dimension_numbers = #tpu.dot_dimension_numbers<[1], [0], [0], [1], [0, 0, 1, 1], [], []>} : vector<128x128xbf16>, vector<128x4xbf16>, vector<128x4xf32> -> vector<128x4xf32>
    %65 = vector.extract_strided_slice %44 {offsets = [0, 0, 0], sizes = [8, 16, 128], strides = [1, 1, 1]} : vector<10x16x128xbf16> to vector<8x16x128xbf16>
    %66 = vector.shape_cast %65 : vector<8x16x128xbf16> to vector<128x128xbf16>
    %c0_41 = arith.constant 0 : index
    %c1_42 = arith.constant 1 : index
    %c0_43 = arith.constant 0 : index
    %c0_44 = arith.constant 0 : index
    %67 = vector.load %arg7[%c0_41, %c1_42, %c0_43, %c0_44] : memref<3x3x128x4xbf16, #tpu.memory_space<vmem>>, vector<1x1x128x4xbf16>
    %68 = vector.shape_cast %67 : vector<1x1x128x4xbf16> to vector<128x4xbf16>
    %cst_45 = arith.constant dense<0.000000e+00> : vector<128x4xf32>
    %69 = tpu.matmul %66, %68, %cst_45 {dimension_numbers = #tpu.dot_dimension_numbers<[1], [0], [0], [1], [0, 0, 1, 1], [], []>} : vector<128x128xbf16>, vector<128x4xbf16>, vector<128x4xf32> -> vector<128x4xf32>
    %70 = arith.addf %64, %69 : vector<128x4xf32>
    %71 = vector.extract_strided_slice %59 {offsets = [0, 0, 0], sizes = [8, 16, 128], strides = [1, 1, 1]} : vector<10x16x128xbf16> to vector<8x16x128xbf16>
    %72 = vector.shape_cast %71 : vector<8x16x128xbf16> to vector<128x128xbf16>
    %c0_46 = arith.constant 0 : index
    %c2 = arith.constant 2 : index
    %c0_47 = arith.constant 0 : index
    %c0_48 = arith.constant 0 : index
    %73 = vector.load %arg7[%c0_46, %c2, %c0_47, %c0_48] : memref<3x3x128x4xbf16, #tpu.memory_space<vmem>>, vector<1x1x128x4xbf16>
    %74 = vector.shape_cast %73 : vector<1x1x128x4xbf16> to vector<128x4xbf16>
    %cst_49 = arith.constant dense<0.000000e+00> : vector<128x4xf32>
    %75 = tpu.matmul %72, %74, %cst_49 {dimension_numbers = #tpu.dot_dimension_numbers<[1], [0], [0], [1], [0, 0, 1, 1], [], []>} : vector<128x128xbf16>, vector<128x4xbf16>, vector<128x4xf32> -> vector<128x4xf32>
    %76 = arith.addf %70, %75 : vector<128x4xf32>
    %77 = vector.extract_strided_slice %52 {offsets = [1, 0, 0], sizes = [8, 16, 128], strides = [1, 1, 1]} : vector<10x16x128xbf16> to vector<8x16x128xbf16>
    %78 = vector.shape_cast %77 : vector<8x16x128xbf16> to vector<128x128xbf16>
    %c1_50 = arith.constant 1 : index
    %c0_51 = arith.constant 0 : index
    %c0_52 = arith.constant 0 : index
    %c0_53 = arith.constant 0 : index
    %79 = vector.load %arg7[%c1_50, %c0_51, %c0_52, %c0_53] : memref<3x3x128x4xbf16, #tpu.memory_space<vmem>>, vector<1x1x128x4xbf16>
    %80 = vector.shape_cast %79 : vector<1x1x128x4xbf16> to vector<128x4xbf16>
    %cst_54 = arith.constant dense<0.000000e+00> : vector<128x4xf32>
    %81 = tpu.matmul %78, %80, %cst_54 {dimension_numbers = #tpu.dot_dimension_numbers<[1], [0], [0], [1], [0, 0, 1, 1], [], []>} : vector<128x128xbf16>, vector<128x4xbf16>, vector<128x4xf32> -> vector<128x4xf32>
    %82 = arith.addf %76, %81 : vector<128x4xf32>
    %83 = vector.extract_strided_slice %44 {offsets = [1, 0, 0], sizes = [8, 16, 128], strides = [1, 1, 1]} : vector<10x16x128xbf16> to vector<8x16x128xbf16>
    %84 = vector.shape_cast %83 : vector<8x16x128xbf16> to vector<128x128xbf16>
    %c1_55 = arith.constant 1 : index
    %c1_56 = arith.constant 1 : index
    %c0_57 = arith.constant 0 : index
    %c0_58 = arith.constant 0 : index
    %85 = vector.load %arg7[%c1_55, %c1_56, %c0_57, %c0_58] : memref<3x3x128x4xbf16, #tpu.memory_space<vmem>>, vector<1x1x128x4xbf16>
    %86 = vector.shape_cast %85 : vector<1x1x128x4xbf16> to vector<128x4xbf16>
    %cst_59 = arith.constant dense<0.000000e+00> : vector<128x4xf32>
    %87 = tpu.matmul %84, %86, %cst_59 {dimension_numbers = #tpu.dot_dimension_numbers<[1], [0], [0], [1], [0, 0, 1, 1], [], []>} : vector<128x128xbf16>, vector<128x4xbf16>, vector<128x4xf32> -> vector<128x4xf32>
    %88 = arith.addf %82, %87 : vector<128x4xf32>
    %89 = vector.extract_strided_slice %59 {offsets = [1, 0, 0], sizes = [8, 16, 128], strides = [1, 1, 1]} : vector<10x16x128xbf16> to vector<8x16x128xbf16>
    %90 = vector.shape_cast %89 : vector<8x16x128xbf16> to vector<128x128xbf16>
    %c1_60 = arith.constant 1 : index
    %c2_61 = arith.constant 2 : index
    %c0_62 = arith.constant 0 : index
    %c0_63 = arith.constant 0 : index
    %91 = vector.load %arg7[%c1_60, %c2_61, %c0_62, %c0_63] : memref<3x3x128x4xbf16, #tpu.memory_space<vmem>>, vector<1x1x128x4xbf16>
    %92 = vector.shape_cast %91 : vector<1x1x128x4xbf16> to vector<128x4xbf16>
    %cst_64 = arith.constant dense<0.000000e+00> : vector<128x4xf32>
    %93 = tpu.matmul %90, %92, %cst_64 {dimension_numbers = #tpu.dot_dimension_numbers<[1], [0], [0], [1], [0, 0, 1, 1], [], []>} : vector<128x128xbf16>, vector<128x4xbf16>, vector<128x4xf32> -> vector<128x4xf32>
    %94 = arith.addf %88, %93 : vector<128x4xf32>
    %95 = vector.extract_strided_slice %52 {offsets = [2, 0, 0], sizes = [8, 16, 128], strides = [1, 1, 1]} : vector<10x16x128xbf16> to vector<8x16x128xbf16>
    %96 = vector.shape_cast %95 : vector<8x16x128xbf16> to vector<128x128xbf16>
    %c2_65 = arith.constant 2 : index
    %c0_66 = arith.constant 0 : index
    %c0_67 = arith.constant 0 : index
    %c0_68 = arith.constant 0 : index
    %97 = vector.load %arg7[%c2_65, %c0_66, %c0_67, %c0_68] : memref<3x3x128x4xbf16, #tpu.memory_space<vmem>>, vector<1x1x128x4xbf16>
    %98 = vector.shape_cast %97 : vector<1x1x128x4xbf16> to vector<128x4xbf16>
    %cst_69 = arith.constant dense<0.000000e+00> : vector<128x4xf32>
    %99 = tpu.matmul %96, %98, %cst_69 {dimension_numbers = #tpu.dot_dimension_numbers<[1], [0], [0], [1], [0, 0, 1, 1], [], []>} : vector<128x128xbf16>, vector<128x4xbf16>, vector<128x4xf32> -> vector<128x4xf32>
    %100 = arith.addf %94, %99 : vector<128x4xf32>
    %101 = vector.extract_strided_slice %44 {offsets = [2, 0, 0], sizes = [8, 16, 128], strides = [1, 1, 1]} : vector<10x16x128xbf16> to vector<8x16x128xbf16>
    %102 = vector.shape_cast %101 : vector<8x16x128xbf16> to vector<128x128xbf16>
    %c2_70 = arith.constant 2 : index
    %c1_71 = arith.constant 1 : index
    %c0_72 = arith.constant 0 : index
    %c0_73 = arith.constant 0 : index
    %103 = vector.load %arg7[%c2_70, %c1_71, %c0_72, %c0_73] : memref<3x3x128x4xbf16, #tpu.memory_space<vmem>>, vector<1x1x128x4xbf16>
    %104 = vector.shape_cast %103 : vector<1x1x128x4xbf16> to vector<128x4xbf16>
    %cst_74 = arith.constant dense<0.000000e+00> : vector<128x4xf32>
    %105 = tpu.matmul %102, %104, %cst_74 {dimension_numbers = #tpu.dot_dimension_numbers<[1], [0], [0], [1], [0, 0, 1, 1], [], []>} : vector<128x128xbf16>, vector<128x4xbf16>, vector<128x4xf32> -> vector<128x4xf32>
    %106 = arith.addf %100, %105 : vector<128x4xf32>
    %107 = vector.extract_strided_slice %59 {offsets = [2, 0, 0], sizes = [8, 16, 128], strides = [1, 1, 1]} : vector<10x16x128xbf16> to vector<8x16x128xbf16>
    %108 = vector.shape_cast %107 : vector<8x16x128xbf16> to vector<128x128xbf16>
    %c2_75 = arith.constant 2 : index
    %c2_76 = arith.constant 2 : index
    %c0_77 = arith.constant 0 : index
    %c0_78 = arith.constant 0 : index
    %109 = vector.load %arg7[%c2_75, %c2_76, %c0_77, %c0_78] : memref<3x3x128x4xbf16, #tpu.memory_space<vmem>>, vector<1x1x128x4xbf16>
    %110 = vector.shape_cast %109 : vector<1x1x128x4xbf16> to vector<128x4xbf16>
    %cst_79 = arith.constant dense<0.000000e+00> : vector<128x4xf32>
    %111 = tpu.matmul %108, %110, %cst_79 {dimension_numbers = #tpu.dot_dimension_numbers<[1], [0], [0], [1], [0, 0, 1, 1], [], []>} : vector<128x128xbf16>, vector<128x4xbf16>, vector<128x4xf32> -> vector<128x4xf32>
    %112 = arith.addf %106, %111 : vector<128x4xf32>
    %c0_80 = arith.constant 0 : index
    %c0_81 = arith.constant 0 : index
    %113 = vector.load %arg8[%c0_80, %c0_81] : memref<1x4xf32, #tpu.memory_space<vmem>>, vector<1x4xf32>
    %114 = vector.broadcast %113 : vector<1x4xf32> to vector<128x4xf32>
    %115 = arith.addf %112, %114 : vector<128x4xf32>
    %cst_82 = arith.constant 0.000000e+00 : f32
    %116 = vector.broadcast %cst_82 : f32 to vector<128x4xf32>
    %117 = arith.maximumf %115, %116 : vector<128x4xf32>
    %118 = vector.shape_cast %117 : vector<128x4xf32> to vector<8x16x4xf32>
    %119 = arith.addf %118, %1 : vector<8x16x4xf32>
    %c0_83 = arith.constant 0 : index
    %c0_84 = arith.constant 0 : index
    %c0_85 = arith.constant 0 : index
    %c0_86 = arith.constant 0 : index
    %120 = vector.load %arg9[%c0_83, %c0_84, %c0_85, %c0_86] : memref<1x8x16x4xf32, #tpu.memory_space<vmem>>, vector<1x8x16x4xf32>
    %121 = vector.shape_cast %120 : vector<1x8x16x4xf32> to vector<8x16x4xf32>
    %122 = vector.shape_cast %119 : vector<8x16x4xf32> to vector<1x8x16x4xf32>
    tpu.vector_store %arg9[%c0_83, %c0_84, %c0_85, %c0_86], %122 {strides = array<i32>} : memref<1x8x16x4xf32, #tpu.memory_space<vmem>>, vector<1x8x16x4xf32>,
    return
  }
  func.func @transform_0(%arg0: i32, %arg1: i32) -> (i32, i32, i32, i32) {
    %c0_i32 = arith.constant 0 : i32
    %c0_i32_0 = arith.constant 0 : i32
    %c0_i32_1 = arith.constant 0 : i32
    return %arg0, %arg1, %c0_i32, %c0_i32_0 : i32, i32, i32, i32
  }
  func.func @transform_1(%arg0: i32, %arg1: i32) -> (i32, i32, i32, i32) {
    %c8_i32 = arith.constant 8 : i32
    %0 = arith.muli %arg1, %c8_i32 : i32
    %c1_i32 = arith.constant 1 : i32
    %1 = arith.subi %0, %c1_i32 : i32
    %c0_i32 = arith.constant 0 : i32
    %2 = arith.maxsi %1, %c0_i32 : i32
    %c0_i32_0 = arith.constant 0 : i32
    %c0_i32_1 = arith.constant 0 : i32
    %c0_i32_2 = arith.constant 0 : i32
    return %arg0, %2, %c0_i32_0, %c0_i32_1 : i32, i32, i32, i32
  }
  func.func @transform_2(%arg0: i32, %arg1: i32) -> (i32, i32, i32, i32) {
    %c1_i32 = arith.constant 1 : i32
    %0 = arith.addi %arg1, %c1_i32 : i32
    %c8_i32 = arith.constant 8 : i32
    %1 = arith.muli %0, %c8_i32 : i32
    %c15_i32 = arith.constant 15 : i32
    %2 = arith.minsi %1, %c15_i32 : i32
    %c0_i32 = arith.constant 0 : i32
    %c0_i32_0 = arith.constant 0 : i32
    %c0_i32_1 = arith.constant 0 : i32
    return %arg0, %2, %c0_i32, %c0_i32_0 : i32, i32, i32, i32
  }
  func.func @transform_3(%arg0: i32, %arg1: i32) -> (i32, i32) {
    %c0_i32 = arith.constant 0 : i32
    %c0_i32_0 = arith.constant 0 : i32
    %c0_i32_1 = arith.constant 0 : i32
    return %c0_i32, %c0_i32_0 : i32, i32
  }
  func.func @transform_4(%arg0: i32, %arg1: i32) -> (i32, i32) {
    %c0_i32 = arith.constant 0 : i32
    %c0_i32_0 = arith.constant 0 : i32
    %c0_i32_1 = arith.constant 0 : i32
    return %c0_i32, %c0_i32_0 : i32, i32
  }
  func.func @transform_5(%arg0: i32, %arg1: i32) -> (i32, i32, i32, i32) {
    %c0_i32 = arith.constant 0 : i32
    %c0_i32_0 = arith.constant 0 : i32
    %c0_i32_1 = arith.constant 0 : i32
    %c0_i32_2 = arith.constant 0 : i32
    %c0_i32_3 = arith.constant 0 : i32
    return %c0_i32, %c0_i32_0, %c0_i32_1, %c0_i32_2 : i32, i32, i32, i32
  }
  func.func @transform_6(%arg0: i32, %arg1: i32) -> (i32, i32) {
    %c0_i32 = arith.constant 0 : i32
    %c0_i32_0 = arith.constant 0 : i32
    %c0_i32_1 = arith.constant 0 : i32
    return %c0_i32, %c0_i32_0 : i32, i32
  }
  func.func @transform_7(%arg0: i32, %arg1: i32) -> (i32, i32, i32, i32) {
    %c0_i32 = arith.constant 0 : i32
    %c0_i32_0 = arith.constant 0 : i32
    %c0_i32_1 = arith.constant 0 : i32
    return %arg0, %arg1, %c0_i32, %c0_i32_0 : i32, i32, i32, i32
  }
}

module attributes {stable_mosaic.version = 11 : i64} {
  func.func @_residual_kernel(%arg0: i32, %arg1: i32, %arg2: memref<1x8x16x4xf32, #tpu.memory_space<vmem>>, %arg3: memref<1x1x16x4xf32, #tpu.memory_space<vmem>>, %arg4: memref<1x1x16x4xf32, #tpu.memory_space<vmem>>, %arg5: memref<4x128xbf16, #tpu.memory_space<vmem>>, %arg6: memref<1x128xf32, #tpu.memory_space<vmem>>, %arg7: memref<3x3x128x4xbf16, #tpu.memory_space<vmem>>, %arg8: memref<1x4xf32, #tpu.memory_space<vmem>>, %arg9: memref<1x8x16x4xf32, #tpu.memory_space<vmem>>, %arg10: memref<10x16x128xbf16, #tpu.memory_space<vmem>>) attributes {dimension_semantics = [#tpu.dimension_semantics<parallel>, #tpu.dimension_semantics<parallel>], iteration_bounds = array<i64: 2, 2>, scalar_prefetch = 0 : i64, scratch_operands = 1 : i64, tpu.core_type = #tpu.core_type<tc>, window_params = [{transform_indices = @transform_0, window_bounds = array<i64: 1, 8, 16, 4>}, {transform_indices = @transform_1, window_bounds = array<i64: 1, 1, 16, 4>}, {transform_indices = @transform_2, window_bounds = array<i64: 1, 1, 16, 4>}, {pipeline_mode = #tpu.pipeline_mode<synchronous>, transform_indices = @transform_3, window_bounds = array<i64: 4, 128>}, {pipeline_mode = #tpu.pipeline_mode<synchronous>, transform_indices = @transform_4, window_bounds = array<i64: 1, 128>}, {pipeline_mode = #tpu.pipeline_mode<synchronous>, transform_indices = @transform_5, window_bounds = array<i64: 3, 3, 128, 4>}, {pipeline_mode = #tpu.pipeline_mode<synchronous>, transform_indices = @transform_6, window_bounds = array<i64: 1, 4>}, {transform_indices = @transform_7, window_bounds = array<i64: 1, 8, 16, 4>}]} {
    %c0 = arith.constant 0 : index
    %c0_0 = arith.constant 0 : index
    %c0_1 = arith.constant 0 : index
    %c0_2 = arith.constant 0 : index
    %0 = vector.load %arg2[%c0, %c0_0, %c0_1, %c0_2] : memref<1x8x16x4xf32, #tpu.memory_space<vmem>>, vector<1x8x16x4xf32>
    %1 = vector.shape_cast %0 : vector<1x8x16x4xf32> to vector<8x16x4xf32>
    %c0_3 = arith.constant 0 : index
    %c0_4 = arith.constant 0 : index
    %2 = vector.load %arg5[%c0_3, %c0_4] : memref<4x128xbf16, #tpu.memory_space<vmem>>, vector<4x128xbf16>
    %c0_5 = arith.constant 0 : index
    %c0_6 = arith.constant 0 : index
    %3 = vector.load %arg6[%c0_5, %c0_6] : memref<1x128xf32, #tpu.memory_space<vmem>>, vector<1x128xf32>
    %4 = vector.shape_cast %1 : vector<8x16x4xf32> to vector<128x4xf32>
    %5 = arith.truncf %4 : vector<128x4xf32> to vector<128x4xbf16>
    %cst = arith.constant dense<0.000000e+00> : vector<128x128xf32>
    %6 = tpu.matmul %5, %2, %cst {dimension_numbers = #tpu.dot_dimension_numbers<[1], [0], [0], [1], [0, 0, 1, 1], [], []>} : vector<128x4xbf16>, vector<4x128xbf16>, vector<128x128xf32> -> vector<128x128xf32>
    %7 = vector.broadcast %3 : vector<1x128xf32> to vector<128x128xf32>
    %8 = arith.addf %6, %7 : vector<128x128xf32>
    %cst_7 = arith.constant 0.000000e+00 : f32
    %9 = vector.broadcast %cst_7 : f32 to vector<128x128xf32>
    %10 = arith.maximumf %8, %9 : vector<128x128xf32>
    %11 = vector.shape_cast %10 : vector<128x128xf32> to vector<8x16x128xf32>
    %12 = arith.truncf %11 : vector<8x16x128xf32> to vector<8x16x128xbf16>
    %c1 = arith.constant 1 : index
    %c0_8 = arith.constant 0 : index
    %c0_9 = arith.constant 0 : index
    %13 = vector.load %arg10[%c1, %c0_8, %c0_9] : memref<10x16x128xbf16, #tpu.memory_space<vmem>>, vector<8x16x128xbf16>
    tpu.vector_store %arg10[%c1, %c0_8, %c0_9], %12 {strides = array<i32>} : memref<10x16x128xbf16, #tpu.memory_space<vmem>>, vector<8x16x128xbf16>,
    %c0_10 = arith.constant 0 : index
    %c0_11 = arith.constant 0 : index
    %c0_12 = arith.constant 0 : index
    %c0_13 = arith.constant 0 : index
    %14 = vector.load %arg3[%c0_10, %c0_11, %c0_12, %c0_13] : memref<1x1x16x4xf32, #tpu.memory_space<vmem>>, vector<1x1x16x4xf32>
    %15 = vector.shape_cast %14 : vector<1x1x16x4xf32> to vector<16x4xf32>
    %16 = arith.truncf %15 : vector<16x4xf32> to vector<16x4xbf16>
    %cst_14 = arith.constant dense<0.000000e+00> : vector<16x128xf32>
    %17 = tpu.matmul %16, %2, %cst_14 {dimension_numbers = #tpu.dot_dimension_numbers<[1], [0], [0], [1], [0, 0, 1, 1], [], []>} : vector<16x4xbf16>, vector<4x128xbf16>, vector<16x128xf32> -> vector<16x128xf32>
    %c0_i32 = arith.constant 0 : i32
    %18 = arith.cmpi sgt, %arg1, %c0_i32 : i32
    %19 = vector.broadcast %3 : vector<1x128xf32> to vector<16x128xf32>
    %20 = arith.addf %17, %19 : vector<16x128xf32>
    %cst_15 = arith.constant 0.000000e+00 : f32
    %21 = vector.broadcast %cst_15 : f32 to vector<16x128xf32>
    %22 = arith.maximumf %20, %21 : vector<16x128xf32>
    %cst_16 = arith.constant 0.000000e+00 : f32
    %23 = vector.broadcast %cst_16 : f32 to vector<16x128xf32>
    %24 = arith.select %18, %22, %23 : vector<16x128xf32>
    %25 = arith.truncf %24 : vector<16x128xf32> to vector<16x128xbf16>
    %c0_17 = arith.constant 0 : index
    %c0_18 = arith.constant 0 : index
    %c0_19 = arith.constant 0 : index
    %26 = vector.load %arg10[%c0_17, %c0_18, %c0_19] : memref<10x16x128xbf16, #tpu.memory_space<vmem>>, vector<1x16x128xbf16>
    %27 = vector.shape_cast %26 : vector<1x16x128xbf16> to vector<16x128xbf16>
    %28 = vector.shape_cast %25 : vector<16x128xbf16> to vector<1x16x128xbf16>
    tpu.vector_store %arg10[%c0_17, %c0_18, %c0_19], %28 {strides = array<i32>} : memref<10x16x128xbf16, #tpu.memory_space<vmem>>, vector<1x16x128xbf16>,
    %c0_20 = arith.constant 0 : index
    %c0_21 = arith.constant 0 : index
    %c0_22 = arith.constant 0 : index
    %c0_23 = arith.constant 0 : index
    %29 = vector.load %arg4[%c0_20, %c0_21, %c0_22, %c0_23] : memref<1x1x16x4xf32, #tpu.memory_space<vmem>>, vector<1x1x16x4xf32>
    %30 = vector.shape_cast %29 : vector<1x1x16x4xf32> to vector<16x4xf32>
    %31 = arith.truncf %30 : vector<16x4xf32> to vector<16x4xbf16>
    %cst_24 = arith.constant dense<0.000000e+00> : vector<16x128xf32>
    %32 = tpu.matmul %31, %2, %cst_24 {dimension_numbers = #tpu.dot_dimension_numbers<[1], [0], [0], [1], [0, 0, 1, 1], [], []>} : vector<16x4xbf16>, vector<4x128xbf16>, vector<16x128xf32> -> vector<16x128xf32>
    %c1_i32 = arith.constant 1 : i32
    %33 = arith.cmpi slt, %arg1, %c1_i32 : i32
    %34 = vector.broadcast %3 : vector<1x128xf32> to vector<16x128xf32>
    %35 = arith.addf %32, %34 : vector<16x128xf32>
    %cst_25 = arith.constant 0.000000e+00 : f32
    %36 = vector.broadcast %cst_25 : f32 to vector<16x128xf32>
    %37 = arith.maximumf %35, %36 : vector<16x128xf32>
    %cst_26 = arith.constant 0.000000e+00 : f32
    %38 = vector.broadcast %cst_26 : f32 to vector<16x128xf32>
    %39 = arith.select %33, %37, %38 : vector<16x128xf32>
    %40 = arith.truncf %39 : vector<16x128xf32> to vector<16x128xbf16>
    %c9 = arith.constant 9 : index
    %c0_27 = arith.constant 0 : index
    %c0_28 = arith.constant 0 : index
    %41 = vector.load %arg10[%c9, %c0_27, %c0_28] : memref<10x16x128xbf16, #tpu.memory_space<vmem>>, vector<1x16x128xbf16>
    %42 = vector.shape_cast %41 : vector<1x16x128xbf16> to vector<16x128xbf16>
    %43 = vector.shape_cast %40 : vector<16x128xbf16> to vector<1x16x128xbf16>
    tpu.vector_store %arg10[%c9, %c0_27, %c0_28], %43 {strides = array<i32>} : memref<10x16x128xbf16, #tpu.memory_space<vmem>>, vector<1x16x128xbf16>,
    %c0_29 = arith.constant 0 : index
    %c0_30 = arith.constant 0 : index
    %c0_31 = arith.constant 0 : index
    %44 = vector.load %arg10[%c0_29, %c0_30, %c0_31] : memref<10x16x128xbf16, #tpu.memory_space<vmem>>, vector<10x16x128xbf16>
    %45 = tpu.iota {dimensions = array<i32: 1>} : vector<10x16x1xi32>
    %c1_i32_32 = arith.constant 1 : i32
    %46 = vector.broadcast %c1_i32_32 : i32 to vector<10x16x1xi32>
    %47 = arith.cmpi sge, %45, %46 : vector<10x16x1xi32>
    %c1_i32_33 = arith.constant 1 : i32
    %48 = tpu.dynamic_rotate %44 by %c1_i32_33 dim 1 : vector<10x16x128xbf16>, i32 -> vector<10x16x128xbf16>
    %cst_34 = arith.constant 0.000000e+00 : bf16
    %49 = vector.shape_cast %47 : vector<10x16x1xi1> to vector<10x16x1xi1>
    %50 = vector.broadcast %49 : vector<10x16x1xi1> to vector<10x16x128xi1>
    %51 = vector.broadcast %cst_34 : bf16 to vector<10x16x128xbf16>
    %52 = arith.select %50, %48, %51 : vector<10x16x128xi1>, vector<10x16x128xbf16>
    %c14_i32 = arith.constant 14 : i32
    %53 = vector.broadcast %c14_i32 : i32 to vector<10x16x1xi32>
    %54 = arith.cmpi sle, %45, %53 : vector<10x16x1xi32>
    %c15_i32 = arith.constant 15 : i32
    %55 = tpu.dynamic_rotate %44 by %c15_i32 dim 1 : vector<10x16x128xbf16>, i32 -> vector<10x16x128xbf16>
    %cst_35 = arith.constant 0.000000e+00 : bf16
    %56 = vector.shape_cast %54 : vector<10x16x1xi1> to vector<10x16x1xi1>
    %57 = vector.broadcast %56 : vector<10x16x1xi1> to vector<10x16x128xi1>
    %58 = vector.broadcast %cst_35 : bf16 to vector<10x16x128xbf16>
    %59 = arith.select %57, %55, %58 : vector<10x16x128xi1>, vector<10x16x128xbf16>
    %60 = vector.extract_strided_slice %52 {offsets = [0, 0, 0], sizes = [8, 16, 128], strides = [1, 1, 1]} : vector<10x16x128xbf16> to vector<8x16x128xbf16>
    %61 = vector.shape_cast %60 : vector<8x16x128xbf16> to vector<128x128xbf16>
    %c0_36 = arith.constant 0 : index
    %c0_37 = arith.constant 0 : index
    %c0_38 = arith.constant 0 : index
    %c0_39 = arith.constant 0 : index
    %62 = vector.load %arg7[%c0_36, %c0_37, %c0_38, %c0_39] : memref<3x3x128x4xbf16, #tpu.memory_space<vmem>>, vector<1x1x128x4xbf16>
    %63 = vector.shape_cast %62 : vector<1x1x128x4xbf16> to vector<128x4xbf16>
    %cst_40 = arith.constant dense<0.000000e+00> : vector<128x4xf32>
    %64 = tpu.matmul %61, %63, %cst_40 {dimension_numbers = #tpu.dot_dimension_numbers<[1], [0], [0], [1], [0, 0, 1, 1], [], []>} : vector<128x128xbf16>, vector<128x4xbf16>, vector<128x4xf32> -> vector<128x4xf32>
    %65 = vector.extract_strided_slice %44 {offsets = [0, 0, 0], sizes = [8, 16, 128], strides = [1, 1, 1]} : vector<10x16x128xbf16> to vector<8x16x128xbf16>
    %66 = vector.shape_cast %65 : vector<8x16x128xbf16> to vector<128x128xbf16>
    %c0_41 = arith.constant 0 : index
    %c1_42 = arith.constant 1 : index
    %c0_43 = arith.constant 0 : index
    %c0_44 = arith.constant 0 : index
    %67 = vector.load %arg7[%c0_41, %c1_42, %c0_43, %c0_44] : memref<3x3x128x4xbf16, #tpu.memory_space<vmem>>, vector<1x1x128x4xbf16>
    %68 = vector.shape_cast %67 : vector<1x1x128x4xbf16> to vector<128x4xbf16>
    %cst_45 = arith.constant dense<0.000000e+00> : vector<128x4xf32>
    %69 = tpu.matmul %66, %68, %cst_45 {dimension_numbers = #tpu.dot_dimension_numbers<[1], [0], [0], [1], [0, 0, 1, 1], [], []>} : vector<128x128xbf16>, vector<128x4xbf16>, vector<128x4xf32> -> vector<128x4xf32>
    %70 = arith.addf %64, %69 : vector<128x4xf32>
    %71 = vector.extract_strided_slice %59 {offsets = [0, 0, 0], sizes = [8, 16, 128], strides = [1, 1, 1]} : vector<10x16x128xbf16> to vector<8x16x128xbf16>
    %72 = vector.shape_cast %71 : vector<8x16x128xbf16> to vector<128x128xbf16>
    %c0_46 = arith.constant 0 : index
    %c2 = arith.constant 2 : index
    %c0_47 = arith.constant 0 : index
    %c0_48 = arith.constant 0 : index
    %73 = vector.load %arg7[%c0_46, %c2, %c0_47, %c0_48] : memref<3x3x128x4xbf16, #tpu.memory_space<vmem>>, vector<1x1x128x4xbf16>
    %74 = vector.shape_cast %73 : vector<1x1x128x4xbf16> to vector<128x4xbf16>
    %cst_49 = arith.constant dense<0.000000e+00> : vector<128x4xf32>
    %75 = tpu.matmul %72, %74, %cst_49 {dimension_numbers = #tpu.dot_dimension_numbers<[1], [0], [0], [1], [0, 0, 1, 1], [], []>} : vector<128x128xbf16>, vector<128x4xbf16>, vector<128x4xf32> -> vector<128x4xf32>
    %76 = arith.addf %70, %75 : vector<128x4xf32>
    %77 = vector.extract_strided_slice %52 {offsets = [1, 0, 0], sizes = [8, 16, 128], strides = [1, 1, 1]} : vector<10x16x128xbf16> to vector<8x16x128xbf16>
    %78 = vector.shape_cast %77 : vector<8x16x128xbf16> to vector<128x128xbf16>
    %c1_50 = arith.constant 1 : index
    %c0_51 = arith.constant 0 : index
    %c0_52 = arith.constant 0 : index
    %c0_53 = arith.constant 0 : index
    %79 = vector.load %arg7[%c1_50, %c0_51, %c0_52, %c0_53] : memref<3x3x128x4xbf16, #tpu.memory_space<vmem>>, vector<1x1x128x4xbf16>
    %80 = vector.shape_cast %79 : vector<1x1x128x4xbf16> to vector<128x4xbf16>
    %cst_54 = arith.constant dense<0.000000e+00> : vector<128x4xf32>
    %81 = tpu.matmul %78, %80, %cst_54 {dimension_numbers = #tpu.dot_dimension_numbers<[1], [0], [0], [1], [0, 0, 1, 1], [], []>} : vector<128x128xbf16>, vector<128x4xbf16>, vector<128x4xf32> -> vector<128x4xf32>
    %82 = arith.addf %76, %81 : vector<128x4xf32>
    %83 = vector.extract_strided_slice %44 {offsets = [1, 0, 0], sizes = [8, 16, 128], strides = [1, 1, 1]} : vector<10x16x128xbf16> to vector<8x16x128xbf16>
    %84 = vector.shape_cast %83 : vector<8x16x128xbf16> to vector<128x128xbf16>
    %c1_55 = arith.constant 1 : index
    %c1_56 = arith.constant 1 : index
    %c0_57 = arith.constant 0 : index
    %c0_58 = arith.constant 0 : index
    %85 = vector.load %arg7[%c1_55, %c1_56, %c0_57, %c0_58] : memref<3x3x128x4xbf16, #tpu.memory_space<vmem>>, vector<1x1x128x4xbf16>
    %86 = vector.shape_cast %85 : vector<1x1x128x4xbf16> to vector<128x4xbf16>
    %cst_59 = arith.constant dense<0.000000e+00> : vector<128x4xf32>
    %87 = tpu.matmul %84, %86, %cst_59 {dimension_numbers = #tpu.dot_dimension_numbers<[1], [0], [0], [1], [0, 0, 1, 1], [], []>} : vector<128x128xbf16>, vector<128x4xbf16>, vector<128x4xf32> -> vector<128x4xf32>
    %88 = arith.addf %82, %87 : vector<128x4xf32>
    %89 = vector.extract_strided_slice %59 {offsets = [1, 0, 0], sizes = [8, 16, 128], strides = [1, 1, 1]} : vector<10x16x128xbf16> to vector<8x16x128xbf16>
    %90 = vector.shape_cast %89 : vector<8x16x128xbf16> to vector<128x128xbf16>
    %c1_60 = arith.constant 1 : index
    %c2_61 = arith.constant 2 : index
    %c0_62 = arith.constant 0 : index
    %c0_63 = arith.constant 0 : index
    %91 = vector.load %arg7[%c1_60, %c2_61, %c0_62, %c0_63] : memref<3x3x128x4xbf16, #tpu.memory_space<vmem>>, vector<1x1x128x4xbf16>
    %92 = vector.shape_cast %91 : vector<1x1x128x4xbf16> to vector<128x4xbf16>
    %cst_64 = arith.constant dense<0.000000e+00> : vector<128x4xf32>
    %93 = tpu.matmul %90, %92, %cst_64 {dimension_numbers = #tpu.dot_dimension_numbers<[1], [0], [0], [1], [0, 0, 1, 1], [], []>} : vector<128x128xbf16>, vector<128x4xbf16>, vector<128x4xf32> -> vector<128x4xf32>
    %94 = arith.addf %88, %93 : vector<128x4xf32>
    %95 = vector.extract_strided_slice %52 {offsets = [2, 0, 0], sizes = [8, 16, 128], strides = [1, 1, 1]} : vector<10x16x128xbf16> to vector<8x16x128xbf16>
    %96 = vector.shape_cast %95 : vector<8x16x128xbf16> to vector<128x128xbf16>
    %c2_65 = arith.constant 2 : index
    %c0_66 = arith.constant 0 : index
    %c0_67 = arith.constant 0 : index
    %c0_68 = arith.constant 0 : index
    %97 = vector.load %arg7[%c2_65, %c0_66, %c0_67, %c0_68] : memref<3x3x128x4xbf16, #tpu.memory_space<vmem>>, vector<1x1x128x4xbf16>
    %98 = vector.shape_cast %97 : vector<1x1x128x4xbf16> to vector<128x4xbf16>
    %cst_69 = arith.constant dense<0.000000e+00> : vector<128x4xf32>
    %99 = tpu.matmul %96, %98, %cst_69 {dimension_numbers = #tpu.dot_dimension_numbers<[1], [0], [0], [1], [0, 0, 1, 1], [], []>} : vector<128x128xbf16>, vector<128x4xbf16>, vector<128x4xf32> -> vector<128x4xf32>
    %100 = arith.addf %94, %99 : vector<128x4xf32>
    %101 = vector.extract_strided_slice %44 {offsets = [2, 0, 0], sizes = [8, 16, 128], strides = [1, 1, 1]} : vector<10x16x128xbf16> to vector<8x16x128xbf16>
    %102 = vector.shape_cast %101 : vector<8x16x128xbf16> to vector<128x128xbf16>
    %c2_70 = arith.constant 2 : index
    %c1_71 = arith.constant 1 : index
    %c0_72 = arith.constant 0 : index
    %c0_73 = arith.constant 0 : index
    %103 = vector.load %arg7[%c2_70, %c1_71, %c0_72, %c0_73] : memref<3x3x128x4xbf16, #tpu.memory_space<vmem>>, vector<1x1x128x4xbf16>
    %104 = vector.shape_cast %103 : vector<1x1x128x4xbf16> to vector<128x4xbf16>
    %cst_74 = arith.constant dense<0.000000e+00> : vector<128x4xf32>
    %105 = tpu.matmul %102, %104, %cst_74 {dimension_numbers = #tpu.dot_dimension_numbers<[1], [0], [0], [1], [0, 0, 1, 1], [], []>} : vector<128x128xbf16>, vector<128x4xbf16>, vector<128x4xf32> -> vector<128x4xf32>
    %106 = arith.addf %100, %105 : vector<128x4xf32>
    %107 = vector.extract_strided_slice %59 {offsets = [2, 0, 0], sizes = [8, 16, 128], strides = [1, 1, 1]} : vector<10x16x128xbf16> to vector<8x16x128xbf16>
    %108 = vector.shape_cast %107 : vector<8x16x128xbf16> to vector<128x128xbf16>
    %c2_75 = arith.constant 2 : index
    %c2_76 = arith.constant 2 : index
    %c0_77 = arith.constant 0 : index
    %c0_78 = arith.constant 0 : index
    %109 = vector.load %arg7[%c2_75, %c2_76, %c0_77, %c0_78] : memref<3x3x128x4xbf16, #tpu.memory_space<vmem>>, vector<1x1x128x4xbf16>
    %110 = vector.shape_cast %109 : vector<1x1x128x4xbf16> to vector<128x4xbf16>
    %cst_79 = arith.constant dense<0.000000e+00> : vector<128x4xf32>
    %111 = tpu.matmul %108, %110, %cst_79 {dimension_numbers = #tpu.dot_dimension_numbers<[1], [0], [0], [1], [0, 0, 1, 1], [], []>} : vector<128x128xbf16>, vector<128x4xbf16>, vector<128x4xf32> -> vector<128x4xf32>
    %112 = arith.addf %106, %111 : vector<128x4xf32>
    %c0_80 = arith.constant 0 : index
    %c0_81 = arith.constant 0 : index
    %113 = vector.load %arg8[%c0_80, %c0_81] : memref<1x4xf32, #tpu.memory_space<vmem>>, vector<1x4xf32>
    %114 = vector.broadcast %113 : vector<1x4xf32> to vector<128x4xf32>
    %115 = arith.addf %112, %114 : vector<128x4xf32>
    %cst_82 = arith.constant 0.000000e+00 : f32
    %116 = vector.broadcast %cst_82 : f32 to vector<128x4xf32>
    %117 = arith.maximumf %115, %116 : vector<128x4xf32>
    %118 = vector.shape_cast %117 : vector<128x4xf32> to vector<8x16x4xf32>
    %119 = arith.addf %118, %1 : vector<8x16x4xf32>
    %c0_83 = arith.constant 0 : index
    %c0_84 = arith.constant 0 : index
    %c0_85 = arith.constant 0 : index
    %c0_86 = arith.constant 0 : index
    %120 = vector.load %arg9[%c0_83, %c0_84, %c0_85, %c0_86] : memref<1x8x16x4xf32, #tpu.memory_space<vmem>>, vector<1x8x16x4xf32>
    %121 = vector.shape_cast %120 : vector<1x8x16x4xf32> to vector<8x16x4xf32>
    %122 = vector.shape_cast %119 : vector<8x16x4xf32> to vector<1x8x16x4xf32>
    tpu.vector_store %arg9[%c0_83, %c0_84, %c0_85, %c0_86], %122 {strides = array<i32>} : memref<1x8x16x4xf32, #tpu.memory_space<vmem>>, vector<1x8x16x4xf32>,
    return
  }
  func.func @transform_0(%arg0: i32, %arg1: i32) -> (i32, i32, i32, i32) {
    %c0_i32 = arith.constant 0 : i32
    %c0_i32_0 = arith.constant 0 : i32
    %c0_i32_1 = arith.constant 0 : i32
    return %arg0, %arg1, %c0_i32, %c0_i32_0 : i32, i32, i32, i32
  }
  func.func @transform_1(%arg0: i32, %arg1: i32) -> (i32, i32, i32, i32) {
    %c8_i32 = arith.constant 8 : i32
    %0 = arith.muli %arg1, %c8_i32 : i32
    %c1_i32 = arith.constant 1 : i32
    %1 = arith.subi %0, %c1_i32 : i32
    %c0_i32 = arith.constant 0 : i32
    %2 = arith.maxsi %1, %c0_i32 : i32
    %c0_i32_0 = arith.constant 0 : i32
    %c0_i32_1 = arith.constant 0 : i32
    %c0_i32_2 = arith.constant 0 : i32
    return %arg0, %2, %c0_i32_0, %c0_i32_1 : i32, i32, i32, i32
  }
  func.func @transform_2(%arg0: i32, %arg1: i32) -> (i32, i32, i32, i32) {
    %c1_i32 = arith.constant 1 : i32
    %0 = arith.addi %arg1, %c1_i32 : i32
    %c8_i32 = arith.constant 8 : i32
    %1 = arith.muli %0, %c8_i32 : i32
    %c15_i32 = arith.constant 15 : i32
    %2 = arith.minsi %1, %c15_i32 : i32
    %c0_i32 = arith.constant 0 : i32
    %c0_i32_0 = arith.constant 0 : i32
    %c0_i32_1 = arith.constant 0 : i32
    return %arg0, %2, %c0_i32, %c0_i32_0 : i32, i32, i32, i32
  }
  func.func @transform_3(%arg0: i32, %arg1: i32) -> (i32, i32) {
    %c0_i32 = arith.constant 0 : i32
    %c0_i32_0 = arith.constant 0 : i32
    %c0_i32_1 = arith.constant 0 : i32
    return %c0_i32, %c0_i32_0 : i32, i32
  }
  func.func @transform_4(%arg0: i32, %arg1: i32) -> (i32, i32) {
    %c0_i32 = arith.constant 0 : i32
    %c0_i32_0 = arith.constant 0 : i32
    %c0_i32_1 = arith.constant 0 : i32
    return %c0_i32, %c0_i32_0 : i32, i32
  }
  func.func @transform_5(%arg0: i32, %arg1: i32) -> (i32, i32, i32, i32) {
    %c0_i32 = arith.constant 0 : i32
    %c0_i32_0 = arith.constant 0 : i32
    %c0_i32_1 = arith.constant 0 : i32
    %c0_i32_2 = arith.constant 0 : i32
    %c0_i32_3 = arith.constant 0 : i32
    return %c0_i32, %c0_i32_0, %c0_i32_1, %c0_i32_2 : i32, i32, i32, i32
  }
  func.func @transform_6(%arg0: i32, %arg1: i32) -> (i32, i32) {
    %c0_i32 = arith.constant 0 : i32
    %c0_i32_0 = arith.constant 0 : i32
    %c0_i32_1 = arith.constant 0 : i32
    return %c0_i32, %c0_i32_0 : i32, i32
  }
  func.func @transform_7(%arg0: i32, %arg1: i32) -> (i32, i32, i32, i32) {
    %c0_i32 = arith.constant 0 : i32
    %c0_i32_0 = arith.constant 0 : i32
    %c0_i32_1 = arith.constant 0 : i32
    return %arg0, %arg1, %c0_i32, %c0_i32_0 : i32, i32, i32, i32
  }
}

module attributes {stable_mosaic.version = 11 : i64} {
  func.func @_residual_kernel(%arg0: i32, %arg1: i32, %arg2: memref<1x8x16x4xf32, #tpu.memory_space<vmem>>, %arg3: memref<1x1x16x4xf32, #tpu.memory_space<vmem>>, %arg4: memref<1x1x16x4xf32, #tpu.memory_space<vmem>>, %arg5: memref<4x128xbf16, #tpu.memory_space<vmem>>, %arg6: memref<1x128xf32, #tpu.memory_space<vmem>>, %arg7: memref<3x3x128x4xbf16, #tpu.memory_space<vmem>>, %arg8: memref<1x4xf32, #tpu.memory_space<vmem>>, %arg9: memref<1x8x16x4xf32, #tpu.memory_space<vmem>>, %arg10: memref<10x16x128xbf16, #tpu.memory_space<vmem>>) attributes {dimension_semantics = [#tpu.dimension_semantics<parallel>, #tpu.dimension_semantics<parallel>], iteration_bounds = array<i64: 2, 2>, scalar_prefetch = 0 : i64, scratch_operands = 1 : i64, tpu.core_type = #tpu.core_type<tc>, window_params = [{transform_indices = @transform_0, window_bounds = array<i64: 1, 8, 16, 4>}, {transform_indices = @transform_1, window_bounds = array<i64: 1, 1, 16, 4>}, {transform_indices = @transform_2, window_bounds = array<i64: 1, 1, 16, 4>}, {pipeline_mode = #tpu.pipeline_mode<synchronous>, transform_indices = @transform_3, window_bounds = array<i64: 4, 128>}, {pipeline_mode = #tpu.pipeline_mode<synchronous>, transform_indices = @transform_4, window_bounds = array<i64: 1, 128>}, {pipeline_mode = #tpu.pipeline_mode<synchronous>, transform_indices = @transform_5, window_bounds = array<i64: 3, 3, 128, 4>}, {pipeline_mode = #tpu.pipeline_mode<synchronous>, transform_indices = @transform_6, window_bounds = array<i64: 1, 4>}, {transform_indices = @transform_7, window_bounds = array<i64: 1, 8, 16, 4>}]} {
    %c0 = arith.constant 0 : index
    %c0_0 = arith.constant 0 : index
    %c0_1 = arith.constant 0 : index
    %c0_2 = arith.constant 0 : index
    %0 = vector.load %arg2[%c0, %c0_0, %c0_1, %c0_2] : memref<1x8x16x4xf32, #tpu.memory_space<vmem>>, vector<1x8x16x4xf32>
    %1 = vector.shape_cast %0 : vector<1x8x16x4xf32> to vector<8x16x4xf32>
    %c0_3 = arith.constant 0 : index
    %c0_4 = arith.constant 0 : index
    %2 = vector.load %arg5[%c0_3, %c0_4] : memref<4x128xbf16, #tpu.memory_space<vmem>>, vector<4x128xbf16>
    %c0_5 = arith.constant 0 : index
    %c0_6 = arith.constant 0 : index
    %3 = vector.load %arg6[%c0_5, %c0_6] : memref<1x128xf32, #tpu.memory_space<vmem>>, vector<1x128xf32>
    %4 = vector.shape_cast %1 : vector<8x16x4xf32> to vector<128x4xf32>
    %5 = arith.truncf %4 : vector<128x4xf32> to vector<128x4xbf16>
    %cst = arith.constant dense<0.000000e+00> : vector<128x128xf32>
    %6 = tpu.matmul %5, %2, %cst {dimension_numbers = #tpu.dot_dimension_numbers<[1], [0], [0], [1], [0, 0, 1, 1], [], []>} : vector<128x4xbf16>, vector<4x128xbf16>, vector<128x128xf32> -> vector<128x128xf32>
    %7 = vector.broadcast %3 : vector<1x128xf32> to vector<128x128xf32>
    %8 = arith.addf %6, %7 : vector<128x128xf32>
    %cst_7 = arith.constant 0.000000e+00 : f32
    %9 = vector.broadcast %cst_7 : f32 to vector<128x128xf32>
    %10 = arith.maximumf %8, %9 : vector<128x128xf32>
    %11 = vector.shape_cast %10 : vector<128x128xf32> to vector<8x16x128xf32>
    %12 = arith.truncf %11 : vector<8x16x128xf32> to vector<8x16x128xbf16>
    %c1 = arith.constant 1 : index
    %c0_8 = arith.constant 0 : index
    %c0_9 = arith.constant 0 : index
    %13 = vector.load %arg10[%c1, %c0_8, %c0_9] : memref<10x16x128xbf16, #tpu.memory_space<vmem>>, vector<8x16x128xbf16>
    tpu.vector_store %arg10[%c1, %c0_8, %c0_9], %12 {strides = array<i32>} : memref<10x16x128xbf16, #tpu.memory_space<vmem>>, vector<8x16x128xbf16>,
    %c0_10 = arith.constant 0 : index
    %c0_11 = arith.constant 0 : index
    %c0_12 = arith.constant 0 : index
    %c0_13 = arith.constant 0 : index
    %14 = vector.load %arg3[%c0_10, %c0_11, %c0_12, %c0_13] : memref<1x1x16x4xf32, #tpu.memory_space<vmem>>, vector<1x1x16x4xf32>
    %15 = vector.shape_cast %14 : vector<1x1x16x4xf32> to vector<16x4xf32>
    %16 = arith.truncf %15 : vector<16x4xf32> to vector<16x4xbf16>
    %cst_14 = arith.constant dense<0.000000e+00> : vector<16x128xf32>
    %17 = tpu.matmul %16, %2, %cst_14 {dimension_numbers = #tpu.dot_dimension_numbers<[1], [0], [0], [1], [0, 0, 1, 1], [], []>} : vector<16x4xbf16>, vector<4x128xbf16>, vector<16x128xf32> -> vector<16x128xf32>
    %c0_i32 = arith.constant 0 : i32
    %18 = arith.cmpi sgt, %arg1, %c0_i32 : i32
    %19 = vector.broadcast %3 : vector<1x128xf32> to vector<16x128xf32>
    %20 = arith.addf %17, %19 : vector<16x128xf32>
    %cst_15 = arith.constant 0.000000e+00 : f32
    %21 = vector.broadcast %cst_15 : f32 to vector<16x128xf32>
    %22 = arith.maximumf %20, %21 : vector<16x128xf32>
    %cst_16 = arith.constant 0.000000e+00 : f32
    %23 = vector.broadcast %cst_16 : f32 to vector<16x128xf32>
    %24 = arith.select %18, %22, %23 : vector<16x128xf32>
    %25 = arith.truncf %24 : vector<16x128xf32> to vector<16x128xbf16>
    %c0_17 = arith.constant 0 : index
    %c0_18 = arith.constant 0 : index
    %c0_19 = arith.constant 0 : index
    %26 = vector.load %arg10[%c0_17, %c0_18, %c0_19] : memref<10x16x128xbf16, #tpu.memory_space<vmem>>, vector<1x16x128xbf16>
    %27 = vector.shape_cast %26 : vector<1x16x128xbf16> to vector<16x128xbf16>
    %28 = vector.shape_cast %25 : vector<16x128xbf16> to vector<1x16x128xbf16>
    tpu.vector_store %arg10[%c0_17, %c0_18, %c0_19], %28 {strides = array<i32>} : memref<10x16x128xbf16, #tpu.memory_space<vmem>>, vector<1x16x128xbf16>,
    %c0_20 = arith.constant 0 : index
    %c0_21 = arith.constant 0 : index
    %c0_22 = arith.constant 0 : index
    %c0_23 = arith.constant 0 : index
    %29 = vector.load %arg4[%c0_20, %c0_21, %c0_22, %c0_23] : memref<1x1x16x4xf32, #tpu.memory_space<vmem>>, vector<1x1x16x4xf32>
    %30 = vector.shape_cast %29 : vector<1x1x16x4xf32> to vector<16x4xf32>
    %31 = arith.truncf %30 : vector<16x4xf32> to vector<16x4xbf16>
    %cst_24 = arith.constant dense<0.000000e+00> : vector<16x128xf32>
    %32 = tpu.matmul %31, %2, %cst_24 {dimension_numbers = #tpu.dot_dimension_numbers<[1], [0], [0], [1], [0, 0, 1, 1], [], []>} : vector<16x4xbf16>, vector<4x128xbf16>, vector<16x128xf32> -> vector<16x128xf32>
    %c1_i32 = arith.constant 1 : i32
    %33 = arith.cmpi slt, %arg1, %c1_i32 : i32
    %34 = vector.broadcast %3 : vector<1x128xf32> to vector<16x128xf32>
    %35 = arith.addf %32, %34 : vector<16x128xf32>
    %cst_25 = arith.constant 0.000000e+00 : f32
    %36 = vector.broadcast %cst_25 : f32 to vector<16x128xf32>
    %37 = arith.maximumf %35, %36 : vector<16x128xf32>
    %cst_26 = arith.constant 0.000000e+00 : f32
    %38 = vector.broadcast %cst_26 : f32 to vector<16x128xf32>
    %39 = arith.select %33, %37, %38 : vector<16x128xf32>
    %40 = arith.truncf %39 : vector<16x128xf32> to vector<16x128xbf16>
    %c9 = arith.constant 9 : index
    %c0_27 = arith.constant 0 : index
    %c0_28 = arith.constant 0 : index
    %41 = vector.load %arg10[%c9, %c0_27, %c0_28] : memref<10x16x128xbf16, #tpu.memory_space<vmem>>, vector<1x16x128xbf16>
    %42 = vector.shape_cast %41 : vector<1x16x128xbf16> to vector<16x128xbf16>
    %43 = vector.shape_cast %40 : vector<16x128xbf16> to vector<1x16x128xbf16>
    tpu.vector_store %arg10[%c9, %c0_27, %c0_28], %43 {strides = array<i32>} : memref<10x16x128xbf16, #tpu.memory_space<vmem>>, vector<1x16x128xbf16>,
    %c0_29 = arith.constant 0 : index
    %c0_30 = arith.constant 0 : index
    %c0_31 = arith.constant 0 : index
    %44 = vector.load %arg10[%c0_29, %c0_30, %c0_31] : memref<10x16x128xbf16, #tpu.memory_space<vmem>>, vector<10x16x128xbf16>
    %cst_32 = arith.constant 0.000000e+00 : bf16
    %45 = vector.broadcast %cst_32 : bf16 to vector<10x1x128xbf16>
    %46 = vector.extract_strided_slice %44 {offsets = [0, 0, 0], sizes = [10, 15, 128], strides = [1, 1, 1]} : vector<10x16x128xbf16> to vector<10x15x128xbf16>
    %47 = tpu.concatenate %45, %46 in 1 : vector<10x1x128xbf16>, vector<10x15x128xbf16> -> vector<10x16x128xbf16>
    %48 = vector.extract_strided_slice %44 {offsets = [0, 1, 0], sizes = [10, 15, 128], strides = [1, 1, 1]} : vector<10x16x128xbf16> to vector<10x15x128xbf16>
    %49 = tpu.concatenate %48, %45 in 1 : vector<10x15x128xbf16>, vector<10x1x128xbf16> -> vector<10x16x128xbf16>
    %50 = vector.extract_strided_slice %47 {offsets = [0, 0, 0], sizes = [8, 16, 128], strides = [1, 1, 1]} : vector<10x16x128xbf16> to vector<8x16x128xbf16>
    %51 = vector.shape_cast %50 : vector<8x16x128xbf16> to vector<128x128xbf16>
    %c0_33 = arith.constant 0 : index
    %c0_34 = arith.constant 0 : index
    %c0_35 = arith.constant 0 : index
    %c0_36 = arith.constant 0 : index
    %52 = vector.load %arg7[%c0_33, %c0_34, %c0_35, %c0_36] : memref<3x3x128x4xbf16, #tpu.memory_space<vmem>>, vector<1x1x128x4xbf16>
    %53 = vector.shape_cast %52 : vector<1x1x128x4xbf16> to vector<128x4xbf16>
    %cst_37 = arith.constant dense<0.000000e+00> : vector<128x4xf32>
    %54 = tpu.matmul %51, %53, %cst_37 {dimension_numbers = #tpu.dot_dimension_numbers<[1], [0], [0], [1], [0, 0, 1, 1], [], []>} : vector<128x128xbf16>, vector<128x4xbf16>, vector<128x4xf32> -> vector<128x4xf32>
    %55 = vector.extract_strided_slice %44 {offsets = [0, 0, 0], sizes = [8, 16, 128], strides = [1, 1, 1]} : vector<10x16x128xbf16> to vector<8x16x128xbf16>
    %56 = vector.shape_cast %55 : vector<8x16x128xbf16> to vector<128x128xbf16>
    %c0_38 = arith.constant 0 : index
    %c1_39 = arith.constant 1 : index
    %c0_40 = arith.constant 0 : index
    %c0_41 = arith.constant 0 : index
    %57 = vector.load %arg7[%c0_38, %c1_39, %c0_40, %c0_41] : memref<3x3x128x4xbf16, #tpu.memory_space<vmem>>, vector<1x1x128x4xbf16>
    %58 = vector.shape_cast %57 : vector<1x1x128x4xbf16> to vector<128x4xbf16>
    %cst_42 = arith.constant dense<0.000000e+00> : vector<128x4xf32>
    %59 = tpu.matmul %56, %58, %cst_42 {dimension_numbers = #tpu.dot_dimension_numbers<[1], [0], [0], [1], [0, 0, 1, 1], [], []>} : vector<128x128xbf16>, vector<128x4xbf16>, vector<128x4xf32> -> vector<128x4xf32>
    %60 = arith.addf %54, %59 : vector<128x4xf32>
    %61 = vector.extract_strided_slice %49 {offsets = [0, 0, 0], sizes = [8, 16, 128], strides = [1, 1, 1]} : vector<10x16x128xbf16> to vector<8x16x128xbf16>
    %62 = vector.shape_cast %61 : vector<8x16x128xbf16> to vector<128x128xbf16>
    %c0_43 = arith.constant 0 : index
    %c2 = arith.constant 2 : index
    %c0_44 = arith.constant 0 : index
    %c0_45 = arith.constant 0 : index
    %63 = vector.load %arg7[%c0_43, %c2, %c0_44, %c0_45] : memref<3x3x128x4xbf16, #tpu.memory_space<vmem>>, vector<1x1x128x4xbf16>
    %64 = vector.shape_cast %63 : vector<1x1x128x4xbf16> to vector<128x4xbf16>
    %cst_46 = arith.constant dense<0.000000e+00> : vector<128x4xf32>
    %65 = tpu.matmul %62, %64, %cst_46 {dimension_numbers = #tpu.dot_dimension_numbers<[1], [0], [0], [1], [0, 0, 1, 1], [], []>} : vector<128x128xbf16>, vector<128x4xbf16>, vector<128x4xf32> -> vector<128x4xf32>
    %66 = arith.addf %60, %65 : vector<128x4xf32>
    %67 = vector.extract_strided_slice %47 {offsets = [1, 0, 0], sizes = [8, 16, 128], strides = [1, 1, 1]} : vector<10x16x128xbf16> to vector<8x16x128xbf16>
    %68 = vector.shape_cast %67 : vector<8x16x128xbf16> to vector<128x128xbf16>
    %c1_47 = arith.constant 1 : index
    %c0_48 = arith.constant 0 : index
    %c0_49 = arith.constant 0 : index
    %c0_50 = arith.constant 0 : index
    %69 = vector.load %arg7[%c1_47, %c0_48, %c0_49, %c0_50] : memref<3x3x128x4xbf16, #tpu.memory_space<vmem>>, vector<1x1x128x4xbf16>
    %70 = vector.shape_cast %69 : vector<1x1x128x4xbf16> to vector<128x4xbf16>
    %cst_51 = arith.constant dense<0.000000e+00> : vector<128x4xf32>
    %71 = tpu.matmul %68, %70, %cst_51 {dimension_numbers = #tpu.dot_dimension_numbers<[1], [0], [0], [1], [0, 0, 1, 1], [], []>} : vector<128x128xbf16>, vector<128x4xbf16>, vector<128x4xf32> -> vector<128x4xf32>
    %72 = arith.addf %66, %71 : vector<128x4xf32>
    %73 = vector.extract_strided_slice %44 {offsets = [1, 0, 0], sizes = [8, 16, 128], strides = [1, 1, 1]} : vector<10x16x128xbf16> to vector<8x16x128xbf16>
    %74 = vector.shape_cast %73 : vector<8x16x128xbf16> to vector<128x128xbf16>
    %c1_52 = arith.constant 1 : index
    %c1_53 = arith.constant 1 : index
    %c0_54 = arith.constant 0 : index
    %c0_55 = arith.constant 0 : index
    %75 = vector.load %arg7[%c1_52, %c1_53, %c0_54, %c0_55] : memref<3x3x128x4xbf16, #tpu.memory_space<vmem>>, vector<1x1x128x4xbf16>
    %76 = vector.shape_cast %75 : vector<1x1x128x4xbf16> to vector<128x4xbf16>
    %cst_56 = arith.constant dense<0.000000e+00> : vector<128x4xf32>
    %77 = tpu.matmul %74, %76, %cst_56 {dimension_numbers = #tpu.dot_dimension_numbers<[1], [0], [0], [1], [0, 0, 1, 1], [], []>} : vector<128x128xbf16>, vector<128x4xbf16>, vector<128x4xf32> -> vector<128x4xf32>
    %78 = arith.addf %72, %77 : vector<128x4xf32>
    %79 = vector.extract_strided_slice %49 {offsets = [1, 0, 0], sizes = [8, 16, 128], strides = [1, 1, 1]} : vector<10x16x128xbf16> to vector<8x16x128xbf16>
    %80 = vector.shape_cast %79 : vector<8x16x128xbf16> to vector<128x128xbf16>
    %c1_57 = arith.constant 1 : index
    %c2_58 = arith.constant 2 : index
    %c0_59 = arith.constant 0 : index
    %c0_60 = arith.constant 0 : index
    %81 = vector.load %arg7[%c1_57, %c2_58, %c0_59, %c0_60] : memref<3x3x128x4xbf16, #tpu.memory_space<vmem>>, vector<1x1x128x4xbf16>
    %82 = vector.shape_cast %81 : vector<1x1x128x4xbf16> to vector<128x4xbf16>
    %cst_61 = arith.constant dense<0.000000e+00> : vector<128x4xf32>
    %83 = tpu.matmul %80, %82, %cst_61 {dimension_numbers = #tpu.dot_dimension_numbers<[1], [0], [0], [1], [0, 0, 1, 1], [], []>} : vector<128x128xbf16>, vector<128x4xbf16>, vector<128x4xf32> -> vector<128x4xf32>
    %84 = arith.addf %78, %83 : vector<128x4xf32>
    %85 = vector.extract_strided_slice %47 {offsets = [2, 0, 0], sizes = [8, 16, 128], strides = [1, 1, 1]} : vector<10x16x128xbf16> to vector<8x16x128xbf16>
    %86 = vector.shape_cast %85 : vector<8x16x128xbf16> to vector<128x128xbf16>
    %c2_62 = arith.constant 2 : index
    %c0_63 = arith.constant 0 : index
    %c0_64 = arith.constant 0 : index
    %c0_65 = arith.constant 0 : index
    %87 = vector.load %arg7[%c2_62, %c0_63, %c0_64, %c0_65] : memref<3x3x128x4xbf16, #tpu.memory_space<vmem>>, vector<1x1x128x4xbf16>
    %88 = vector.shape_cast %87 : vector<1x1x128x4xbf16> to vector<128x4xbf16>
    %cst_66 = arith.constant dense<0.000000e+00> : vector<128x4xf32>
    %89 = tpu.matmul %86, %88, %cst_66 {dimension_numbers = #tpu.dot_dimension_numbers<[1], [0], [0], [1], [0, 0, 1, 1], [], []>} : vector<128x128xbf16>, vector<128x4xbf16>, vector<128x4xf32> -> vector<128x4xf32>
    %90 = arith.addf %84, %89 : vector<128x4xf32>
    %91 = vector.extract_strided_slice %44 {offsets = [2, 0, 0], sizes = [8, 16, 128], strides = [1, 1, 1]} : vector<10x16x128xbf16> to vector<8x16x128xbf16>
    %92 = vector.shape_cast %91 : vector<8x16x128xbf16> to vector<128x128xbf16>
    %c2_67 = arith.constant 2 : index
    %c1_68 = arith.constant 1 : index
    %c0_69 = arith.constant 0 : index
    %c0_70 = arith.constant 0 : index
    %93 = vector.load %arg7[%c2_67, %c1_68, %c0_69, %c0_70] : memref<3x3x128x4xbf16, #tpu.memory_space<vmem>>, vector<1x1x128x4xbf16>
    %94 = vector.shape_cast %93 : vector<1x1x128x4xbf16> to vector<128x4xbf16>
    %cst_71 = arith.constant dense<0.000000e+00> : vector<128x4xf32>
    %95 = tpu.matmul %92, %94, %cst_71 {dimension_numbers = #tpu.dot_dimension_numbers<[1], [0], [0], [1], [0, 0, 1, 1], [], []>} : vector<128x128xbf16>, vector<128x4xbf16>, vector<128x4xf32> -> vector<128x4xf32>
    %96 = arith.addf %90, %95 : vector<128x4xf32>
    %97 = vector.extract_strided_slice %49 {offsets = [2, 0, 0], sizes = [8, 16, 128], strides = [1, 1, 1]} : vector<10x16x128xbf16> to vector<8x16x128xbf16>
    %98 = vector.shape_cast %97 : vector<8x16x128xbf16> to vector<128x128xbf16>
    %c2_72 = arith.constant 2 : index
    %c2_73 = arith.constant 2 : index
    %c0_74 = arith.constant 0 : index
    %c0_75 = arith.constant 0 : index
    %99 = vector.load %arg7[%c2_72, %c2_73, %c0_74, %c0_75] : memref<3x3x128x4xbf16, #tpu.memory_space<vmem>>, vector<1x1x128x4xbf16>
    %100 = vector.shape_cast %99 : vector<1x1x128x4xbf16> to vector<128x4xbf16>
    %cst_76 = arith.constant dense<0.000000e+00> : vector<128x4xf32>
    %101 = tpu.matmul %98, %100, %cst_76 {dimension_numbers = #tpu.dot_dimension_numbers<[1], [0], [0], [1], [0, 0, 1, 1], [], []>} : vector<128x128xbf16>, vector<128x4xbf16>, vector<128x4xf32> -> vector<128x4xf32>
    %102 = arith.addf %96, %101 : vector<128x4xf32>
    %c0_77 = arith.constant 0 : index
    %c0_78 = arith.constant 0 : index
    %103 = vector.load %arg8[%c0_77, %c0_78] : memref<1x4xf32, #tpu.memory_space<vmem>>, vector<1x4xf32>
    %104 = vector.broadcast %103 : vector<1x4xf32> to vector<128x4xf32>
    %105 = arith.addf %102, %104 : vector<128x4xf32>
    %cst_79 = arith.constant 0.000000e+00 : f32
    %106 = vector.broadcast %cst_79 : f32 to vector<128x4xf32>
    %107 = arith.maximumf %105, %106 : vector<128x4xf32>
    %108 = vector.shape_cast %107 : vector<128x4xf32> to vector<8x16x4xf32>
    %109 = arith.addf %108, %1 : vector<8x16x4xf32>
    %c0_80 = arith.constant 0 : index
    %c0_81 = arith.constant 0 : index
    %c0_82 = arith.constant 0 : index
    %c0_83 = arith.constant 0 : index
    %110 = vector.load %arg9[%c0_80, %c0_81, %c0_82, %c0_83] : memref<1x8x16x4xf32, #tpu.memory_space<vmem>>, vector<1x8x16x4xf32>
    %111 = vector.shape_cast %110 : vector<1x8x16x4xf32> to vector<8x16x4xf32>
    %112 = vector.shape_cast %109 : vector<8x16x4xf32> to vector<1x8x16x4xf32>
    tpu.vector_store %arg9[%c0_80, %c0_81, %c0_82, %c0_83], %112 {strides = array<i32>} : memref<1x8x16x4xf32, #tpu.memory_space<vmem>>, vector<1x8x16x4xf32>,
    return
  }
  func.func @transform_0(%arg0: i32, %arg1: i32) -> (i32, i32, i32, i32) {
    %c0_i32 = arith.constant 0 : i32
    %c0_i32_0 = arith.constant 0 : i32
    %c0_i32_1 = arith.constant 0 : i32
    return %arg0, %arg1, %c0_i32, %c0_i32_0 : i32, i32, i32, i32
  }
  func.func @transform_1(%arg0: i32, %arg1: i32) -> (i32, i32, i32, i32) {
    %c8_i32 = arith.constant 8 : i32
    %0 = arith.muli %arg1, %c8_i32 : i32
    %c1_i32 = arith.constant 1 : i32
    %1 = arith.subi %0, %c1_i32 : i32
    %c0_i32 = arith.constant 0 : i32
    %2 = arith.maxsi %1, %c0_i32 : i32
    %c0_i32_0 = arith.constant 0 : i32
    %c0_i32_1 = arith.constant 0 : i32
    %c0_i32_2 = arith.constant 0 : i32
    return %arg0, %2, %c0_i32_0, %c0_i32_1 : i32, i32, i32, i32
  }
  func.func @transform_2(%arg0: i32, %arg1: i32) -> (i32, i32, i32, i32) {
    %c1_i32 = arith.constant 1 : i32
    %0 = arith.addi %arg1, %c1_i32 : i32
    %c8_i32 = arith.constant 8 : i32
    %1 = arith.muli %0, %c8_i32 : i32
    %c15_i32 = arith.constant 15 : i32
    %2 = arith.minsi %1, %c15_i32 : i32
    %c0_i32 = arith.constant 0 : i32
    %c0_i32_0 = arith.constant 0 : i32
    %c0_i32_1 = arith.constant 0 : i32
    return %arg0, %2, %c0_i32, %c0_i32_0 : i32, i32, i32, i32
  }
  func.func @transform_3(%arg0: i32, %arg1: i32) -> (i32, i32) {
    %c0_i32 = arith.constant 0 : i32
    %c0_i32_0 = arith.constant 0 : i32
    %c0_i32_1 = arith.constant 0 : i32
    return %c0_i32, %c0_i32_0 : i32, i32
  }
  func.func @transform_4(%arg0: i32, %arg1: i32) -> (i32, i32) {
    %c0_i32 = arith.constant 0 : i32
    %c0_i32_0 = arith.constant 0 : i32
    %c0_i32_1 = arith.constant 0 : i32
    return %c0_i32, %c0_i32_0 : i32, i32
  }
  func.func @transform_5(%arg0: i32, %arg1: i32) -> (i32, i32, i32, i32) {
    %c0_i32 = arith.constant 0 : i32
    %c0_i32_0 = arith.constant 0 : i32
    %c0_i32_1 = arith.constant 0 : i32
    %c0_i32_2 = arith.constant 0 : i32
    %c0_i32_3 = arith.constant 0 : i32
    return %c0_i32, %c0_i32_0, %c0_i32_1, %c0_i32_2 : i32, i32, i32, i32
  }
  func.func @transform_6(%arg0: i32, %arg1: i32) -> (i32, i32) {
    %c0_i32 = arith.constant 0 : i32
    %c0_i32_0 = arith.constant 0 : i32
    %c0_i32_1 = arith.constant 0 : i32
    return %c0_i32, %c0_i32_0 : i32, i32
  }
  func.func @transform_7(%arg0: i32, %arg1: i32) -> (i32, i32, i32, i32) {
    %c0_i32 = arith.constant 0 : i32
    %c0_i32_0 = arith.constant 0 : i32
    %c0_i32_1 = arith.constant 0 : i32
    return %arg0, %arg1, %c0_i32, %c0_i32_0 : i32, i32, i32, i32
  }
}

module attributes {stable_mosaic.version = 11 : i64} {
  func.func @_residual_kernel(%arg0: i32, %arg1: i32, %arg2: memref<1x8x16x4xf32, #tpu.memory_space<vmem>>, %arg3: memref<1x1x16x4xf32, #tpu.memory_space<vmem>>, %arg4: memref<1x1x16x4xf32, #tpu.memory_space<vmem>>, %arg5: memref<4x128xbf16, #tpu.memory_space<vmem>>, %arg6: memref<1x128xf32, #tpu.memory_space<vmem>>, %arg7: memref<3x3x128x4xbf16, #tpu.memory_space<vmem>>, %arg8: memref<1x4xf32, #tpu.memory_space<vmem>>, %arg9: memref<1x8x16x4xf32, #tpu.memory_space<vmem>>, %arg10: memref<10x16x128xbf16, #tpu.memory_space<vmem>>) attributes {dimension_semantics = [#tpu.dimension_semantics<parallel>, #tpu.dimension_semantics<parallel>], iteration_bounds = array<i64: 2, 2>, scalar_prefetch = 0 : i64, scratch_operands = 1 : i64, tpu.core_type = #tpu.core_type<tc>, window_params = [{transform_indices = @transform_0, window_bounds = array<i64: 1, 8, 16, 4>}, {transform_indices = @transform_1, window_bounds = array<i64: 1, 1, 16, 4>}, {transform_indices = @transform_2, window_bounds = array<i64: 1, 1, 16, 4>}, {pipeline_mode = #tpu.pipeline_mode<synchronous>, transform_indices = @transform_3, window_bounds = array<i64: 4, 128>}, {pipeline_mode = #tpu.pipeline_mode<synchronous>, transform_indices = @transform_4, window_bounds = array<i64: 1, 128>}, {pipeline_mode = #tpu.pipeline_mode<synchronous>, transform_indices = @transform_5, window_bounds = array<i64: 3, 3, 128, 4>}, {pipeline_mode = #tpu.pipeline_mode<synchronous>, transform_indices = @transform_6, window_bounds = array<i64: 1, 4>}, {transform_indices = @transform_7, window_bounds = array<i64: 1, 8, 16, 4>}]} {
    %c0 = arith.constant 0 : index
    %c0_0 = arith.constant 0 : index
    %c0_1 = arith.constant 0 : index
    %c0_2 = arith.constant 0 : index
    %0 = vector.load %arg2[%c0, %c0_0, %c0_1, %c0_2] : memref<1x8x16x4xf32, #tpu.memory_space<vmem>>, vector<1x8x16x4xf32>
    %1 = vector.shape_cast %0 : vector<1x8x16x4xf32> to vector<8x16x4xf32>
    %c0_3 = arith.constant 0 : index
    %c0_4 = arith.constant 0 : index
    %2 = vector.load %arg5[%c0_3, %c0_4] : memref<4x128xbf16, #tpu.memory_space<vmem>>, vector<4x128xbf16>
    %c0_5 = arith.constant 0 : index
    %c0_6 = arith.constant 0 : index
    %3 = vector.load %arg6[%c0_5, %c0_6] : memref<1x128xf32, #tpu.memory_space<vmem>>, vector<1x128xf32>
    %4 = vector.shape_cast %1 : vector<8x16x4xf32> to vector<128x4xf32>
    %5 = arith.truncf %4 : vector<128x4xf32> to vector<128x4xbf16>
    %cst = arith.constant dense<0.000000e+00> : vector<128x128xf32>
    %6 = tpu.matmul %5, %2, %cst {dimension_numbers = #tpu.dot_dimension_numbers<[1], [0], [0], [1], [0, 0, 1, 1], [], []>} : vector<128x4xbf16>, vector<4x128xbf16>, vector<128x128xf32> -> vector<128x128xf32>
    %7 = vector.broadcast %3 : vector<1x128xf32> to vector<128x128xf32>
    %8 = arith.addf %6, %7 : vector<128x128xf32>
    %cst_7 = arith.constant 0.000000e+00 : f32
    %9 = vector.broadcast %cst_7 : f32 to vector<128x128xf32>
    %10 = arith.maximumf %8, %9 : vector<128x128xf32>
    %11 = vector.shape_cast %10 : vector<128x128xf32> to vector<8x16x128xf32>
    %12 = arith.truncf %11 : vector<8x16x128xf32> to vector<8x16x128xbf16>
    %c1 = arith.constant 1 : index
    %c0_8 = arith.constant 0 : index
    %c0_9 = arith.constant 0 : index
    %13 = vector.load %arg10[%c1, %c0_8, %c0_9] : memref<10x16x128xbf16, #tpu.memory_space<vmem>>, vector<8x16x128xbf16>
    tpu.vector_store %arg10[%c1, %c0_8, %c0_9], %12 {strides = array<i32>} : memref<10x16x128xbf16, #tpu.memory_space<vmem>>, vector<8x16x128xbf16>,
    %c0_10 = arith.constant 0 : index
    %c0_11 = arith.constant 0 : index
    %c0_12 = arith.constant 0 : index
    %c0_13 = arith.constant 0 : index
    %14 = vector.load %arg3[%c0_10, %c0_11, %c0_12, %c0_13] : memref<1x1x16x4xf32, #tpu.memory_space<vmem>>, vector<1x1x16x4xf32>
    %15 = vector.shape_cast %14 : vector<1x1x16x4xf32> to vector<16x4xf32>
    %16 = arith.truncf %15 : vector<16x4xf32> to vector<16x4xbf16>
    %cst_14 = arith.constant dense<0.000000e+00> : vector<16x128xf32>
    %17 = tpu.matmul %16, %2, %cst_14 {dimension_numbers = #tpu.dot_dimension_numbers<[1], [0], [0], [1], [0, 0, 1, 1], [], []>} : vector<16x4xbf16>, vector<4x128xbf16>, vector<16x128xf32> -> vector<16x128xf32>
    %c0_i32 = arith.constant 0 : i32
    %18 = arith.cmpi sgt, %arg1, %c0_i32 : i32
    %19 = vector.broadcast %3 : vector<1x128xf32> to vector<16x128xf32>
    %20 = arith.addf %17, %19 : vector<16x128xf32>
    %cst_15 = arith.constant 0.000000e+00 : f32
    %21 = vector.broadcast %cst_15 : f32 to vector<16x128xf32>
    %22 = arith.maximumf %20, %21 : vector<16x128xf32>
    %cst_16 = arith.constant 0.000000e+00 : f32
    %23 = vector.broadcast %cst_16 : f32 to vector<16x128xf32>
    %24 = arith.select %18, %22, %23 : vector<16x128xf32>
    %25 = arith.truncf %24 : vector<16x128xf32> to vector<16x128xbf16>
    %c0_17 = arith.constant 0 : index
    %c0_18 = arith.constant 0 : index
    %c0_19 = arith.constant 0 : index
    %26 = vector.load %arg10[%c0_17, %c0_18, %c0_19] : memref<10x16x128xbf16, #tpu.memory_space<vmem>>, vector<1x16x128xbf16>
    %27 = vector.shape_cast %26 : vector<1x16x128xbf16> to vector<16x128xbf16>
    %28 = vector.shape_cast %25 : vector<16x128xbf16> to vector<1x16x128xbf16>
    tpu.vector_store %arg10[%c0_17, %c0_18, %c0_19], %28 {strides = array<i32>} : memref<10x16x128xbf16, #tpu.memory_space<vmem>>, vector<1x16x128xbf16>,
    %c0_20 = arith.constant 0 : index
    %c0_21 = arith.constant 0 : index
    %c0_22 = arith.constant 0 : index
    %c0_23 = arith.constant 0 : index
    %29 = vector.load %arg4[%c0_20, %c0_21, %c0_22, %c0_23] : memref<1x1x16x4xf32, #tpu.memory_space<vmem>>, vector<1x1x16x4xf32>
    %30 = vector.shape_cast %29 : vector<1x1x16x4xf32> to vector<16x4xf32>
    %31 = arith.truncf %30 : vector<16x4xf32> to vector<16x4xbf16>
    %cst_24 = arith.constant dense<0.000000e+00> : vector<16x128xf32>
    %32 = tpu.matmul %31, %2, %cst_24 {dimension_numbers = #tpu.dot_dimension_numbers<[1], [0], [0], [1], [0, 0, 1, 1], [], []>} : vector<16x4xbf16>, vector<4x128xbf16>, vector<16x128xf32> -> vector<16x128xf32>
    %c1_i32 = arith.constant 1 : i32
    %33 = arith.cmpi slt, %arg1, %c1_i32 : i32
    %34 = vector.broadcast %3 : vector<1x128xf32> to vector<16x128xf32>
    %35 = arith.addf %32, %34 : vector<16x128xf32>
    %cst_25 = arith.constant 0.000000e+00 : f32
    %36 = vector.broadcast %cst_25 : f32 to vector<16x128xf32>
    %37 = arith.maximumf %35, %36 : vector<16x128xf32>
    %cst_26 = arith.constant 0.000000e+00 : f32
    %38 = vector.broadcast %cst_26 : f32 to vector<16x128xf32>
    %39 = arith.select %33, %37, %38 : vector<16x128xf32>
    %40 = arith.truncf %39 : vector<16x128xf32> to vector<16x128xbf16>
    %c9 = arith.constant 9 : index
    %c0_27 = arith.constant 0 : index
    %c0_28 = arith.constant 0 : index
    %41 = vector.load %arg10[%c9, %c0_27, %c0_28] : memref<10x16x128xbf16, #tpu.memory_space<vmem>>, vector<1x16x128xbf16>
    %42 = vector.shape_cast %41 : vector<1x16x128xbf16> to vector<16x128xbf16>
    %43 = vector.shape_cast %40 : vector<16x128xbf16> to vector<1x16x128xbf16>
    tpu.vector_store %arg10[%c9, %c0_27, %c0_28], %43 {strides = array<i32>} : memref<10x16x128xbf16, #tpu.memory_space<vmem>>, vector<1x16x128xbf16>,
    %c0_29 = arith.constant 0 : index
    %c0_30 = arith.constant 0 : index
    %c0_31 = arith.constant 0 : index
    %44 = vector.load %arg10[%c0_29, %c0_30, %c0_31] : memref<10x16x128xbf16, #tpu.memory_space<vmem>>, vector<10x16x128xbf16>
    %cst_32 = arith.constant 0.000000e+00 : bf16
    %45 = vector.broadcast %cst_32 : bf16 to vector<10x1x128xbf16>
    %46 = vector.extract_strided_slice %44 {offsets = [0, 0, 0], sizes = [10, 15, 128], strides = [1, 1, 1]} : vector<10x16x128xbf16> to vector<10x15x128xbf16>
    %47 = tpu.concatenate %45, %46 in 1 : vector<10x1x128xbf16>, vector<10x15x128xbf16> -> vector<10x16x128xbf16>
    %48 = vector.extract_strided_slice %44 {offsets = [0, 1, 0], sizes = [10, 15, 128], strides = [1, 1, 1]} : vector<10x16x128xbf16> to vector<10x15x128xbf16>
    %49 = tpu.concatenate %48, %45 in 1 : vector<10x15x128xbf16>, vector<10x1x128xbf16> -> vector<10x16x128xbf16>
    %50 = vector.extract_strided_slice %47 {offsets = [0, 0, 0], sizes = [8, 16, 128], strides = [1, 1, 1]} : vector<10x16x128xbf16> to vector<8x16x128xbf16>
    %51 = vector.shape_cast %50 : vector<8x16x128xbf16> to vector<128x128xbf16>
    %c0_33 = arith.constant 0 : index
    %c0_34 = arith.constant 0 : index
    %c0_35 = arith.constant 0 : index
    %c0_36 = arith.constant 0 : index
    %52 = vector.load %arg7[%c0_33, %c0_34, %c0_35, %c0_36] : memref<3x3x128x4xbf16, #tpu.memory_space<vmem>>, vector<1x1x128x4xbf16>
    %53 = vector.shape_cast %52 : vector<1x1x128x4xbf16> to vector<128x4xbf16>
    %cst_37 = arith.constant dense<0.000000e+00> : vector<128x4xf32>
    %54 = tpu.matmul %51, %53, %cst_37 {dimension_numbers = #tpu.dot_dimension_numbers<[1], [0], [0], [1], [0, 0, 1, 1], [], []>} : vector<128x128xbf16>, vector<128x4xbf16>, vector<128x4xf32> -> vector<128x4xf32>
    %55 = vector.extract_strided_slice %44 {offsets = [0, 0, 0], sizes = [8, 16, 128], strides = [1, 1, 1]} : vector<10x16x128xbf16> to vector<8x16x128xbf16>
    %56 = vector.shape_cast %55 : vector<8x16x128xbf16> to vector<128x128xbf16>
    %c0_38 = arith.constant 0 : index
    %c1_39 = arith.constant 1 : index
    %c0_40 = arith.constant 0 : index
    %c0_41 = arith.constant 0 : index
    %57 = vector.load %arg7[%c0_38, %c1_39, %c0_40, %c0_41] : memref<3x3x128x4xbf16, #tpu.memory_space<vmem>>, vector<1x1x128x4xbf16>
    %58 = vector.shape_cast %57 : vector<1x1x128x4xbf16> to vector<128x4xbf16>
    %cst_42 = arith.constant dense<0.000000e+00> : vector<128x4xf32>
    %59 = tpu.matmul %56, %58, %cst_42 {dimension_numbers = #tpu.dot_dimension_numbers<[1], [0], [0], [1], [0, 0, 1, 1], [], []>} : vector<128x128xbf16>, vector<128x4xbf16>, vector<128x4xf32> -> vector<128x4xf32>
    %60 = arith.addf %54, %59 : vector<128x4xf32>
    %61 = vector.extract_strided_slice %49 {offsets = [0, 0, 0], sizes = [8, 16, 128], strides = [1, 1, 1]} : vector<10x16x128xbf16> to vector<8x16x128xbf16>
    %62 = vector.shape_cast %61 : vector<8x16x128xbf16> to vector<128x128xbf16>
    %c0_43 = arith.constant 0 : index
    %c2 = arith.constant 2 : index
    %c0_44 = arith.constant 0 : index
    %c0_45 = arith.constant 0 : index
    %63 = vector.load %arg7[%c0_43, %c2, %c0_44, %c0_45] : memref<3x3x128x4xbf16, #tpu.memory_space<vmem>>, vector<1x1x128x4xbf16>
    %64 = vector.shape_cast %63 : vector<1x1x128x4xbf16> to vector<128x4xbf16>
    %cst_46 = arith.constant dense<0.000000e+00> : vector<128x4xf32>
    %65 = tpu.matmul %62, %64, %cst_46 {dimension_numbers = #tpu.dot_dimension_numbers<[1], [0], [0], [1], [0, 0, 1, 1], [], []>} : vector<128x128xbf16>, vector<128x4xbf16>, vector<128x4xf32> -> vector<128x4xf32>
    %66 = arith.addf %60, %65 : vector<128x4xf32>
    %67 = vector.extract_strided_slice %47 {offsets = [1, 0, 0], sizes = [8, 16, 128], strides = [1, 1, 1]} : vector<10x16x128xbf16> to vector<8x16x128xbf16>
    %68 = vector.shape_cast %67 : vector<8x16x128xbf16> to vector<128x128xbf16>
    %c1_47 = arith.constant 1 : index
    %c0_48 = arith.constant 0 : index
    %c0_49 = arith.constant 0 : index
    %c0_50 = arith.constant 0 : index
    %69 = vector.load %arg7[%c1_47, %c0_48, %c0_49, %c0_50] : memref<3x3x128x4xbf16, #tpu.memory_space<vmem>>, vector<1x1x128x4xbf16>
    %70 = vector.shape_cast %69 : vector<1x1x128x4xbf16> to vector<128x4xbf16>
    %cst_51 = arith.constant dense<0.000000e+00> : vector<128x4xf32>
    %71 = tpu.matmul %68, %70, %cst_51 {dimension_numbers = #tpu.dot_dimension_numbers<[1], [0], [0], [1], [0, 0, 1, 1], [], []>} : vector<128x128xbf16>, vector<128x4xbf16>, vector<128x4xf32> -> vector<128x4xf32>
    %72 = arith.addf %66, %71 : vector<128x4xf32>
    %73 = vector.extract_strided_slice %44 {offsets = [1, 0, 0], sizes = [8, 16, 128], strides = [1, 1, 1]} : vector<10x16x128xbf16> to vector<8x16x128xbf16>
    %74 = vector.shape_cast %73 : vector<8x16x128xbf16> to vector<128x128xbf16>
    %c1_52 = arith.constant 1 : index
    %c1_53 = arith.constant 1 : index
    %c0_54 = arith.constant 0 : index
    %c0_55 = arith.constant 0 : index
    %75 = vector.load %arg7[%c1_52, %c1_53, %c0_54, %c0_55] : memref<3x3x128x4xbf16, #tpu.memory_space<vmem>>, vector<1x1x128x4xbf16>
    %76 = vector.shape_cast %75 : vector<1x1x128x4xbf16> to vector<128x4xbf16>
    %cst_56 = arith.constant dense<0.000000e+00> : vector<128x4xf32>
    %77 = tpu.matmul %74, %76, %cst_56 {dimension_numbers = #tpu.dot_dimension_numbers<[1], [0], [0], [1], [0, 0, 1, 1], [], []>} : vector<128x128xbf16>, vector<128x4xbf16>, vector<128x4xf32> -> vector<128x4xf32>
    %78 = arith.addf %72, %77 : vector<128x4xf32>
    %79 = vector.extract_strided_slice %49 {offsets = [1, 0, 0], sizes = [8, 16, 128], strides = [1, 1, 1]} : vector<10x16x128xbf16> to vector<8x16x128xbf16>
    %80 = vector.shape_cast %79 : vector<8x16x128xbf16> to vector<128x128xbf16>
    %c1_57 = arith.constant 1 : index
    %c2_58 = arith.constant 2 : index
    %c0_59 = arith.constant 0 : index
    %c0_60 = arith.constant 0 : index
    %81 = vector.load %arg7[%c1_57, %c2_58, %c0_59, %c0_60] : memref<3x3x128x4xbf16, #tpu.memory_space<vmem>>, vector<1x1x128x4xbf16>
    %82 = vector.shape_cast %81 : vector<1x1x128x4xbf16> to vector<128x4xbf16>
    %cst_61 = arith.constant dense<0.000000e+00> : vector<128x4xf32>
    %83 = tpu.matmul %80, %82, %cst_61 {dimension_numbers = #tpu.dot_dimension_numbers<[1], [0], [0], [1], [0, 0, 1, 1], [], []>} : vector<128x128xbf16>, vector<128x4xbf16>, vector<128x4xf32> -> vector<128x4xf32>
    %84 = arith.addf %78, %83 : vector<128x4xf32>
    %85 = vector.extract_strided_slice %47 {offsets = [2, 0, 0], sizes = [8, 16, 128], strides = [1, 1, 1]} : vector<10x16x128xbf16> to vector<8x16x128xbf16>
    %86 = vector.shape_cast %85 : vector<8x16x128xbf16> to vector<128x128xbf16>
    %c2_62 = arith.constant 2 : index
    %c0_63 = arith.constant 0 : index
    %c0_64 = arith.constant 0 : index
    %c0_65 = arith.constant 0 : index
    %87 = vector.load %arg7[%c2_62, %c0_63, %c0_64, %c0_65] : memref<3x3x128x4xbf16, #tpu.memory_space<vmem>>, vector<1x1x128x4xbf16>
    %88 = vector.shape_cast %87 : vector<1x1x128x4xbf16> to vector<128x4xbf16>
    %cst_66 = arith.constant dense<0.000000e+00> : vector<128x4xf32>
    %89 = tpu.matmul %86, %88, %cst_66 {dimension_numbers = #tpu.dot_dimension_numbers<[1], [0], [0], [1], [0, 0, 1, 1], [], []>} : vector<128x128xbf16>, vector<128x4xbf16>, vector<128x4xf32> -> vector<128x4xf32>
    %90 = arith.addf %84, %89 : vector<128x4xf32>
    %91 = vector.extract_strided_slice %44 {offsets = [2, 0, 0], sizes = [8, 16, 128], strides = [1, 1, 1]} : vector<10x16x128xbf16> to vector<8x16x128xbf16>
    %92 = vector.shape_cast %91 : vector<8x16x128xbf16> to vector<128x128xbf16>
    %c2_67 = arith.constant 2 : index
    %c1_68 = arith.constant 1 : index
    %c0_69 = arith.constant 0 : index
    %c0_70 = arith.constant 0 : index
    %93 = vector.load %arg7[%c2_67, %c1_68, %c0_69, %c0_70] : memref<3x3x128x4xbf16, #tpu.memory_space<vmem>>, vector<1x1x128x4xbf16>
    %94 = vector.shape_cast %93 : vector<1x1x128x4xbf16> to vector<128x4xbf16>
    %cst_71 = arith.constant dense<0.000000e+00> : vector<128x4xf32>
    %95 = tpu.matmul %92, %94, %cst_71 {dimension_numbers = #tpu.dot_dimension_numbers<[1], [0], [0], [1], [0, 0, 1, 1], [], []>} : vector<128x128xbf16>, vector<128x4xbf16>, vector<128x4xf32> -> vector<128x4xf32>
    %96 = arith.addf %90, %95 : vector<128x4xf32>
    %97 = vector.extract_strided_slice %49 {offsets = [2, 0, 0], sizes = [8, 16, 128], strides = [1, 1, 1]} : vector<10x16x128xbf16> to vector<8x16x128xbf16>
    %98 = vector.shape_cast %97 : vector<8x16x128xbf16> to vector<128x128xbf16>
    %c2_72 = arith.constant 2 : index
    %c2_73 = arith.constant 2 : index
    %c0_74 = arith.constant 0 : index
    %c0_75 = arith.constant 0 : index
    %99 = vector.load %arg7[%c2_72, %c2_73, %c0_74, %c0_75] : memref<3x3x128x4xbf16, #tpu.memory_space<vmem>>, vector<1x1x128x4xbf16>
    %100 = vector.shape_cast %99 : vector<1x1x128x4xbf16> to vector<128x4xbf16>
    %cst_76 = arith.constant dense<0.000000e+00> : vector<128x4xf32>
    %101 = tpu.matmul %98, %100, %cst_76 {dimension_numbers = #tpu.dot_dimension_numbers<[1], [0], [0], [1], [0, 0, 1, 1], [], []>} : vector<128x128xbf16>, vector<128x4xbf16>, vector<128x4xf32> -> vector<128x4xf32>
    %102 = arith.addf %96, %101 : vector<128x4xf32>
    %c0_77 = arith.constant 0 : index
    %c0_78 = arith.constant 0 : index
    %103 = vector.load %arg8[%c0_77, %c0_78] : memref<1x4xf32, #tpu.memory_space<vmem>>, vector<1x4xf32>
    %104 = vector.broadcast %103 : vector<1x4xf32> to vector<128x4xf32>
    %105 = arith.addf %102, %104 : vector<128x4xf32>
    %cst_79 = arith.constant 0.000000e+00 : f32
    %106 = vector.broadcast %cst_79 : f32 to vector<128x4xf32>
    %107 = arith.maximumf %105, %106 : vector<128x4xf32>
    %108 = vector.shape_cast %107 : vector<128x4xf32> to vector<8x16x4xf32>
    %109 = arith.addf %108, %1 : vector<8x16x4xf32>
    %c0_80 = arith.constant 0 : index
    %c0_81 = arith.constant 0 : index
    %c0_82 = arith.constant 0 : index
    %c0_83 = arith.constant 0 : index
    %110 = vector.load %arg9[%c0_80, %c0_81, %c0_82, %c0_83] : memref<1x8x16x4xf32, #tpu.memory_space<vmem>>, vector<1x8x16x4xf32>
    %111 = vector.shape_cast %110 : vector<1x8x16x4xf32> to vector<8x16x4xf32>
    %112 = vector.shape_cast %109 : vector<8x16x4xf32> to vector<1x8x16x4xf32>
    tpu.vector_store %arg9[%c0_80, %c0_81, %c0_82, %c0_83], %112 {strides = array<i32>} : memref<1x8x16x4xf32, #tpu.memory_space<vmem>>, vector<1x8x16x4xf32>,
    return
  }
  func.func @transform_0(%arg0: i32, %arg1: i32) -> (i32, i32, i32, i32) {
    %c0_i32 = arith.constant 0 : i32
    %c0_i32_0 = arith.constant 0 : i32
    %c0_i32_1 = arith.constant 0 : i32
    return %arg0, %arg1, %c0_i32, %c0_i32_0 : i32, i32, i32, i32
  }
  func.func @transform_1(%arg0: i32, %arg1: i32) -> (i32, i32, i32, i32) {
    %c8_i32 = arith.constant 8 : i32
    %0 = arith.muli %arg1, %c8_i32 : i32
    %c1_i32 = arith.constant 1 : i32
    %1 = arith.subi %0, %c1_i32 : i32
    %c0_i32 = arith.constant 0 : i32
    %2 = arith.maxsi %1, %c0_i32 : i32
    %c0_i32_0 = arith.constant 0 : i32
    %c0_i32_1 = arith.constant 0 : i32
    %c0_i32_2 = arith.constant 0 : i32
    return %arg0, %2, %c0_i32_0, %c0_i32_1 : i32, i32, i32, i32
  }
  func.func @transform_2(%arg0: i32, %arg1: i32) -> (i32, i32, i32, i32) {
    %c1_i32 = arith.constant 1 : i32
    %0 = arith.addi %arg1, %c1_i32 : i32
    %c8_i32 = arith.constant 8 : i32
    %1 = arith.muli %0, %c8_i32 : i32
    %c15_i32 = arith.constant 15 : i32
    %2 = arith.minsi %1, %c15_i32 : i32
    %c0_i32 = arith.constant 0 : i32
    %c0_i32_0 = arith.constant 0 : i32
    %c0_i32_1 = arith.constant 0 : i32
    return %arg0, %2, %c0_i32, %c0_i32_0 : i32, i32, i32, i32
  }
  func.func @transform_3(%arg0: i32, %arg1: i32) -> (i32, i32) {
    %c0_i32 = arith.constant 0 : i32
    %c0_i32_0 = arith.constant 0 : i32
    %c0_i32_1 = arith.constant 0 : i32
    return %c0_i32, %c0_i32_0 : i32, i32
  }
  func.func @transform_4(%arg0: i32, %arg1: i32) -> (i32, i32) {
    %c0_i32 = arith.constant 0 : i32
    %c0_i32_0 = arith.constant 0 : i32
    %c0_i32_1 = arith.constant 0 : i32
    return %c0_i32, %c0_i32_0 : i32, i32
  }
  func.func @transform_5(%arg0: i32, %arg1: i32) -> (i32, i32, i32, i32) {
    %c0_i32 = arith.constant 0 : i32
    %c0_i32_0 = arith.constant 0 : i32
    %c0_i32_1 = arith.constant 0 : i32
    %c0_i32_2 = arith.constant 0 : i32
    %c0_i32_3 = arith.constant 0 : i32
    return %c0_i32, %c0_i32_0, %c0_i32_1, %c0_i32_2 : i32, i32, i32, i32
  }
  func.func @transform_6(%arg0: i32, %arg1: i32) -> (i32, i32) {
    %c0_i32 = arith.constant 0 : i32
    %c0_i32_0 = arith.constant 0 : i32
    %c0_i32_1 = arith.constant 0 : i32
    return %c0_i32, %c0_i32_0 : i32, i32
  }
  func.func @transform_7(%arg0: i32, %arg1: i32) -> (i32, i32, i32, i32) {
    %c0_i32 = arith.constant 0 : i32
    %c0_i32_0 = arith.constant 0 : i32
    %c0_i32_1 = arith.constant 0 : i32
    return %arg0, %arg1, %c0_i32, %c0_i32_0 : i32, i32, i32, i32
  }
}

</mosaic_0001>

<llo_original>
// kernel: tpu_custom_call.1
$region0: #{tpu_custom_call.1}
  #allocation0 [shape = 'u32[]', space=smem, size = 0x4, offset = 0x4, fixed_abs, tag = 'smem constant byte address 0x4 - core index']
  #allocation1 [shape = 'u32[144,128]{1,0:T(1,128)}', space=vmem, size = 0x12000, scoped, tag = 'internal scratch']
  #allocation2 [shape = 'bf16[10,16,128]{2,1,0:T(8,128)(2,1)}', space=vmem, size = 0xa000, scoped, tag = 'scratch operand']
  %s0 = inlined_call_operand.vmem [shape: f32[2,16,16,4], index: 0, kind: input, shape index: {}]
  %s1 = inlined_call_operand.vmem [shape: f32[2,16,16,4], index: 1, kind: input, shape index: {}]
  %s2 = inlined_call_operand.vmem [shape: f32[2,16,16,4], index: 2, kind: input, shape index: {}]
  %s3 = inlined_call_operand.vmem [shape: bf16[4,128], index: 3, kind: input, shape index: {}]
  %s4 = inlined_call_operand.vmem [shape: f32[1,128], index: 4, kind: input, shape index: {}]
  %s5 = inlined_call_operand.vmem [shape: bf16[3,3,128,4], index: 5, kind: input, shape index: {}]
  %s6 = inlined_call_operand.vmem [shape: f32[1,4], index: 6, kind: input, shape index: {}]
  %s7 = inlined_call_operand.vmem [shape: f32[2,16,16,4], index: 7, kind: output, shape index: {}]
  %s8 = sld [smem:[#allocation0]]
  $region61: #{tpu_custom_call.1} parent=0
    _
  %s10 = ssub.s32 1, %s8
  %s11 = scalar_select 0, %s10, %s8
  loop: start=0, step=1, limit=6
  $region2: #{tpu_custom_call.1} parent=0 // loop_pre_header
    _
  $region3: #{tpu_custom_call.1} parent=0 // loop_header
    %s13 = sphi 0, %s17
    %p14 = scmp.ge.s32.totalorder %s13, 6
    %s20 = sphi 0, %s32
    %s21 = sphi 0, %s28
    %s22 = sphi 0, %s20
    %s23 = sphi 0, %s21
    %s24 = sphi 0, %s22
    %s25 = sphi 0, %s23
    %s37 = sphi 0, %s39
    %s40 = sphi 0, %s37
    %s41 = sphi 0, %s40
    %s57 = sphi 0, %s41
    %s73 = sphi 0, %s75
    %s76 = sphi 0, %s73
    %s77 = sphi 0, %s76
    %s93 = sphi 0, %s77
    %s109 = sphi 0, %s111
    %s112 = sphi 0, %s109
    %s113 = sphi 0, %s112
    %s129 = sphi 0, %s113
    %s133 = sphi 0, %s133
    %s135 = sphi 0, %s133
    %s136 = sphi 0, %s135
    %s150 = sphi 0, %s136
    %s154 = sphi 0, %s154
    %s156 = sphi 0, %s154
    %s157 = sphi 0, %s156
    %s171 = sphi 0, %s157
    %s175 = sphi 0, %s175
    %s177 = sphi 0, %s175
    %s178 = sphi 0, %s177
    %s192 = sphi 0, %s178
    %s196 = sphi 0, %s196
    %s198 = sphi 0, %s196
    %s199 = sphi 0, %s198
    %s213 = sphi 0, %s199
    %s221 = sphi 0, %s223
    %s224 = sphi 0, %s221
    %s225 = sphi 0, %s224
    %s241 = sphi 0, %s225
  $region4: #{tpu_custom_call.1} parent=0 // loop_header_branch
    %16 = sbr.rel (%p14) target = $region8
  $region5: #{tpu_custom_call.1} parent=0 // loop_body
    %s18 = ssub.s32 %s13, 1
    %s19 = ssub.s32 %s13, 2
    %s26 = sadd.s32 1, %s21
    %p27 = scmp.ge.s32.totalorder %s26, 2
    %s28 = scalar_select %p27, 0, %s26
    %s29 = sadd.s32 1, %s20
    %s30 = scalar_select %p27, %s29, %s20
    %p31 = scmp.ge.s32.totalorder %s30, 2
    %s32 = scalar_select %p31, 0, %s30
    %s33 = ssub.s32 %s20, %s32
    %s34 = ssub.s32 %s21, %s28
    %s35 = sor.u32 %s33, %s34
    %p36 = scmp.eq.s32.totalorder %s35, 0
    %s38 = sadd.s32 %s37, 1
    %s39 = scalar_select %p36, %s37, %s38
    %p42 = pneg %p36
    %p43 = scmp.eq.s32.totalorder %s13, 3
    %p44 = por %p42, %p43
    %p45 = scmp.ne.s32.totalorder %s37, %s40
    %p46 = scmp.eq.s32.totalorder %s13, 0
    %p47 = por %p45, %p46
    %p48 = scmp.ne.s32.totalorder %s37, %s40
    %p49 = scmp.eq.s32.totalorder %s18, 3
    %p50 = por %p48, %p49
    %p51 = scmp.ne.s32.totalorder %s40, %s41
    %p52 = scmp.eq.s32.totalorder %s18, 0
    %p53 = por %p51, %p52
    %p54 = scmp.ne.s32.totalorder %s40, %s41
    %p55 = scmp.eq.s32.totalorder %s19, 3
    %p56 = por %p54, %p55
    %p58 = scmp.ne.s32.totalorder %s41, %s57
    %p59 = scmp.eq.s32.totalorder %s19, 0
    %p60 = por %p58, %p59
    %s61 = smul.u32 %s21, 8
    %s62 = ssub.s32 %s61, 1
    %p63 = scmp.gt.s32.totalorder %s62, 0
    %s64 = scalar_select %p63, %s62, 0
    %s65 = smul.u32 %s28, 8
    %s66 = ssub.s32 %s65, 1
    %p67 = scmp.gt.s32.totalorder %s66, 0
    %s68 = scalar_select %p67, %s66, 0
    %s69 = ssub.s32 %s20, %s32
    %s70 = ssub.s32 %s64, %s68
    %s71 = sor.u32 %s69, %s70
    %p72 = scmp.eq.s32.totalorder %s71, 0
    %s74 = sadd.s32 %s73, 1
    %s75 = scalar_select %p72, %s73, %s74
    %p78 = pneg %p72
    %p79 = scmp.eq.s32.totalorder %s13, 3
    %p80 = por %p78, %p79
    %p81 = scmp.ne.s32.totalorder %s73, %s76
    %p82 = scmp.eq.s32.totalorder %s13, 0
    %p83 = por %p81, %p82
    %p84 = scmp.ne.s32.totalorder %s73, %s76
    %p85 = scmp.eq.s32.totalorder %s18, 3
    %p86 = por %p84, %p85
    %p87 = scmp.ne.s32.totalorder %s76, %s77
    %p88 = scmp.eq.s32.totalorder %s18, 0
    %p89 = por %p87, %p88
    %p90 = scmp.ne.s32.totalorder %s76, %s77
    %p91 = scmp.eq.s32.totalorder %s19, 3
    %p92 = por %p90, %p91
    %p94 = scmp.ne.s32.totalorder %s77, %s93
    %p95 = scmp.eq.s32.totalorder %s19, 0
    %p96 = por %p94, %p95
    %s97 = sadd.s32 %s21, 1
    %s98 = smul.u32 %s97, 8
    %p99 = scmp.lt.s32.totalorder %s98, 15
    %s100 = scalar_select %p99, %s98, 15
    %s101 = sadd.s32 %s28, 1
    %s102 = smul.u32 %s101, 8
    %p103 = scmp.lt.s32.totalorder %s102, 15
    %s104 = scalar_select %p103, %s102, 15
    %s105 = ssub.s32 %s20, %s32
    %s106 = ssub.s32 %s100, %s104
    %s107 = sor.u32 %s105, %s106
    %p108 = scmp.eq.s32.totalorder %s107, 0
    %s110 = sadd.s32 %s109, 1
    %s111 = scalar_select %p108, %s109, %s110
    %p114 = pneg %p108
    %p115 = scmp.eq.s32.totalorder %s13, 3
    %p116 = por %p114, %p115
    %p117 = scmp.ne.s32.totalorder %s109, %s112
    %p118 = scmp.eq.s32.totalorder %s13, 0
    %p119 = por %p117, %p118
    %p120 = scmp.ne.s32.totalorder %s109, %s112
    %p121 = scmp.eq.s32.totalorder %s18, 3
    %p122 = por %p120, %p121
    %p123 = scmp.ne.s32.totalorder %s112, %s113
    %p124 = scmp.eq.s32.totalorder %s18, 0
    %p125 = por %p123, %p124
    %p126 = scmp.ne.s32.totalorder %s112, %s113
    %p127 = scmp.eq.s32.totalorder %s19, 3
    %p128 = por %p126, %p127
    %p130 = scmp.ne.s32.totalorder %s113, %s129
    %p131 = scmp.eq.s32.totalorder %s19, 0
    %p132 = por %p130, %p131
    %s134 = sadd.s32 %s133, 1
    %p137 = scmp.eq.s32.totalorder %s13, 3
    %p138 = scmp.ne.s32.totalorder %s133, %s135
    %p139 = scmp.eq.s32.totalorder %s13, 0
    %p140 = por %p138, %p139
    %p141 = scmp.ne.s32.totalorder %s133, %s135
    %p142 = scmp.eq.s32.totalorder %s18, 3
    %p143 = por %p141, %p142
    %p144 = scmp.ne.s32.totalorder %s135, %s136
    %p145 = scmp.eq.s32.totalorder %s18, 0
    %p146 = por %p144, %p145
    %p147 = scmp.ne.s32.totalorder %s135, %s136
    %p148 = scmp.eq.s32.totalorder %s19, 3
    %p149 = por %p147, %p148
    %p151 = scmp.ne.s32.totalorder %s136, %s150
    %p152 = scmp.eq.s32.totalorder %s19, 0
    %p153 = por %p151, %p152
    %s155 = sadd.s32 %s154, 1
    %p158 = scmp.eq.s32.totalorder %s13, 3
    %p159 = scmp.ne.s32.totalorder %s154, %s156
    %p160 = scmp.eq.s32.totalorder %s13, 0
    %p161 = por %p159, %p160
    %p162 = scmp.ne.s32.totalorder %s154, %s156
    %p163 = scmp.eq.s32.totalorder %s18, 3
    %p164 = por %p162, %p163
    %p165 = scmp.ne.s32.totalorder %s156, %s157
    %p166 = scmp.eq.s32.totalorder %s18, 0
    %p167 = por %p165, %p166
    %p168 = scmp.ne.s32.totalorder %s156, %s157
    %p169 = scmp.eq.s32.totalorder %s19, 3
    %p170 = por %p168, %p169
    %p172 = scmp.ne.s32.totalorder %s157, %s171
    %p173 = scmp.eq.s32.totalorder %s19, 0
    %p174 = por %p172, %p173
    %s176 = sadd.s32 %s175, 1
    %p179 = scmp.eq.s32.totalorder %s13, 3
    %p180 = scmp.ne.s32.totalorder %s175, %s177
    %p181 = scmp.eq.s32.totalorder %s13, 0
    %p182 = por %p180, %p181
    %p183 = scmp.ne.s32.totalorder %s175, %s177
    %p184 = scmp.eq.s32.totalorder %s18, 3
    %p185 = por %p183, %p184
    %p186 = scmp.ne.s32.totalorder %s177, %s178
    %p187 = scmp.eq.s32.totalorder %s18, 0
    %p188 = por %p186, %p187
    %p189 = scmp.ne.s32.totalorder %s177, %s178
    %p190 = scmp.eq.s32.totalorder %s19, 3
    %p191 = por %p189, %p190
    %p193 = scmp.ne.s32.totalorder %s178, %s192
    %p194 = scmp.eq.s32.totalorder %s19, 0
    %p195 = por %p193, %p194
    %s197 = sadd.s32 %s196, 1
    %p200 = scmp.eq.s32.totalorder %s13, 3
    %p201 = scmp.ne.s32.totalorder %s196, %s198
    %p202 = scmp.eq.s32.totalorder %s13, 0
    %p203 = por %p201, %p202
    %p204 = scmp.ne.s32.totalorder %s196, %s198
    %p205 = scmp.eq.s32.totalorder %s18, 3
    %p206 = por %p204, %p205
    %p207 = scmp.ne.s32.totalorder %s198, %s199
    %p208 = scmp.eq.s32.totalorder %s18, 0
    %p209 = por %p207, %p208
    %p210 = scmp.ne.s32.totalorder %s198, %s199
    %p211 = scmp.eq.s32.totalorder %s19, 3
    %p212 = por %p210, %p211
    %p214 = scmp.ne.s32.totalorder %s199, %s213
    %p215 = scmp.eq.s32.totalorder %s19, 0
    %p216 = por %p214, %p215
    %s217 = ssub.s32 %s20, %s32
    %s218 = ssub.s32 %s21, %s28
    %s219 = sor.u32 %s217, %s218
    %p220 = scmp.eq.s32.totalorder %s219, 0
    %s222 = sadd.s32 %s221, 1
    %s223 = scalar_select %p220, %s221, %s222
    %p226 = pneg %p220
    %p227 = scmp.eq.s32.totalorder %s13, 3
    %p228 = por %p226, %p227
    %p229 = scmp.ne.s32.totalorder %s221, %s224
    %p230 = scmp.eq.s32.totalorder %s13, 0
    %p231 = por %p229, %p230
    %p232 = scmp.ne.s32.totalorder %s221, %s224
    %p233 = scmp.eq.s32.totalorder %s18, 3
    %p234 = por %p232, %p233
    %p235 = scmp.ne.s32.totalorder %s224, %s225
    %p236 = scmp.eq.s32.totalorder %s18, 0
    %p237 = por %p235, %p236
    %p238 = scmp.ne.s32.totalorder %s224, %s225
    %p239 = scmp.eq.s32.totalorder %s19, 3
    %p240 = por %p238, %p239
    %p242 = scmp.ne.s32.totalorder %s225, %s241
    %p243 = scmp.eq.s32.totalorder %s19, 0
    %p244 = por %p242, %p243
    %p245 = scmp.le.s32.totalorder 1, %s13
    %p246 = scmp.lt.s32.totalorder %s13, 5
    %p247 = pnand %p245, %p246
    %p248 = pneg %p247
    // Predicated region
    $region9: #{tpu_custom_call.1} parent=5 // pred_check
      _
    $region10: #{tpu_custom_call.1} parent=5 // pred_check_branch
      %250 = sbr.rel (%p247) target = $region12
    $region11: #{tpu_custom_call.1} parent=5 // pred_region
      %s251 = ssub.s32 %s13, 1
      // Predicated region
      $region13: #{tpu_custom_call.1} parent=11 // pred_check
        %p252 = pneg %p146
      $region14: #{tpu_custom_call.1} parent=11 // pred_check_branch
        %254 = sbr.rel (%p252) target = $region16
      $region15: #{tpu_custom_call.1} parent=11 // pred_region
        _
      $region16: #{tpu_custom_call.1} parent=11 // pred_fallthru
        _
      // Predicated region
      $region17: #{tpu_custom_call.1} parent=11 // pred_check
        %p255 = pneg %p167
      $region18: #{tpu_custom_call.1} parent=11 // pred_check_branch
        %257 = sbr.rel (%p255) target = $region20
      $region19: #{tpu_custom_call.1} parent=11 // pred_region
        _
      $region20: #{tpu_custom_call.1} parent=11 // pred_fallthru
        _
      // Predicated region
      $region21: #{tpu_custom_call.1} parent=11 // pred_check
        %p258 = pneg %p188
      $region22: #{tpu_custom_call.1} parent=11 // pred_check_branch
        %260 = sbr.rel (%p258) target = $region24
      $region23: #{tpu_custom_call.1} parent=11 // pred_region
        _
      $region24: #{tpu_custom_call.1} parent=11 // pred_fallthru
        _
      // Predicated region
      $region25: #{tpu_custom_call.1} parent=11 // pred_check
        %p261 = pneg %p209
      $region26: #{tpu_custom_call.1} parent=11 // pred_check_branch
        %263 = sbr.rel (%p261) target = $region28
      $region27: #{tpu_custom_call.1} parent=11 // pred_region
        _
      $region28: #{tpu_custom_call.1} parent=11 // pred_fallthru
        _
    $region12: #{tpu_custom_call.1} parent=5 // pred_fallthru
      _
    %p264 = scmp.lt.s32.totalorder %s13, 4
    // Predicated region
    $region29: #{tpu_custom_call.1} parent=5 // pred_check
      %p265 = pneg %p264
    $region30: #{tpu_custom_call.1} parent=5 // pred_check_branch
      %267 = sbr.rel (%p265) target = $region32
    $region31: #{tpu_custom_call.1} parent=5 // pred_region
      // Predicated region
      $region33: #{tpu_custom_call.1} parent=31 // pred_check
        %p268 = pneg %p47
      $region34: #{tpu_custom_call.1} parent=31 // pred_check_branch
        %270 = sbr.rel (%p268) target = $region36
      $region35: #{tpu_custom_call.1} parent=31 // pred_region
        %s271 = smul.u32 8, %s21
        %p272 = scmp.lt.s32.totalorder %s20, 1
        %s273 = scalar_select %p272, %s20, 1
        %p274 = scmp.lt.s32.totalorder %s271, 15
        %s275 = scalar_select %p274, %s271, 15
        %s276 = smul.addr %s275, 2
        %s277 = smul.addr %s273, 32
        %s278 = sadd.s32 %s276, %s277
        %s279 = smul.addr %s278, 8
        %s280 = scalar_lea.vmem %s0, %s279
        %s281 = smul.u32 8, %s21
      $region36: #{tpu_custom_call.1} parent=31 // pred_fallthru
        _
      // Predicated region
      $region37: #{tpu_custom_call.1} parent=31 // pred_check
        %p282 = pneg %p83
      $region38: #{tpu_custom_call.1} parent=31 // pred_check_branch
        %284 = sbr.rel (%p282) target = $region40
      $region39: #{tpu_custom_call.1} parent=31 // pred_region
        %s285 = smul.u32 %s21, 8
        %s286 = ssub.s32 %s285, 1
        %p287 = scmp.gt.s32.totalorder %s286, 0
        %s288 = scalar_select %p287, %s286, 0
        %p289 = scmp.lt.s32.totalorder %s20, 1
        %s290 = scalar_select %p289, %s20, 1
        %p291 = scmp.lt.s32.totalorder %s288, 15
        %s292 = scalar_select %p291, %s288, 15
        %s293 = smul.addr %s292, 2
        %s294 = smul.addr %s290, 32
        %s295 = sadd.s32 %s293, %s294
        %s296 = smul.addr %s295, 8
        %s297 = scalar_lea.vmem %s1, %s296
        %s298 = smul.u32 %s21, 8
        %s299 = ssub.s32 %s298, 1
        %p300 = scmp.gt.s32.totalorder %s299, 0
        %s301 = scalar_select %p300, %s299, 0
      $region40: #{tpu_custom_call.1} parent=31 // pred_fallthru
        _
      // Predicated region
      $region41: #{tpu_custom_call.1} parent=31 // pred_check
        %p302 = pneg %p119
      $region42: #{tpu_custom_call.1} parent=31 // pred_check_branch
        %304 = sbr.rel (%p302) target = $region44
      $region43: #{tpu_custom_call.1} parent=31 // pred_region
        %s305 = sadd.s32 %s21, 1
        %s306 = smul.u32 %s305, 8
        %p307 = scmp.lt.s32.totalorder %s306, 15
        %s308 = scalar_select %p307, %s306, 15
        %p309 = scmp.lt.s32.totalorder %s20, 1
        %s310 = scalar_select %p309, %s20, 1
        %p311 = scmp.lt.s32.totalorder %s308, 15
        %s312 = scalar_select %p311, %s308, 15
        %s313 = smul.addr %s312, 2
        %s314 = smul.addr %s310, 32
        %s315 = sadd.s32 %s313, %s314
        %s316 = smul.addr %s315, 8
        %s317 = scalar_lea.vmem %s2, %s316
        %s318 = sadd.s32 %s21, 1
        %s319 = smul.u32 %s318, 8
        %p320 = scmp.lt.s32.totalorder %s319, 15
        %s321 = scalar_select %p320, %s319, 15
      $region44: #{tpu_custom_call.1} parent=31 // pred_fallthru
        _
    $region32: #{tpu_custom_call.1} parent=5 // pred_fallthru
      _
    %p322 = scmp.le.s32.totalorder 1, %s13
    %p323 = scmp.lt.s32.totalorder %s13, 5
    %p324 = pnand %p322, %p323
    %p325 = pneg %p324
    // Predicated region
    $region45: #{tpu_custom_call.1} parent=5 // pred_check
      _
    $region46: #{tpu_custom_call.1} parent=5 // pred_check_branch
      %327 = sbr.rel (%p324) target = $region48
    $region47: #{tpu_custom_call.1} parent=5 // pred_region
      %s328 = ssub.s32 %s13, 1
      %s329 = smul.u32 8, %s23
      %p330 = scmp.lt.s32.totalorder %s22, 1
      %s331 = scalar_select %p330, %s22, 1
      %p332 = scmp.lt.s32.totalorder %s329, 15
      %s333 = scalar_select %p332, %s329, 15
      %s334 = smul.addr %s333, 2
      %s335 = smul.addr %s331, 32
      %s336 = sadd.s32 %s334, %s335
      %s337 = smul.addr %s336, 8
      %s338 = scalar_lea.vmem %s0, %s337
      %p339 = pneg %p53
      %p340 = pneg %p50
      %s341 = smul.u32 %s23, 8
      %s342 = ssub.s32 %s341, 1
      %p343 = scmp.gt.s32.totalorder %s342, 0
      %s344 = scalar_select %p343, %s342, 0
      %p345 = scmp.lt.s32.totalorder %s22, 1
      %s346 = scalar_select %p345, %s22, 1
      %p347 = scmp.lt.s32.totalorder %s344, 15
      %s348 = scalar_select %p347, %s344, 15
      %s349 = smul.addr %s348, 2
      %s350 = smul.addr %s346, 32
      %s351 = sadd.s32 %s349, %s350
      %s352 = smul.addr %s351, 8
      %s353 = scalar_lea.vmem %s1, %s352
      %p354 = pneg %p89
      %p355 = pneg %p86
      %s356 = sadd.s32 %s23, 1
      %s357 = smul.u32 %s356, 8
      %p358 = scmp.lt.s32.totalorder %s357, 15
      %s359 = scalar_select %p358, %s357, 15
      %p360 = scmp.lt.s32.totalorder %s22, 1
      %s361 = scalar_select %p360, %s22, 1
      %p362 = scmp.lt.s32.totalorder %s359, 15
      %s363 = scalar_select %p362, %s359, 15
      %s364 = smul.addr %s363, 2
      %s365 = smul.addr %s361, 32
      %s366 = sadd.s32 %s364, %s365
      %s367 = smul.addr %s366, 8
      %s368 = scalar_lea.vmem %s2, %s367
      %p369 = pneg %p125
      %p370 = pneg %p122
      %p371 = pneg %p146
      %p372 = pneg %p143
      %p373 = pneg %p167
      %p374 = pneg %p164
      %p375 = pneg %p188
      %p376 = pneg %p185
      %p377 = pneg %p209
      %p378 = pneg %p206
      %p379 = pneg %p237
      %p380 = pneg %p234
      %s381 = smul.u32 8, %s23
      %p382 = scmp.lt.s32.totalorder %s22, 1
      %s383 = scalar_select %p382, %s22, 1
      %p384 = scmp.lt.s32.totalorder %s381, 15
      %s385 = scalar_select %p384, %s381, 15
      %s386 = smul.addr %s385, 2
      %s387 = smul.addr %s383, 32
      %s388 = sadd.s32 %s386, %s387
      %s389 = smul.addr %s388, 8
      %s390 = scalar_lea.vmem %s7, %s389
      %s391 = smul.u32 8, %s23
      %p392 = scmp.lt.s32.totalorder %s22, 1
      %s393 = scalar_select %p392, %s22, 1
      %p394 = scmp.lt.s32.totalorder %s391, 15
      %s395 = scalar_select %p394, %s391, 15
      %s396 = smul.addr %s395, 2
      %s397 = smul.addr %s393, 32
      %s398 = sadd.s32 %s396, %s397
      %s399 = smul.addr %s398, 8
      %s400 = scalar_lea.vmem %s0, %s399
      %s401 = smul.u32 8, %s23
      %s402 = smul.u32 %s23, 8
      %s403 = ssub.s32 %s402, 1
      %p404 = scmp.gt.s32.totalorder %s403, 0
      %s405 = scalar_select %p404, %s403, 0
      %p406 = scmp.lt.s32.totalorder %s22, 1
      %s407 = scalar_select %p406, %s22, 1
      %p408 = scmp.lt.s32.totalorder %s405, 15
      %s409 = scalar_select %p408, %s405, 15
      %s410 = smul.addr %s409, 2
      %s411 = smul.addr %s407, 32
      %s412 = sadd.s32 %s410, %s411
      %s413 = smul.addr %s412, 8
      %s414 = scalar_lea.vmem %s1, %s413
      %s415 = smul.u32 %s23, 8
      %s416 = ssub.s32 %s415, 1
      %p417 = scmp.gt.s32.totalorder %s416, 0
      %s418 = scalar_select %p417, %s416, 0
      %s419 = sadd.s32 %s23, 1
      %s420 = smul.u32 %s419, 8
      %p421 = scmp.lt.s32.totalorder %s420, 15
      %s422 = scalar_select %p421, %s420, 15
      %p423 = scmp.lt.s32.totalorder %s22, 1
      %s424 = scalar_select %p423, %s22, 1
      %p425 = scmp.lt.s32.totalorder %s422, 15
      %s426 = scalar_select %p425, %s422, 15
      %s427 = smul.addr %s426, 2
      %s428 = smul.addr %s424, 32
      %s429 = sadd.s32 %s427, %s428
      %s430 = smul.addr %s429, 8
      %s431 = scalar_lea.vmem %s2, %s430
      %s432 = sadd.s32 %s23, 1
      %s433 = smul.u32 %s432, 8
      %p434 = scmp.lt.s32.totalorder %s433, 15
      %s435 = scalar_select %p434, %s433, 15
      %s436 = smul.u32 8, %s23
      %p437 = scmp.lt.s32.totalorder %s22, 1
      %s438 = scalar_select %p437, %s22, 1
      %p439 = scmp.lt.s32.totalorder %s436, 15
      %s440 = scalar_select %p439, %s436, 15
      %s441 = smul.addr %s440, 2
      %s442 = smul.addr %s438, 32
      %s443 = sadd.s32 %s441, %s442
      %s444 = smul.addr %s443, 8
      %s445 = scalar_lea.vmem %s7, %s444
      %s446 = smul.u32 8, %s23
      %v448 = vld [vmem:[%s400] sm:$0xff]
      %v449 = vld [vmem:[%s400 + $0x8] sm:$0xff]
      %v450 = vld [vmem:[%s400 + $0x10] sm:$0xff]
      %v451 = vld [vmem:[%s400 + $0x18] sm:$0xff]
      %v452 = vld [vmem:[%s400 + $0x20] sm:$0xff]
      %v453 = vld [vmem:[%s400 + $0x28] sm:$0xff]
      %v454 = vld [vmem:[%s400 + $0x30] sm:$0xff]
      %v455 = vld [vmem:[%s400 + $0x38] sm:$0xff]
      %v456 = vld [vmem:[%s400 + $0x40] sm:$0xff]
      %v457 = vld [vmem:[%s400 + $0x48] sm:$0xff]
      %v458 = vld [vmem:[%s400 + $0x50] sm:$0xff]
      %v459 = vld [vmem:[%s400 + $0x58] sm:$0xff]
      %v460 = vld [vmem:[%s400 + $0x60] sm:$0xff]
      %v461 = vld [vmem:[%s400 + $0x68] sm:$0xff]
      %v462 = vld [vmem:[%s400 + $0x70] sm:$0xff]
      %v463 = vld [vmem:[%s400 + $0x78] sm:$0xff]
      %v464 = vld [vmem:[%s3] sm:$0x3]
      %v465 = vld [vmem:[%s4] sm:$0x1]
      %v466 = vpack.c.bf16 %v449, %v448
      %v467 = vpack.c.bf16 %v451, %v450
      %v468 = vpack.c.bf16 %v453, %v452
      %v469 = vpack.c.bf16 %v455, %v454
      %v470 = vpack.c.bf16 %v457, %v456
      %v471 = vpack.c.bf16 %v459, %v458
      %v472 = vpack.c.bf16 %v461, %v460
      %v473 = vpack.c.bf16 %v463, %v462
      %v475 = vlaneseq
      %v476 = vshrl.u32 %v475, 7
      %v477 = vsub.s32 0, %v476
      %v478 = vrot.slane %v465, %v477
      %vm480 = vcmask 31744
      %v482 = vsel %vm480, %v466, 0
      %v485 = vsel %vm480, %v467, 0
      %v488 = vsel %vm480, %v468, 0
      %v491 = vsel %vm480, %v469, 0
      %v494 = vsel %vm480, %v470, 0
      %v497 = vsel %vm480, %v471, 0
      %v500 = vsel %vm480, %v472, 0
      %v503 = vsel %vm480, %v473, 0
      %vm505 = vcmask 1041408
      %v507 = vsel %vm505, %v464, 0
      %509 = vmatprep.subr.bf16.mxu0 0
      %510 = vmatpush1.bf16.msra.mxu0 0
      %511 = vmatprep.subr.bf16.mxu0 0
      %512 = vmatpush1.bf16.msra.mxu0 0
      %513 = vmatprep.subr.bf16.mxu0 0
      %514 = vmatpush1.bf16.msra.mxu0 0
      %515 = vmatprep.subr.bf16.mxu0 0
      %516 = vmatpush1.bf16.msra.mxu0 0
      %517 = vmatprep.subr.bf16.mxu0 0
      %518 = vmatpush1.bf16.msra.mxu0 0
      %519 = vmatprep.subr.bf16.mxu0 0
      %520 = vmatpush1.bf16.msra.mxu0 0
      %521 = vmatprep.subr.bf16.mxu0 0
      %522 = vmatpush1.bf16.msra.mxu0 0
      %523 = vmatprep.subr.bf16.mxu0 0
      %524 = vmatpush1.bf16.msra.mxu0 %v507
      %525 = vmatprep.subr.bf16.mxu0 0
      %526 = vmatpush2.bf16.msra.mxu0 0
      %527 = vmatprep.subr.bf16.mxu0 0
      %528 = vmatpush2.bf16.msra.mxu0 0
      %529 = vmatprep.subr.bf16.mxu0 0
      %530 = vmatpush2.bf16.msra.mxu0 0
      %531 = vmatprep.subr.bf16.mxu0 0
      %532 = vmatpush2.bf16.msra.mxu0 0
      %533 = vmatprep.subr.bf16.mxu0 0
      %534 = vmatpush2.bf16.msra.mxu0 0
      %535 = vmatprep.subr.bf16.mxu0 0
      %536 = vmatpush2.bf16.msra.mxu0 0
      %537 = vmatprep.subr.bf16.mxu0 0
      %538 = vmatpush2.bf16.msra.mxu0 0
      %539 = vmatprep.subr.bf16.mxu0 0
      %540 = vmatpush2.bf16.msra.mxu0 0
      %541 = vmatprep.mubr.bf16.mxu0 0
      %542 = vmatmul.mubr.bf16.gmra.mxu0 %v482
      %v543 = vpop.f32.mrf.mxu0
      %v544 = vadd.f32 %v478, %v543
      %v545 = vpop.f32.mrf.mxu0
      %v546 = vpop.f32.mrf.mxu0
      %v547 = vadd.f32 %v478, %v546
      %v548 = vpop.f32.mrf.mxu0
      %549 = vmatprep.mubr.bf16.mxu0 0
      %550 = vmatmul.mubr.bf16.gmra.mxu0 %v485
      %v551 = vpop.f32.mrf.mxu0
      %v552 = vadd.f32 %v478, %v551
      %v553 = vpop.f32.mrf.mxu0
      %v554 = vpop.f32.mrf.mxu0
      %v555 = vadd.f32 %v478, %v554
      %v556 = vpop.f32.mrf.mxu0
      %557 = vmatprep.mubr.bf16.mxu0 0
      %558 = vmatmul.mubr.bf16.gmra.mxu0 %v488
      %v559 = vpop.f32.mrf.mxu0
      %v560 = vadd.f32 %v478, %v559
      %v561 = vpop.f32.mrf.mxu0
      %v562 = vpop.f32.mrf.mxu0
      %v563 = vadd.f32 %v478, %v562
      %v564 = vpop.f32.mrf.mxu0
      %565 = vmatprep.mubr.bf16.mxu0 0
      %566 = vmatmul.mubr.bf16.gmra.mxu0 %v491
      %v567 = vpop.f32.mrf.mxu0
      %v568 = vadd.f32 %v478, %v567
      %v569 = vpop.f32.mrf.mxu0
      %v570 = vpop.f32.mrf.mxu0
      %v571 = vadd.f32 %v478, %v570
      %v572 = vpop.f32.mrf.mxu0
      %573 = vmatprep.mubr.bf16.mxu0 0
      %574 = vmatmul.mubr.bf16.gmra.mxu0 %v494
      %v575 = vpop.f32.mrf.mxu0
      %v576 = vadd.f32 %v478, %v575
      %v577 = vpop.f32.mrf.mxu0
      %v578 = vpop.f32.mrf.mxu0
      %v579 = vadd.f32 %v478, %v578
      %v580 = vpop.f32.mrf.mxu0
      %581 = vmatprep.mubr.bf16.mxu0 0
      %582 = vmatmul.mubr.bf16.gmra.mxu0 %v497
      %v583 = vpop.f32.mrf.mxu0
      %v584 = vadd.f32 %v478, %v583
      %v585 = vpop.f32.mrf.mxu0
      %v586 = vpop.f32.mrf.mxu0
      %v587 = vadd.f32 %v478, %v586
      %v588 = vpop.f32.mrf.mxu0
      %589 = vmatprep.mubr.bf16.mxu0 0
      %590 = vmatmul.mubr.bf16.gmra.mxu0 %v500
      %v591 = vpop.f32.mrf.mxu0
      %v592 = vadd.f32 %v478, %v591
      %v593 = vpop.f32.mrf.mxu0
      %v594 = vpop.f32.mrf.mxu0
      %v595 = vadd.f32 %v478, %v594
      %v596 = vpop.f32.mrf.mxu0
      %597 = vmatprep.mubr.bf16.mxu0 0
      %598 = vmatmul.mubr.bf16.gmra.mxu0 %v503
      %v599 = vpop.f32.mrf.mxu0
      %v600 = vadd.f32 %v478, %v599
      %v601 = vpop.f32.mrf.mxu0
      %v602 = vpop.f32.mrf.mxu0
      %v603 = vadd.f32 %v478, %v602
      %v604 = vpop.f32.mrf.mxu0
      %605 = vdwg.mxu0
      %v606 = vmax.f32 %v544, 0.0
      %v607 = vmax.f32 %v547, 0.0
      %v608 = vmax.f32 %v552, 0.0
      %v609 = vmax.f32 %v555, 0.0
      %v610 = vmax.f32 %v560, 0.0
      %v611 = vmax.f32 %v563, 0.0
      %v612 = vmax.f32 %v568, 0.0
      %v613 = vmax.f32 %v571, 0.0
      %v614 = vmax.f32 %v576, 0.0
      %v615 = vmax.f32 %v579, 0.0
      %v616 = vmax.f32 %v584, 0.0
      %v617 = vmax.f32 %v587, 0.0
      %v618 = vmax.f32 %v592, 0.0
      %v619 = vmax.f32 %v595, 0.0
      %v620 = vmax.f32 %v600, 0.0
      %v621 = vmax.f32 %v603, 0.0
      %v622 = vpack.c.bf16 %v607, %v606
      %v623 = vpack.c.bf16 %v609, %v608
      %v624 = vpack.c.bf16 %v611, %v610
      %v625 = vpack.c.bf16 %v613, %v612
      %v626 = vpack.c.bf16 %v615, %v614
      %v627 = vpack.c.bf16 %v617, %v616
      %v628 = vpack.c.bf16 %v619, %v618
      %v629 = vpack.c.bf16 %v621, %v620
      %v638 = vunpack.c.l.b16 %v622
      %v639 = vunpack.c.h.b16 %v622
      %v640 = vunpack.c.l.b16 %v623
      %v641 = vunpack.c.h.b16 %v623
      %v642 = vunpack.c.l.b16 %v624
      %v643 = vunpack.c.h.b16 %v624
      %v644 = vunpack.c.l.b16 %v625
      %v645 = vunpack.c.h.b16 %v625
      %v646 = vunpack.c.l.b16 %v626
      %v647 = vunpack.c.h.b16 %v626
      %v648 = vunpack.c.l.b16 %v627
      %v649 = vunpack.c.h.b16 %v627
      %v650 = vunpack.c.l.b16 %v628
      %v651 = vunpack.c.h.b16 %v628
      %v652 = vunpack.c.l.b16 %v629
      %v653 = vunpack.c.h.b16 %v629
      %v654 = vpack.c.b16 %v638, %v638
      %v655 = vpack.c.b16 %v639, %v639
      %v656 = vpack.c.b16 %v640, %v640
      %v657 = vpack.c.b16 %v641, %v641
      %v658 = vpack.c.b16 %v642, %v642
      %v659 = vpack.c.b16 %v643, %v643
      %v660 = vpack.c.b16 %v644, %v644
      %v661 = vpack.c.b16 %v645, %v645
      %v662 = vpack.c.b16 %v646, %v646
      %v663 = vpack.c.b16 %v647, %v647
      %v664 = vpack.c.b16 %v648, %v648
      %v665 = vpack.c.b16 %v649, %v649
      %v666 = vpack.c.b16 %v650, %v650
      %v667 = vpack.c.b16 %v651, %v651
      %v668 = vpack.c.b16 %v652, %v652
      %v669 = vpack.c.b16 %v653, %v653
      %s686 = scalar_lea.vmem [#allocation2], 8
      %687 = vst [vmem:[%s686] sm:$0xf] %v654
      %688 = vst [vmem:[%s686 + $0x4] sm:$0xf] %v655
      %689 = vst [vmem:[%s686 + $0x8] sm:$0xf] %v656
      %690 = vst [vmem:[%s686 + $0xc] sm:$0xf] %v657
      %691 = vst [vmem:[%s686 + $0x10] sm:$0xf] %v658
      %692 = vst [vmem:[%s686 + $0x14] sm:$0xf] %v659
      %693 = vst [vmem:[%s686 + $0x18] sm:$0xf] %v660
      %694 = vst [vmem:[%s686 + $0x1c] sm:$0xf] %v661
      %695 = vst [vmem:[%s686 + $0x20] sm:$0xf] %v662
      %696 = vst [vmem:[%s686 + $0x24] sm:$0xf] %v663
      %697 = vst [vmem:[%s686 + $0x28] sm:$0xf] %v664
      %698 = vst [vmem:[%s686 + $0x2c] sm:$0xf] %v665
      %699 = vst [vmem:[%s686 + $0x30] sm:$0xf] %v666
      %700 = vst [vmem:[%s686 + $0x34] sm:$0xf] %v667
      %701 = vst [vmem:[%s686 + $0x38] sm:$0xf] %v668
      %702 = vst [vmem:[%s686 + $0x3c] sm:$0xf] %v669
      %v703 = vld [vmem:[%s414] sm:$0xff]
      %v704 = vld [vmem:[%s414 + $0x8] sm:$0xff]
      %v705 = vpack.c.bf16 %v704, %v703
      %p706 = scmp.gt.s32.totalorder %s23, 0
      %v708 = vsel %vm480, %v705, 0
      %710 = vmatprep.subr.bf16.mxu0 0
      %711 = vmatpush1.bf16.msra.mxu0 0
      %712 = vmatprep.subr.bf16.mxu0 0
      %713 = vmatpush1.bf16.msra.mxu0 0
      %714 = vmatprep.subr.bf16.mxu0 0
      %715 = vmatpush1.bf16.msra.mxu0 0
      %716 = vmatprep.subr.bf16.mxu0 0
      %717 = vmatpush1.bf16.msra.mxu0 0
      %718 = vmatprep.subr.bf16.mxu0 0
      %719 = vmatpush1.bf16.msra.mxu0 0
      %720 = vmatprep.subr.bf16.mxu0 0
      %721 = vmatpush1.bf16.msra.mxu0 0
      %722 = vmatprep.subr.bf16.mxu0 0
      %723 = vmatpush1.bf16.msra.mxu0 0
      %724 = vmatprep.subr.bf16.mxu0 0
      %725 = vmatpush1.bf16.msra.mxu0 %v507
      %726 = vmatprep.subr.bf16.mxu0 0
      %727 = vmatpush2.bf16.msra.mxu0 0
      %728 = vmatprep.subr.bf16.mxu0 0
      %729 = vmatpush2.bf16.msra.mxu0 0
      %730 = vmatprep.subr.bf16.mxu0 0
      %731 = vmatpush2.bf16.msra.mxu0 0
      %732 = vmatprep.subr.bf16.mxu0 0
      %733 = vmatpush2.bf16.msra.mxu0 0
      %734 = vmatprep.subr.bf16.mxu0 0
      %735 = vmatpush2.bf16.msra.mxu0 0
      %736 = vmatprep.subr.bf16.mxu0 0
      %737 = vmatpush2.bf16.msra.mxu0 0
      %738 = vmatprep.subr.bf16.mxu0 0
      %739 = vmatpush2.bf16.msra.mxu0 0
      %740 = vmatprep.subr.bf16.mxu0 0
      %741 = vmatpush2.bf16.msra.mxu0 0
      %742 = vmatprep.mubr.bf16.mxu0 0
      %743 = vmatmul.mubr.bf16.gmra.mxu0 %v708
      %v744 = vpop.f32.mrf.mxu0
      %v745 = vadd.f32 %v478, %v744
      %v746 = vpop.f32.mrf.mxu0
      %v747 = vpop.f32.mrf.mxu0
      %v748 = vadd.f32 %v478, %v747
      %v749 = vpop.f32.mrf.mxu0
      %750 = vdwg.mxu0
      %v751 = vmax.f32 %v745, 0.0
      %v752 = vmax.f32 %v748, 0.0
      %s753 = scalar_select %p706, 1, 0
      %v754 = vstv %s753
      %vm755 = vcmp.eq.s32.totalorder %v754, 1
      %v756 = vsel %vm755, %v751, 0.0
      %v757 = vsel %vm755, %v752, 0.0
      %v758 = vpack.c.bf16 %v757, %v756
      %v760 = vunpack.c.l.b16 %v758
      %v761 = vunpack.c.h.b16 %v758
      %v762 = vpack.c.b16 %v760, %v760
      %v763 = vpack.c.b16 %v761, %v761
      %766 = vst [vmem:[#allocation2] sm:$0xf] %v762
      %767 = vst [vmem:[#allocation2 + $0x4] sm:$0xf] %v763
      %v768 = vld [vmem:[%s431] sm:$0xff]
      %v769 = vld [vmem:[%s431 + $0x8] sm:$0xff]
      %v770 = vpack.c.bf16 %v769, %v768
      %p771 = scmp.lt.s32.totalorder %s23, 1
      %v773 = vsel %vm480, %v770, 0
      %775 = vmatprep.subr.bf16.mxu0 0
      %776 = vmatpush1.bf16.msra.mxu0 0
      %777 = vmatprep.subr.bf16.mxu0 0
      %778 = vmatpush1.bf16.msra.mxu0 0
      %779 = vmatprep.subr.bf16.mxu0 0
      %780 = vmatpush1.bf16.msra.mxu0 0
      %781 = vmatprep.subr.bf16.mxu0 0
      %782 = vmatpush1.bf16.msra.mxu0 0
      %783 = vmatprep.subr.bf16.mxu0 0
      %784 = vmatpush1.bf16.msra.mxu0 0
      %785 = vmatprep.subr.bf16.mxu0 0
      %786 = vmatpush1.bf16.msra.mxu0 0
      %787 = vmatprep.subr.bf16.mxu0 0
      %788 = vmatpush1.bf16.msra.mxu0 0
      %789 = vmatprep.subr.bf16.mxu0 0
      %790 = vmatpush1.bf16.msra.mxu0 %v507
      %791 = vmatprep.subr.bf16.mxu0 0
      %792 = vmatpush2.bf16.msra.mxu0 0
      %793 = vmatprep.subr.bf16.mxu0 0
      %794 = vmatpush2.bf16.msra.mxu0 0
      %795 = vmatprep.subr.bf16.mxu0 0
      %796 = vmatpush2.bf16.msra.mxu0 0
      %797 = vmatprep.subr.bf16.mxu0 0
      %798 = vmatpush2.bf16.msra.mxu0 0
      %799 = vmatprep.subr.bf16.mxu0 0
      %800 = vmatpush2.bf16.msra.mxu0 0
      %801 = vmatprep.subr.bf16.mxu0 0
      %802 = vmatpush2.bf16.msra.mxu0 0
      %803 = vmatprep.subr.bf16.mxu0 0
      %804 = vmatpush2.bf16.msra.mxu0 0
      %805 = vmatprep.subr.bf16.mxu0 0
      %806 = vmatpush2.bf16.msra.mxu0 0
      %807 = vmatprep.mubr.bf16.mxu0 0
      %808 = vmatmul.mubr.bf16.gmra.mxu0 %v773
      %v809 = vpop.f32.mrf.mxu0
      %v810 = vadd.f32 %v478, %v809
      %v811 = vpop.f32.mrf.mxu0
      %v812 = vpop.f32.mrf.mxu0
      %v813 = vadd.f32 %v478, %v812
      %v814 = vpop.f32.mrf.mxu0
      %815 = vdwg.mxu0
      %v816 = vmax.f32 %v810, 0.0
      %v817 = vmax.f32 %v813, 0.0
      %s818 = scalar_select %p771, 1, 0
      %v819 = vstv %s818
      %vm820 = vcmp.eq.s32.totalorder %v819, 1
      %v821 = vsel %vm820, %v816, 0.0
      %v822 = vsel %vm820, %v817, 0.0
      %v823 = vpack.c.bf16 %v822, %v821
      %v825 = vunpack.c.l.b16 %v823
      %v826 = vunpack.c.h.b16 %v823
      %v827 = vpack.c.b16 %v825, %v825
      %v828 = vpack.c.b16 %v826, %v826
      %s831 = scalar_lea.vmem [#allocation2], 72
      %832 = vst [vmem:[%s831] sm:$0xf] %v827
      %833 = vst [vmem:[%s831 + $0x4] sm:$0xf] %v828
      %v834 = vld [vmem:[#allocation2] sm:$0xf]
      %v835 = vld [vmem:[#allocation2 + $0x4] sm:$0xf]
      %v836 = vld [vmem:[#allocation2 + $0x8] sm:$0xf]
      %v837 = vld [vmem:[#allocation2 + $0xc] sm:$0xf]
      %v838 = vld [vmem:[#allocation2 + $0x10] sm:$0xf]
      %v839 = vld [vmem:[#allocation2 + $0x14] sm:$0xf]
      %v840 = vld [vmem:[#allocation2 + $0x18] sm:$0xf]
      %v841 = vld [vmem:[#allocation2 + $0x1c] sm:$0xf]
      %v842 = vld [vmem:[#allocation2 + $0x20] sm:$0xf]
      %v843 = vld [vmem:[#allocation2 + $0x24] sm:$0xf]
      %v844 = vld [vmem:[#allocation2 + $0x28] sm:$0xf]
      %v845 = vld [vmem:[#allocation2 + $0x2c] sm:$0xf]
      %v846 = vld [vmem:[#allocation2 + $0x30] sm:$0xf]
      %v847 = vld [vmem:[#allocation2 + $0x34] sm:$0xf]
      %v848 = vld [vmem:[#allocation2 + $0x38] sm:$0xf]
      %v849 = vld [vmem:[#allocation2 + $0x3c] sm:$0xf]
      %v850 = vld [vmem:[#allocation2 + $0x40] sm:$0xf]
      %v851 = vld [vmem:[#allocation2 + $0x44] sm:$0xf]
      %v852 = vld [vmem:[#allocation2 + $0x48] sm:$0xf]
      %v853 = vld [vmem:[#allocation2 + $0x4c] sm:$0xf]
      %v874 = vunpack.c.l.b16 %v834
      %v875 = vunpack.c.l.b16 %v835
      %v876 = vunpack.c.l.b16 %v836
      %v877 = vunpack.c.l.b16 %v837
      %v878 = vunpack.c.l.b16 %v838
      %v879 = vunpack.c.l.b16 %v839
      %v880 = vunpack.c.l.b16 %v840
      %v881 = vunpack.c.l.b16 %v841
      %v882 = vunpack.c.l.b16 %v842
      %v883 = vunpack.c.l.b16 %v843
      %v884 = vunpack.c.l.b16 %v844
      %v885 = vunpack.c.l.b16 %v845
      %v886 = vunpack.c.l.b16 %v846
      %v887 = vunpack.c.l.b16 %v847
      %v888 = vunpack.c.l.b16 %v848
      %v889 = vunpack.c.l.b16 %v849
      %v890 = vunpack.c.l.b16 %v850
      %v891 = vunpack.c.l.b16 %v851
      %v892 = vunpack.c.l.b16 %v852
      %v893 = vunpack.c.l.b16 %v853
      %v894 = vpack.c.b16 %v875, %v874
      %v895 = vpack.c.b16 %v877, %v876
      %v896 = vpack.c.b16 %v879, %v878
      %v897 = vpack.c.b16 %v881, %v880
      %v898 = vpack.c.b16 %v883, %v882
      %v899 = vpack.c.b16 %v885, %v884
      %v900 = vpack.c.b16 %v887, %v886
      %v901 = vpack.c.b16 %v889, %v888
      %v902 = vpack.c.b16 %v891, %v890
      %v903 = vpack.c.b16 %v893, %v892
      %v905 = vshrl.u32 %v894, 16
      %v907 = vrot.slane %v905, 7
      %v908 = vshll.u32 %v894, 16
      %v910 = vor.u32 %v907, %v908
      %v912 = vshrl.u32 %v895, 16
      %v914 = vrot.slane %v912, 7
      %v915 = vshll.u32 %v895, 16
      %v917 = vor.u32 %v914, %v915
      %v919 = vshrl.u32 %v896, 16
      %v921 = vrot.slane %v919, 7
      %v922 = vshll.u32 %v896, 16
      %v924 = vor.u32 %v921, %v922
      %v926 = vshrl.u32 %v897, 16
      %v928 = vrot.slane %v926, 7
      %v929 = vshll.u32 %v897, 16
      %v931 = vor.u32 %v928, %v929
      %v933 = vshrl.u32 %v898, 16
      %v935 = vrot.slane %v933, 7
      %v936 = vshll.u32 %v898, 16
      %v938 = vor.u32 %v935, %v936
      %v940 = vshrl.u32 %v899, 16
      %v942 = vrot.slane %v940, 7
      %v943 = vshll.u32 %v899, 16
      %v945 = vor.u32 %v942, %v943
      %v947 = vshrl.u32 %v900, 16
      %v949 = vrot.slane %v947, 7
      %v950 = vshll.u32 %v900, 16
      %v952 = vor.u32 %v949, %v950
      %v954 = vshrl.u32 %v901, 16
      %v956 = vrot.slane %v954, 7
      %v957 = vshll.u32 %v901, 16
      %v959 = vor.u32 %v956, %v957
      %v961 = vshrl.u32 %v902, 16
      %v963 = vrot.slane %v961, 7
      %v964 = vshll.u32 %v902, 16
      %v966 = vor.u32 %v963, %v964
      %v968 = vshrl.u32 %v903, 16
      %v970 = vrot.slane %v968, 7
      %v971 = vshll.u32 %v903, 16
      %v973 = vor.u32 %v970, %v971
      %vm984 = vcmask 1040384
      %vm985 = vsmask.f32 256
      %vm986 = vmand %vm984, %vm985
      %v987 = vsel %vm986, 0, %v910
      %v988 = vsel %vm986, 0, %v917
      %v989 = vsel %vm986, 0, %v924
      %v990 = vsel %vm986, 0, %v931
      %v991 = vsel %vm986, 0, %v938
      %v992 = vsel %vm986, 0, %v945
      %v993 = vsel %vm986, 0, %v952
      %v994 = vsel %vm986, 0, %v959
      %v995 = vsel %vm986, 0, %v966
      %v996 = vsel %vm986, 0, %v973
      %v997 = vrot.slane %v908, 1
      %v998 = vor.u32 %v905, %v997
      %v999 = vrot.slane %v915, 1
      %v1000 = vor.u32 %v912, %v999
      %v1001 = vrot.slane %v922, 1
      %v1002 = vor.u32 %v919, %v1001
      %v1003 = vrot.slane %v929, 1
      %v1004 = vor.u32 %v926, %v1003
      %v1005 = vrot.slane %v936, 1
      %v1006 = vor.u32 %v933, %v1005
      %v1007 = vrot.slane %v943, 1
      %v1008 = vor.u32 %v940, %v1007
      %v1009 = vrot.slane %v950, 1
      %v1010 = vor.u32 %v947, %v1009
      %v1011 = vrot.slane %v957, 1
      %v1012 = vor.u32 %v954, %v1011
      %v1013 = vrot.slane %v964, 1
      %v1014 = vor.u32 %v961, %v1013
      %v1015 = vrot.slane %v971, 1
      %v1016 = vor.u32 %v968, %v1015
      %vm1027 = vcmask 1047552
      %vm1028 = vsmask.f32 7424
      %vm1029 = vmand %vm1027, %vm1028
      %v1030 = vsel %vm1029, %v998, 0
      %v1031 = vsel %vm1029, %v1000, 0
      %v1032 = vsel %vm1029, %v1002, 0
      %v1033 = vsel %vm1029, %v1004, 0
      %v1034 = vsel %vm1029, %v1006, 0
      %v1035 = vsel %vm1029, %v1008, 0
      %v1036 = vsel %vm1029, %v1010, 0
      %v1037 = vsel %vm1029, %v1012, 0
      %v1038 = vsel %vm1029, %v1014, 0
      %v1039 = vsel %vm1029, %v1016, 0
      %v1040 = vld [vmem:[%s5] sm:$0xf]
      %v1041 = vld [vmem:[%s5 + $0x4] sm:$0xf]
      %v1042 = vld [vmem:[%s5 + $0x8] sm:$0xf]
      %v1043 = vld [vmem:[%s5 + $0xc] sm:$0xf]
      %v1044 = vld [vmem:[%s5 + $0x10] sm:$0xf]
      %v1045 = vld [vmem:[%s5 + $0x14] sm:$0xf]
      %v1046 = vld [vmem:[%s5 + $0x18] sm:$0xf]
      %v1047 = vld [vmem:[%s5 + $0x1c] sm:$0xf]
      %v1048 = vld [vmem:[%s5 + $0x20] sm:$0xf]
      %v1049 = vld [vmem:[%s5 + $0x24] sm:$0xf]
      %v1050 = vld [vmem:[%s5 + $0x28] sm:$0xf]
      %v1051 = vld [vmem:[%s5 + $0x2c] sm:$0xf]
      %v1052 = vld [vmem:[%s5 + $0x30] sm:$0xf]
      %v1053 = vld [vmem:[%s5 + $0x34] sm:$0xf]
      %v1054 = vld [vmem:[%s5 + $0x38] sm:$0xf]
      %v1055 = vld [vmem:[%s5 + $0x3c] sm:$0xf]
      %s1056 = scalar_lea.vmem %s5, 64
      %v1057 = vld [vmem:[%s1056] sm:$0xf]
      %v1058 = vld [vmem:[%s1056 + $0x4] sm:$0xf]
      %v1059 = vld [vmem:[%s1056 + $0x8] sm:$0xf]
      %v1060 = vld [vmem:[%s1056 + $0xc] sm:$0xf]
      %v1061 = vld [vmem:[%s1056 + $0x10] sm:$0xf]
      %v1062 = vld [vmem:[%s1056 + $0x14] sm:$0xf]
      %v1063 = vld [vmem:[%s1056 + $0x18] sm:$0xf]
      %v1064 = vld [vmem:[%s1056 + $0x1c] sm:$0xf]
      %v1065 = vld [vmem:[%s1056 + $0x20] sm:$0xf]
      %v1066 = vld [vmem:[%s1056 + $0x24] sm:$0xf]
      %v1067 = vld [vmem:[%s1056 + $0x28] sm:$0xf]
      %v1068 = vld [vmem:[%s1056 + $0x2c] sm:$0xf]
      %v1069 = vld [vmem:[%s1056 + $0x30] sm:$0xf]
      %v1070 = vld [vmem:[%s1056 + $0x34] sm:$0xf]
      %v1071 = vld [vmem:[%s1056 + $0x38] sm:$0xf]
      %v1072 = vld [vmem:[%s1056 + $0x3c] sm:$0xf]
      %v1097 = vunpack.c.l.b16 %v1057
      %v1098 = vunpack.c.l.b16 %v1058
      %v1099 = vunpack.c.l.b16 %v1059
      %v1100 = vunpack.c.l.b16 %v1060
      %v1101 = vunpack.c.l.b16 %v1061
      %v1102 = vunpack.c.l.b16 %v1062
      %v1103 = vunpack.c.l.b16 %v1063
      %v1104 = vunpack.c.l.b16 %v1064
      %v1105 = vunpack.c.l.b16 %v1065
      %v1106 = vunpack.c.l.b16 %v1066
      %v1107 = vunpack.c.l.b16 %v1067
      %v1108 = vunpack.c.l.b16 %v1068
      %v1109 = vunpack.c.l.b16 %v1069
      %v1110 = vunpack.c.l.b16 %v1070
      %v1111 = vunpack.c.l.b16 %v1071
      %v1112 = vunpack.c.l.b16 %v1072
      %v1113 = vpack.c.b16 %v1098, %v1097
      %v1114 = vpack.c.b16 %v1100, %v1099
      %v1115 = vpack.c.b16 %v1102, %v1101
      %v1116 = vpack.c.b16 %v1104, %v1103
      %v1117 = vpack.c.b16 %v1106, %v1105
      %v1118 = vpack.c.b16 %v1108, %v1107
      %v1119 = vpack.c.b16 %v1110, %v1109
      %v1120 = vpack.c.b16 %v1112, %v1111
      %1129 = vmatprep.subr.bf16.mxu0 0
      %1130 = vmatpush1.bf16.msra.mxu0 %v1120
      %1131 = vmatprep.subr.bf16.mxu0 0
      %1132 = vmatpush1.bf16.msra.mxu0 %v1119
      %1133 = vmatprep.subr.bf16.mxu0 0
      %1134 = vmatpush1.bf16.msra.mxu0 %v1118
      %1135 = vmatprep.subr.bf16.mxu0 0
      %1136 = vmatpush1.bf16.msra.mxu0 %v1117
      %1137 = vmatprep.subr.bf16.mxu0 0
      %1138 = vmatpush1.bf16.msra.mxu0 %v1116
      %1139 = vmatprep.subr.bf16.mxu0 0
      %1140 = vmatpush1.bf16.msra.mxu0 %v1115
      %1141 = vmatprep.subr.bf16.mxu0 0
      %1142 = vmatpush1.bf16.msra.mxu0 %v1114
      %1143 = vmatprep.subr.bf16.mxu0 0
      %1144 = vmatpush1.bf16.msra.mxu0 %v1113
      %1145 = vmatprep.subr.bf16.mxu0 0
      %1146 = vmatpush2.bf16.msra.mxu0 0
      %1147 = vmatprep.subr.bf16.mxu0 0
      %1148 = vmatpush2.bf16.msra.mxu0 0
      %1149 = vmatprep.subr.bf16.mxu0 0
      %1150 = vmatpush2.bf16.msra.mxu0 0
      %1151 = vmatprep.subr.bf16.mxu0 0
      %1152 = vmatpush2.bf16.msra.mxu0 0
      %1153 = vmatprep.subr.bf16.mxu0 0
      %1154 = vmatpush2.bf16.msra.mxu0 0
      %1155 = vmatprep.subr.bf16.mxu0 0
      %1156 = vmatpush2.bf16.msra.mxu0 0
      %1157 = vmatprep.subr.bf16.mxu0 0
      %1158 = vmatpush2.bf16.msra.mxu0 0
      %1159 = vmatprep.subr.bf16.mxu0 0
      %1160 = vmatpush2.bf16.msra.mxu0 0
      %1161 = vmatprep.mubr.bf16.mxu0 0
      %1162 = vmatmul.mubr.bf16.gmra.mxu0 %v894
      %v1163 = vpop.f32.mrf.mxu0
      %v1164 = vadd.f32 0.0, %v1163
      %v1165 = vpop.f32.mrf.mxu0
      %v1166 = vpop.f32.mrf.mxu0
      %v1167 = vadd.f32 0.0, %v1166
      %v1168 = vpop.f32.mrf.mxu0
      %1169 = vmatprep.mubr.bf16.mxu0 0
      %1170 = vmatmul.mubr.bf16.gmra.mxu0 %v895
      %v1171 = vpop.f32.mrf.mxu0
      %v1172 = vadd.f32 0.0, %v1171
      %v1173 = vpop.f32.mrf.mxu0
      %v1174 = vpop.f32.mrf.mxu0
      %v1175 = vadd.f32 0.0, %v1174
      %v1176 = vpop.f32.mrf.mxu0
      %1177 = vmatprep.mubr.bf16.mxu0 0
      %1178 = vmatmul.mubr.bf16.gmra.mxu0 %v896
      %v1179 = vpop.f32.mrf.mxu0
      %v1180 = vadd.f32 0.0, %v1179
      %v1181 = vpop.f32.mrf.mxu0
      %v1182 = vpop.f32.mrf.mxu0
      %v1183 = vadd.f32 0.0, %v1182
      %v1184 = vpop.f32.mrf.mxu0
      %1185 = vmatprep.mubr.bf16.mxu0 0
      %1186 = vmatmul.mubr.bf16.gmra.mxu0 %v897
      %v1187 = vpop.f32.mrf.mxu0
      %v1188 = vadd.f32 0.0, %v1187
      %v1189 = vpop.f32.mrf.mxu0
      %v1190 = vpop.f32.mrf.mxu0
      %v1191 = vadd.f32 0.0, %v1190
      %v1192 = vpop.f32.mrf.mxu0
      %1193 = vmatprep.mubr.bf16.mxu0 0
      %1194 = vmatmul.mubr.bf16.gmra.mxu0 %v898
      %v1195 = vpop.f32.mrf.mxu0
      %v1196 = vadd.f32 0.0, %v1195
      %v1197 = vpop.f32.mrf.mxu0
      %v1198 = vpop.f32.mrf.mxu0
      %v1199 = vadd.f32 0.0, %v1198
      %v1200 = vpop.f32.mrf.mxu0
      %1201 = vmatprep.mubr.bf16.mxu0 0
      %1202 = vmatmul.mubr.bf16.gmra.mxu0 %v899
      %v1203 = vpop.f32.mrf.mxu0
      %v1204 = vadd.f32 0.0, %v1203
      %v1205 = vpop.f32.mrf.mxu0
      %v1206 = vpop.f32.mrf.mxu0
      %v1207 = vadd.f32 0.0, %v1206
      %v1208 = vpop.f32.mrf.mxu0
      %1209 = vmatprep.mubr.bf16.mxu0 0
      %1210 = vmatmul.mubr.bf16.gmra.mxu0 %v900
      %v1211 = vpop.f32.mrf.mxu0
      %v1212 = vadd.f32 0.0, %v1211
      %v1213 = vpop.f32.mrf.mxu0
      %v1214 = vpop.f32.mrf.mxu0
      %v1215 = vadd.f32 0.0, %v1214
      %v1216 = vpop.f32.mrf.mxu0
      %1217 = vmatprep.mubr.bf16.mxu0 0
      %1218 = vmatmul.mubr.bf16.gmra.mxu0 %v901
      %v1219 = vpop.f32.mrf.mxu0
      %v1220 = vadd.f32 0.0, %v1219
      %v1221 = vpop.f32.mrf.mxu0
      %v1222 = vpop.f32.mrf.mxu0
      %v1223 = vadd.f32 0.0, %v1222
      %v1224 = vpop.f32.mrf.mxu0
      %1225 = vdwg.mxu0
      %v1242 = vunpack.c.l.b16 %v1040
      %v1243 = vunpack.c.l.b16 %v1041
      %v1244 = vunpack.c.l.b16 %v1042
      %v1245 = vunpack.c.l.b16 %v1043
      %v1246 = vunpack.c.l.b16 %v1044
      %v1247 = vunpack.c.l.b16 %v1045
      %v1248 = vunpack.c.l.b16 %v1046
      %v1249 = vunpack.c.l.b16 %v1047
      %v1250 = vunpack.c.l.b16 %v1048
      %v1251 = vunpack.c.l.b16 %v1049
      %v1252 = vunpack.c.l.b16 %v1050
      %v1253 = vunpack.c.l.b16 %v1051
      %v1254 = vunpack.c.l.b16 %v1052
      %v1255 = vunpack.c.l.b16 %v1053
      %v1256 = vunpack.c.l.b16 %v1054
      %v1257 = vunpack.c.l.b16 %v1055
      %v1258 = vpack.c.b16 %v1243, %v1242
      %v1259 = vpack.c.b16 %v1245, %v1244
      %v1260 = vpack.c.b16 %v1247, %v1246
      %v1261 = vpack.c.b16 %v1249, %v1248
      %v1262 = vpack.c.b16 %v1251, %v1250
      %v1263 = vpack.c.b16 %v1253, %v1252
      %v1264 = vpack.c.b16 %v1255, %v1254
      %v1265 = vpack.c.b16 %v1257, %v1256
      %1274 = vmatprep.subr.bf16.mxu0 0
      %1275 = vmatpush1.bf16.msra.mxu0 %v1265
      %1276 = vmatprep.subr.bf16.mxu0 0
      %1277 = vmatpush1.bf16.msra.mxu0 %v1264
      %1278 = vmatprep.subr.bf16.mxu0 0
      %1279 = vmatpush1.bf16.msra.mxu0 %v1263
      %1280 = vmatprep.subr.bf16.mxu0 0
      %1281 = vmatpush1.bf16.msra.mxu0 %v1262
      %1282 = vmatprep.subr.bf16.mxu0 0
      %1283 = vmatpush1.bf16.msra.mxu0 %v1261
      %1284 = vmatprep.subr.bf16.mxu0 0
      %1285 = vmatpush1.bf16.msra.mxu0 %v1260
      %1286 = vmatprep.subr.bf16.mxu0 0
      %1287 = vmatpush1.bf16.msra.mxu0 %v1259
      %1288 = vmatprep.subr.bf16.mxu0 0
      %1289 = vmatpush1.bf16.msra.mxu0 %v1258
      %1290 = vmatprep.subr.bf16.mxu0 0
      %1291 = vmatpush2.bf16.msra.mxu0 0
      %1292 = vmatprep.subr.bf16.mxu0 0
      %1293 = vmatpush2.bf16.msra.mxu0 0
      %1294 = vmatprep.subr.bf16.mxu0 0
      %1295 = vmatpush2.bf16.msra.mxu0 0
      %1296 = vmatprep.subr.bf16.mxu0 0
      %1297 = vmatpush2.bf16.msra.mxu0 0
      %1298 = vmatprep.subr.bf16.mxu0 0
      %1299 = vmatpush2.bf16.msra.mxu0 0
      %1300 = vmatprep.subr.bf16.mxu0 0
      %1301 = vmatpush2.bf16.msra.mxu0 0
      %1302 = vmatprep.subr.bf16.mxu0 0
      %1303 = vmatpush2.bf16.msra.mxu0 0
      %1304 = vmatprep.subr.bf16.mxu0 0
      %1305 = vmatpush2.bf16.msra.mxu0 0
      %1306 = vmatprep.mubr.bf16.mxu0 0
      %1307 = vmatmul.mubr.bf16.gmra.mxu0 %v987
      %v1308 = vpop.f32.mrf.mxu0
      %v1309 = vadd.f32 %v1164, %v1308
      %v1310 = vpop.f32.mrf.mxu0
      %v1311 = vpop.f32.mrf.mxu0
      %v1312 = vadd.f32 %v1167, %v1311
      %v1313 = vpop.f32.mrf.mxu0
      %1314 = vmatprep.mubr.bf16.mxu0 0
      %1315 = vmatmul.mubr.bf16.gmra.mxu0 %v988
      %v1316 = vpop.f32.mrf.mxu0
      %v1317 = vadd.f32 %v1172, %v1316
      %v1318 = vpop.f32.mrf.mxu0
      %v1319 = vpop.f32.mrf.mxu0
      %v1320 = vadd.f32 %v1175, %v1319
      %v1321 = vpop.f32.mrf.mxu0
      %1322 = vmatprep.mubr.bf16.mxu0 0
      %1323 = vmatmul.mubr.bf16.gmra.mxu0 %v989
      %v1324 = vpop.f32.mrf.mxu0
      %v1325 = vadd.f32 %v1180, %v1324
      %v1326 = vpop.f32.mrf.mxu0
      %v1327 = vpop.f32.mrf.mxu0
      %v1328 = vadd.f32 %v1183, %v1327
      %v1329 = vpop.f32.mrf.mxu0
      %1330 = vmatprep.mubr.bf16.mxu0 0
      %1331 = vmatmul.mubr.bf16.gmra.mxu0 %v990
      %v1332 = vpop.f32.mrf.mxu0
      %v1333 = vadd.f32 %v1188, %v1332
      %v1334 = vpop.f32.mrf.mxu0
      %v1335 = vpop.f32.mrf.mxu0
      %v1336 = vadd.f32 %v1191, %v1335
      %v1337 = vpop.f32.mrf.mxu0
      %1338 = vmatprep.mubr.bf16.mxu0 0
      %1339 = vmatmul.mubr.bf16.gmra.mxu0 %v991
      %v1340 = vpop.f32.mrf.mxu0
      %v1341 = vadd.f32 %v1196, %v1340
      %v1342 = vpop.f32.mrf.mxu0
      %v1343 = vpop.f32.mrf.mxu0
      %v1344 = vadd.f32 %v1199, %v1343
      %v1345 = vpop.f32.mrf.mxu0
      %1346 = vmatprep.mubr.bf16.mxu0 0
      %1347 = vmatmul.mubr.bf16.gmra.mxu0 %v992
      %v1348 = vpop.f32.mrf.mxu0
      %v1349 = vadd.f32 %v1204, %v1348
      %v1350 = vpop.f32.mrf.mxu0
      %v1351 = vpop.f32.mrf.mxu0
      %v1352 = vadd.f32 %v1207, %v1351
      %v1353 = vpop.f32.mrf.mxu0
      %1354 = vmatprep.mubr.bf16.mxu0 0
      %1355 = vmatmul.mubr.bf16.gmra.mxu0 %v993
      %v1356 = vpop.f32.mrf.mxu0
      %v1357 = vadd.f32 %v1212, %v1356
      %v1358 = vpop.f32.mrf.mxu0
      %v1359 = vpop.f32.mrf.mxu0
      %v1360 = vadd.f32 %v1215, %v1359
      %v1361 = vpop.f32.mrf.mxu0
      %1362 = vmatprep.mubr.bf16.mxu0 0
      %1363 = vmatmul.mubr.bf16.gmra.mxu0 %v994
      %v1364 = vpop.f32.mrf.mxu0
      %v1365 = vadd.f32 %v1220, %v1364
      %v1366 = vpop.f32.mrf.mxu0
      %v1367 = vpop.f32.mrf.mxu0
      %v1368 = vadd.f32 %v1223, %v1367
      %v1369 = vpop.f32.mrf.mxu0
      %1370 = vdwg.mxu0
      %s1371 = scalar_lea.vmem %s5, 128
      %v1372 = vld [vmem:[%s1371] sm:$0xf]
      %v1373 = vld [vmem:[%s1371 + $0x4] sm:$0xf]
      %v1374 = vld [vmem:[%s1371 + $0x8] sm:$0xf]
      %v1375 = vld [vmem:[%s1371 + $0xc] sm:$0xf]
      %v1376 = vld [vmem:[%s1371 + $0x10] sm:$0xf]
      %v1377 = vld [vmem:[%s1371 + $0x14] sm:$0xf]
      %v1378 = vld [vmem:[%s1371 + $0x18] sm:$0xf]
      %v1379 = vld [vmem:[%s1371 + $0x1c] sm:$0xf]
      %v1380 = vld [vmem:[%s1371 + $0x20] sm:$0xf]
      %v1381 = vld [vmem:[%s1371 + $0x24] sm:$0xf]
      %v1382 = vld [vmem:[%s1371 + $0x28] sm:$0xf]
      %v1383 = vld [vmem:[%s1371 + $0x2c] sm:$0xf]
      %v1384 = vld [vmem:[%s1371 + $0x30] sm:$0xf]
      %v1385 = vld [vmem:[%s1371 + $0x34] sm:$0xf]
      %v1386 = vld [vmem:[%s1371 + $0x38] sm:$0xf]
      %v1387 = vld [vmem:[%s1371 + $0x3c] sm:$0xf]
      %v1404 = vunpack.c.l.b16 %v1372
      %v1405 = vunpack.c.l.b16 %v1373
      %v1406 = vunpack.c.l.b16 %v1374
      %v1407 = vunpack.c.l.b16 %v1375
      %v1408 = vunpack.c.l.b16 %v1376
      %v1409 = vunpack.c.l.b16 %v1377
      %v1410 = vunpack.c.l.b16 %v1378
      %v1411 = vunpack.c.l.b16 %v1379
      %v1412 = vunpack.c.l.b16 %v1380
      %v1413 = vunpack.c.l.b16 %v1381
      %v1414 = vunpack.c.l.b16 %v1382
      %v1415 = vunpack.c.l.b16 %v1383
      %v1416 = vunpack.c.l.b16 %v1384
      %v1417 = vunpack.c.l.b16 %v1385
      %v1418 = vunpack.c.l.b16 %v1386
      %v1419 = vunpack.c.l.b16 %v1387
      %v1420 = vpack.c.b16 %v1405, %v1404
      %v1421 = vpack.c.b16 %v1407, %v1406
      %v1422 = vpack.c.b16 %v1409, %v1408
      %v1423 = vpack.c.b16 %v1411, %v1410
      %v1424 = vpack.c.b16 %v1413, %v1412
      %v1425 = vpack.c.b16 %v1415, %v1414
      %v1426 = vpack.c.b16 %v1417, %v1416
      %v1427 = vpack.c.b16 %v1419, %v1418
      %1436 = vmatprep.subr.bf16.mxu0 0
      %1437 = vmatpush1.bf16.msra.mxu0 %v1427
      %1438 = vmatprep.subr.bf16.mxu0 0
      %1439 = vmatpush1.bf16.msra.mxu0 %v1426
      %1440 = vmatprep.subr.bf16.mxu0 0
      %1441 = vmatpush1.bf16.msra.mxu0 %v1425
      %1442 = vmatprep.subr.bf16.mxu0 0
      %1443 = vmatpush1.bf16.msra.mxu0 %v1424
      %1444 = vmatprep.subr.bf16.mxu0 0
      %1445 = vmatpush1.bf16.msra.mxu0 %v1423
      %1446 = vmatprep.subr.bf16.mxu0 0
      %1447 = vmatpush1.bf16.msra.mxu0 %v1422
      %1448 = vmatprep.subr.bf16.mxu0 0
      %1449 = vmatpush1.bf16.msra.mxu0 %v1421
      %1450 = vmatprep.subr.bf16.mxu0 0
      %1451 = vmatpush1.bf16.msra.mxu0 %v1420
      %1452 = vmatprep.subr.bf16.mxu0 0
      %1453 = vmatpush2.bf16.msra.mxu0 0
      %1454 = vmatprep.subr.bf16.mxu0 0
      %1455 = vmatpush2.bf16.msra.mxu0 0
      %1456 = vmatprep.subr.bf16.mxu0 0
      %1457 = vmatpush2.bf16.msra.mxu0 0
      %1458 = vmatprep.subr.bf16.mxu0 0
      %1459 = vmatpush2.bf16.msra.mxu0 0
      %1460 = vmatprep.subr.bf16.mxu0 0
      %1461 = vmatpush2.bf16.msra.mxu0 0
      %1462 = vmatprep.subr.bf16.mxu0 0
      %1463 = vmatpush2.bf16.msra.mxu0 0
      %1464 = vmatprep.subr.bf16.mxu0 0
      %1465 = vmatpush2.bf16.msra.mxu0 0
      %1466 = vmatprep.subr.bf16.mxu0 0
      %1467 = vmatpush2.bf16.msra.mxu0 0
      %1468 = vmatprep.mubr.bf16.mxu0 0
      %1469 = vmatmul.mubr.bf16.gmra.mxu0 %v1030
      %v1470 = vpop.f32.mrf.mxu0
      %v1471 = vadd.f32 0.0, %v1470
      %v1472 = vpop.f32.mrf.mxu0
      %v1473 = vpop.f32.mrf.mxu0
      %v1474 = vadd.f32 0.0, %v1473
      %v1475 = vpop.f32.mrf.mxu0
      %1476 = vmatprep.mubr.bf16.mxu0 0
      %1477 = vmatmul.mubr.bf16.gmra.mxu0 %v1031
      %v1478 = vpop.f32.mrf.mxu0
      %v1479 = vadd.f32 0.0, %v1478
      %v1480 = vpop.f32.mrf.mxu0
      %v1481 = vpop.f32.mrf.mxu0
      %v1482 = vadd.f32 0.0, %v1481
      %v1483 = vpop.f32.mrf.mxu0
      %1484 = vmatprep.mubr.bf16.mxu0 0
      %1485 = vmatmul.mubr.bf16.gmra.mxu0 %v1032
      %v1486 = vpop.f32.mrf.mxu0
      %v1487 = vadd.f32 0.0, %v1486
      %v1488 = vpop.f32.mrf.mxu0
      %v1489 = vpop.f32.mrf.mxu0
      %v1490 = vadd.f32 0.0, %v1489
      %v1491 = vpop.f32.mrf.mxu0
      %1492 = vmatprep.mubr.bf16.mxu0 0
      %1493 = vmatmul.mubr.bf16.gmra.mxu0 %v1033
      %v1494 = vpop.f32.mrf.mxu0
      %v1495 = vadd.f32 0.0, %v1494
      %v1496 = vpop.f32.mrf.mxu0
      %v1497 = vpop.f32.mrf.mxu0
      %v1498 = vadd.f32 0.0, %v1497
      %v1499 = vpop.f32.mrf.mxu0
      %1500 = vmatprep.mubr.bf16.mxu0 0
      %1501 = vmatmul.mubr.bf16.gmra.mxu0 %v1034
      %v1502 = vpop.f32.mrf.mxu0
      %v1503 = vadd.f32 0.0, %v1502
      %v1504 = vpop.f32.mrf.mxu0
      %v1505 = vpop.f32.mrf.mxu0
      %v1506 = vadd.f32 0.0, %v1505
      %v1507 = vpop.f32.mrf.mxu0
      %1508 = vmatprep.mubr.bf16.mxu0 0
      %1509 = vmatmul.mubr.bf16.gmra.mxu0 %v1035
      %v1510 = vpop.f32.mrf.mxu0
      %v1511 = vadd.f32 0.0, %v1510
      %v1512 = vpop.f32.mrf.mxu0
      %v1513 = vpop.f32.mrf.mxu0
      %v1514 = vadd.f32 0.0, %v1513
      %v1515 = vpop.f32.mrf.mxu0
      %1516 = vmatprep.mubr.bf16.mxu0 0
      %1517 = vmatmul.mubr.bf16.gmra.mxu0 %v1036
      %v1518 = vpop.f32.mrf.mxu0
      %v1519 = vadd.f32 0.0, %v1518
      %v1520 = vpop.f32.mrf.mxu0
      %v1521 = vpop.f32.mrf.mxu0
      %v1522 = vadd.f32 0.0, %v1521
      %v1523 = vpop.f32.mrf.mxu0
      %1524 = vmatprep.mubr.bf16.mxu0 0
      %1525 = vmatmul.mubr.bf16.gmra.mxu0 %v1037
      %v1526 = vpop.f32.mrf.mxu0
      %v1527 = vadd.f32 0.0, %v1526
      %v1528 = vpop.f32.mrf.mxu0
      %v1529 = vpop.f32.mrf.mxu0
      %v1530 = vadd.f32 0.0, %v1529
      %v1531 = vpop.f32.mrf.mxu0
      %1532 = vdwg.mxu0
      %v1533 = vadd.f32 %v1309, %v1471
      %v1534 = vadd.f32 %v1312, %v1474
      %v1535 = vadd.f32 %v1317, %v1479
      %v1536 = vadd.f32 %v1320, %v1482
      %v1537 = vadd.f32 %v1325, %v1487
      %v1538 = vadd.f32 %v1328, %v1490
      %v1539 = vadd.f32 %v1333, %v1495
      %v1540 = vadd.f32 %v1336, %v1498
      %v1541 = vadd.f32 %v1341, %v1503
      %v1542 = vadd.f32 %v1344, %v1506
      %v1543 = vadd.f32 %v1349, %v1511
      %v1544 = vadd.f32 %v1352, %v1514
      %v1545 = vadd.f32 %v1357, %v1519
      %v1546 = vadd.f32 %v1360, %v1522
      %v1547 = vadd.f32 %v1365, %v1527
      %v1548 = vadd.f32 %v1368, %v1530
      %s1549 = scalar_lea.vmem %s5, 192
      %v1550 = vld [vmem:[%s1549] sm:$0xf]
      %v1551 = vld [vmem:[%s1549 + $0x4] sm:$0xf]
      %v1552 = vld [vmem:[%s1549 + $0x8] sm:$0xf]
      %v1553 = vld [vmem:[%s1549 + $0xc] sm:$0xf]
      %v1554 = vld [vmem:[%s1549 + $0x10] sm:$0xf]
      %v1555 = vld [vmem:[%s1549 + $0x14] sm:$0xf]
      %v1556 = vld [vmem:[%s1549 + $0x18] sm:$0xf]
      %v1557 = vld [vmem:[%s1549 + $0x1c] sm:$0xf]
      %v1558 = vld [vmem:[%s1549 + $0x20] sm:$0xf]
      %v1559 = vld [vmem:[%s1549 + $0x24] sm:$0xf]
      %v1560 = vld [vmem:[%s1549 + $0x28] sm:$0xf]
      %v1561 = vld [vmem:[%s1549 + $0x2c] sm:$0xf]
      %v1562 = vld [vmem:[%s1549 + $0x30] sm:$0xf]
      %v1563 = vld [vmem:[%s1549 + $0x34] sm:$0xf]
      %v1564 = vld [vmem:[%s1549 + $0x38] sm:$0xf]
      %v1565 = vld [vmem:[%s1549 + $0x3c] sm:$0xf]
      %v1582 = vunpack.c.l.b16 %v1550
      %v1583 = vunpack.c.l.b16 %v1551
      %v1584 = vunpack.c.l.b16 %v1552
      %v1585 = vunpack.c.l.b16 %v1553
      %v1586 = vunpack.c.l.b16 %v1554
      %v1587 = vunpack.c.l.b16 %v1555
      %v1588 = vunpack.c.l.b16 %v1556
      %v1589 = vunpack.c.l.b16 %v1557
      %v1590 = vunpack.c.l.b16 %v1558
      %v1591 = vunpack.c.l.b16 %v1559
      %v1592 = vunpack.c.l.b16 %v1560
      %v1593 = vunpack.c.l.b16 %v1561
      %v1594 = vunpack.c.l.b16 %v1562
      %v1595 = vunpack.c.l.b16 %v1563
      %v1596 = vunpack.c.l.b16 %v1564
      %v1597 = vunpack.c.l.b16 %v1565
      %v1598 = vpack.c.b16 %v1583, %v1582
      %v1599 = vpack.c.b16 %v1585, %v1584
      %v1600 = vpack.c.b16 %v1587, %v1586
      %v1601 = vpack.c.b16 %v1589, %v1588
      %v1602 = vpack.c.b16 %v1591, %v1590
      %v1603 = vpack.c.b16 %v1593, %v1592
      %v1604 = vpack.c.b16 %v1595, %v1594
      %v1605 = vpack.c.b16 %v1597, %v1596
      %1614 = vmatprep.subr.bf16.mxu0 0
      %1615 = vmatpush1.bf16.msra.mxu0 %v1605
      %1616 = vmatprep.subr.bf16.mxu0 0
      %1617 = vmatpush1.bf16.msra.mxu0 %v1604
      %1618 = vmatprep.subr.bf16.mxu0 0
      %1619 = vmatpush1.bf16.msra.mxu0 %v1603
      %1620 = vmatprep.subr.bf16.mxu0 0
      %1621 = vmatpush1.bf16.msra.mxu0 %v1602
      %1622 = vmatprep.subr.bf16.mxu0 0
      %1623 = vmatpush1.bf16.msra.mxu0 %v1601
      %1624 = vmatprep.subr.bf16.mxu0 0
      %1625 = vmatpush1.bf16.msra.mxu0 %v1600
      %1626 = vmatprep.subr.bf16.mxu0 0
      %1627 = vmatpush1.bf16.msra.mxu0 %v1599
      %1628 = vmatprep.subr.bf16.mxu0 0
      %1629 = vmatpush1.bf16.msra.mxu0 %v1598
      %1630 = vmatprep.subr.bf16.mxu0 0
      %1631 = vmatpush2.bf16.msra.mxu0 0
      %1632 = vmatprep.subr.bf16.mxu0 0
      %1633 = vmatpush2.bf16.msra.mxu0 0
      %1634 = vmatprep.subr.bf16.mxu0 0
      %1635 = vmatpush2.bf16.msra.mxu0 0
      %1636 = vmatprep.subr.bf16.mxu0 0
      %1637 = vmatpush2.bf16.msra.mxu0 0
      %1638 = vmatprep.subr.bf16.mxu0 0
      %1639 = vmatpush2.bf16.msra.mxu0 0
      %1640 = vmatprep.subr.bf16.mxu0 0
      %1641 = vmatpush2.bf16.msra.mxu0 0
      %1642 = vmatprep.subr.bf16.mxu0 0
      %1643 = vmatpush2.bf16.msra.mxu0 0
      %1644 = vmatprep.subr.bf16.mxu0 0
      %1645 = vmatpush2.bf16.msra.mxu0 0
      %1646 = vmatprep.mubr.bf16.mxu0 0
      %1647 = vmatmul.mubr.bf16.gmra.mxu0 %v988
      %v1648 = vpop.f32.mrf.mxu0
      %v1649 = vadd.f32 0.0, %v1648
      %v1650 = vpop.f32.mrf.mxu0
      %v1651 = vpop.f32.mrf.mxu0
      %v1652 = vadd.f32 0.0, %v1651
      %v1653 = vpop.f32.mrf.mxu0
      %1654 = vmatprep.mubr.bf16.mxu0 0
      %1655 = vmatmul.mubr.bf16.gmra.mxu0 %v989
      %v1656 = vpop.f32.mrf.mxu0
      %v1657 = vadd.f32 0.0, %v1656
      %v1658 = vpop.f32.mrf.mxu0
      %v1659 = vpop.f32.mrf.mxu0
      %v1660 = vadd.f32 0.0, %v1659
      %v1661 = vpop.f32.mrf.mxu0
      %1662 = vmatprep.mubr.bf16.mxu0 0
      %1663 = vmatmul.mubr.bf16.gmra.mxu0 %v990
      %v1664 = vpop.f32.mrf.mxu0
      %v1665 = vadd.f32 0.0, %v1664
      %v1666 = vpop.f32.mrf.mxu0
      %v1667 = vpop.f32.mrf.mxu0
      %v1668 = vadd.f32 0.0, %v1667
      %v1669 = vpop.f32.mrf.mxu0
      %1670 = vmatprep.mubr.bf16.mxu0 0
      %1671 = vmatmul.mubr.bf16.gmra.mxu0 %v991
      %v1672 = vpop.f32.mrf.mxu0
      %v1673 = vadd.f32 0.0, %v1672
      %v1674 = vpop.f32.mrf.mxu0
      %v1675 = vpop.f32.mrf.mxu0
      %v1676 = vadd.f32 0.0, %v1675
      %v1677 = vpop.f32.mrf.mxu0
      %1678 = vmatprep.mubr.bf16.mxu0 0
      %1679 = vmatmul.mubr.bf16.gmra.mxu0 %v992
      %v1680 = vpop.f32.mrf.mxu0
      %v1681 = vadd.f32 0.0, %v1680
      %v1682 = vpop.f32.mrf.mxu0
      %v1683 = vpop.f32.mrf.mxu0
      %v1684 = vadd.f32 0.0, %v1683
      %v1685 = vpop.f32.mrf.mxu0
      %1686 = vmatprep.mubr.bf16.mxu0 0
      %1687 = vmatmul.mubr.bf16.gmra.mxu0 %v993
      %v1688 = vpop.f32.mrf.mxu0
      %v1689 = vadd.f32 0.0, %v1688
      %v1690 = vpop.f32.mrf.mxu0
      %v1691 = vpop.f32.mrf.mxu0
      %v1692 = vadd.f32 0.0, %v1691
      %v1693 = vpop.f32.mrf.mxu0
      %1694 = vmatprep.mubr.bf16.mxu0 0
      %1695 = vmatmul.mubr.bf16.gmra.mxu0 %v994
      %v1696 = vpop.f32.mrf.mxu0
      %v1697 = vadd.f32 0.0, %v1696
      %v1698 = vpop.f32.mrf.mxu0
      %v1699 = vpop.f32.mrf.mxu0
      %v1700 = vadd.f32 0.0, %v1699
      %v1701 = vpop.f32.mrf.mxu0
      %1702 = vmatprep.mubr.bf16.mxu0 0
      %1703 = vmatmul.mubr.bf16.gmra.mxu0 %v995
      %v1704 = vpop.f32.mrf.mxu0
      %v1705 = vadd.f32 0.0, %v1704
      %v1706 = vpop.f32.mrf.mxu0
      %v1707 = vpop.f32.mrf.mxu0
      %v1708 = vadd.f32 0.0, %v1707
      %v1709 = vpop.f32.mrf.mxu0
      %1710 = vdwg.mxu0
      %v1711 = vadd.f32 %v1533, %v1649
      %v1712 = vadd.f32 %v1534, %v1652
      %v1713 = vadd.f32 %v1535, %v1657
      %v1714 = vadd.f32 %v1536, %v1660
      %v1715 = vadd.f32 %v1537, %v1665
      %v1716 = vadd.f32 %v1538, %v1668
      %v1717 = vadd.f32 %v1539, %v1673
      %v1718 = vadd.f32 %v1540, %v1676
      %v1719 = vadd.f32 %v1541, %v1681
      %v1720 = vadd.f32 %v1542, %v1684
      %v1721 = vadd.f32 %v1543, %v1689
      %v1722 = vadd.f32 %v1544, %v1692
      %v1723 = vadd.f32 %v1545, %v1697
      %v1724 = vadd.f32 %v1546, %v1700
      %v1725 = vadd.f32 %v1547, %v1705
      %v1726 = vadd.f32 %v1548, %v1708
      %s1727 = scalar_lea.vmem %s5, 256
      %v1728 = vld [vmem:[%s1727] sm:$0xf]
      %v1729 = vld [vmem:[%s1727 + $0x4] sm:$0xf]
      %v1730 = vld [vmem:[%s1727 + $0x8] sm:$0xf]
      %v1731 = vld [vmem:[%s1727 + $0xc] sm:$0xf]
      %v1732 = vld [vmem:[%s1727 + $0x10] sm:$0xf]
      %v1733 = vld [vmem:[%s1727 + $0x14] sm:$0xf]
      %v1734 = vld [vmem:[%s1727 + $0x18] sm:$0xf]
      %v1735 = vld [vmem:[%s1727 + $0x1c] sm:$0xf]
      %v1736 = vld [vmem:[%s1727 + $0x20] sm:$0xf]
      %v1737 = vld [vmem:[%s1727 + $0x24] sm:$0xf]
      %v1738 = vld [vmem:[%s1727 + $0x28] sm:$0xf]
      %v1739 = vld [vmem:[%s1727 + $0x2c] sm:$0xf]
      %v1740 = vld [vmem:[%s1727 + $0x30] sm:$0xf]
      %v1741 = vld [vmem:[%s1727 + $0x34] sm:$0xf]
      %v1742 = vld [vmem:[%s1727 + $0x38] sm:$0xf]
      %v1743 = vld [vmem:[%s1727 + $0x3c] sm:$0xf]
      %v1761 = vunpack.c.l.b16 %v1728
      %v1762 = vunpack.c.l.b16 %v1729
      %v1763 = vunpack.c.l.b16 %v1730
      %v1764 = vunpack.c.l.b16 %v1731
      %v1765 = vunpack.c.l.b16 %v1732
      %v1766 = vunpack.c.l.b16 %v1733
      %v1767 = vunpack.c.l.b16 %v1734
      %v1768 = vunpack.c.l.b16 %v1735
      %v1769 = vunpack.c.l.b16 %v1736
      %v1770 = vunpack.c.l.b16 %v1737
      %v1771 = vunpack.c.l.b16 %v1738
      %v1772 = vunpack.c.l.b16 %v1739
      %v1773 = vunpack.c.l.b16 %v1740
      %v1774 = vunpack.c.l.b16 %v1741
      %v1775 = vunpack.c.l.b16 %v1742
      %v1776 = vunpack.c.l.b16 %v1743
      %v1777 = vpack.c.b16 %v1762, %v1761
      %v1778 = vpack.c.b16 %v1764, %v1763
      %v1779 = vpack.c.b16 %v1766, %v1765
      %v1780 = vpack.c.b16 %v1768, %v1767
      %v1781 = vpack.c.b16 %v1770, %v1769
      %v1782 = vpack.c.b16 %v1772, %v1771
      %v1783 = vpack.c.b16 %v1774, %v1773
      %v1784 = vpack.c.b16 %v1776, %v1775
      %1793 = vmatprep.subr.bf16.mxu0 0
      %1794 = vmatpush1.bf16.msra.mxu0 %v1784
      %1795 = vmatprep.subr.bf16.mxu0 0
      %1796 = vmatpush1.bf16.msra.mxu0 %v1783
      %1797 = vmatprep.subr.bf16.mxu0 0
      %1798 = vmatpush1.bf16.msra.mxu0 %v1782
      %1799 = vmatprep.subr.bf16.mxu0 0
      %1800 = vmatpush1.bf16.msra.mxu0 %v1781
      %1801 = vmatprep.subr.bf16.mxu0 0
      %1802 = vmatpush1.bf16.msra.mxu0 %v1780
      %1803 = vmatprep.subr.bf16.mxu0 0
      %1804 = vmatpush1.bf16.msra.mxu0 %v1779
      %1805 = vmatprep.subr.bf16.mxu0 0
      %1806 = vmatpush1.bf16.msra.mxu0 %v1778
      %1807 = vmatprep.subr.bf16.mxu0 0
      %1808 = vmatpush1.bf16.msra.mxu0 %v1777
      %1809 = vmatprep.subr.bf16.mxu0 0
      %1810 = vmatpush2.bf16.msra.mxu0 0
      %1811 = vmatprep.subr.bf16.mxu0 0
      %1812 = vmatpush2.bf16.msra.mxu0 0
      %1813 = vmatprep.subr.bf16.mxu0 0
      %1814 = vmatpush2.bf16.msra.mxu0 0
      %1815 = vmatprep.subr.bf16.mxu0 0
      %1816 = vmatpush2.bf16.msra.mxu0 0
      %1817 = vmatprep.subr.bf16.mxu0 0
      %1818 = vmatpush2.bf16.msra.mxu0 0
      %1819 = vmatprep.subr.bf16.mxu0 0
      %1820 = vmatpush2.bf16.msra.mxu0 0
      %1821 = vmatprep.subr.bf16.mxu0 0
      %1822 = vmatpush2.bf16.msra.mxu0 0
      %1823 = vmatprep.subr.bf16.mxu0 0
      %1824 = vmatpush2.bf16.msra.mxu0 0
      %1825 = vmatprep.mubr.bf16.mxu0 0
      %1826 = vmatmul.mubr.bf16.gmra.mxu0 %v895
      %v1827 = vpop.f32.mrf.mxu0
      %v1828 = vadd.f32 0.0, %v1827
      %v1829 = vpop.f32.mrf.mxu0
      %v1830 = vpop.f32.mrf.mxu0
      %v1831 = vadd.f32 0.0, %v1830
      %v1832 = vpop.f32.mrf.mxu0
      %1833 = vmatprep.mubr.bf16.mxu0 0
      %1834 = vmatmul.mubr.bf16.gmra.mxu0 %v896
      %v1835 = vpop.f32.mrf.mxu0
      %v1836 = vadd.f32 0.0, %v1835
      %v1837 = vpop.f32.mrf.mxu0
      %v1838 = vpop.f32.mrf.mxu0
      %v1839 = vadd.f32 0.0, %v1838
      %v1840 = vpop.f32.mrf.mxu0
      %1841 = vmatprep.mubr.bf16.mxu0 0
      %1842 = vmatmul.mubr.bf16.gmra.mxu0 %v897
      %v1843 = vpop.f32.mrf.mxu0
      %v1844 = vadd.f32 0.0, %v1843
      %v1845 = vpop.f32.mrf.mxu0
      %v1846 = vpop.f32.mrf.mxu0
      %v1847 = vadd.f32 0.0, %v1846
      %v1848 = vpop.f32.mrf.mxu0
      %1849 = vmatprep.mubr.bf16.mxu0 0
      %1850 = vmatmul.mubr.bf16.gmra.mxu0 %v898
      %v1851 = vpop.f32.mrf.mxu0
      %v1852 = vadd.f32 0.0, %v1851
      %v1853 = vpop.f32.mrf.mxu0
      %v1854 = vpop.f32.mrf.mxu0
      %v1855 = vadd.f32 0.0, %v1854
      %v1856 = vpop.f32.mrf.mxu0
      %1857 = vmatprep.mubr.bf16.mxu0 0
      %1858 = vmatmul.mubr.bf16.gmra.mxu0 %v899
      %v1859 = vpop.f32.mrf.mxu0
      %v1860 = vadd.f32 0.0, %v1859
      %v1861 = vpop.f32.mrf.mxu0
      %v1862 = vpop.f32.mrf.mxu0
      %v1863 = vadd.f32 0.0, %v1862
      %v1864 = vpop.f32.mrf.mxu0
      %1865 = vmatprep.mubr.bf16.mxu0 0
      %1866 = vmatmul.mubr.bf16.gmra.mxu0 %v900
      %v1867 = vpop.f32.mrf.mxu0
      %v1868 = vadd.f32 0.0, %v1867
      %v1869 = vpop.f32.mrf.mxu0
      %v1870 = vpop.f32.mrf.mxu0
      %v1871 = vadd.f32 0.0, %v1870
      %v1872 = vpop.f32.mrf.mxu0
      %1873 = vmatprep.mubr.bf16.mxu0 0
      %1874 = vmatmul.mubr.bf16.gmra.mxu0 %v901
      %v1875 = vpop.f32.mrf.mxu0
      %v1876 = vadd.f32 0.0, %v1875
      %v1877 = vpop.f32.mrf.mxu0
      %v1878 = vpop.f32.mrf.mxu0
      %v1879 = vadd.f32 0.0, %v1878
      %v1880 = vpop.f32.mrf.mxu0
      %1881 = vmatprep.mubr.bf16.mxu0 0
      %1882 = vmatmul.mubr.bf16.gmra.mxu0 %v902
      %v1883 = vpop.f32.mrf.mxu0
      %v1884 = vadd.f32 0.0, %v1883
      %v1885 = vpop.f32.mrf.mxu0
      %v1886 = vpop.f32.mrf.mxu0
      %v1887 = vadd.f32 0.0, %v1886
      %v1888 = vpop.f32.mrf.mxu0
      %1889 = vdwg.mxu0
      %v1890 = vadd.f32 %v1711, %v1828
      %v1891 = vadd.f32 %v1712, %v1831
      %v1892 = vadd.f32 %v1713, %v1836
      %v1893 = vadd.f32 %v1714, %v1839
      %v1894 = vadd.f32 %v1715, %v1844
      %v1895 = vadd.f32 %v1716, %v1847
      %v1896 = vadd.f32 %v1717, %v1852
      %v1897 = vadd.f32 %v1718, %v1855
      %v1898 = vadd.f32 %v1719, %v1860
      %v1899 = vadd.f32 %v1720, %v1863
      %v1900 = vadd.f32 %v1721, %v1868
      %v1901 = vadd.f32 %v1722, %v1871
      %v1902 = vadd.f32 %v1723, %v1876
      %v1903 = vadd.f32 %v1724, %v1879
      %v1904 = vadd.f32 %v1725, %v1884
      %v1905 = vadd.f32 %v1726, %v1887
      %s1906 = scalar_lea.vmem %s5, 320
      %v1907 = vld [vmem:[%s1906] sm:$0xf]
      %v1908 = vld [vmem:[%s1906 + $0x4] sm:$0xf]
      %v1909 = vld [vmem:[%s1906 + $0x8] sm:$0xf]
      %v1910 = vld [vmem:[%s1906 + $0xc] sm:$0xf]
      %v1911 = vld [vmem:[%s1906 + $0x10] sm:$0xf]
      %v1912 = vld [vmem:[%s1906 + $0x14] sm:$0xf]
      %v1913 = vld [vmem:[%s1906 + $0x18] sm:$0xf]
      %v1914 = vld [vmem:[%s1906 + $0x1c] sm:$0xf]
      %v1915 = vld [vmem:[%s1906 + $0x20] sm:$0xf]
      %v1916 = vld [vmem:[%s1906 + $0x24] sm:$0xf]
      %v1917 = vld [vmem:[%s1906 + $0x28] sm:$0xf]
      %v1918 = vld [vmem:[%s1906 + $0x2c] sm:$0xf]
      %v1919 = vld [vmem:[%s1906 + $0x30] sm:$0xf]
      %v1920 = vld [vmem:[%s1906 + $0x34] sm:$0xf]
      %v1921 = vld [vmem:[%s1906 + $0x38] sm:$0xf]
      %v1922 = vld [vmem:[%s1906 + $0x3c] sm:$0xf]
      %v1939 = vunpack.c.l.b16 %v1907
      %v1940 = vunpack.c.l.b16 %v1908
      %v1941 = vunpack.c.l.b16 %v1909
      %v1942 = vunpack.c.l.b16 %v1910
      %v1943 = vunpack.c.l.b16 %v1911
      %v1944 = vunpack.c.l.b16 %v1912
      %v1945 = vunpack.c.l.b16 %v1913
      %v1946 = vunpack.c.l.b16 %v1914
      %v1947 = vunpack.c.l.b16 %v1915
      %v1948 = vunpack.c.l.b16 %v1916
      %v1949 = vunpack.c.l.b16 %v1917
      %v1950 = vunpack.c.l.b16 %v1918
      %v1951 = vunpack.c.l.b16 %v1919
      %v1952 = vunpack.c.l.b16 %v1920
      %v1953 = vunpack.c.l.b16 %v1921
      %v1954 = vunpack.c.l.b16 %v1922
      %v1955 = vpack.c.b16 %v1940, %v1939
      %v1956 = vpack.c.b16 %v1942, %v1941
      %v1957 = vpack.c.b16 %v1944, %v1943
      %v1958 = vpack.c.b16 %v1946, %v1945
      %v1959 = vpack.c.b16 %v1948, %v1947
      %v1960 = vpack.c.b16 %v1950, %v1949
      %v1961 = vpack.c.b16 %v1952, %v1951
      %v1962 = vpack.c.b16 %v1954, %v1953
      %1971 = vmatprep.subr.bf16.mxu0 0
      %1972 = vmatpush1.bf16.msra.mxu0 %v1962
      %1973 = vmatprep.subr.bf16.mxu0 0
      %1974 = vmatpush1.bf16.msra.mxu0 %v1961
      %1975 = vmatprep.subr.bf16.mxu0 0
      %1976 = vmatpush1.bf16.msra.mxu0 %v1960
      %1977 = vmatprep.subr.bf16.mxu0 0
      %1978 = vmatpush1.bf16.msra.mxu0 %v1959
      %1979 = vmatprep.subr.bf16.mxu0 0
      %1980 = vmatpush1.bf16.msra.mxu0 %v1958
      %1981 = vmatprep.subr.bf16.mxu0 0
      %1982 = vmatpush1.bf16.msra.mxu0 %v1957
      %1983 = vmatprep.subr.bf16.mxu0 0
      %1984 = vmatpush1.bf16.msra.mxu0 %v1956
      %1985 = vmatprep.subr.bf16.mxu0 0
      %1986 = vmatpush1.bf16.msra.mxu0 %v1955
      %1987 = vmatprep.subr.bf16.mxu0 0
      %1988 = vmatpush2.bf16.msra.mxu0 0
      %1989 = vmatprep.subr.bf16.mxu0 0
      %1990 = vmatpush2.bf16.msra.mxu0 0
      %1991 = vmatprep.subr.bf16.mxu0 0
      %1992 = vmatpush2.bf16.msra.mxu0 0
      %1993 = vmatprep.subr.bf16.mxu0 0
      %1994 = vmatpush2.bf16.msra.mxu0 0
      %1995 = vmatprep.subr.bf16.mxu0 0
      %1996 = vmatpush2.bf16.msra.mxu0 0
      %1997 = vmatprep.subr.bf16.mxu0 0
      %1998 = vmatpush2.bf16.msra.mxu0 0
      %1999 = vmatprep.subr.bf16.mxu0 0
      %2000 = vmatpush2.bf16.msra.mxu0 0
      %2001 = vmatprep.subr.bf16.mxu0 0
      %2002 = vmatpush2.bf16.msra.mxu0 0
      %2003 = vmatprep.mubr.bf16.mxu0 0
      %2004 = vmatmul.mubr.bf16.gmra.mxu0 %v1031
      %v2005 = vpop.f32.mrf.mxu0
      %v2006 = vadd.f32 0.0, %v2005
      %v2007 = vpop.f32.mrf.mxu0
      %v2008 = vpop.f32.mrf.mxu0
      %v2009 = vadd.f32 0.0, %v2008
      %v2010 = vpop.f32.mrf.mxu0
      %2011 = vmatprep.mubr.bf16.mxu0 0
      %2012 = vmatmul.mubr.bf16.gmra.mxu0 %v1032
      %v2013 = vpop.f32.mrf.mxu0
      %v2014 = vadd.f32 0.0, %v2013
      %v2015 = vpop.f32.mrf.mxu0
      %v2016 = vpop.f32.mrf.mxu0
      %v2017 = vadd.f32 0.0, %v2016
      %v2018 = vpop.f32.mrf.mxu0
      %2019 = vmatprep.mubr.bf16.mxu0 0
      %2020 = vmatmul.mubr.bf16.gmra.mxu0 %v1033
      %v2021 = vpop.f32.mrf.mxu0
      %v2022 = vadd.f32 0.0, %v2021
      %v2023 = vpop.f32.mrf.mxu0
      %v2024 = vpop.f32.mrf.mxu0
      %v2025 = vadd.f32 0.0, %v2024
      %v2026 = vpop.f32.mrf.mxu0
      %2027 = vmatprep.mubr.bf16.mxu0 0
      %2028 = vmatmul.mubr.bf16.gmra.mxu0 %v1034
      %v2029 = vpop.f32.mrf.mxu0
      %v2030 = vadd.f32 0.0, %v2029
      %v2031 = vpop.f32.mrf.mxu0
      %v2032 = vpop.f32.mrf.mxu0
      %v2033 = vadd.f32 0.0, %v2032
      %v2034 = vpop.f32.mrf.mxu0
      %2035 = vmatprep.mubr.bf16.mxu0 0
      %2036 = vmatmul.mubr.bf16.gmra.mxu0 %v1035
      %v2037 = vpop.f32.mrf.mxu0
      %v2038 = vadd.f32 0.0, %v2037
      %v2039 = vpop.f32.mrf.mxu0
      %v2040 = vpop.f32.mrf.mxu0
      %v2041 = vadd.f32 0.0, %v2040
      %v2042 = vpop.f32.mrf.mxu0
      %2043 = vmatprep.mubr.bf16.mxu0 0
      %2044 = vmatmul.mubr.bf16.gmra.mxu0 %v1036
      %v2045 = vpop.f32.mrf.mxu0
      %v2046 = vadd.f32 0.0, %v2045
      %v2047 = vpop.f32.mrf.mxu0
      %v2048 = vpop.f32.mrf.mxu0
      %v2049 = vadd.f32 0.0, %v2048
      %v2050 = vpop.f32.mrf.mxu0
      %2051 = vmatprep.mubr.bf16.mxu0 0
      %2052 = vmatmul.mubr.bf16.gmra.mxu0 %v1037
      %v2053 = vpop.f32.mrf.mxu0
      %v2054 = vadd.f32 0.0, %v2053
      %v2055 = vpop.f32.mrf.mxu0
      %v2056 = vpop.f32.mrf.mxu0
      %v2057 = vadd.f32 0.0, %v2056
      %v2058 = vpop.f32.mrf.mxu0
      %2059 = vmatprep.mubr.bf16.mxu0 0
      %2060 = vmatmul.mubr.bf16.gmra.mxu0 %v1038
      %v2061 = vpop.f32.mrf.mxu0
      %v2062 = vadd.f32 0.0, %v2061
      %v2063 = vpop.f32.mrf.mxu0
      %v2064 = vpop.f32.mrf.mxu0
      %v2065 = vadd.f32 0.0, %v2064
      %v2066 = vpop.f32.mrf.mxu0
      %2067 = vdwg.mxu0
      %v2068 = vadd.f32 %v1890, %v2006
      %v2069 = vadd.f32 %v1891, %v2009
      %v2070 = vadd.f32 %v1892, %v2014
      %v2071 = vadd.f32 %v1893, %v2017
      %v2072 = vadd.f32 %v1894, %v2022
      %v2073 = vadd.f32 %v1895, %v2025
      %v2074 = vadd.f32 %v1896, %v2030
      %v2075 = vadd.f32 %v1897, %v2033
      %v2076 = vadd.f32 %v1898, %v2038
      %v2077 = vadd.f32 %v1899, %v2041
      %v2078 = vadd.f32 %v1900, %v2046
      %v2079 = vadd.f32 %v1901, %v2049
      %v2080 = vadd.f32 %v1902, %v2054
      %v2081 = vadd.f32 %v1903, %v2057
      %v2082 = vadd.f32 %v1904, %v2062
      %v2083 = vadd.f32 %v1905, %v2065
      %s2084 = scalar_lea.vmem %s5, 384
      %v2085 = vld [vmem:[%s2084] sm:$0xf]
      %v2086 = vld [vmem:[%s2084 + $0x4] sm:$0xf]
      %v2087 = vld [vmem:[%s2084 + $0x8] sm:$0xf]
      %v2088 = vld [vmem:[%s2084 + $0xc] sm:$0xf]
      %v2089 = vld [vmem:[%s2084 + $0x10] sm:$0xf]
      %v2090 = vld [vmem:[%s2084 + $0x14] sm:$0xf]
      %v2091 = vld [vmem:[%s2084 + $0x18] sm:$0xf]
      %v2092 = vld [vmem:[%s2084 + $0x1c] sm:$0xf]
      %v2093 = vld [vmem:[%s2084 + $0x20] sm:$0xf]
      %v2094 = vld [vmem:[%s2084 + $0x24] sm:$0xf]
      %v2095 = vld [vmem:[%s2084 + $0x28] sm:$0xf]
      %v2096 = vld [vmem:[%s2084 + $0x2c] sm:$0xf]
      %v2097 = vld [vmem:[%s2084 + $0x30] sm:$0xf]
      %v2098 = vld [vmem:[%s2084 + $0x34] sm:$0xf]
      %v2099 = vld [vmem:[%s2084 + $0x38] sm:$0xf]
      %v2100 = vld [vmem:[%s2084 + $0x3c] sm:$0xf]
      %v2117 = vunpack.c.l.b16 %v2085
      %v2118 = vunpack.c.l.b16 %v2086
      %v2119 = vunpack.c.l.b16 %v2087
      %v2120 = vunpack.c.l.b16 %v2088
      %v2121 = vunpack.c.l.b16 %v2089
      %v2122 = vunpack.c.l.b16 %v2090
      %v2123 = vunpack.c.l.b16 %v2091
      %v2124 = vunpack.c.l.b16 %v2092
      %v2125 = vunpack.c.l.b16 %v2093
      %v2126 = vunpack.c.l.b16 %v2094
      %v2127 = vunpack.c.l.b16 %v2095
      %v2128 = vunpack.c.l.b16 %v2096
      %v2129 = vunpack.c.l.b16 %v2097
      %v2130 = vunpack.c.l.b16 %v2098
      %v2131 = vunpack.c.l.b16 %v2099
      %v2132 = vunpack.c.l.b16 %v2100
      %v2133 = vpack.c.b16 %v2118, %v2117
      %v2134 = vpack.c.b16 %v2120, %v2119
      %v2135 = vpack.c.b16 %v2122, %v2121
      %v2136 = vpack.c.b16 %v2124, %v2123
      %v2137 = vpack.c.b16 %v2126, %v2125
      %v2138 = vpack.c.b16 %v2128, %v2127
      %v2139 = vpack.c.b16 %v2130, %v2129
      %v2140 = vpack.c.b16 %v2132, %v2131
      %2149 = vmatprep.subr.bf16.mxu0 0
      %2150 = vmatpush1.bf16.msra.mxu0 %v2140
      %2151 = vmatprep.subr.bf16.mxu0 0
      %2152 = vmatpush1.bf16.msra.mxu0 %v2139
      %2153 = vmatprep.subr.bf16.mxu0 0
      %2154 = vmatpush1.bf16.msra.mxu0 %v2138
      %2155 = vmatprep.subr.bf16.mxu0 0
      %2156 = vmatpush1.bf16.msra.mxu0 %v2137
      %2157 = vmatprep.subr.bf16.mxu0 0
      %2158 = vmatpush1.bf16.msra.mxu0 %v2136
      %2159 = vmatprep.subr.bf16.mxu0 0
      %2160 = vmatpush1.bf16.msra.mxu0 %v2135
      %2161 = vmatprep.subr.bf16.mxu0 0
      %2162 = vmatpush1.bf16.msra.mxu0 %v2134
      %2163 = vmatprep.subr.bf16.mxu0 0
      %2164 = vmatpush1.bf16.msra.mxu0 %v2133
      %2165 = vmatprep.subr.bf16.mxu0 0
      %2166 = vmatpush2.bf16.msra.mxu0 0
      %2167 = vmatprep.subr.bf16.mxu0 0
      %2168 = vmatpush2.bf16.msra.mxu0 0
      %2169 = vmatprep.subr.bf16.mxu0 0
      %2170 = vmatpush2.bf16.msra.mxu0 0
      %2171 = vmatprep.subr.bf16.mxu0 0
      %2172 = vmatpush2.bf16.msra.mxu0 0
      %2173 = vmatprep.subr.bf16.mxu0 0
      %2174 = vmatpush2.bf16.msra.mxu0 0
      %2175 = vmatprep.subr.bf16.mxu0 0
      %2176 = vmatpush2.bf16.msra.mxu0 0
      %2177 = vmatprep.subr.bf16.mxu0 0
      %2178 = vmatpush2.bf16.msra.mxu0 0
      %2179 = vmatprep.subr.bf16.mxu0 0
      %2180 = vmatpush2.bf16.msra.mxu0 0
      %2181 = vmatprep.mubr.bf16.mxu0 0
      %2182 = vmatmul.mubr.bf16.gmra.mxu0 %v989
      %v2183 = vpop.f32.mrf.mxu0
      %v2184 = vadd.f32 0.0, %v2183
      %v2185 = vpop.f32.mrf.mxu0
      %v2186 = vpop.f32.mrf.mxu0
      %v2187 = vadd.f32 0.0, %v2186
      %v2188 = vpop.f32.mrf.mxu0
      %2189 = vmatprep.mubr.bf16.mxu0 0
      %2190 = vmatmul.mubr.bf16.gmra.mxu0 %v990
      %v2191 = vpop.f32.mrf.mxu0
      %v2192 = vadd.f32 0.0, %v2191
      %v2193 = vpop.f32.mrf.mxu0
      %v2194 = vpop.f32.mrf.mxu0
      %v2195 = vadd.f32 0.0, %v2194
      %v2196 = vpop.f32.mrf.mxu0
      %2197 = vmatprep.mubr.bf16.mxu0 0
      %2198 = vmatmul.mubr.bf16.gmra.mxu0 %v991
      %v2199 = vpop.f32.mrf.mxu0
      %v2200 = vadd.f32 0.0, %v2199
      %v2201 = vpop.f32.mrf.mxu0
      %v2202 = vpop.f32.mrf.mxu0
      %v2203 = vadd.f32 0.0, %v2202
      %v2204 = vpop.f32.mrf.mxu0
      %2205 = vmatprep.mubr.bf16.mxu0 0
      %2206 = vmatmul.mubr.bf16.gmra.mxu0 %v992
      %v2207 = vpop.f32.mrf.mxu0
      %v2208 = vadd.f32 0.0, %v2207
      %v2209 = vpop.f32.mrf.mxu0
      %v2210 = vpop.f32.mrf.mxu0
      %v2211 = vadd.f32 0.0, %v2210
      %v2212 = vpop.f32.mrf.mxu0
      %2213 = vmatprep.mubr.bf16.mxu0 0
      %2214 = vmatmul.mubr.bf16.gmra.mxu0 %v993
      %v2215 = vpop.f32.mrf.mxu0
      %v2216 = vadd.f32 0.0, %v2215
      %v2217 = vpop.f32.mrf.mxu0
      %v2218 = vpop.f32.mrf.mxu0
      %v2219 = vadd.f32 0.0, %v2218
      %v2220 = vpop.f32.mrf.mxu0
      %2221 = vmatprep.mubr.bf16.mxu0 0
      %2222 = vmatmul.mubr.bf16.gmra.mxu0 %v994
      %v2223 = vpop.f32.mrf.mxu0
      %v2224 = vadd.f32 0.0, %v2223
      %v2225 = vpop.f32.mrf.mxu0
      %v2226 = vpop.f32.mrf.mxu0
      %v2227 = vadd.f32 0.0, %v2226
      %v2228 = vpop.f32.mrf.mxu0
      %2229 = vmatprep.mubr.bf16.mxu0 0
      %2230 = vmatmul.mubr.bf16.gmra.mxu0 %v995
      %v2231 = vpop.f32.mrf.mxu0
      %v2232 = vadd.f32 0.0, %v2231
      %v2233 = vpop.f32.mrf.mxu0
      %v2234 = vpop.f32.mrf.mxu0
      %v2235 = vadd.f32 0.0, %v2234
      %v2236 = vpop.f32.mrf.mxu0
      %2237 = vmatprep.mubr.bf16.mxu0 0
      %2238 = vmatmul.mubr.bf16.gmra.mxu0 %v996
      %v2239 = vpop.f32.mrf.mxu0
      %v2240 = vadd.f32 0.0, %v2239
      %v2241 = vpop.f32.mrf.mxu0
      %v2242 = vpop.f32.mrf.mxu0
      %v2243 = vadd.f32 0.0, %v2242
      %v2244 = vpop.f32.mrf.mxu0
      %2245 = vdwg.mxu0
      %v2246 = vadd.f32 %v2068, %v2184
      %v2247 = vadd.f32 %v2069, %v2187
      %v2248 = vadd.f32 %v2070, %v2192
      %v2249 = vadd.f32 %v2071, %v2195
      %v2250 = vadd.f32 %v2072, %v2200
      %v2251 = vadd.f32 %v2073, %v2203
      %v2252 = vadd.f32 %v2074, %v2208
      %v2253 = vadd.f32 %v2075, %v2211
      %v2254 = vadd.f32 %v2076, %v2216
      %v2255 = vadd.f32 %v2077, %v2219
      %v2256 = vadd.f32 %v2078, %v2224
      %v2257 = vadd.f32 %v2079, %v2227
      %v2258 = vadd.f32 %v2080, %v2232
      %v2259 = vadd.f32 %v2081, %v2235
      %v2260 = vadd.f32 %v2082, %v2240
      %v2261 = vadd.f32 %v2083, %v2243
      %s2262 = scalar_lea.vmem %s5, 448
      %v2263 = vld [vmem:[%s2262] sm:$0xf]
      %v2264 = vld [vmem:[%s2262 + $0x4] sm:$0xf]
      %v2265 = vld [vmem:[%s2262 + $0x8] sm:$0xf]
      %v2266 = vld [vmem:[%s2262 + $0xc] sm:$0xf]
      %v2267 = vld [vmem:[%s2262 + $0x10] sm:$0xf]
      %v2268 = vld [vmem:[%s2262 + $0x14] sm:$0xf]
      %v2269 = vld [vmem:[%s2262 + $0x18] sm:$0xf]
      %v2270 = vld [vmem:[%s2262 + $0x1c] sm:$0xf]
      %v2271 = vld [vmem:[%s2262 + $0x20] sm:$0xf]
      %v2272 = vld [vmem:[%s2262 + $0x24] sm:$0xf]
      %v2273 = vld [vmem:[%s2262 + $0x28] sm:$0xf]
      %v2274 = vld [vmem:[%s2262 + $0x2c] sm:$0xf]
      %v2275 = vld [vmem:[%s2262 + $0x30] sm:$0xf]
      %v2276 = vld [vmem:[%s2262 + $0x34] sm:$0xf]
      %v2277 = vld [vmem:[%s2262 + $0x38] sm:$0xf]
      %v2278 = vld [vmem:[%s2262 + $0x3c] sm:$0xf]
      %v2296 = vunpack.c.l.b16 %v2263
      %v2297 = vunpack.c.l.b16 %v2264
      %v2298 = vunpack.c.l.b16 %v2265
      %v2299 = vunpack.c.l.b16 %v2266
      %v2300 = vunpack.c.l.b16 %v2267
      %v2301 = vunpack.c.l.b16 %v2268
      %v2302 = vunpack.c.l.b16 %v2269
      %v2303 = vunpack.c.l.b16 %v2270
      %v2304 = vunpack.c.l.b16 %v2271
      %v2305 = vunpack.c.l.b16 %v2272
      %v2306 = vunpack.c.l.b16 %v2273
      %v2307 = vunpack.c.l.b16 %v2274
      %v2308 = vunpack.c.l.b16 %v2275
      %v2309 = vunpack.c.l.b16 %v2276
      %v2310 = vunpack.c.l.b16 %v2277
      %v2311 = vunpack.c.l.b16 %v2278
      %v2312 = vpack.c.b16 %v2297, %v2296
      %v2313 = vpack.c.b16 %v2299, %v2298
      %v2314 = vpack.c.b16 %v2301, %v2300
      %v2315 = vpack.c.b16 %v2303, %v2302
      %v2316 = vpack.c.b16 %v2305, %v2304
      %v2317 = vpack.c.b16 %v2307, %v2306
      %v2318 = vpack.c.b16 %v2309, %v2308
      %v2319 = vpack.c.b16 %v2311, %v2310
      %2328 = vmatprep.subr.bf16.mxu0 0
      %2329 = vmatpush1.bf16.msra.mxu0 %v2319
      %2330 = vmatprep.subr.bf16.mxu0 0
      %2331 = vmatpush1.bf16.msra.mxu0 %v2318
      %2332 = vmatprep.subr.bf16.mxu0 0
      %2333 = vmatpush1.bf16.msra.mxu0 %v2317
      %2334 = vmatprep.subr.bf16.mxu0 0
      %2335 = vmatpush1.bf16.msra.mxu0 %v2316
      %2336 = vmatprep.subr.bf16.mxu0 0
      %2337 = vmatpush1.bf16.msra.mxu0 %v2315
      %2338 = vmatprep.subr.bf16.mxu0 0
      %2339 = vmatpush1.bf16.msra.mxu0 %v2314
      %2340 = vmatprep.subr.bf16.mxu0 0
      %2341 = vmatpush1.bf16.msra.mxu0 %v2313
      %2342 = vmatprep.subr.bf16.mxu0 0
      %2343 = vmatpush1.bf16.msra.mxu0 %v2312
      %2344 = vmatprep.subr.bf16.mxu0 0
      %2345 = vmatpush2.bf16.msra.mxu0 0
      %2346 = vmatprep.subr.bf16.mxu0 0
      %2347 = vmatpush2.bf16.msra.mxu0 0
      %2348 = vmatprep.subr.bf16.mxu0 0
      %2349 = vmatpush2.bf16.msra.mxu0 0
      %2350 = vmatprep.subr.bf16.mxu0 0
      %2351 = vmatpush2.bf16.msra.mxu0 0
      %2352 = vmatprep.subr.bf16.mxu0 0
      %2353 = vmatpush2.bf16.msra.mxu0 0
      %2354 = vmatprep.subr.bf16.mxu0 0
      %2355 = vmatpush2.bf16.msra.mxu0 0
      %2356 = vmatprep.subr.bf16.mxu0 0
      %2357 = vmatpush2.bf16.msra.mxu0 0
      %2358 = vmatprep.subr.bf16.mxu0 0
      %2359 = vmatpush2.bf16.msra.mxu0 0
      %2360 = vmatprep.mubr.bf16.mxu0 0
      %2361 = vmatmul.mubr.bf16.gmra.mxu0 %v896
      %v2362 = vpop.f32.mrf.mxu0
      %v2363 = vadd.f32 0.0, %v2362
      %v2364 = vpop.f32.mrf.mxu0
      %v2365 = vpop.f32.mrf.mxu0
      %v2366 = vadd.f32 0.0, %v2365
      %v2367 = vpop.f32.mrf.mxu0
      %2368 = vmatprep.mubr.bf16.mxu0 0
      %2369 = vmatmul.mubr.bf16.gmra.mxu0 %v897
      %v2370 = vpop.f32.mrf.mxu0
      %v2371 = vadd.f32 0.0, %v2370
      %v2372 = vpop.f32.mrf.mxu0
      %v2373 = vpop.f32.mrf.mxu0
      %v2374 = vadd.f32 0.0, %v2373
      %v2375 = vpop.f32.mrf.mxu0
      %2376 = vmatprep.mubr.bf16.mxu0 0
      %2377 = vmatmul.mubr.bf16.gmra.mxu0 %v898
      %v2378 = vpop.f32.mrf.mxu0
      %v2379 = vadd.f32 0.0, %v2378
      %v2380 = vpop.f32.mrf.mxu0
      %v2381 = vpop.f32.mrf.mxu0
      %v2382 = vadd.f32 0.0, %v2381
      %v2383 = vpop.f32.mrf.mxu0
      %2384 = vmatprep.mubr.bf16.mxu0 0
      %2385 = vmatmul.mubr.bf16.gmra.mxu0 %v899
      %v2386 = vpop.f32.mrf.mxu0
      %v2387 = vadd.f32 0.0, %v2386
      %v2388 = vpop.f32.mrf.mxu0
      %v2389 = vpop.f32.mrf.mxu0
      %v2390 = vadd.f32 0.0, %v2389
      %v2391 = vpop.f32.mrf.mxu0
      %2392 = vmatprep.mubr.bf16.mxu0 0
      %2393 = vmatmul.mubr.bf16.gmra.mxu0 %v900
      %v2394 = vpop.f32.mrf.mxu0
      %v2395 = vadd.f32 0.0, %v2394
      %v2396 = vpop.f32.mrf.mxu0
      %v2397 = vpop.f32.mrf.mxu0
      %v2398 = vadd.f32 0.0, %v2397
      %v2399 = vpop.f32.mrf.mxu0
      %2400 = vmatprep.mubr.bf16.mxu0 0
      %2401 = vmatmul.mubr.bf16.gmra.mxu0 %v901
      %v2402 = vpop.f32.mrf.mxu0
      %v2403 = vadd.f32 0.0, %v2402
      %v2404 = vpop.f32.mrf.mxu0
      %v2405 = vpop.f32.mrf.mxu0
      %v2406 = vadd.f32 0.0, %v2405
      %v2407 = vpop.f32.mrf.mxu0
      %2408 = vmatprep.mubr.bf16.mxu0 0
      %2409 = vmatmul.mubr.bf16.gmra.mxu0 %v902
      %v2410 = vpop.f32.mrf.mxu0
      %v2411 = vadd.f32 0.0, %v2410
      %v2412 = vpop.f32.mrf.mxu0
      %v2413 = vpop.f32.mrf.mxu0
      %v2414 = vadd.f32 0.0, %v2413
      %v2415 = vpop.f32.mrf.mxu0
      %2416 = vmatprep.mubr.bf16.mxu0 0
      %2417 = vmatmul.mubr.bf16.gmra.mxu0 %v903
      %v2418 = vpop.f32.mrf.mxu0
      %v2419 = vadd.f32 0.0, %v2418
      %v2420 = vpop.f32.mrf.mxu0
      %v2421 = vpop.f32.mrf.mxu0
      %v2422 = vadd.f32 0.0, %v2421
      %v2423 = vpop.f32.mrf.mxu0
      %2424 = vdwg.mxu0
      %v2425 = vadd.f32 %v2246, %v2363
      %v2426 = vadd.f32 %v2247, %v2366
      %v2427 = vadd.f32 %v2248, %v2371
      %v2428 = vadd.f32 %v2249, %v2374
      %v2429 = vadd.f32 %v2250, %v2379
      %v2430 = vadd.f32 %v2251, %v2382
      %v2431 = vadd.f32 %v2252, %v2387
      %v2432 = vadd.f32 %v2253, %v2390
      %v2433 = vadd.f32 %v2254, %v2395
      %v2434 = vadd.f32 %v2255, %v2398
      %v2435 = vadd.f32 %v2256, %v2403
      %v2436 = vadd.f32 %v2257, %v2406
      %v2437 = vadd.f32 %v2258, %v2411
      %v2438 = vadd.f32 %v2259, %v2414
      %v2439 = vadd.f32 %v2260, %v2419
      %v2440 = vadd.f32 %v2261, %v2422
      %s2441 = scalar_lea.vmem %s5, 512
      %v2442 = vld [vmem:[%s2441] sm:$0xf]
      %v2443 = vld [vmem:[%s2441 + $0x4] sm:$0xf]
      %v2444 = vld [vmem:[%s2441 + $0x8] sm:$0xf]
      %v2445 = vld [vmem:[%s2441 + $0xc] sm:$0xf]
      %v2446 = vld [vmem:[%s2441 + $0x10] sm:$0xf]
      %v2447 = vld [vmem:[%s2441 + $0x14] sm:$0xf]
      %v2448 = vld [vmem:[%s2441 + $0x18] sm:$0xf]
      %v2449 = vld [vmem:[%s2441 + $0x1c] sm:$0xf]
      %v2450 = vld [vmem:[%s2441 + $0x20] sm:$0xf]
      %v2451 = vld [vmem:[%s2441 + $0x24] sm:$0xf]
      %v2452 = vld [vmem:[%s2441 + $0x28] sm:$0xf]
      %v2453 = vld [vmem:[%s2441 + $0x2c] sm:$0xf]
      %v2454 = vld [vmem:[%s2441 + $0x30] sm:$0xf]
      %v2455 = vld [vmem:[%s2441 + $0x34] sm:$0xf]
      %v2456 = vld [vmem:[%s2441 + $0x38] sm:$0xf]
      %v2457 = vld [vmem:[%s2441 + $0x3c] sm:$0xf]
      %v2474 = vunpack.c.l.b16 %v2442
      %v2475 = vunpack.c.l.b16 %v2443
      %v2476 = vunpack.c.l.b16 %v2444
      %v2477 = vunpack.c.l.b16 %v2445
      %v2478 = vunpack.c.l.b16 %v2446
      %v2479 = vunpack.c.l.b16 %v2447
      %v2480 = vunpack.c.l.b16 %v2448
      %v2481 = vunpack.c.l.b16 %v2449
      %v2482 = vunpack.c.l.b16 %v2450
      %v2483 = vunpack.c.l.b16 %v2451
      %v2484 = vunpack.c.l.b16 %v2452
      %v2485 = vunpack.c.l.b16 %v2453
      %v2486 = vunpack.c.l.b16 %v2454
      %v2487 = vunpack.c.l.b16 %v2455
      %v2488 = vunpack.c.l.b16 %v2456
      %v2489 = vunpack.c.l.b16 %v2457
      %v2490 = vpack.c.b16 %v2475, %v2474
      %v2491 = vpack.c.b16 %v2477, %v2476
      %v2492 = vpack.c.b16 %v2479, %v2478
      %v2493 = vpack.c.b16 %v2481, %v2480
      %v2494 = vpack.c.b16 %v2483, %v2482
      %v2495 = vpack.c.b16 %v2485, %v2484
      %v2496 = vpack.c.b16 %v2487, %v2486
      %v2497 = vpack.c.b16 %v2489, %v2488
      %2506 = vmatprep.subr.bf16.mxu0 0
      %2507 = vmatpush1.bf16.msra.mxu0 %v2497
      %2508 = vmatprep.subr.bf16.mxu0 0
      %2509 = vmatpush1.bf16.msra.mxu0 %v2496
      %2510 = vmatprep.subr.bf16.mxu0 0
      %2511 = vmatpush1.bf16.msra.mxu0 %v2495
      %2512 = vmatprep.subr.bf16.mxu0 0
      %2513 = vmatpush1.bf16.msra.mxu0 %v2494
      %2514 = vmatprep.subr.bf16.mxu0 0
      %2515 = vmatpush1.bf16.msra.mxu0 %v2493
      %2516 = vmatprep.subr.bf16.mxu0 0
      %2517 = vmatpush1.bf16.msra.mxu0 %v2492
      %2518 = vmatprep.subr.bf16.mxu0 0
      %2519 = vmatpush1.bf16.msra.mxu0 %v2491
      %2520 = vmatprep.subr.bf16.mxu0 0
      %2521 = vmatpush1.bf16.msra.mxu0 %v2490
      %2522 = vmatprep.subr.bf16.mxu0 0
      %2523 = vmatpush2.bf16.msra.mxu0 0
      %2524 = vmatprep.subr.bf16.mxu0 0
      %2525 = vmatpush2.bf16.msra.mxu0 0
      %2526 = vmatprep.subr.bf16.mxu0 0
      %2527 = vmatpush2.bf16.msra.mxu0 0
      %2528 = vmatprep.subr.bf16.mxu0 0
      %2529 = vmatpush2.bf16.msra.mxu0 0
      %2530 = vmatprep.subr.bf16.mxu0 0
      %2531 = vmatpush2.bf16.msra.mxu0 0
      %2532 = vmatprep.subr.bf16.mxu0 0
      %2533 = vmatpush2.bf16.msra.mxu0 0
      %2534 = vmatprep.subr.bf16.mxu0 0
      %2535 = vmatpush2.bf16.msra.mxu0 0
      %2536 = vmatprep.subr.bf16.mxu0 0
      %2537 = vmatpush2.bf16.msra.mxu0 0
      %2538 = vmatprep.mubr.bf16.mxu0 0
      %2539 = vmatmul.mubr.bf16.gmra.mxu0 %v1032
      %v2540 = vpop.f32.mrf.mxu0
      %v2541 = vadd.f32 0.0, %v2540
      %v2542 = vpop.f32.mrf.mxu0
      %v2543 = vpop.f32.mrf.mxu0
      %v2544 = vadd.f32 0.0, %v2543
      %v2545 = vpop.f32.mrf.mxu0
      %2546 = vmatprep.mubr.bf16.mxu0 0
      %2547 = vmatmul.mubr.bf16.gmra.mxu0 %v1033
      %v2548 = vpop.f32.mrf.mxu0
      %v2549 = vadd.f32 0.0, %v2548
      %v2550 = vpop.f32.mrf.mxu0
      %v2551 = vpop.f32.mrf.mxu0
      %v2552 = vadd.f32 0.0, %v2551
      %v2553 = vpop.f32.mrf.mxu0
      %2554 = vmatprep.mubr.bf16.mxu0 0
      %2555 = vmatmul.mubr.bf16.gmra.mxu0 %v1034
      %v2556 = vpop.f32.mrf.mxu0
      %v2557 = vadd.f32 0.0, %v2556
      %v2558 = vpop.f32.mrf.mxu0
      %v2559 = vpop.f32.mrf.mxu0
      %v2560 = vadd.f32 0.0, %v2559
      %v2561 = vpop.f32.mrf.mxu0
      %2562 = vmatprep.mubr.bf16.mxu0 0
      %2563 = vmatmul.mubr.bf16.gmra.mxu0 %v1035
      %v2564 = vpop.f32.mrf.mxu0
      %v2565 = vadd.f32 0.0, %v2564
      %v2566 = vpop.f32.mrf.mxu0
      %v2567 = vpop.f32.mrf.mxu0
      %v2568 = vadd.f32 0.0, %v2567
      %v2569 = vpop.f32.mrf.mxu0
      %2570 = vmatprep.mubr.bf16.mxu0 0
      %2571 = vmatmul.mubr.bf16.gmra.mxu0 %v1036
      %v2572 = vpop.f32.mrf.mxu0
      %v2573 = vadd.f32 0.0, %v2572
      %v2574 = vpop.f32.mrf.mxu0
      %v2575 = vpop.f32.mrf.mxu0
      %v2576 = vadd.f32 0.0, %v2575
      %v2577 = vpop.f32.mrf.mxu0
      %2578 = vmatprep.mubr.bf16.mxu0 0
      %2579 = vmatmul.mubr.bf16.gmra.mxu0 %v1037
      %v2580 = vpop.f32.mrf.mxu0
      %v2581 = vadd.f32 0.0, %v2580
      %v2582 = vpop.f32.mrf.mxu0
      %v2583 = vpop.f32.mrf.mxu0
      %v2584 = vadd.f32 0.0, %v2583
      %v2585 = vpop.f32.mrf.mxu0
      %2586 = vmatprep.mubr.bf16.mxu0 0
      %2587 = vmatmul.mubr.bf16.gmra.mxu0 %v1038
      %v2588 = vpop.f32.mrf.mxu0
      %v2589 = vadd.f32 0.0, %v2588
      %v2590 = vpop.f32.mrf.mxu0
      %v2591 = vpop.f32.mrf.mxu0
      %v2592 = vadd.f32 0.0, %v2591
      %v2593 = vpop.f32.mrf.mxu0
      %2594 = vmatprep.mubr.bf16.mxu0 0
      %2595 = vmatmul.mubr.bf16.gmra.mxu0 %v1039
      %v2596 = vpop.f32.mrf.mxu0
      %v2597 = vadd.f32 0.0, %v2596
      %v2598 = vpop.f32.mrf.mxu0
      %v2599 = vpop.f32.mrf.mxu0
      %v2600 = vadd.f32 0.0, %v2599
      %v2601 = vpop.f32.mrf.mxu0
      %2602 = vdwg.mxu0
      %v2603 = vadd.f32 %v2425, %v2541
      %v2604 = vadd.f32 %v2426, %v2544
      %v2605 = vadd.f32 %v2427, %v2549
      %v2606 = vadd.f32 %v2428, %v2552
      %v2607 = vadd.f32 %v2429, %v2557
      %v2608 = vadd.f32 %v2430, %v2560
      %v2609 = vadd.f32 %v2431, %v2565
      %v2610 = vadd.f32 %v2432, %v2568
      %v2611 = vadd.f32 %v2433, %v2573
      %v2612 = vadd.f32 %v2434, %v2576
      %v2613 = vadd.f32 %v2435, %v2581
      %v2614 = vadd.f32 %v2436, %v2584
      %v2615 = vadd.f32 %v2437, %v2589
      %v2616 = vadd.f32 %v2438, %v2592
      %v2617 = vadd.f32 %v2439, %v2597
      %v2618 = vadd.f32 %v2440, %v2600
      %v2619 = vld [vmem:[%s6] sm:$0x1]
      %v2621 = vlaneseq
      %v2622 = vshrl.u32 %v2621, 7
      %v2623 = vsub.s32 0, %v2622
      %v2624 = vrot.slane %v2619, %v2623
      %v2626 = vadd.f32 %v2603, %v2624
      %v2627 = vadd.f32 %v2604, %v2624
      %v2628 = vadd.f32 %v2605, %v2624
      %v2629 = vadd.f32 %v2606, %v2624
      %v2630 = vadd.f32 %v2607, %v2624
      %v2631 = vadd.f32 %v2608, %v2624
      %v2632 = vadd.f32 %v2609, %v2624
      %v2633 = vadd.f32 %v2610, %v2624
      %v2634 = vadd.f32 %v2611, %v2624
      %v2635 = vadd.f32 %v2612, %v2624
      %v2636 = vadd.f32 %v2613, %v2624
      %v2637 = vadd.f32 %v2614, %v2624
      %v2638 = vadd.f32 %v2615, %v2624
      %v2639 = vadd.f32 %v2616, %v2624
      %v2640 = vadd.f32 %v2617, %v2624
      %v2641 = vadd.f32 %v2618, %v2624
      %v2642 = vmax.f32 %v2626, 0.0
      %v2643 = vmax.f32 %v2627, 0.0
      %v2644 = vmax.f32 %v2628, 0.0
      %v2645 = vmax.f32 %v2629, 0.0
      %v2646 = vmax.f32 %v2630, 0.0
      %v2647 = vmax.f32 %v2631, 0.0
      %v2648 = vmax.f32 %v2632, 0.0
      %v2649 = vmax.f32 %v2633, 0.0
      %v2650 = vmax.f32 %v2634, 0.0
      %v2651 = vmax.f32 %v2635, 0.0
      %v2652 = vmax.f32 %v2636, 0.0
      %v2653 = vmax.f32 %v2637, 0.0
      %v2654 = vmax.f32 %v2638, 0.0
      %v2655 = vmax.f32 %v2639, 0.0
      %v2656 = vmax.f32 %v2640, 0.0
      %v2657 = vmax.f32 %v2641, 0.0
      %v2658 = vadd.f32 %v2642, %v448
      %v2659 = vadd.f32 %v2643, %v449
      %v2660 = vadd.f32 %v2644, %v450
      %v2661 = vadd.f32 %v2645, %v451
      %v2662 = vadd.f32 %v2646, %v452
      %v2663 = vadd.f32 %v2647, %v453
      %v2664 = vadd.f32 %v2648, %v454
      %v2665 = vadd.f32 %v2649, %v455
      %v2666 = vadd.f32 %v2650, %v456
      %v2667 = vadd.f32 %v2651, %v457
      %v2668 = vadd.f32 %v2652, %v458
      %v2669 = vadd.f32 %v2653, %v459
      %v2670 = vadd.f32 %v2654, %v460
      %v2671 = vadd.f32 %v2655, %v461
      %v2672 = vadd.f32 %v2656, %v462
      %v2673 = vadd.f32 %v2657, %v463
      %2674 = vst.msk [vmem:[%s445] sm:$0xff] %vm480, %v2658
      %2675 = vst.msk [vmem:[%s445 + $0x8] sm:$0xff] %vm480, %v2659
      %2676 = vst.msk [vmem:[%s445 + $0x10] sm:$0xff] %vm480, %v2660
      %2677 = vst.msk [vmem:[%s445 + $0x18] sm:$0xff] %vm480, %v2661
      %2678 = vst.msk [vmem:[%s445 + $0x20] sm:$0xff] %vm480, %v2662
      %2679 = vst.msk [vmem:[%s445 + $0x28] sm:$0xff] %vm480, %v2663
      %2680 = vst.msk [vmem:[%s445 + $0x30] sm:$0xff] %vm480, %v2664
      %2681 = vst.msk [vmem:[%s445 + $0x38] sm:$0xff] %vm480, %v2665
      %2682 = vst.msk [vmem:[%s445 + $0x40] sm:$0xff] %vm480, %v2666
      %2683 = vst.msk [vmem:[%s445 + $0x48] sm:$0xff] %vm480, %v2667
      %2684 = vst.msk [vmem:[%s445 + $0x50] sm:$0xff] %vm480, %v2668
      %2685 = vst.msk [vmem:[%s445 + $0x58] sm:$0xff] %vm480, %v2669
      %2686 = vst.msk [vmem:[%s445 + $0x60] sm:$0xff] %vm480, %v2670
      %2687 = vst.msk [vmem:[%s445 + $0x68] sm:$0xff] %vm480, %v2671
      %2688 = vst.msk [vmem:[%s445 + $0x70] sm:$0xff] %vm480, %v2672
      %2689 = vst.msk [vmem:[%s445 + $0x78] sm:$0xff] %vm480, %v2673
      %s2690 = smul.u32 8, %s23
      %p2691 = scmp.lt.s32.totalorder %s22, 1
      %s2692 = scalar_select %p2691, %s22, 1
      %p2693 = scmp.lt.s32.totalorder %s2690, 15
      %s2694 = scalar_select %p2693, %s2690, 15
      %s2695 = smul.addr %s2694, 2
      %s2696 = smul.addr %s2692, 32
      %s2697 = sadd.s32 %s2695, %s2696
      %s2698 = smul.addr %s2697, 8
      %s2699 = scalar_lea.vmem %s7, %s2698
      // Predicated region
      $region49: #{tpu_custom_call.1} parent=47 // pred_check
        %p2700 = pneg %p234
      $region50: #{tpu_custom_call.1} parent=47 // pred_check_branch
        %2702 = sbr.rel (%p2700) target = $region52
      $region51: #{tpu_custom_call.1} parent=47 // pred_region
        %s2703 = smul.u32 8, %s23
      $region52: #{tpu_custom_call.1} parent=47 // pred_fallthru
        _
    $region48: #{tpu_custom_call.1} parent=5 // pred_fallthru
      _
    %p2704 = scmp.le.s32.totalorder 2, %s13
    // Predicated region
    $region53: #{tpu_custom_call.1} parent=5 // pred_check
      %p2705 = pneg %p2704
    $region54: #{tpu_custom_call.1} parent=5 // pred_check_branch
      %2707 = sbr.rel (%p2705) target = $region56
    $region55: #{tpu_custom_call.1} parent=5 // pred_region
      %s2708 = ssub.s32 %s13, 2
      // Predicated region
      $region57: #{tpu_custom_call.1} parent=55 // pred_check
        %p2709 = pneg %p240
      $region58: #{tpu_custom_call.1} parent=55 // pred_check_branch
        %2711 = sbr.rel (%p2709) target = $region60
      $region59: #{tpu_custom_call.1} parent=55 // pred_region
        %s2712 = smul.u32 8, %s25
        %p2713 = scmp.lt.s32.totalorder %s24, 1
        %s2714 = scalar_select %p2713, %s24, 1
        %p2715 = scmp.lt.s32.totalorder %s2712, 15
        %s2716 = scalar_select %p2715, %s2712, 15
        %s2717 = smul.addr %s2716, 2
        %s2718 = smul.addr %s2714, 32
        %s2719 = sadd.s32 %s2717, %s2718
        %s2720 = smul.addr %s2719, 8
        %s2721 = scalar_lea.vmem %s7, %s2720
      $region60: #{tpu_custom_call.1} parent=55 // pred_fallthru
        _
    $region56: #{tpu_custom_call.1} parent=5 // pred_fallthru
      _
  $region6: #{tpu_custom_call.1} parent=0 // loop_footer
    %s17 = sadd.s32 1, %s13
  $region7: #{tpu_custom_call.1} parent=0 // loop_footer_branch
    %12 = sbr.rel target = $region3
  $region8: #{tpu_custom_call.1} parent=0 // loop_exit
    _

// kernel: tpu_custom_call.1
$region0: #{tpu_custom_call.1}
  #allocation0 [shape = 'u32[]', space=smem, size = 0x4, offset = 0x4, fixed_abs, tag = 'smem constant byte address 0x4 - core index']
  #allocation1 [shape = 'u32[144,128]{1,0:T(1,128)}', space=vmem, size = 0x12000, scoped, tag = 'internal scratch']
  #allocation2 [shape = 'bf16[10,16,128]{2,1,0:T(8,128)(2,1)}', space=vmem, size = 0xa000, scoped, tag = 'scratch operand']
  %s0 = inlined_call_operand.vmem [shape: f32[2,16,16,4], index: 0, kind: input, shape index: {}]
  %s1 = inlined_call_operand.vmem [shape: f32[2,16,16,4], index: 1, kind: input, shape index: {}]
  %s2 = inlined_call_operand.vmem [shape: f32[2,16,16,4], index: 2, kind: input, shape index: {}]
  %s3 = inlined_call_operand.vmem [shape: bf16[4,128], index: 3, kind: input, shape index: {}]
  %s4 = inlined_call_operand.vmem [shape: f32[1,128], index: 4, kind: input, shape index: {}]
  %s5 = inlined_call_operand.vmem [shape: bf16[3,3,128,4], index: 5, kind: input, shape index: {}]
  %s6 = inlined_call_operand.vmem [shape: f32[1,4], index: 6, kind: input, shape index: {}]
  %s7 = inlined_call_operand.vmem [shape: f32[2,16,16,4], index: 7, kind: output, shape index: {}]
  %s8 = sld [smem:[#allocation0]]
  $region61: #{tpu_custom_call.1} parent=0
    _
  %s10 = ssub.s32 1, %s8
  %s11 = scalar_select 0, %s10, %s8
  loop: start=0, step=1, limit=6
  $region2: #{tpu_custom_call.1} parent=0 // loop_pre_header
    _
  $region3: #{tpu_custom_call.1} parent=0 // loop_header
    %s13 = sphi 0, %s17
    %p14 = scmp.ge.s32.totalorder %s13, 6
    %s20 = sphi 0, %s32
    %s21 = sphi 0, %s28
    %s22 = sphi 0, %s20
    %s23 = sphi 0, %s21
    %s24 = sphi 0, %s22
    %s25 = sphi 0, %s23
    %s37 = sphi 0, %s39
    %s40 = sphi 0, %s37
    %s41 = sphi 0, %s40
    %s57 = sphi 0, %s41
    %s73 = sphi 0, %s75
    %s76 = sphi 0, %s73
    %s77 = sphi 0, %s76
    %s93 = sphi 0, %s77
    %s109 = sphi 0, %s111
    %s112 = sphi 0, %s109
    %s113 = sphi 0, %s112
    %s129 = sphi 0, %s113
    %s133 = sphi 0, %s133
    %s135 = sphi 0, %s133
    %s136 = sphi 0, %s135
    %s150 = sphi 0, %s136
    %s154 = sphi 0, %s154
    %s156 = sphi 0, %s154
    %s157 = sphi 0, %s156
    %s171 = sphi 0, %s157
    %s175 = sphi 0, %s175
    %s177 = sphi 0, %s175
    %s178 = sphi 0, %s177
    %s192 = sphi 0, %s178
    %s196 = sphi 0, %s196
    %s198 = sphi 0, %s196
    %s199 = sphi 0, %s198
    %s213 = sphi 0, %s199
    %s221 = sphi 0, %s223
    %s224 = sphi 0, %s221
    %s225 = sphi 0, %s224
    %s241 = sphi 0, %s225
  $region4: #{tpu_custom_call.1} parent=0 // loop_header_branch
    %16 = sbr.rel (%p14) target = $region8
  $region5: #{tpu_custom_call.1} parent=0 // loop_body
    %s18 = ssub.s32 %s13, 1
    %s19 = ssub.s32 %s13, 2
    %s26 = sadd.s32 1, %s21
    %p27 = scmp.ge.s32.totalorder %s26, 2
    %s28 = scalar_select %p27, 0, %s26
    %s29 = sadd.s32 1, %s20
    %s30 = scalar_select %p27, %s29, %s20
    %p31 = scmp.ge.s32.totalorder %s30, 2
    %s32 = scalar_select %p31, 0, %s30
    %s33 = ssub.s32 %s20, %s32
    %s34 = ssub.s32 %s21, %s28
    %s35 = sor.u32 %s33, %s34
    %p36 = scmp.eq.s32.totalorder %s35, 0
    %s38 = sadd.s32 %s37, 1
    %s39 = scalar_select %p36, %s37, %s38
    %p42 = pneg %p36
    %p43 = scmp.eq.s32.totalorder %s13, 3
    %p44 = por %p42, %p43
    %p45 = scmp.ne.s32.totalorder %s37, %s40
    %p46 = scmp.eq.s32.totalorder %s13, 0
    %p47 = por %p45, %p46
    %p48 = scmp.ne.s32.totalorder %s37, %s40
    %p49 = scmp.eq.s32.totalorder %s18, 3
    %p50 = por %p48, %p49
    %p51 = scmp.ne.s32.totalorder %s40, %s41
    %p52 = scmp.eq.s32.totalorder %s18, 0
    %p53 = por %p51, %p52
    %p54 = scmp.ne.s32.totalorder %s40, %s41
    %p55 = scmp.eq.s32.totalorder %s19, 3
    %p56 = por %p54, %p55
    %p58 = scmp.ne.s32.totalorder %s41, %s57
    %p59 = scmp.eq.s32.totalorder %s19, 0
    %p60 = por %p58, %p59
    %s61 = smul.u32 %s21, 8
    %s62 = ssub.s32 %s61, 1
    %p63 = scmp.gt.s32.totalorder %s62, 0
    %s64 = scalar_select %p63, %s62, 0
    %s65 = smul.u32 %s28, 8
    %s66 = ssub.s32 %s65, 1
    %p67 = scmp.gt.s32.totalorder %s66, 0
    %s68 = scalar_select %p67, %s66, 0
    %s69 = ssub.s32 %s20, %s32
    %s70 = ssub.s32 %s64, %s68
    %s71 = sor.u32 %s69, %s70
    %p72 = scmp.eq.s32.totalorder %s71, 0
    %s74 = sadd.s32 %s73, 1
    %s75 = scalar_select %p72, %s73, %s74
    %p78 = pneg %p72
    %p79 = scmp.eq.s32.totalorder %s13, 3
    %p80 = por %p78, %p79
    %p81 = scmp.ne.s32.totalorder %s73, %s76
    %p82 = scmp.eq.s32.totalorder %s13, 0
    %p83 = por %p81, %p82
    %p84 = scmp.ne.s32.totalorder %s73, %s76
    %p85 = scmp.eq.s32.totalorder %s18, 3
    %p86 = por %p84, %p85
    %p87 = scmp.ne.s32.totalorder %s76, %s77
    %p88 = scmp.eq.s32.totalorder %s18, 0
    %p89 = por %p87, %p88
    %p90 = scmp.ne.s32.totalorder %s76, %s77
    %p91 = scmp.eq.s32.totalorder %s19, 3
    %p92 = por %p90, %p91
    %p94 = scmp.ne.s32.totalorder %s77, %s93
    %p95 = scmp.eq.s32.totalorder %s19, 0
    %p96 = por %p94, %p95
    %s97 = sadd.s32 %s21, 1
    %s98 = smul.u32 %s97, 8
    %p99 = scmp.lt.s32.totalorder %s98, 15
    %s100 = scalar_select %p99, %s98, 15
    %s101 = sadd.s32 %s28, 1
    %s102 = smul.u32 %s101, 8
    %p103 = scmp.lt.s32.totalorder %s102, 15
    %s104 = scalar_select %p103, %s102, 15
    %s105 = ssub.s32 %s20, %s32
    %s106 = ssub.s32 %s100, %s104
    %s107 = sor.u32 %s105, %s106
    %p108 = scmp.eq.s32.totalorder %s107, 0
    %s110 = sadd.s32 %s109, 1
    %s111 = scalar_select %p108, %s109, %s110
    %p114 = pneg %p108
    %p115 = scmp.eq.s32.totalorder %s13, 3
    %p116 = por %p114, %p115
    %p117 = scmp.ne.s32.totalorder %s109, %s112
    %p118 = scmp.eq.s32.totalorder %s13, 0
    %p119 = por %p117, %p118
    %p120 = scmp.ne.s32.totalorder %s109, %s112
    %p121 = scmp.eq.s32.totalorder %s18, 3
    %p122 = por %p120, %p121
    %p123 = scmp.ne.s32.totalorder %s112, %s113
    %p124 = scmp.eq.s32.totalorder %s18, 0
    %p125 = por %p123, %p124
    %p126 = scmp.ne.s32.totalorder %s112, %s113
    %p127 = scmp.eq.s32.totalorder %s19, 3
    %p128 = por %p126, %p127
    %p130 = scmp.ne.s32.totalorder %s113, %s129
    %p131 = scmp.eq.s32.totalorder %s19, 0
    %p132 = por %p130, %p131
    %s134 = sadd.s32 %s133, 1
    %p137 = scmp.eq.s32.totalorder %s13, 3
    %p138 = scmp.ne.s32.totalorder %s133, %s135
    %p139 = scmp.eq.s32.totalorder %s13, 0
    %p140 = por %p138, %p139
    %p141 = scmp.ne.s32.totalorder %s133, %s135
    %p142 = scmp.eq.s32.totalorder %s18, 3
    %p143 = por %p141, %p142
    %p144 = scmp.ne.s32.totalorder %s135, %s136
    %p145 = scmp.eq.s32.totalorder %s18, 0
    %p146 = por %p144, %p145
    %p147 = scmp.ne.s32.totalorder %s135, %s136
    %p148 = scmp.eq.s32.totalorder %s19, 3
    %p149 = por %p147, %p148
    %p151 = scmp.ne.s32.totalorder %s136, %s150
    %p152 = scmp.eq.s32.totalorder %s19, 0
    %p153 = por %p151, %p152
    %s155 = sadd.s32 %s154, 1
    %p158 = scmp.eq.s32.totalorder %s13, 3
    %p159 = scmp.ne.s32.totalorder %s154, %s156
    %p160 = scmp.eq.s32.totalorder %s13, 0
    %p161 = por %p159, %p160
    %p162 = scmp.ne.s32.totalorder %s154, %s156
    %p163 = scmp.eq.s32.totalorder %s18, 3
    %p164 = por %p162, %p163
    %p165 = scmp.ne.s32.totalorder %s156, %s157
    %p166 = scmp.eq.s32.totalorder %s18, 0
    %p167 = por %p165, %p166
    %p168 = scmp.ne.s32.totalorder %s156, %s157
    %p169 = scmp.eq.s32.totalorder %s19, 3
    %p170 = por %p168, %p169
    %p172 = scmp.ne.s32.totalorder %s157, %s171
    %p173 = scmp.eq.s32.totalorder %s19, 0
    %p174 = por %p172, %p173
    %s176 = sadd.s32 %s175, 1
    %p179 = scmp.eq.s32.totalorder %s13, 3
    %p180 = scmp.ne.s32.totalorder %s175, %s177
    %p181 = scmp.eq.s32.totalorder %s13, 0
    %p182 = por %p180, %p181
    %p183 = scmp.ne.s32.totalorder %s175, %s177
    %p184 = scmp.eq.s32.totalorder %s18, 3
    %p185 = por %p183, %p184
    %p186 = scmp.ne.s32.totalorder %s177, %s178
    %p187 = scmp.eq.s32.totalorder %s18, 0
    %p188 = por %p186, %p187
    %p189 = scmp.ne.s32.totalorder %s177, %s178
    %p190 = scmp.eq.s32.totalorder %s19, 3
    %p191 = por %p189, %p190
    %p193 = scmp.ne.s32.totalorder %s178, %s192
    %p194 = scmp.eq.s32.totalorder %s19, 0
    %p195 = por %p193, %p194
    %s197 = sadd.s32 %s196, 1
    %p200 = scmp.eq.s32.totalorder %s13, 3
    %p201 = scmp.ne.s32.totalorder %s196, %s198
    %p202 = scmp.eq.s32.totalorder %s13, 0
    %p203 = por %p201, %p202
    %p204 = scmp.ne.s32.totalorder %s196, %s198
    %p205 = scmp.eq.s32.totalorder %s18, 3
    %p206 = por %p204, %p205
    %p207 = scmp.ne.s32.totalorder %s198, %s199
    %p208 = scmp.eq.s32.totalorder %s18, 0
    %p209 = por %p207, %p208
    %p210 = scmp.ne.s32.totalorder %s198, %s199
    %p211 = scmp.eq.s32.totalorder %s19, 3
    %p212 = por %p210, %p211
    %p214 = scmp.ne.s32.totalorder %s199, %s213
    %p215 = scmp.eq.s32.totalorder %s19, 0
    %p216 = por %p214, %p215
    %s217 = ssub.s32 %s20, %s32
    %s218 = ssub.s32 %s21, %s28
    %s219 = sor.u32 %s217, %s218
    %p220 = scmp.eq.s32.totalorder %s219, 0
    %s222 = sadd.s32 %s221, 1
    %s223 = scalar_select %p220, %s221, %s222
    %p226 = pneg %p220
    %p227 = scmp.eq.s32.totalorder %s13, 3
    %p228 = por %p226, %p227
    %p229 = scmp.ne.s32.totalorder %s221, %s224
    %p230 = scmp.eq.s32.totalorder %s13, 0
    %p231 = por %p229, %p230
    %p232 = scmp.ne.s32.totalorder %s221, %s224
    %p233 = scmp.eq.s32.totalorder %s18, 3
    %p234 = por %p232, %p233
    %p235 = scmp.ne.s32.totalorder %s224, %s225
    %p236 = scmp.eq.s32.totalorder %s18, 0
    %p237 = por %p235, %p236
    %p238 = scmp.ne.s32.totalorder %s224, %s225
    %p239 = scmp.eq.s32.totalorder %s19, 3
    %p240 = por %p238, %p239
    %p242 = scmp.ne.s32.totalorder %s225, %s241
    %p243 = scmp.eq.s32.totalorder %s19, 0
    %p244 = por %p242, %p243
    %p245 = scmp.le.s32.totalorder 1, %s13
    %p246 = scmp.lt.s32.totalorder %s13, 5
    %p247 = pnand %p245, %p246
    %p248 = pneg %p247
    // Predicated region
    $region9: #{tpu_custom_call.1} parent=5 // pred_check
      _
    $region10: #{tpu_custom_call.1} parent=5 // pred_check_branch
      %250 = sbr.rel (%p247) target = $region12
    $region11: #{tpu_custom_call.1} parent=5 // pred_region
      %s251 = ssub.s32 %s13, 1
      // Predicated region
      $region13: #{tpu_custom_call.1} parent=11 // pred_check
        %p252 = pneg %p146
      $region14: #{tpu_custom_call.1} parent=11 // pred_check_branch
        %254 = sbr.rel (%p252) target = $region16
      $region15: #{tpu_custom_call.1} parent=11 // pred_region
        _
      $region16: #{tpu_custom_call.1} parent=11 // pred_fallthru
        _
      // Predicated region
      $region17: #{tpu_custom_call.1} parent=11 // pred_check
        %p255 = pneg %p167
      $region18: #{tpu_custom_call.1} parent=11 // pred_check_branch
        %257 = sbr.rel (%p255) target = $region20
      $region19: #{tpu_custom_call.1} parent=11 // pred_region
        _
      $region20: #{tpu_custom_call.1} parent=11 // pred_fallthru
        _
      // Predicated region
      $region21: #{tpu_custom_call.1} parent=11 // pred_check
        %p258 = pneg %p188
      $region22: #{tpu_custom_call.1} parent=11 // pred_check_branch
        %260 = sbr.rel (%p258) target = $region24
      $region23: #{tpu_custom_call.1} parent=11 // pred_region
        _
      $region24: #{tpu_custom_call.1} parent=11 // pred_fallthru
        _
      // Predicated region
      $region25: #{tpu_custom_call.1} parent=11 // pred_check
        %p261 = pneg %p209
      $region26: #{tpu_custom_call.1} parent=11 // pred_check_branch
        %263 = sbr.rel (%p261) target = $region28
      $region27: #{tpu_custom_call.1} parent=11 // pred_region
        _
      $region28: #{tpu_custom_call.1} parent=11 // pred_fallthru
        _
    $region12: #{tpu_custom_call.1} parent=5 // pred_fallthru
      _
    %p264 = scmp.lt.s32.totalorder %s13, 4
    // Predicated region
    $region29: #{tpu_custom_call.1} parent=5 // pred_check
      %p265 = pneg %p264
    $region30: #{tpu_custom_call.1} parent=5 // pred_check_branch
      %267 = sbr.rel (%p265) target = $region32
    $region31: #{tpu_custom_call.1} parent=5 // pred_region
      // Predicated region
      $region33: #{tpu_custom_call.1} parent=31 // pred_check
        %p268 = pneg %p47
      $region34: #{tpu_custom_call.1} parent=31 // pred_check_branch
        %270 = sbr.rel (%p268) target = $region36
      $region35: #{tpu_custom_call.1} parent=31 // pred_region
        %s271 = smul.u32 8, %s21
        %p272 = scmp.lt.s32.totalorder %s20, 1
        %s273 = scalar_select %p272, %s20, 1
        %p274 = scmp.lt.s32.totalorder %s271, 15
        %s275 = scalar_select %p274, %s271, 15
        %s276 = smul.addr %s275, 2
        %s277 = smul.addr %s273, 32
        %s278 = sadd.s32 %s276, %s277
        %s279 = smul.addr %s278, 8
        %s280 = scalar_lea.vmem %s0, %s279
        %s281 = smul.u32 8, %s21
      $region36: #{tpu_custom_call.1} parent=31 // pred_fallthru
        _
      // Predicated region
      $region37: #{tpu_custom_call.1} parent=31 // pred_check
        %p282 = pneg %p83
      $region38: #{tpu_custom_call.1} parent=31 // pred_check_branch
        %284 = sbr.rel (%p282) target = $region40
      $region39: #{tpu_custom_call.1} parent=31 // pred_region
        %s285 = smul.u32 %s21, 8
        %s286 = ssub.s32 %s285, 1
        %p287 = scmp.gt.s32.totalorder %s286, 0
        %s288 = scalar_select %p287, %s286, 0
        %p289 = scmp.lt.s32.totalorder %s20, 1
        %s290 = scalar_select %p289, %s20, 1
        %p291 = scmp.lt.s32.totalorder %s288, 15
        %s292 = scalar_select %p291, %s288, 15
        %s293 = smul.addr %s292, 2
        %s294 = smul.addr %s290, 32
        %s295 = sadd.s32 %s293, %s294
        %s296 = smul.addr %s295, 8
        %s297 = scalar_lea.vmem %s1, %s296
        %s298 = smul.u32 %s21, 8
        %s299 = ssub.s32 %s298, 1
        %p300 = scmp.gt.s32.totalorder %s299, 0
        %s301 = scalar_select %p300, %s299, 0
      $region40: #{tpu_custom_call.1} parent=31 // pred_fallthru
        _
      // Predicated region
      $region41: #{tpu_custom_call.1} parent=31 // pred_check
        %p302 = pneg %p119
      $region42: #{tpu_custom_call.1} parent=31 // pred_check_branch
        %304 = sbr.rel (%p302) target = $region44
      $region43: #{tpu_custom_call.1} parent=31 // pred_region
        %s305 = sadd.s32 %s21, 1
        %s306 = smul.u32 %s305, 8
        %p307 = scmp.lt.s32.totalorder %s306, 15
        %s308 = scalar_select %p307, %s306, 15
        %p309 = scmp.lt.s32.totalorder %s20, 1
        %s310 = scalar_select %p309, %s20, 1
        %p311 = scmp.lt.s32.totalorder %s308, 15
        %s312 = scalar_select %p311, %s308, 15
        %s313 = smul.addr %s312, 2
        %s314 = smul.addr %s310, 32
        %s315 = sadd.s32 %s313, %s314
        %s316 = smul.addr %s315, 8
        %s317 = scalar_lea.vmem %s2, %s316
        %s318 = sadd.s32 %s21, 1
        %s319 = smul.u32 %s318, 8
        %p320 = scmp.lt.s32.totalorder %s319, 15
        %s321 = scalar_select %p320, %s319, 15
      $region44: #{tpu_custom_call.1} parent=31 // pred_fallthru
        _
    $region32: #{tpu_custom_call.1} parent=5 // pred_fallthru
      _
    %p322 = scmp.le.s32.totalorder 1, %s13
    %p323 = scmp.lt.s32.totalorder %s13, 5
    %p324 = pnand %p322, %p323
    %p325 = pneg %p324
    // Predicated region
    $region45: #{tpu_custom_call.1} parent=5 // pred_check
      _
    $region46: #{tpu_custom_call.1} parent=5 // pred_check_branch
      %327 = sbr.rel (%p324) target = $region48
    $region47: #{tpu_custom_call.1} parent=5 // pred_region
      %s328 = ssub.s32 %s13, 1
      %s329 = smul.u32 8, %s23
      %p330 = scmp.lt.s32.totalorder %s22, 1
      %s331 = scalar_select %p330, %s22, 1
      %p332 = scmp.lt.s32.totalorder %s329, 15
      %s333 = scalar_select %p332, %s329, 15
      %s334 = smul.addr %s333, 2
      %s335 = smul.addr %s331, 32
      %s336 = sadd.s32 %s334, %s335
      %s337 = smul.addr %s336, 8
      %s338 = scalar_lea.vmem %s0, %s337
      %p339 = pneg %p53
      %p340 = pneg %p50
      %s341 = smul.u32 %s23, 8
      %s342 = ssub.s32 %s341, 1
      %p343 = scmp.gt.s32.totalorder %s342, 0
      %s344 = scalar_select %p343, %s342, 0
      %p345 = scmp.lt.s32.totalorder %s22, 1
      %s346 = scalar_select %p345, %s22, 1
      %p347 = scmp.lt.s32.totalorder %s344, 15
      %s348 = scalar_select %p347, %s344, 15
      %s349 = smul.addr %s348, 2
      %s350 = smul.addr %s346, 32
      %s351 = sadd.s32 %s349, %s350
      %s352 = smul.addr %s351, 8
      %s353 = scalar_lea.vmem %s1, %s352
      %p354 = pneg %p89
      %p355 = pneg %p86
      %s356 = sadd.s32 %s23, 1
      %s357 = smul.u32 %s356, 8
      %p358 = scmp.lt.s32.totalorder %s357, 15
      %s359 = scalar_select %p358, %s357, 15
      %p360 = scmp.lt.s32.totalorder %s22, 1
      %s361 = scalar_select %p360, %s22, 1
      %p362 = scmp.lt.s32.totalorder %s359, 15
      %s363 = scalar_select %p362, %s359, 15
      %s364 = smul.addr %s363, 2
      %s365 = smul.addr %s361, 32
      %s366 = sadd.s32 %s364, %s365
      %s367 = smul.addr %s366, 8
      %s368 = scalar_lea.vmem %s2, %s367
      %p369 = pneg %p125
      %p370 = pneg %p122
      %p371 = pneg %p146
      %p372 = pneg %p143
      %p373 = pneg %p167
      %p374 = pneg %p164
      %p375 = pneg %p188
      %p376 = pneg %p185
      %p377 = pneg %p209
      %p378 = pneg %p206
      %p379 = pneg %p237
      %p380 = pneg %p234
      %s381 = smul.u32 8, %s23
      %p382 = scmp.lt.s32.totalorder %s22, 1
      %s383 = scalar_select %p382, %s22, 1
      %p384 = scmp.lt.s32.totalorder %s381, 15
      %s385 = scalar_select %p384, %s381, 15
      %s386 = smul.addr %s385, 2
      %s387 = smul.addr %s383, 32
      %s388 = sadd.s32 %s386, %s387
      %s389 = smul.addr %s388, 8
      %s390 = scalar_lea.vmem %s7, %s389
      %s391 = smul.u32 8, %s23
      %p392 = scmp.lt.s32.totalorder %s22, 1
      %s393 = scalar_select %p392, %s22, 1
      %p394 = scmp.lt.s32.totalorder %s391, 15
      %s395 = scalar_select %p394, %s391, 15
      %s396 = smul.addr %s395, 2
      %s397 = smul.addr %s393, 32
      %s398 = sadd.s32 %s396, %s397
      %s399 = smul.addr %s398, 8
      %s400 = scalar_lea.vmem %s0, %s399
      %s401 = smul.u32 8, %s23
      %s402 = smul.u32 %s23, 8
      %s403 = ssub.s32 %s402, 1
      %p404 = scmp.gt.s32.totalorder %s403, 0
      %s405 = scalar_select %p404, %s403, 0
      %p406 = scmp.lt.s32.totalorder %s22, 1
      %s407 = scalar_select %p406, %s22, 1
      %p408 = scmp.lt.s32.totalorder %s405, 15
      %s409 = scalar_select %p408, %s405, 15
      %s410 = smul.addr %s409, 2
      %s411 = smul.addr %s407, 32
      %s412 = sadd.s32 %s410, %s411
      %s413 = smul.addr %s412, 8
      %s414 = scalar_lea.vmem %s1, %s413
      %s415 = smul.u32 %s23, 8
      %s416 = ssub.s32 %s415, 1
      %p417 = scmp.gt.s32.totalorder %s416, 0
      %s418 = scalar_select %p417, %s416, 0
      %s419 = sadd.s32 %s23, 1
      %s420 = smul.u32 %s419, 8
      %p421 = scmp.lt.s32.totalorder %s420, 15
      %s422 = scalar_select %p421, %s420, 15
      %p423 = scmp.lt.s32.totalorder %s22, 1
      %s424 = scalar_select %p423, %s22, 1
      %p425 = scmp.lt.s32.totalorder %s422, 15
      %s426 = scalar_select %p425, %s422, 15
      %s427 = smul.addr %s426, 2
      %s428 = smul.addr %s424, 32
      %s429 = sadd.s32 %s427, %s428
      %s430 = smul.addr %s429, 8
      %s431 = scalar_lea.vmem %s2, %s430
      %s432 = sadd.s32 %s23, 1
      %s433 = smul.u32 %s432, 8
      %p434 = scmp.lt.s32.totalorder %s433, 15
      %s435 = scalar_select %p434, %s433, 15
      %s436 = smul.u32 8, %s23
      %p437 = scmp.lt.s32.totalorder %s22, 1
      %s438 = scalar_select %p437, %s22, 1
      %p439 = scmp.lt.s32.totalorder %s436, 15
      %s440 = scalar_select %p439, %s436, 15
      %s441 = smul.addr %s440, 2
      %s442 = smul.addr %s438, 32
      %s443 = sadd.s32 %s441, %s442
      %s444 = smul.addr %s443, 8
      %s445 = scalar_lea.vmem %s7, %s444
      %s446 = smul.u32 8, %s23
      %v448 = vld [vmem:[%s400] sm:$0xff]
      %v449 = vld [vmem:[%s400 + $0x8] sm:$0xff]
      %v450 = vld [vmem:[%s400 + $0x10] sm:$0xff]
      %v451 = vld [vmem:[%s400 + $0x18] sm:$0xff]
      %v452 = vld [vmem:[%s400 + $0x20] sm:$0xff]
      %v453 = vld [vmem:[%s400 + $0x28] sm:$0xff]
      %v454 = vld [vmem:[%s400 + $0x30] sm:$0xff]
      %v455 = vld [vmem:[%s400 + $0x38] sm:$0xff]
      %v456 = vld [vmem:[%s400 + $0x40] sm:$0xff]
      %v457 = vld [vmem:[%s400 + $0x48] sm:$0xff]
      %v458 = vld [vmem:[%s400 + $0x50] sm:$0xff]
      %v459 = vld [vmem:[%s400 + $0x58] sm:$0xff]
      %v460 = vld [vmem:[%s400 + $0x60] sm:$0xff]
      %v461 = vld [vmem:[%s400 + $0x68] sm:$0xff]
      %v462 = vld [vmem:[%s400 + $0x70] sm:$0xff]
      %v463 = vld [vmem:[%s400 + $0x78] sm:$0xff]
      %v464 = vld [vmem:[%s3] sm:$0x3]
      %v465 = vld [vmem:[%s4] sm:$0x1]
      %v466 = vpack.c.bf16 %v449, %v448
      %v467 = vpack.c.bf16 %v451, %v450
      %v468 = vpack.c.bf16 %v453, %v452
      %v469 = vpack.c.bf16 %v455, %v454
      %v470 = vpack.c.bf16 %v457, %v456
      %v471 = vpack.c.bf16 %v459, %v458
      %v472 = vpack.c.bf16 %v461, %v460
      %v473 = vpack.c.bf16 %v463, %v462
      %v475 = vlaneseq
      %v476 = vshrl.u32 %v475, 7
      %v477 = vsub.s32 0, %v476
      %v478 = vrot.slane %v465, %v477
      %vm480 = vcmask 31744
      %v482 = vsel %vm480, %v466, 0
      %v485 = vsel %vm480, %v467, 0
      %v488 = vsel %vm480, %v468, 0
      %v491 = vsel %vm480, %v469, 0
      %v494 = vsel %vm480, %v470, 0
      %v497 = vsel %vm480, %v471, 0
      %v500 = vsel %vm480, %v472, 0
      %v503 = vsel %vm480, %v473, 0
      %vm505 = vcmask 1041408
      %v507 = vsel %vm505, %v464, 0
      %509 = vmatprep.subr.bf16.mxu0 0
      %510 = vmatpush1.bf16.msra.mxu0 0
      %511 = vmatprep.subr.bf16.mxu0 0
      %512 = vmatpush1.bf16.msra.mxu0 0
      %513 = vmatprep.subr.bf16.mxu0 0
      %514 = vmatpush1.bf16.msra.mxu0 0
      %515 = vmatprep.subr.bf16.mxu0 0
      %516 = vmatpush1.bf16.msra.mxu0 0
      %517 = vmatprep.subr.bf16.mxu0 0
      %518 = vmatpush1.bf16.msra.mxu0 0
      %519 = vmatprep.subr.bf16.mxu0 0
      %520 = vmatpush1.bf16.msra.mxu0 0
      %521 = vmatprep.subr.bf16.mxu0 0
      %522 = vmatpush1.bf16.msra.mxu0 0
      %523 = vmatprep.subr.bf16.mxu0 0
      %524 = vmatpush1.bf16.msra.mxu0 %v507
      %525 = vmatprep.subr.bf16.mxu0 0
      %526 = vmatpush2.bf16.msra.mxu0 0
      %527 = vmatprep.subr.bf16.mxu0 0
      %528 = vmatpush2.bf16.msra.mxu0 0
      %529 = vmatprep.subr.bf16.mxu0 0
      %530 = vmatpush2.bf16.msra.mxu0 0
      %531 = vmatprep.subr.bf16.mxu0 0
      %532 = vmatpush2.bf16.msra.mxu0 0
      %533 = vmatprep.subr.bf16.mxu0 0
      %534 = vmatpush2.bf16.msra.mxu0 0
      %535 = vmatprep.subr.bf16.mxu0 0
      %536 = vmatpush2.bf16.msra.mxu0 0
      %537 = vmatprep.subr.bf16.mxu0 0
      %538 = vmatpush2.bf16.msra.mxu0 0
      %539 = vmatprep.subr.bf16.mxu0 0
      %540 = vmatpush2.bf16.msra.mxu0 0
      %541 = vmatprep.mubr.bf16.mxu0 0
      %542 = vmatmul.mubr.bf16.gmra.mxu0 %v482
      %v543 = vpop.f32.mrf.mxu0
      %v544 = vadd.f32 %v478, %v543
      %v545 = vpop.f32.mrf.mxu0
      %v546 = vpop.f32.mrf.mxu0
      %v547 = vadd.f32 %v478, %v546
      %v548 = vpop.f32.mrf.mxu0
      %549 = vmatprep.mubr.bf16.mxu0 0
      %550 = vmatmul.mubr.bf16.gmra.mxu0 %v485
      %v551 = vpop.f32.mrf.mxu0
      %v552 = vadd.f32 %v478, %v551
      %v553 = vpop.f32.mrf.mxu0
      %v554 = vpop.f32.mrf.mxu0
      %v555 = vadd.f32 %v478, %v554
      %v556 = vpop.f32.mrf.mxu0
      %557 = vmatprep.mubr.bf16.mxu0 0
      %558 = vmatmul.mubr.bf16.gmra.mxu0 %v488
      %v559 = vpop.f32.mrf.mxu0
      %v560 = vadd.f32 %v478, %v559
      %v561 = vpop.f32.mrf.mxu0
      %v562 = vpop.f32.mrf.mxu0
      %v563 = vadd.f32 %v478, %v562
      %v564 = vpop.f32.mrf.mxu0
      %565 = vmatprep.mubr.bf16.mxu0 0
      %566 = vmatmul.mubr.bf16.gmra.mxu0 %v491
      %v567 = vpop.f32.mrf.mxu0
      %v568 = vadd.f32 %v478, %v567
      %v569 = vpop.f32.mrf.mxu0
      %v570 = vpop.f32.mrf.mxu0
      %v571 = vadd.f32 %v478, %v570
      %v572 = vpop.f32.mrf.mxu0
      %573 = vmatprep.mubr.bf16.mxu0 0
      %574 = vmatmul.mubr.bf16.gmra.mxu0 %v494
      %v575 = vpop.f32.mrf.mxu0
      %v576 = vadd.f32 %v478, %v575
      %v577 = vpop.f32.mrf.mxu0
      %v578 = vpop.f32.mrf.mxu0
      %v579 = vadd.f32 %v478, %v578
      %v580 = vpop.f32.mrf.mxu0
      %581 = vmatprep.mubr.bf16.mxu0 0
      %582 = vmatmul.mubr.bf16.gmra.mxu0 %v497
      %v583 = vpop.f32.mrf.mxu0
      %v584 = vadd.f32 %v478, %v583
      %v585 = vpop.f32.mrf.mxu0
      %v586 = vpop.f32.mrf.mxu0
      %v587 = vadd.f32 %v478, %v586
      %v588 = vpop.f32.mrf.mxu0
      %589 = vmatprep.mubr.bf16.mxu0 0
      %590 = vmatmul.mubr.bf16.gmra.mxu0 %v500
      %v591 = vpop.f32.mrf.mxu0
      %v592 = vadd.f32 %v478, %v591
      %v593 = vpop.f32.mrf.mxu0
      %v594 = vpop.f32.mrf.mxu0
      %v595 = vadd.f32 %v478, %v594
      %v596 = vpop.f32.mrf.mxu0
      %597 = vmatprep.mubr.bf16.mxu0 0
      %598 = vmatmul.mubr.bf16.gmra.mxu0 %v503
      %v599 = vpop.f32.mrf.mxu0
      %v600 = vadd.f32 %v478, %v599
      %v601 = vpop.f32.mrf.mxu0
      %v602 = vpop.f32.mrf.mxu0
      %v603 = vadd.f32 %v478, %v602
      %v604 = vpop.f32.mrf.mxu0
      %605 = vdwg.mxu0
      %v606 = vmax.f32 %v544, 0.0
      %v607 = vmax.f32 %v547, 0.0
      %v608 = vmax.f32 %v552, 0.0
      %v609 = vmax.f32 %v555, 0.0
      %v610 = vmax.f32 %v560, 0.0
      %v611 = vmax.f32 %v563, 0.0
      %v612 = vmax.f32 %v568, 0.0
      %v613 = vmax.f32 %v571, 0.0
      %v614 = vmax.f32 %v576, 0.0
      %v615 = vmax.f32 %v579, 0.0
      %v616 = vmax.f32 %v584, 0.0
      %v617 = vmax.f32 %v587, 0.0
      %v618 = vmax.f32 %v592, 0.0
      %v619 = vmax.f32 %v595, 0.0
      %v620 = vmax.f32 %v600, 0.0
      %v621 = vmax.f32 %v603, 0.0
      %v622 = vpack.c.bf16 %v607, %v606
      %v623 = vpack.c.bf16 %v609, %v608
      %v624 = vpack.c.bf16 %v611, %v610
      %v625 = vpack.c.bf16 %v613, %v612
      %v626 = vpack.c.bf16 %v615, %v614
      %v627 = vpack.c.bf16 %v617, %v616
      %v628 = vpack.c.bf16 %v619, %v618
      %v629 = vpack.c.bf16 %v621, %v620
      %v638 = vunpack.c.l.b16 %v622
      %v639 = vunpack.c.h.b16 %v622
      %v640 = vunpack.c.l.b16 %v623
      %v641 = vunpack.c.h.b16 %v623
      %v642 = vunpack.c.l.b16 %v624
      %v643 = vunpack.c.h.b16 %v624
      %v644 = vunpack.c.l.b16 %v625
      %v645 = vunpack.c.h.b16 %v625
      %v646 = vunpack.c.l.b16 %v626
      %v647 = vunpack.c.h.b16 %v626
      %v648 = vunpack.c.l.b16 %v627
      %v649 = vunpack.c.h.b16 %v627
      %v650 = vunpack.c.l.b16 %v628
      %v651 = vunpack.c.h.b16 %v628
      %v652 = vunpack.c.l.b16 %v629
      %v653 = vunpack.c.h.b16 %v629
      %v654 = vpack.c.b16 %v638, %v638
      %v655 = vpack.c.b16 %v639, %v639
      %v656 = vpack.c.b16 %v640, %v640
      %v657 = vpack.c.b16 %v641, %v641
      %v658 = vpack.c.b16 %v642, %v642
      %v659 = vpack.c.b16 %v643, %v643
      %v660 = vpack.c.b16 %v644, %v644
      %v661 = vpack.c.b16 %v645, %v645
      %v662 = vpack.c.b16 %v646, %v646
      %v663 = vpack.c.b16 %v647, %v647
      %v664 = vpack.c.b16 %v648, %v648
      %v665 = vpack.c.b16 %v649, %v649
      %v666 = vpack.c.b16 %v650, %v650
      %v667 = vpack.c.b16 %v651, %v651
      %v668 = vpack.c.b16 %v652, %v652
      %v669 = vpack.c.b16 %v653, %v653
      %s686 = scalar_lea.vmem [#allocation2], 8
      %687 = vst [vmem:[%s686] sm:$0xf] %v654
      %688 = vst [vmem:[%s686 + $0x4] sm:$0xf] %v655
      %689 = vst [vmem:[%s686 + $0x8] sm:$0xf] %v656
      %690 = vst [vmem:[%s686 + $0xc] sm:$0xf] %v657
      %691 = vst [vmem:[%s686 + $0x10] sm:$0xf] %v658
      %692 = vst [vmem:[%s686 + $0x14] sm:$0xf] %v659
      %693 = vst [vmem:[%s686 + $0x18] sm:$0xf] %v660
      %694 = vst [vmem:[%s686 + $0x1c] sm:$0xf] %v661
      %695 = vst [vmem:[%s686 + $0x20] sm:$0xf] %v662
      %696 = vst [vmem:[%s686 + $0x24] sm:$0xf] %v663
      %697 = vst [vmem:[%s686 + $0x28] sm:$0xf] %v664
      %698 = vst [vmem:[%s686 + $0x2c] sm:$0xf] %v665
      %699 = vst [vmem:[%s686 + $0x30] sm:$0xf] %v666
      %700 = vst [vmem:[%s686 + $0x34] sm:$0xf] %v667
      %701 = vst [vmem:[%s686 + $0x38] sm:$0xf] %v668
      %702 = vst [vmem:[%s686 + $0x3c] sm:$0xf] %v669
      %v703 = vld [vmem:[%s414] sm:$0xff]
      %v704 = vld [vmem:[%s414 + $0x8] sm:$0xff]
      %v705 = vpack.c.bf16 %v704, %v703
      %p706 = scmp.gt.s32.totalorder %s23, 0
      %v708 = vsel %vm480, %v705, 0
      %710 = vmatprep.subr.bf16.mxu0 0
      %711 = vmatpush1.bf16.msra.mxu0 0
      %712 = vmatprep.subr.bf16.mxu0 0
      %713 = vmatpush1.bf16.msra.mxu0 0
      %714 = vmatprep.subr.bf16.mxu0 0
      %715 = vmatpush1.bf16.msra.mxu0 0
      %716 = vmatprep.subr.bf16.mxu0 0
      %717 = vmatpush1.bf16.msra.mxu0 0
      %718 = vmatprep.subr.bf16.mxu0 0
      %719 = vmatpush1.bf16.msra.mxu0 0
      %720 = vmatprep.subr.bf16.mxu0 0
      %721 = vmatpush1.bf16.msra.mxu0 0
      %722 = vmatprep.subr.bf16.mxu0 0
      %723 = vmatpush1.bf16.msra.mxu0 0
      %724 = vmatprep.subr.bf16.mxu0 0
      %725 = vmatpush1.bf16.msra.mxu0 %v507
      %726 = vmatprep.subr.bf16.mxu0 0
      %727 = vmatpush2.bf16.msra.mxu0 0
      %728 = vmatprep.subr.bf16.mxu0 0
      %729 = vmatpush2.bf16.msra.mxu0 0
      %730 = vmatprep.subr.bf16.mxu0 0
      %731 = vmatpush2.bf16.msra.mxu0 0
      %732 = vmatprep.subr.bf16.mxu0 0
      %733 = vmatpush2.bf16.msra.mxu0 0
      %734 = vmatprep.subr.bf16.mxu0 0
      %735 = vmatpush2.bf16.msra.mxu0 0
      %736 = vmatprep.subr.bf16.mxu0 0
      %737 = vmatpush2.bf16.msra.mxu0 0
      %738 = vmatprep.subr.bf16.mxu0 0
      %739 = vmatpush2.bf16.msra.mxu0 0
      %740 = vmatprep.subr.bf16.mxu0 0
      %741 = vmatpush2.bf16.msra.mxu0 0
      %742 = vmatprep.mubr.bf16.mxu0 0
      %743 = vmatmul.mubr.bf16.gmra.mxu0 %v708
      %v744 = vpop.f32.mrf.mxu0
      %v745 = vadd.f32 %v478, %v744
      %v746 = vpop.f32.mrf.mxu0
      %v747 = vpop.f32.mrf.mxu0
      %v748 = vadd.f32 %v478, %v747
      %v749 = vpop.f32.mrf.mxu0
      %750 = vdwg.mxu0
      %v751 = vmax.f32 %v745, 0.0
      %v752 = vmax.f32 %v748, 0.0
      %s753 = scalar_select %p706, 1, 0
      %v754 = vstv %s753
      %vm755 = vcmp.eq.s32.totalorder %v754, 1
      %v756 = vsel %vm755, %v751, 0.0
      %v757 = vsel %vm755, %v752, 0.0
      %v758 = vpack.c.bf16 %v757, %v756
      %v760 = vunpack.c.l.b16 %v758
      %v761 = vunpack.c.h.b16 %v758
      %v762 = vpack.c.b16 %v760, %v760
      %v763 = vpack.c.b16 %v761, %v761
      %766 = vst [vmem:[#allocation2] sm:$0xf] %v762
      %767 = vst [vmem:[#allocation2 + $0x4] sm:$0xf] %v763
      %v768 = vld [vmem:[%s431] sm:$0xff]
      %v769 = vld [vmem:[%s431 + $0x8] sm:$0xff]
      %v770 = vpack.c.bf16 %v769, %v768
      %p771 = scmp.lt.s32.totalorder %s23, 1
      %v773 = vsel %vm480, %v770, 0
      %775 = vmatprep.subr.bf16.mxu0 0
      %776 = vmatpush1.bf16.msra.mxu0 0
      %777 = vmatprep.subr.bf16.mxu0 0
      %778 = vmatpush1.bf16.msra.mxu0 0
      %779 = vmatprep.subr.bf16.mxu0 0
      %780 = vmatpush1.bf16.msra.mxu0 0
      %781 = vmatprep.subr.bf16.mxu0 0
      %782 = vmatpush1.bf16.msra.mxu0 0
      %783 = vmatprep.subr.bf16.mxu0 0
      %784 = vmatpush1.bf16.msra.mxu0 0
      %785 = vmatprep.subr.bf16.mxu0 0
      %786 = vmatpush1.bf16.msra.mxu0 0
      %787 = vmatprep.subr.bf16.mxu0 0
      %788 = vmatpush1.bf16.msra.mxu0 0
      %789 = vmatprep.subr.bf16.mxu0 0
      %790 = vmatpush1.bf16.msra.mxu0 %v507
      %791 = vmatprep.subr.bf16.mxu0 0
      %792 = vmatpush2.bf16.msra.mxu0 0
      %793 = vmatprep.subr.bf16.mxu0 0
      %794 = vmatpush2.bf16.msra.mxu0 0
      %795 = vmatprep.subr.bf16.mxu0 0
      %796 = vmatpush2.bf16.msra.mxu0 0
      %797 = vmatprep.subr.bf16.mxu0 0
      %798 = vmatpush2.bf16.msra.mxu0 0
      %799 = vmatprep.subr.bf16.mxu0 0
      %800 = vmatpush2.bf16.msra.mxu0 0
      %801 = vmatprep.subr.bf16.mxu0 0
      %802 = vmatpush2.bf16.msra.mxu0 0
      %803 = vmatprep.subr.bf16.mxu0 0
      %804 = vmatpush2.bf16.msra.mxu0 0
      %805 = vmatprep.subr.bf16.mxu0 0
      %806 = vmatpush2.bf16.msra.mxu0 0
      %807 = vmatprep.mubr.bf16.mxu0 0
      %808 = vmatmul.mubr.bf16.gmra.mxu0 %v773
      %v809 = vpop.f32.mrf.mxu0
      %v810 = vadd.f32 %v478, %v809
      %v811 = vpop.f32.mrf.mxu0
      %v812 = vpop.f32.mrf.mxu0
      %v813 = vadd.f32 %v478, %v812
      %v814 = vpop.f32.mrf.mxu0
      %815 = vdwg.mxu0
      %v816 = vmax.f32 %v810, 0.0
      %v817 = vmax.f32 %v813, 0.0
      %s818 = scalar_select %p771, 1, 0
      %v819 = vstv %s818
      %vm820 = vcmp.eq.s32.totalorder %v819, 1
      %v821 = vsel %vm820, %v816, 0.0
      %v822 = vsel %vm820, %v817, 0.0
      %v823 = vpack.c.bf16 %v822, %v821
      %v825 = vunpack.c.l.b16 %v823
      %v826 = vunpack.c.h.b16 %v823
      %v827 = vpack.c.b16 %v825, %v825
      %v828 = vpack.c.b16 %v826, %v826
      %s831 = scalar_lea.vmem [#allocation2], 72
      %832 = vst [vmem:[%s831] sm:$0xf] %v827
      %833 = vst [vmem:[%s831 + $0x4] sm:$0xf] %v828
      %v834 = vld [vmem:[#allocation2] sm:$0xf]
      %v835 = vld [vmem:[#allocation2 + $0x4] sm:$0xf]
      %v836 = vld [vmem:[#allocation2 + $0x8] sm:$0xf]
      %v837 = vld [vmem:[#allocation2 + $0xc] sm:$0xf]
      %v838 = vld [vmem:[#allocation2 + $0x10] sm:$0xf]
      %v839 = vld [vmem:[#allocation2 + $0x14] sm:$0xf]
      %v840 = vld [vmem:[#allocation2 + $0x18] sm:$0xf]
      %v841 = vld [vmem:[#allocation2 + $0x1c] sm:$0xf]
      %v842 = vld [vmem:[#allocation2 + $0x20] sm:$0xf]
      %v843 = vld [vmem:[#allocation2 + $0x24] sm:$0xf]
      %v844 = vld [vmem:[#allocation2 + $0x28] sm:$0xf]
      %v845 = vld [vmem:[#allocation2 + $0x2c] sm:$0xf]
      %v846 = vld [vmem:[#allocation2 + $0x30] sm:$0xf]
      %v847 = vld [vmem:[#allocation2 + $0x34] sm:$0xf]
      %v848 = vld [vmem:[#allocation2 + $0x38] sm:$0xf]
      %v849 = vld [vmem:[#allocation2 + $0x3c] sm:$0xf]
      %v850 = vld [vmem:[#allocation2 + $0x40] sm:$0xf]
      %v851 = vld [vmem:[#allocation2 + $0x44] sm:$0xf]
      %v852 = vld [vmem:[#allocation2 + $0x48] sm:$0xf]
      %v853 = vld [vmem:[#allocation2 + $0x4c] sm:$0xf]
      %v874 = vunpack.c.l.b16 %v834
      %v875 = vunpack.c.l.b16 %v835
      %v876 = vunpack.c.l.b16 %v836
      %v877 = vunpack.c.l.b16 %v837
      %v878 = vunpack.c.l.b16 %v838
      %v879 = vunpack.c.l.b16 %v839
      %v880 = vunpack.c.l.b16 %v840
      %v881 = vunpack.c.l.b16 %v841
      %v882 = vunpack.c.l.b16 %v842
      %v883 = vunpack.c.l.b16 %v843
      %v884 = vunpack.c.l.b16 %v844
      %v885 = vunpack.c.l.b16 %v845
      %v886 = vunpack.c.l.b16 %v846
      %v887 = vunpack.c.l.b16 %v847
      %v888 = vunpack.c.l.b16 %v848
      %v889 = vunpack.c.l.b16 %v849
      %v890 = vunpack.c.l.b16 %v850
      %v891 = vunpack.c.l.b16 %v851
      %v892 = vunpack.c.l.b16 %v852
      %v893 = vunpack.c.l.b16 %v853
      %v894 = vpack.c.b16 %v875, %v874
      %v895 = vpack.c.b16 %v877, %v876
      %v896 = vpack.c.b16 %v879, %v878
      %v897 = vpack.c.b16 %v881, %v880
      %v898 = vpack.c.b16 %v883, %v882
      %v899 = vpack.c.b16 %v885, %v884
      %v900 = vpack.c.b16 %v887, %v886
      %v901 = vpack.c.b16 %v889, %v888
      %v902 = vpack.c.b16 %v891, %v890
      %v903 = vpack.c.b16 %v893, %v892
      %v905 = vshrl.u32 %v894, 16
      %v907 = vrot.slane %v905, 7
      %v908 = vshll.u32 %v894, 16
      %v910 = vor.u32 %v907, %v908
      %v912 = vshrl.u32 %v895, 16
      %v914 = vrot.slane %v912, 7
      %v915 = vshll.u32 %v895, 16
      %v917 = vor.u32 %v914, %v915
      %v919 = vshrl.u32 %v896, 16
      %v921 = vrot.slane %v919, 7
      %v922 = vshll.u32 %v896, 16
      %v924 = vor.u32 %v921, %v922
      %v926 = vshrl.u32 %v897, 16
      %v928 = vrot.slane %v926, 7
      %v929 = vshll.u32 %v897, 16
      %v931 = vor.u32 %v928, %v929
      %v933 = vshrl.u32 %v898, 16
      %v935 = vrot.slane %v933, 7
      %v936 = vshll.u32 %v898, 16
      %v938 = vor.u32 %v935, %v936
      %v940 = vshrl.u32 %v899, 16
      %v942 = vrot.slane %v940, 7
      %v943 = vshll.u32 %v899, 16
      %v945 = vor.u32 %v942, %v943
      %v947 = vshrl.u32 %v900, 16
      %v949 = vrot.slane %v947, 7
      %v950 = vshll.u32 %v900, 16
      %v952 = vor.u32 %v949, %v950
      %v954 = vshrl.u32 %v901, 16
      %v956 = vrot.slane %v954, 7
      %v957 = vshll.u32 %v901, 16
      %v959 = vor.u32 %v956, %v957
      %v961 = vshrl.u32 %v902, 16
      %v963 = vrot.slane %v961, 7
      %v964 = vshll.u32 %v902, 16
      %v966 = vor.u32 %v963, %v964
      %v968 = vshrl.u32 %v903, 16
      %v970 = vrot.slane %v968, 7
      %v971 = vshll.u32 %v903, 16
      %v973 = vor.u32 %v970, %v971
      %vm984 = vcmask 1040384
      %vm985 = vsmask.f32 256
      %vm986 = vmand %vm984, %vm985
      %v987 = vsel %vm986, 0, %v910
      %v988 = vsel %vm986, 0, %v917
      %v989 = vsel %vm986, 0, %v924
      %v990 = vsel %vm986, 0, %v931
      %v991 = vsel %vm986, 0, %v938
      %v992 = vsel %vm986, 0, %v945
      %v993 = vsel %vm986, 0, %v952
      %v994 = vsel %vm986, 0, %v959
      %v995 = vsel %vm986, 0, %v966
      %v996 = vsel %vm986, 0, %v973
      %v997 = vrot.slane %v908, 1
      %v998 = vor.u32 %v905, %v997
      %v999 = vrot.slane %v915, 1
      %v1000 = vor.u32 %v912, %v999
      %v1001 = vrot.slane %v922, 1
      %v1002 = vor.u32 %v919, %v1001
      %v1003 = vrot.slane %v929, 1
      %v1004 = vor.u32 %v926, %v1003
      %v1005 = vrot.slane %v936, 1
      %v1006 = vor.u32 %v933, %v1005
      %v1007 = vrot.slane %v943, 1
      %v1008 = vor.u32 %v940, %v1007
      %v1009 = vrot.slane %v950, 1
      %v1010 = vor.u32 %v947, %v1009
      %v1011 = vrot.slane %v957, 1
      %v1012 = vor.u32 %v954, %v1011
      %v1013 = vrot.slane %v964, 1
      %v1014 = vor.u32 %v961, %v1013
      %v1015 = vrot.slane %v971, 1
      %v1016 = vor.u32 %v968, %v1015
      %vm1027 = vcmask 1047552
      %vm1028 = vsmask.f32 7424
      %vm1029 = vmand %vm1027, %vm1028
      %v1030 = vsel %vm1029, %v998, 0
      %v1031 = vsel %vm1029, %v1000, 0
      %v1032 = vsel %vm1029, %v1002, 0
      %v1033 = vsel %vm1029, %v1004, 0
      %v1034 = vsel %vm1029, %v1006, 0
      %v1035 = vsel %vm1029, %v1008, 0
      %v1036 = vsel %vm1029, %v1010, 0
      %v1037 = vsel %vm1029, %v1012, 0
      %v1038 = vsel %vm1029, %v1014, 0
      %v1039 = vsel %vm1029, %v1016, 0
      %v1040 = vld [vmem:[%s5] sm:$0xf]
      %v1041 = vld [vmem:[%s5 + $0x4] sm:$0xf]
      %v1042 = vld [vmem:[%s5 + $0x8] sm:$0xf]
      %v1043 = vld [vmem:[%s5 + $0xc] sm:$0xf]
      %v1044 = vld [vmem:[%s5 + $0x10] sm:$0xf]
      %v1045 = vld [vmem:[%s5 + $0x14] sm:$0xf]
      %v1046 = vld [vmem:[%s5 + $0x18] sm:$0xf]
      %v1047 = vld [vmem:[%s5 + $0x1c] sm:$0xf]
      %v1048 = vld [vmem:[%s5 + $0x20] sm:$0xf]
      %v1049 = vld [vmem:[%s5 + $0x24] sm:$0xf]
      %v1050 = vld [vmem:[%s5 + $0x28] sm:$0xf]
      %v1051 = vld [vmem:[%s5 + $0x2c] sm:$0xf]
      %v1052 = vld [vmem:[%s5 + $0x30] sm:$0xf]
      %v1053 = vld [vmem:[%s5 + $0x34] sm:$0xf]
      %v1054 = vld [vmem:[%s5 + $0x38] sm:$0xf]
      %v1055 = vld [vmem:[%s5 + $0x3c] sm:$0xf]
      %s1056 = scalar_lea.vmem %s5, 64
      %v1057 = vld [vmem:[%s1056] sm:$0xf]
      %v1058 = vld [vmem:[%s1056 + $0x4] sm:$0xf]
      %v1059 = vld [vmem:[%s1056 + $0x8] sm:$0xf]
      %v1060 = vld [vmem:[%s1056 + $0xc] sm:$0xf]
      %v1061 = vld [vmem:[%s1056 + $0x10] sm:$0xf]
      %v1062 = vld [vmem:[%s1056 + $0x14] sm:$0xf]
      %v1063 = vld [vmem:[%s1056 + $0x18] sm:$0xf]
      %v1064 = vld [vmem:[%s1056 + $0x1c] sm:$0xf]
      %v1065 = vld [vmem:[%s1056 + $0x20] sm:$0xf]
      %v1066 = vld [vmem:[%s1056 + $0x24] sm:$0xf]
      %v1067 = vld [vmem:[%s1056 + $0x28] sm:$0xf]
      %v1068 = vld [vmem:[%s1056 + $0x2c] sm:$0xf]
      %v1069 = vld [vmem:[%s1056 + $0x30] sm:$0xf]
      %v1070 = vld [vmem:[%s1056 + $0x34] sm:$0xf]
      %v1071 = vld [vmem:[%s1056 + $0x38] sm:$0xf]
      %v1072 = vld [vmem:[%s1056 + $0x3c] sm:$0xf]
      %v1097 = vunpack.c.l.b16 %v1057
      %v1098 = vunpack.c.l.b16 %v1058
      %v1099 = vunpack.c.l.b16 %v1059
      %v1100 = vunpack.c.l.b16 %v1060
      %v1101 = vunpack.c.l.b16 %v1061
      %v1102 = vunpack.c.l.b16 %v1062
      %v1103 = vunpack.c.l.b16 %v1063
      %v1104 = vunpack.c.l.b16 %v1064
      %v1105 = vunpack.c.l.b16 %v1065
      %v1106 = vunpack.c.l.b16 %v1066
      %v1107 = vunpack.c.l.b16 %v1067
      %v1108 = vunpack.c.l.b16 %v1068
      %v1109 = vunpack.c.l.b16 %v1069
      %v1110 = vunpack.c.l.b16 %v1070
      %v1111 = vunpack.c.l.b16 %v1071
      %v1112 = vunpack.c.l.b16 %v1072
      %v1113 = vpack.c.b16 %v1098, %v1097
      %v1114 = vpack.c.b16 %v1100, %v1099
      %v1115 = vpack.c.b16 %v1102, %v1101
      %v1116 = vpack.c.b16 %v1104, %v1103
      %v1117 = vpack.c.b16 %v1106, %v1105
      %v1118 = vpack.c.b16 %v1108, %v1107
      %v1119 = vpack.c.b16 %v1110, %v1109
      %v1120 = vpack.c.b16 %v1112, %v1111
      %1129 = vmatprep.subr.bf16.mxu0 0
      %1130 = vmatpush1.bf16.msra.mxu0 %v1120
      %1131 = vmatprep.subr.bf16.mxu0 0
      %1132 = vmatpush1.bf16.msra.mxu0 %v1119
      %1133 = vmatprep.subr.bf16.mxu0 0
      %1134 = vmatpush1.bf16.msra.mxu0 %v1118
      %1135 = vmatprep.subr.bf16.mxu0 0
      %1136 = vmatpush1.bf16.msra.mxu0 %v1117
      %1137 = vmatprep.subr.bf16.mxu0 0
      %1138 = vmatpush1.bf16.msra.mxu0 %v1116
      %1139 = vmatprep.subr.bf16.mxu0 0
      %1140 = vmatpush1.bf16.msra.mxu0 %v1115
      %1141 = vmatprep.subr.bf16.mxu0 0
      %1142 = vmatpush1.bf16.msra.mxu0 %v1114
      %1143 = vmatprep.subr.bf16.mxu0 0
      %1144 = vmatpush1.bf16.msra.mxu0 %v1113
      %1145 = vmatprep.subr.bf16.mxu0 0
      %1146 = vmatpush2.bf16.msra.mxu0 0
      %1147 = vmatprep.subr.bf16.mxu0 0
      %1148 = vmatpush2.bf16.msra.mxu0 0
      %1149 = vmatprep.subr.bf16.mxu0 0
      %1150 = vmatpush2.bf16.msra.mxu0 0
      %1151 = vmatprep.subr.bf16.mxu0 0
      %1152 = vmatpush2.bf16.msra.mxu0 0
      %1153 = vmatprep.subr.bf16.mxu0 0
      %1154 = vmatpush2.bf16.msra.mxu0 0
      %1155 = vmatprep.subr.bf16.mxu0 0
      %1156 = vmatpush2.bf16.msra.mxu0 0
      %1157 = vmatprep.subr.bf16.mxu0 0
      %1158 = vmatpush2.bf16.msra.mxu0 0
      %1159 = vmatprep.subr.bf16.mxu0 0
      %1160 = vmatpush2.bf16.msra.mxu0 0
      %1161 = vmatprep.mubr.bf16.mxu0 0
      %1162 = vmatmul.mubr.bf16.gmra.mxu0 %v894
      %v1163 = vpop.f32.mrf.mxu0
      %v1164 = vadd.f32 0.0, %v1163
      %v1165 = vpop.f32.mrf.mxu0
      %v1166 = vpop.f32.mrf.mxu0
      %v1167 = vadd.f32 0.0, %v1166
      %v1168 = vpop.f32.mrf.mxu0
      %1169 = vmatprep.mubr.bf16.mxu0 0
      %1170 = vmatmul.mubr.bf16.gmra.mxu0 %v895
      %v1171 = vpop.f32.mrf.mxu0
      %v1172 = vadd.f32 0.0, %v1171
      %v1173 = vpop.f32.mrf.mxu0
      %v1174 = vpop.f32.mrf.mxu0
      %v1175 = vadd.f32 0.0, %v1174
      %v1176 = vpop.f32.mrf.mxu0
      %1177 = vmatprep.mubr.bf16.mxu0 0
      %1178 = vmatmul.mubr.bf16.gmra.mxu0 %v896
      %v1179 = vpop.f32.mrf.mxu0
      %v1180 = vadd.f32 0.0, %v1179
      %v1181 = vpop.f32.mrf.mxu0
      %v1182 = vpop.f32.mrf.mxu0
      %v1183 = vadd.f32 0.0, %v1182
      %v1184 = vpop.f32.mrf.mxu0
      %1185 = vmatprep.mubr.bf16.mxu0 0
      %1186 = vmatmul.mubr.bf16.gmra.mxu0 %v897
      %v1187 = vpop.f32.mrf.mxu0
      %v1188 = vadd.f32 0.0, %v1187
      %v1189 = vpop.f32.mrf.mxu0
      %v1190 = vpop.f32.mrf.mxu0
      %v1191 = vadd.f32 0.0, %v1190
      %v1192 = vpop.f32.mrf.mxu0
      %1193 = vmatprep.mubr.bf16.mxu0 0
      %1194 = vmatmul.mubr.bf16.gmra.mxu0 %v898
      %v1195 = vpop.f32.mrf.mxu0
      %v1196 = vadd.f32 0.0, %v1195
      %v1197 = vpop.f32.mrf.mxu0
      %v1198 = vpop.f32.mrf.mxu0
      %v1199 = vadd.f32 0.0, %v1198
      %v1200 = vpop.f32.mrf.mxu0
      %1201 = vmatprep.mubr.bf16.mxu0 0
      %1202 = vmatmul.mubr.bf16.gmra.mxu0 %v899
      %v1203 = vpop.f32.mrf.mxu0
      %v1204 = vadd.f32 0.0, %v1203
      %v1205 = vpop.f32.mrf.mxu0
      %v1206 = vpop.f32.mrf.mxu0
      %v1207 = vadd.f32 0.0, %v1206
      %v1208 = vpop.f32.mrf.mxu0
      %1209 = vmatprep.mubr.bf16.mxu0 0
      %1210 = vmatmul.mubr.bf16.gmra.mxu0 %v900
      %v1211 = vpop.f32.mrf.mxu0
      %v1212 = vadd.f32 0.0, %v1211
      %v1213 = vpop.f32.mrf.mxu0
      %v1214 = vpop.f32.mrf.mxu0
      %v1215 = vadd.f32 0.0, %v1214
      %v1216 = vpop.f32.mrf.mxu0
      %1217 = vmatprep.mubr.bf16.mxu0 0
      %1218 = vmatmul.mubr.bf16.gmra.mxu0 %v901
      %v1219 = vpop.f32.mrf.mxu0
      %v1220 = vadd.f32 0.0, %v1219
      %v1221 = vpop.f32.mrf.mxu0
      %v1222 = vpop.f32.mrf.mxu0
      %v1223 = vadd.f32 0.0, %v1222
      %v1224 = vpop.f32.mrf.mxu0
      %1225 = vdwg.mxu0
      %v1242 = vunpack.c.l.b16 %v1040
      %v1243 = vunpack.c.l.b16 %v1041
      %v1244 = vunpack.c.l.b16 %v1042
      %v1245 = vunpack.c.l.b16 %v1043
      %v1246 = vunpack.c.l.b16 %v1044
      %v1247 = vunpack.c.l.b16 %v1045
      %v1248 = vunpack.c.l.b16 %v1046
      %v1249 = vunpack.c.l.b16 %v1047
      %v1250 = vunpack.c.l.b16 %v1048
      %v1251 = vunpack.c.l.b16 %v1049
      %v1252 = vunpack.c.l.b16 %v1050
      %v1253 = vunpack.c.l.b16 %v1051
      %v1254 = vunpack.c.l.b16 %v1052
      %v1255 = vunpack.c.l.b16 %v1053
      %v1256 = vunpack.c.l.b16 %v1054
      %v1257 = vunpack.c.l.b16 %v1055
      %v1258 = vpack.c.b16 %v1243, %v1242
      %v1259 = vpack.c.b16 %v1245, %v1244
      %v1260 = vpack.c.b16 %v1247, %v1246
      %v1261 = vpack.c.b16 %v1249, %v1248
      %v1262 = vpack.c.b16 %v1251, %v1250
      %v1263 = vpack.c.b16 %v1253, %v1252
      %v1264 = vpack.c.b16 %v1255, %v1254
      %v1265 = vpack.c.b16 %v1257, %v1256
      %1274 = vmatprep.subr.bf16.mxu0 0
      %1275 = vmatpush1.bf16.msra.mxu0 %v1265
      %1276 = vmatprep.subr.bf16.mxu0 0
      %1277 = vmatpush1.bf16.msra.mxu0 %v1264
      %1278 = vmatprep.subr.bf16.mxu0 0
      %1279 = vmatpush1.bf16.msra.mxu0 %v1263
      %1280 = vmatprep.subr.bf16.mxu0 0
      %1281 = vmatpush1.bf16.msra.mxu0 %v1262
      %1282 = vmatprep.subr.bf16.mxu0 0
      %1283 = vmatpush1.bf16.msra.mxu0 %v1261
      %1284 = vmatprep.subr.bf16.mxu0 0
      %1285 = vmatpush1.bf16.msra.mxu0 %v1260
      %1286 = vmatprep.subr.bf16.mxu0 0
      %1287 = vmatpush1.bf16.msra.mxu0 %v1259
      %1288 = vmatprep.subr.bf16.mxu0 0
      %1289 = vmatpush1.bf16.msra.mxu0 %v1258
      %1290 = vmatprep.subr.bf16.mxu0 0
      %1291 = vmatpush2.bf16.msra.mxu0 0
      %1292 = vmatprep.subr.bf16.mxu0 0
      %1293 = vmatpush2.bf16.msra.mxu0 0
      %1294 = vmatprep.subr.bf16.mxu0 0
      %1295 = vmatpush2.bf16.msra.mxu0 0
      %1296 = vmatprep.subr.bf16.mxu0 0
      %1297 = vmatpush2.bf16.msra.mxu0 0
      %1298 = vmatprep.subr.bf16.mxu0 0
      %1299 = vmatpush2.bf16.msra.mxu0 0
      %1300 = vmatprep.subr.bf16.mxu0 0
      %1301 = vmatpush2.bf16.msra.mxu0 0
      %1302 = vmatprep.subr.bf16.mxu0 0
      %1303 = vmatpush2.bf16.msra.mxu0 0
      %1304 = vmatprep.subr.bf16.mxu0 0
      %1305 = vmatpush2.bf16.msra.mxu0 0
      %1306 = vmatprep.mubr.bf16.mxu0 0
      %1307 = vmatmul.mubr.bf16.gmra.mxu0 %v987
      %v1308 = vpop.f32.mrf.mxu0
      %v1309 = vadd.f32 %v1164, %v1308
      %v1310 = vpop.f32.mrf.mxu0
      %v1311 = vpop.f32.mrf.mxu0
      %v1312 = vadd.f32 %v1167, %v1311
      %v1313 = vpop.f32.mrf.mxu0
      %1314 = vmatprep.mubr.bf16.mxu0 0
      %1315 = vmatmul.mubr.bf16.gmra.mxu0 %v988
      %v1316 = vpop.f32.mrf.mxu0
      %v1317 = vadd.f32 %v1172, %v1316
      %v1318 = vpop.f32.mrf.mxu0
      %v1319 = vpop.f32.mrf.mxu0
      %v1320 = vadd.f32 %v1175, %v1319
      %v1321 = vpop.f32.mrf.mxu0
      %1322 = vmatprep.mubr.bf16.mxu0 0
      %1323 = vmatmul.mubr.bf16.gmra.mxu0 %v989
      %v1324 = vpop.f32.mrf.mxu0
      %v1325 = vadd.f32 %v1180, %v1324
      %v1326 = vpop.f32.mrf.mxu0
      %v1327 = vpop.f32.mrf.mxu0
      %v1328 = vadd.f32 %v1183, %v1327
      %v1329 = vpop.f32.mrf.mxu0
      %1330 = vmatprep.mubr.bf16.mxu0 0
      %1331 = vmatmul.mubr.bf16.gmra.mxu0 %v990
      %v1332 = vpop.f32.mrf.mxu0
      %v1333 = vadd.f32 %v1188, %v1332
      %v1334 = vpop.f32.mrf.mxu0
      %v1335 = vpop.f32.mrf.mxu0
      %v1336 = vadd.f32 %v1191, %v1335
      %v1337 = vpop.f32.mrf.mxu0
      %1338 = vmatprep.mubr.bf16.mxu0 0
      %1339 = vmatmul.mubr.bf16.gmra.mxu0 %v991
      %v1340 = vpop.f32.mrf.mxu0
      %v1341 = vadd.f32 %v1196, %v1340
      %v1342 = vpop.f32.mrf.mxu0
      %v1343 = vpop.f32.mrf.mxu0
      %v1344 = vadd.f32 %v1199, %v1343
      %v1345 = vpop.f32.mrf.mxu0
      %1346 = vmatprep.mubr.bf16.mxu0 0
      %1347 = vmatmul.mubr.bf16.gmra.mxu0 %v992
      %v1348 = vpop.f32.mrf.mxu0
      %v1349 = vadd.f32 %v1204, %v1348
      %v1350 = vpop.f32.mrf.mxu0
      %v1351 = vpop.f32.mrf.mxu0
      %v1352 = vadd.f32 %v1207, %v1351
      %v1353 = vpop.f32.mrf.mxu0
      %1354 = vmatprep.mubr.bf16.mxu0 0
      %1355 = vmatmul.mubr.bf16.gmra.mxu0 %v993
      %v1356 = vpop.f32.mrf.mxu0
      %v1357 = vadd.f32 %v1212, %v1356
      %v1358 = vpop.f32.mrf.mxu0
      %v1359 = vpop.f32.mrf.mxu0
      %v1360 = vadd.f32 %v1215, %v1359
      %v1361 = vpop.f32.mrf.mxu0
      %1362 = vmatprep.mubr.bf16.mxu0 0
      %1363 = vmatmul.mubr.bf16.gmra.mxu0 %v994
      %v1364 = vpop.f32.mrf.mxu0
      %v1365 = vadd.f32 %v1220, %v1364
      %v1366 = vpop.f32.mrf.mxu0
      %v1367 = vpop.f32.mrf.mxu0
      %v1368 = vadd.f32 %v1223, %v1367
      %v1369 = vpop.f32.mrf.mxu0
      %1370 = vdwg.mxu0
      %s1371 = scalar_lea.vmem %s5, 128
      %v1372 = vld [vmem:[%s1371] sm:$0xf]
      %v1373 = vld [vmem:[%s1371 + $0x4] sm:$0xf]
      %v1374 = vld [vmem:[%s1371 + $0x8] sm:$0xf]
      %v1375 = vld [vmem:[%s1371 + $0xc] sm:$0xf]
      %v1376 = vld [vmem:[%s1371 + $0x10] sm:$0xf]
      %v1377 = vld [vmem:[%s1371 + $0x14] sm:$0xf]
      %v1378 = vld [vmem:[%s1371 + $0x18] sm:$0xf]
      %v1379 = vld [vmem:[%s1371 + $0x1c] sm:$0xf]
      %v1380 = vld [vmem:[%s1371 + $0x20] sm:$0xf]
      %v1381 = vld [vmem:[%s1371 + $0x24] sm:$0xf]
      %v1382 = vld [vmem:[%s1371 + $0x28] sm:$0xf]
      %v1383 = vld [vmem:[%s1371 + $0x2c] sm:$0xf]
      %v1384 = vld [vmem:[%s1371 + $0x30] sm:$0xf]
      %v1385 = vld [vmem:[%s1371 + $0x34] sm:$0xf]
      %v1386 = vld [vmem:[%s1371 + $0x38] sm:$0xf]
      %v1387 = vld [vmem:[%s1371 + $0x3c] sm:$0xf]
      %v1404 = vunpack.c.l.b16 %v1372
      %v1405 = vunpack.c.l.b16 %v1373
      %v1406 = vunpack.c.l.b16 %v1374
      %v1407 = vunpack.c.l.b16 %v1375
      %v1408 = vunpack.c.l.b16 %v1376
      %v1409 = vunpack.c.l.b16 %v1377
      %v1410 = vunpack.c.l.b16 %v1378
      %v1411 = vunpack.c.l.b16 %v1379
      %v1412 = vunpack.c.l.b16 %v1380
      %v1413 = vunpack.c.l.b16 %v1381
      %v1414 = vunpack.c.l.b16 %v1382
      %v1415 = vunpack.c.l.b16 %v1383
      %v1416 = vunpack.c.l.b16 %v1384
      %v1417 = vunpack.c.l.b16 %v1385
      %v1418 = vunpack.c.l.b16 %v1386
      %v1419 = vunpack.c.l.b16 %v1387
      %v1420 = vpack.c.b16 %v1405, %v1404
      %v1421 = vpack.c.b16 %v1407, %v1406
      %v1422 = vpack.c.b16 %v1409, %v1408
      %v1423 = vpack.c.b16 %v1411, %v1410
      %v1424 = vpack.c.b16 %v1413, %v1412
      %v1425 = vpack.c.b16 %v1415, %v1414
      %v1426 = vpack.c.b16 %v1417, %v1416
      %v1427 = vpack.c.b16 %v1419, %v1418
      %1436 = vmatprep.subr.bf16.mxu0 0
      %1437 = vmatpush1.bf16.msra.mxu0 %v1427
      %1438 = vmatprep.subr.bf16.mxu0 0
      %1439 = vmatpush1.bf16.msra.mxu0 %v1426
      %1440 = vmatprep.subr.bf16.mxu0 0
      %1441 = vmatpush1.bf16.msra.mxu0 %v1425
      %1442 = vmatprep.subr.bf16.mxu0 0
      %1443 = vmatpush1.bf16.msra.mxu0 %v1424
      %1444 = vmatprep.subr.bf16.mxu0 0
      %1445 = vmatpush1.bf16.msra.mxu0 %v1423
      %1446 = vmatprep.subr.bf16.mxu0 0
      %1447 = vmatpush1.bf16.msra.mxu0 %v1422
      %1448 = vmatprep.subr.bf16.mxu0 0
      %1449 = vmatpush1.bf16.msra.mxu0 %v1421
      %1450 = vmatprep.subr.bf16.mxu0 0
      %1451 = vmatpush1.bf16.msra.mxu0 %v1420
      %1452 = vmatprep.subr.bf16.mxu0 0
      %1453 = vmatpush2.bf16.msra.mxu0 0
      %1454 = vmatprep.subr.bf16.mxu0 0
      %1455 = vmatpush2.bf16.msra.mxu0 0
      %1456 = vmatprep.subr.bf16.mxu0 0
      %1457 = vmatpush2.bf16.msra.mxu0 0
      %1458 = vmatprep.subr.bf16.mxu0 0
      %1459 = vmatpush2.bf16.msra.mxu0 0
      %1460 = vmatprep.subr.bf16.mxu0 0
      %1461 = vmatpush2.bf16.msra.mxu0 0
      %1462 = vmatprep.subr.bf16.mxu0 0
      %1463 = vmatpush2.bf16.msra.mxu0 0
      %1464 = vmatprep.subr.bf16.mxu0 0
      %1465 = vmatpush2.bf16.msra.mxu0 0
      %1466 = vmatprep.subr.bf16.mxu0 0
      %1467 = vmatpush2.bf16.msra.mxu0 0
      %1468 = vmatprep.mubr.bf16.mxu0 0
      %1469 = vmatmul.mubr.bf16.gmra.mxu0 %v1030
      %v1470 = vpop.f32.mrf.mxu0
      %v1471 = vadd.f32 0.0, %v1470
      %v1472 = vpop.f32.mrf.mxu0
      %v1473 = vpop.f32.mrf.mxu0
      %v1474 = vadd.f32 0.0, %v1473
      %v1475 = vpop.f32.mrf.mxu0
      %1476 = vmatprep.mubr.bf16.mxu0 0
      %1477 = vmatmul.mubr.bf16.gmra.mxu0 %v1031
      %v1478 = vpop.f32.mrf.mxu0
      %v1479 = vadd.f32 0.0, %v1478
      %v1480 = vpop.f32.mrf.mxu0
      %v1481 = vpop.f32.mrf.mxu0
      %v1482 = vadd.f32 0.0, %v1481
      %v1483 = vpop.f32.mrf.mxu0
      %1484 = vmatprep.mubr.bf16.mxu0 0
      %1485 = vmatmul.mubr.bf16.gmra.mxu0 %v1032
      %v1486 = vpop.f32.mrf.mxu0
      %v1487 = vadd.f32 0.0, %v1486
      %v1488 = vpop.f32.mrf.mxu0
      %v1489 = vpop.f32.mrf.mxu0
      %v1490 = vadd.f32 0.0, %v1489
      %v1491 = vpop.f32.mrf.mxu0
      %1492 = vmatprep.mubr.bf16.mxu0 0
      %1493 = vmatmul.mubr.bf16.gmra.mxu0 %v1033
      %v1494 = vpop.f32.mrf.mxu0
      %v1495 = vadd.f32 0.0, %v1494
      %v1496 = vpop.f32.mrf.mxu0
      %v1497 = vpop.f32.mrf.mxu0
      %v1498 = vadd.f32 0.0, %v1497
      %v1499 = vpop.f32.mrf.mxu0
      %1500 = vmatprep.mubr.bf16.mxu0 0
      %1501 = vmatmul.mubr.bf16.gmra.mxu0 %v1034
      %v1502 = vpop.f32.mrf.mxu0
      %v1503 = vadd.f32 0.0, %v1502
      %v1504 = vpop.f32.mrf.mxu0
      %v1505 = vpop.f32.mrf.mxu0
      %v1506 = vadd.f32 0.0, %v1505
      %v1507 = vpop.f32.mrf.mxu0
      %1508 = vmatprep.mubr.bf16.mxu0 0
      %1509 = vmatmul.mubr.bf16.gmra.mxu0 %v1035
      %v1510 = vpop.f32.mrf.mxu0
      %v1511 = vadd.f32 0.0, %v1510
      %v1512 = vpop.f32.mrf.mxu0
      %v1513 = vpop.f32.mrf.mxu0
      %v1514 = vadd.f32 0.0, %v1513
      %v1515 = vpop.f32.mrf.mxu0
      %1516 = vmatprep.mubr.bf16.mxu0 0
      %1517 = vmatmul.mubr.bf16.gmra.mxu0 %v1036
      %v1518 = vpop.f32.mrf.mxu0
      %v1519 = vadd.f32 0.0, %v1518
      %v1520 = vpop.f32.mrf.mxu0
      %v1521 = vpop.f32.mrf.mxu0
      %v1522 = vadd.f32 0.0, %v1521
      %v1523 = vpop.f32.mrf.mxu0
      %1524 = vmatprep.mubr.bf16.mxu0 0
      %1525 = vmatmul.mubr.bf16.gmra.mxu0 %v1037
      %v1526 = vpop.f32.mrf.mxu0
      %v1527 = vadd.f32 0.0, %v1526
      %v1528 = vpop.f32.mrf.mxu0
      %v1529 = vpop.f32.mrf.mxu0
      %v1530 = vadd.f32 0.0, %v1529
      %v1531 = vpop.f32.mrf.mxu0
      %1532 = vdwg.mxu0
      %v1533 = vadd.f32 %v1309, %v1471
      %v1534 = vadd.f32 %v1312, %v1474
      %v1535 = vadd.f32 %v1317, %v1479
      %v1536 = vadd.f32 %v1320, %v1482
      %v1537 = vadd.f32 %v1325, %v1487
      %v1538 = vadd.f32 %v1328, %v1490
      %v1539 = vadd.f32 %v1333, %v1495
      %v1540 = vadd.f32 %v1336, %v1498
      %v1541 = vadd.f32 %v1341, %v1503
      %v1542 = vadd.f32 %v1344, %v1506
      %v1543 = vadd.f32 %v1349, %v1511
      %v1544 = vadd.f32 %v1352, %v1514
      %v1545 = vadd.f32 %v1357, %v1519
      %v1546 = vadd.f32 %v1360, %v1522
      %v1547 = vadd.f32 %v1365, %v1527
      %v1548 = vadd.f32 %v1368, %v1530
      %s1549 = scalar_lea.vmem %s5, 192
      %v1550 = vld [vmem:[%s1549] sm:$0xf]
      %v1551 = vld [vmem:[%s1549 + $0x4] sm:$0xf]
      %v1552 = vld [vmem:[%s1549 + $0x8] sm:$0xf]
      %v1553 = vld [vmem:[%s1549 + $0xc] sm:$0xf]
      %v1554 = vld [vmem:[%s1549 + $0x10] sm:$0xf]
      %v1555 = vld [vmem:[%s1549 + $0x14] sm:$0xf]
      %v1556 = vld [vmem:[%s1549 + $0x18] sm:$0xf]
      %v1557 = vld [vmem:[%s1549 + $0x1c] sm:$0xf]
      %v1558 = vld [vmem:[%s1549 + $0x20] sm:$0xf]
      %v1559 = vld [vmem:[%s1549 + $0x24] sm:$0xf]
      %v1560 = vld [vmem:[%s1549 + $0x28] sm:$0xf]
      %v1561 = vld [vmem:[%s1549 + $0x2c] sm:$0xf]
      %v1562 = vld [vmem:[%s1549 + $0x30] sm:$0xf]
      %v1563 = vld [vmem:[%s1549 + $0x34] sm:$0xf]
      %v1564 = vld [vmem:[%s1549 + $0x38] sm:$0xf]
      %v1565 = vld [vmem:[%s1549 + $0x3c] sm:$0xf]
      %v1582 = vunpack.c.l.b16 %v1550
      %v1583 = vunpack.c.l.b16 %v1551
      %v1584 = vunpack.c.l.b16 %v1552
      %v1585 = vunpack.c.l.b16 %v1553
      %v1586 = vunpack.c.l.b16 %v1554
      %v1587 = vunpack.c.l.b16 %v1555
      %v1588 = vunpack.c.l.b16 %v1556
      %v1589 = vunpack.c.l.b16 %v1557
      %v1590 = vunpack.c.l.b16 %v1558
      %v1591 = vunpack.c.l.b16 %v1559
      %v1592 = vunpack.c.l.b16 %v1560
      %v1593 = vunpack.c.l.b16 %v1561
      %v1594 = vunpack.c.l.b16 %v1562
      %v1595 = vunpack.c.l.b16 %v1563
      %v1596 = vunpack.c.l.b16 %v1564
      %v1597 = vunpack.c.l.b16 %v1565
      %v1598 = vpack.c.b16 %v1583, %v1582
      %v1599 = vpack.c.b16 %v1585, %v1584
      %v1600 = vpack.c.b16 %v1587, %v1586
      %v1601 = vpack.c.b16 %v1589, %v1588
      %v1602 = vpack.c.b16 %v1591, %v1590
      %v1603 = vpack.c.b16 %v1593, %v1592
      %v1604 = vpack.c.b16 %v1595, %v1594
      %v1605 = vpack.c.b16 %v1597, %v1596
      %1614 = vmatprep.subr.bf16.mxu0 0
      %1615 = vmatpush1.bf16.msra.mxu0 %v1605
      %1616 = vmatprep.subr.bf16.mxu0 0
      %1617 = vmatpush1.bf16.msra.mxu0 %v1604
      %1618 = vmatprep.subr.bf16.mxu0 0
      %1619 = vmatpush1.bf16.msra.mxu0 %v1603
      %1620 = vmatprep.subr.bf16.mxu0 0
      %1621 = vmatpush1.bf16.msra.mxu0 %v1602
      %1622 = vmatprep.subr.bf16.mxu0 0
      %1623 = vmatpush1.bf16.msra.mxu0 %v1601
      %1624 = vmatprep.subr.bf16.mxu0 0
      %1625 = vmatpush1.bf16.msra.mxu0 %v1600
      %1626 = vmatprep.subr.bf16.mxu0 0
      %1627 = vmatpush1.bf16.msra.mxu0 %v1599
      %1628 = vmatprep.subr.bf16.mxu0 0
      %1629 = vmatpush1.bf16.msra.mxu0 %v1598
      %1630 = vmatprep.subr.bf16.mxu0 0
      %1631 = vmatpush2.bf16.msra.mxu0 0
      %1632 = vmatprep.subr.bf16.mxu0 0
      %1633 = vmatpush2.bf16.msra.mxu0 0
      %1634 = vmatprep.subr.bf16.mxu0 0
      %1635 = vmatpush2.bf16.msra.mxu0 0
      %1636 = vmatprep.subr.bf16.mxu0 0
      %1637 = vmatpush2.bf16.msra.mxu0 0
      %1638 = vmatprep.subr.bf16.mxu0 0
      %1639 = vmatpush2.bf16.msra.mxu0 0
      %1640 = vmatprep.subr.bf16.mxu0 0
      %1641 = vmatpush2.bf16.msra.mxu0 0
      %1642 = vmatprep.subr.bf16.mxu0 0
      %1643 = vmatpush2.bf16.msra.mxu0 0
      %1644 = vmatprep.subr.bf16.mxu0 0
      %1645 = vmatpush2.bf16.msra.mxu0 0
      %1646 = vmatprep.mubr.bf16.mxu0 0
      %1647 = vmatmul.mubr.bf16.gmra.mxu0 %v988
      %v1648 = vpop.f32.mrf.mxu0
      %v1649 = vadd.f32 0.0, %v1648
      %v1650 = vpop.f32.mrf.mxu0
      %v1651 = vpop.f32.mrf.mxu0
      %v1652 = vadd.f32 0.0, %v1651
      %v1653 = vpop.f32.mrf.mxu0
      %1654 = vmatprep.mubr.bf16.mxu0 0
      %1655 = vmatmul.mubr.bf16.gmra.mxu0 %v989
      %v1656 = vpop.f32.mrf.mxu0
      %v1657 = vadd.f32 0.0, %v1656
      %v1658 = vpop.f32.mrf.mxu0
      %v1659 = vpop.f32.mrf.mxu0
      %v1660 = vadd.f32 0.0, %v1659
      %v1661 = vpop.f32.mrf.mxu0
      %1662 = vmatprep.mubr.bf16.mxu0 0
      %1663 = vmatmul.mubr.bf16.gmra.mxu0 %v990
      %v1664 = vpop.f32.mrf.mxu0
      %v1665 = vadd.f32 0.0, %v1664
      %v1666 = vpop.f32.mrf.mxu0
      %v1667 = vpop.f32.mrf.mxu0
      %v1668 = vadd.f32 0.0, %v1667
      %v1669 = vpop.f32.mrf.mxu0
      %1670 = vmatprep.mubr.bf16.mxu0 0
      %1671 = vmatmul.mubr.bf16.gmra.mxu0 %v991
      %v1672 = vpop.f32.mrf.mxu0
      %v1673 = vadd.f32 0.0, %v1672
      %v1674 = vpop.f32.mrf.mxu0
      %v1675 = vpop.f32.mrf.mxu0
      %v1676 = vadd.f32 0.0, %v1675
      %v1677 = vpop.f32.mrf.mxu0
      %1678 = vmatprep.mubr.bf16.mxu0 0
      %1679 = vmatmul.mubr.bf16.gmra.mxu0 %v992
      %v1680 = vpop.f32.mrf.mxu0
      %v1681 = vadd.f32 0.0, %v1680
      %v1682 = vpop.f32.mrf.mxu0
      %v1683 = vpop.f32.mrf.mxu0
      %v1684 = vadd.f32 0.0, %v1683
      %v1685 = vpop.f32.mrf.mxu0
      %1686 = vmatprep.mubr.bf16.mxu0 0
      %1687 = vmatmul.mubr.bf16.gmra.mxu0 %v993
      %v1688 = vpop.f32.mrf.mxu0
      %v1689 = vadd.f32 0.0, %v1688
      %v1690 = vpop.f32.mrf.mxu0
      %v1691 = vpop.f32.mrf.mxu0
      %v1692 = vadd.f32 0.0, %v1691
      %v1693 = vpop.f32.mrf.mxu0
      %1694 = vmatprep.mubr.bf16.mxu0 0
      %1695 = vmatmul.mubr.bf16.gmra.mxu0 %v994
      %v1696 = vpop.f32.mrf.mxu0
      %v1697 = vadd.f32 0.0, %v1696
      %v1698 = vpop.f32.mrf.mxu0
      %v1699 = vpop.f32.mrf.mxu0
      %v1700 = vadd.f32 0.0, %v1699
      %v1701 = vpop.f32.mrf.mxu0
      %1702 = vmatprep.mubr.bf16.mxu0 0
      %1703 = vmatmul.mubr.bf16.gmra.mxu0 %v995
      %v1704 = vpop.f32.mrf.mxu0
      %v1705 = vadd.f32 0.0, %v1704
      %v1706 = vpop.f32.mrf.mxu0
      %v1707 = vpop.f32.mrf.mxu0
      %v1708 = vadd.f32 0.0, %v1707
      %v1709 = vpop.f32.mrf.mxu0
      %1710 = vdwg.mxu0
      %v1711 = vadd.f32 %v1533, %v1649
      %v1712 = vadd.f32 %v1534, %v1652
      %v1713 = vadd.f32 %v1535, %v1657
      %v1714 = vadd.f32 %v1536, %v1660
      %v1715 = vadd.f32 %v1537, %v1665
      %v1716 = vadd.f32 %v1538, %v1668
      %v1717 = vadd.f32 %v1539, %v1673
      %v1718 = vadd.f32 %v1540, %v1676
      %v1719 = vadd.f32 %v1541, %v1681
      %v1720 = vadd.f32 %v1542, %v1684
      %v1721 = vadd.f32 %v1543, %v1689
      %v1722 = vadd.f32 %v1544, %v1692
      %v1723 = vadd.f32 %v1545, %v1697
      %v1724 = vadd.f32 %v1546, %v1700
      %v1725 = vadd.f32 %v1547, %v1705
      %v1726 = vadd.f32 %v1548, %v1708
      %s1727 = scalar_lea.vmem %s5, 256
      %v1728 = vld [vmem:[%s1727] sm:$0xf]
      %v1729 = vld [vmem:[%s1727 + $0x4] sm:$0xf]
      %v1730 = vld [vmem:[%s1727 + $0x8] sm:$0xf]
      %v1731 = vld [vmem:[%s1727 + $0xc] sm:$0xf]
      %v1732 = vld [vmem:[%s1727 + $0x10] sm:$0xf]
      %v1733 = vld [vmem:[%s1727 + $0x14] sm:$0xf]
      %v1734 = vld [vmem:[%s1727 + $0x18] sm:$0xf]
      %v1735 = vld [vmem:[%s1727 + $0x1c] sm:$0xf]
      %v1736 = vld [vmem:[%s1727 + $0x20] sm:$0xf]
      %v1737 = vld [vmem:[%s1727 + $0x24] sm:$0xf]
      %v1738 = vld [vmem:[%s1727 + $0x28] sm:$0xf]
      %v1739 = vld [vmem:[%s1727 + $0x2c] sm:$0xf]
      %v1740 = vld [vmem:[%s1727 + $0x30] sm:$0xf]
      %v1741 = vld [vmem:[%s1727 + $0x34] sm:$0xf]
      %v1742 = vld [vmem:[%s1727 + $0x38] sm:$0xf]
      %v1743 = vld [vmem:[%s1727 + $0x3c] sm:$0xf]
      %v1761 = vunpack.c.l.b16 %v1728
      %v1762 = vunpack.c.l.b16 %v1729
      %v1763 = vunpack.c.l.b16 %v1730
      %v1764 = vunpack.c.l.b16 %v1731
      %v1765 = vunpack.c.l.b16 %v1732
      %v1766 = vunpack.c.l.b16 %v1733
      %v1767 = vunpack.c.l.b16 %v1734
      %v1768 = vunpack.c.l.b16 %v1735
      %v1769 = vunpack.c.l.b16 %v1736
      %v1770 = vunpack.c.l.b16 %v1737
      %v1771 = vunpack.c.l.b16 %v1738
      %v1772 = vunpack.c.l.b16 %v1739
      %v1773 = vunpack.c.l.b16 %v1740
      %v1774 = vunpack.c.l.b16 %v1741
      %v1775 = vunpack.c.l.b16 %v1742
      %v1776 = vunpack.c.l.b16 %v1743
      %v1777 = vpack.c.b16 %v1762, %v1761
      %v1778 = vpack.c.b16 %v1764, %v1763
      %v1779 = vpack.c.b16 %v1766, %v1765
      %v1780 = vpack.c.b16 %v1768, %v1767
      %v1781 = vpack.c.b16 %v1770, %v1769
      %v1782 = vpack.c.b16 %v1772, %v1771
      %v1783 = vpack.c.b16 %v1774, %v1773
      %v1784 = vpack.c.b16 %v1776, %v1775
      %1793 = vmatprep.subr.bf16.mxu0 0
      %1794 = vmatpush1.bf16.msra.mxu0 %v1784
      %1795 = vmatprep.subr.bf16.mxu0 0
      %1796 = vmatpush1.bf16.msra.mxu0 %v1783
      %1797 = vmatprep.subr.bf16.mxu0 0
      %1798 = vmatpush1.bf16.msra.mxu0 %v1782
      %1799 = vmatprep.subr.bf16.mxu0 0
      %1800 = vmatpush1.bf16.msra.mxu0 %v1781
      %1801 = vmatprep.subr.bf16.mxu0 0
      %1802 = vmatpush1.bf16.msra.mxu0 %v1780
      %1803 = vmatprep.subr.bf16.mxu0 0
      %1804 = vmatpush1.bf16.msra.mxu0 %v1779
      %1805 = vmatprep.subr.bf16.mxu0 0
      %1806 = vmatpush1.bf16.msra.mxu0 %v1778
      %1807 = vmatprep.subr.bf16.mxu0 0
      %1808 = vmatpush1.bf16.msra.mxu0 %v1777
      %1809 = vmatprep.subr.bf16.mxu0 0
      %1810 = vmatpush2.bf16.msra.mxu0 0
      %1811 = vmatprep.subr.bf16.mxu0 0
      %1812 = vmatpush2.bf16.msra.mxu0 0
      %1813 = vmatprep.subr.bf16.mxu0 0
      %1814 = vmatpush2.bf16.msra.mxu0 0
      %1815 = vmatprep.subr.bf16.mxu0 0
      %1816 = vmatpush2.bf16.msra.mxu0 0
      %1817 = vmatprep.subr.bf16.mxu0 0
      %1818 = vmatpush2.bf16.msra.mxu0 0
      %1819 = vmatprep.subr.bf16.mxu0 0
      %1820 = vmatpush2.bf16.msra.mxu0 0
      %1821 = vmatprep.subr.bf16.mxu0 0
      %1822 = vmatpush2.bf16.msra.mxu0 0
      %1823 = vmatprep.subr.bf16.mxu0 0
      %1824 = vmatpush2.bf16.msra.mxu0 0
      %1825 = vmatprep.mubr.bf16.mxu0 0
      %1826 = vmatmul.mubr.bf16.gmra.mxu0 %v895
      %v1827 = vpop.f32.mrf.mxu0
      %v1828 = vadd.f32 0.0, %v1827
      %v1829 = vpop.f32.mrf.mxu0
      %v1830 = vpop.f32.mrf.mxu0
      %v1831 = vadd.f32 0.0, %v1830
      %v1832 = vpop.f32.mrf.mxu0
      %1833 = vmatprep.mubr.bf16.mxu0 0
      %1834 = vmatmul.mubr.bf16.gmra.mxu0 %v896
      %v1835 = vpop.f32.mrf.mxu0
      %v1836 = vadd.f32 0.0, %v1835
      %v1837 = vpop.f32.mrf.mxu0
      %v1838 = vpop.f32.mrf.mxu0
      %v1839 = vadd.f32 0.0, %v1838
      %v1840 = vpop.f32.mrf.mxu0
      %1841 = vmatprep.mubr.bf16.mxu0 0
      %1842 = vmatmul.mubr.bf16.gmra.mxu0 %v897
      %v1843 = vpop.f32.mrf.mxu0
      %v1844 = vadd.f32 0.0, %v1843
      %v1845 = vpop.f32.mrf.mxu0
      %v1846 = vpop.f32.mrf.mxu0
      %v1847 = vadd.f32 0.0, %v1846
      %v1848 = vpop.f32.mrf.mxu0
      %1849 = vmatprep.mubr.bf16.mxu0 0
      %1850 = vmatmul.mubr.bf16.gmra.mxu0 %v898
      %v1851 = vpop.f32.mrf.mxu0
      %v1852 = vadd.f32 0.0, %v1851
      %v1853 = vpop.f32.mrf.mxu0
      %v1854 = vpop.f32.mrf.mxu0
      %v1855 = vadd.f32 0.0, %v1854
      %v1856 = vpop.f32.mrf.mxu0
      %1857 = vmatprep.mubr.bf16.mxu0 0
      %1858 = vmatmul.mubr.bf16.gmra.mxu0 %v899
      %v1859 = vpop.f32.mrf.mxu0
      %v1860 = vadd.f32 0.0, %v1859
      %v1861 = vpop.f32.mrf.mxu0
      %v1862 = vpop.f32.mrf.mxu0
      %v1863 = vadd.f32 0.0, %v1862
      %v1864 = vpop.f32.mrf.mxu0
      %1865 = vmatprep.mubr.bf16.mxu0 0
      %1866 = vmatmul.mubr.bf16.gmra.mxu0 %v900
      %v1867 = vpop.f32.mrf.mxu0
      %v1868 = vadd.f32 0.0, %v1867
      %v1869 = vpop.f32.mrf.mxu0
      %v1870 = vpop.f32.mrf.mxu0
      %v1871 = vadd.f32 0.0, %v1870
      %v1872 = vpop.f32.mrf.mxu0
      %1873 = vmatprep.mubr.bf16.mxu0 0
      %1874 = vmatmul.mubr.bf16.gmra.mxu0 %v901
      %v1875 = vpop.f32.mrf.mxu0
      %v1876 = vadd.f32 0.0, %v1875
      %v1877 = vpop.f32.mrf.mxu0
      %v1878 = vpop.f32.mrf.mxu0
      %v1879 = vadd.f32 0.0, %v1878
      %v1880 = vpop.f32.mrf.mxu0
      %1881 = vmatprep.mubr.bf16.mxu0 0
      %1882 = vmatmul.mubr.bf16.gmra.mxu0 %v902
      %v1883 = vpop.f32.mrf.mxu0
      %v1884 = vadd.f32 0.0, %v1883
      %v1885 = vpop.f32.mrf.mxu0
      %v1886 = vpop.f32.mrf.mxu0
      %v1887 = vadd.f32 0.0, %v1886
      %v1888 = vpop.f32.mrf.mxu0
      %1889 = vdwg.mxu0
      %v1890 = vadd.f32 %v1711, %v1828
      %v1891 = vadd.f32 %v1712, %v1831
      %v1892 = vadd.f32 %v1713, %v1836
      %v1893 = vadd.f32 %v1714, %v1839
      %v1894 = vadd.f32 %v1715, %v1844
      %v1895 = vadd.f32 %v1716, %v1847
      %v1896 = vadd.f32 %v1717, %v1852
      %v1897 = vadd.f32 %v1718, %v1855
      %v1898 = vadd.f32 %v1719, %v1860
      %v1899 = vadd.f32 %v1720, %v1863
      %v1900 = vadd.f32 %v1721, %v1868
      %v1901 = vadd.f32 %v1722, %v1871
      %v1902 = vadd.f32 %v1723, %v1876
      %v1903 = vadd.f32 %v1724, %v1879
      %v1904 = vadd.f32 %v1725, %v1884
      %v1905 = vadd.f32 %v1726, %v1887
      %s1906 = scalar_lea.vmem %s5, 320
      %v1907 = vld [vmem:[%s1906] sm:$0xf]
      %v1908 = vld [vmem:[%s1906 + $0x4] sm:$0xf]
      %v1909 = vld [vmem:[%s1906 + $0x8] sm:$0xf]
      %v1910 = vld [vmem:[%s1906 + $0xc] sm:$0xf]
      %v1911 = vld [vmem:[%s1906 + $0x10] sm:$0xf]
      %v1912 = vld [vmem:[%s1906 + $0x14] sm:$0xf]
      %v1913 = vld [vmem:[%s1906 + $0x18] sm:$0xf]
      %v1914 = vld [vmem:[%s1906 + $0x1c] sm:$0xf]
      %v1915 = vld [vmem:[%s1906 + $0x20] sm:$0xf]
      %v1916 = vld [vmem:[%s1906 + $0x24] sm:$0xf]
      %v1917 = vld [vmem:[%s1906 + $0x28] sm:$0xf]
      %v1918 = vld [vmem:[%s1906 + $0x2c] sm:$0xf]
      %v1919 = vld [vmem:[%s1906 + $0x30] sm:$0xf]
      %v1920 = vld [vmem:[%s1906 + $0x34] sm:$0xf]
      %v1921 = vld [vmem:[%s1906 + $0x38] sm:$0xf]
      %v1922 = vld [vmem:[%s1906 + $0x3c] sm:$0xf]
      %v1939 = vunpack.c.l.b16 %v1907
      %v1940 = vunpack.c.l.b16 %v1908
      %v1941 = vunpack.c.l.b16 %v1909
      %v1942 = vunpack.c.l.b16 %v1910
      %v1943 = vunpack.c.l.b16 %v1911
      %v1944 = vunpack.c.l.b16 %v1912
      %v1945 = vunpack.c.l.b16 %v1913
      %v1946 = vunpack.c.l.b16 %v1914
      %v1947 = vunpack.c.l.b16 %v1915
      %v1948 = vunpack.c.l.b16 %v1916
      %v1949 = vunpack.c.l.b16 %v1917
      %v1950 = vunpack.c.l.b16 %v1918
      %v1951 = vunpack.c.l.b16 %v1919
      %v1952 = vunpack.c.l.b16 %v1920
      %v1953 = vunpack.c.l.b16 %v1921
      %v1954 = vunpack.c.l.b16 %v1922
      %v1955 = vpack.c.b16 %v1940, %v1939
      %v1956 = vpack.c.b16 %v1942, %v1941
      %v1957 = vpack.c.b16 %v1944, %v1943
      %v1958 = vpack.c.b16 %v1946, %v1945
      %v1959 = vpack.c.b16 %v1948, %v1947
      %v1960 = vpack.c.b16 %v1950, %v1949
      %v1961 = vpack.c.b16 %v1952, %v1951
      %v1962 = vpack.c.b16 %v1954, %v1953
      %1971 = vmatprep.subr.bf16.mxu0 0
      %1972 = vmatpush1.bf16.msra.mxu0 %v1962
      %1973 = vmatprep.subr.bf16.mxu0 0
      %1974 = vmatpush1.bf16.msra.mxu0 %v1961
      %1975 = vmatprep.subr.bf16.mxu0 0
      %1976 = vmatpush1.bf16.msra.mxu0 %v1960
      %1977 = vmatprep.subr.bf16.mxu0 0
      %1978 = vmatpush1.bf16.msra.mxu0 %v1959
      %1979 = vmatprep.subr.bf16.mxu0 0
      %1980 = vmatpush1.bf16.msra.mxu0 %v1958
      %1981 = vmatprep.subr.bf16.mxu0 0
      %1982 = vmatpush1.bf16.msra.mxu0 %v1957
      %1983 = vmatprep.subr.bf16.mxu0 0
      %1984 = vmatpush1.bf16.msra.mxu0 %v1956
      %1985 = vmatprep.subr.bf16.mxu0 0
      %1986 = vmatpush1.bf16.msra.mxu0 %v1955
      %1987 = vmatprep.subr.bf16.mxu0 0
      %1988 = vmatpush2.bf16.msra.mxu0 0
      %1989 = vmatprep.subr.bf16.mxu0 0
      %1990 = vmatpush2.bf16.msra.mxu0 0
      %1991 = vmatprep.subr.bf16.mxu0 0
      %1992 = vmatpush2.bf16.msra.mxu0 0
      %1993 = vmatprep.subr.bf16.mxu0 0
      %1994 = vmatpush2.bf16.msra.mxu0 0
      %1995 = vmatprep.subr.bf16.mxu0 0
      %1996 = vmatpush2.bf16.msra.mxu0 0
      %1997 = vmatprep.subr.bf16.mxu0 0
      %1998 = vmatpush2.bf16.msra.mxu0 0
      %1999 = vmatprep.subr.bf16.mxu0 0
      %2000 = vmatpush2.bf16.msra.mxu0 0
      %2001 = vmatprep.subr.bf16.mxu0 0
      %2002 = vmatpush2.bf16.msra.mxu0 0
      %2003 = vmatprep.mubr.bf16.mxu0 0
      %2004 = vmatmul.mubr.bf16.gmra.mxu0 %v1031
      %v2005 = vpop.f32.mrf.mxu0
      %v2006 = vadd.f32 0.0, %v2005
      %v2007 = vpop.f32.mrf.mxu0
      %v2008 = vpop.f32.mrf.mxu0
      %v2009 = vadd.f32 0.0, %v2008
      %v2010 = vpop.f32.mrf.mxu0
      %2011 = vmatprep.mubr.bf16.mxu0 0
      %2012 = vmatmul.mubr.bf16.gmra.mxu0 %v1032
      %v2013 = vpop.f32.mrf.mxu0
      %v2014 = vadd.f32 0.0, %v2013
      %v2015 = vpop.f32.mrf.mxu0
      %v2016 = vpop.f32.mrf.mxu0
      %v2017 = vadd.f32 0.0, %v2016
      %v2018 = vpop.f32.mrf.mxu0
      %2019 = vmatprep.mubr.bf16.mxu0 0
      %2020 = vmatmul.mubr.bf16.gmra.mxu0 %v1033
      %v2021 = vpop.f32.mrf.mxu0
      %v2022 = vadd.f32 0.0, %v2021
      %v2023 = vpop.f32.mrf.mxu0
      %v2024 = vpop.f32.mrf.mxu0
      %v2025 = vadd.f32 0.0, %v2024
      %v2026 = vpop.f32.mrf.mxu0
      %2027 = vmatprep.mubr.bf16.mxu0 0
      %2028 = vmatmul.mubr.bf16.gmra.mxu0 %v1034
      %v2029 = vpop.f32.mrf.mxu0
      %v2030 = vadd.f32 0.0, %v2029
      %v2031 = vpop.f32.mrf.mxu0
      %v2032 = vpop.f32.mrf.mxu0
      %v2033 = vadd.f32 0.0, %v2032
      %v2034 = vpop.f32.mrf.mxu0
      %2035 = vmatprep.mubr.bf16.mxu0 0
      %2036 = vmatmul.mubr.bf16.gmra.mxu0 %v1035
      %v2037 = vpop.f32.mrf.mxu0
      %v2038 = vadd.f32 0.0, %v2037
      %v2039 = vpop.f32.mrf.mxu0
      %v2040 = vpop.f32.mrf.mxu0
      %v2041 = vadd.f32 0.0, %v2040
      %v2042 = vpop.f32.mrf.mxu0
      %2043 = vmatprep.mubr.bf16.mxu0 0
      %2044 = vmatmul.mubr.bf16.gmra.mxu0 %v1036
      %v2045 = vpop.f32.mrf.mxu0
      %v2046 = vadd.f32 0.0, %v2045
      %v2047 = vpop.f32.mrf.mxu0
      %v2048 = vpop.f32.mrf.mxu0
      %v2049 = vadd.f32 0.0, %v2048
      %v2050 = vpop.f32.mrf.mxu0
      %2051 = vmatprep.mubr.bf16.mxu0 0
      %2052 = vmatmul.mubr.bf16.gmra.mxu0 %v1037
      %v2053 = vpop.f32.mrf.mxu0
      %v2054 = vadd.f32 0.0, %v2053
      %v2055 = vpop.f32.mrf.mxu0
      %v2056 = vpop.f32.mrf.mxu0
      %v2057 = vadd.f32 0.0, %v2056
      %v2058 = vpop.f32.mrf.mxu0
      %2059 = vmatprep.mubr.bf16.mxu0 0
      %2060 = vmatmul.mubr.bf16.gmra.mxu0 %v1038
      %v2061 = vpop.f32.mrf.mxu0
      %v2062 = vadd.f32 0.0, %v2061
      %v2063 = vpop.f32.mrf.mxu0
      %v2064 = vpop.f32.mrf.mxu0
      %v2065 = vadd.f32 0.0, %v2064
      %v2066 = vpop.f32.mrf.mxu0
      %2067 = vdwg.mxu0
      %v2068 = vadd.f32 %v1890, %v2006
      %v2069 = vadd.f32 %v1891, %v2009
      %v2070 = vadd.f32 %v1892, %v2014
      %v2071 = vadd.f32 %v1893, %v2017
      %v2072 = vadd.f32 %v1894, %v2022
      %v2073 = vadd.f32 %v1895, %v2025
      %v2074 = vadd.f32 %v1896, %v2030
      %v2075 = vadd.f32 %v1897, %v2033
      %v2076 = vadd.f32 %v1898, %v2038
      %v2077 = vadd.f32 %v1899, %v2041
      %v2078 = vadd.f32 %v1900, %v2046
      %v2079 = vadd.f32 %v1901, %v2049
      %v2080 = vadd.f32 %v1902, %v2054
      %v2081 = vadd.f32 %v1903, %v2057
      %v2082 = vadd.f32 %v1904, %v2062
      %v2083 = vadd.f32 %v1905, %v2065
      %s2084 = scalar_lea.vmem %s5, 384
      %v2085 = vld [vmem:[%s2084] sm:$0xf]
      %v2086 = vld [vmem:[%s2084 + $0x4] sm:$0xf]
      %v2087 = vld [vmem:[%s2084 + $0x8] sm:$0xf]
      %v2088 = vld [vmem:[%s2084 + $0xc] sm:$0xf]
      %v2089 = vld [vmem:[%s2084 + $0x10] sm:$0xf]
      %v2090 = vld [vmem:[%s2084 + $0x14] sm:$0xf]
      %v2091 = vld [vmem:[%s2084 + $0x18] sm:$0xf]
      %v2092 = vld [vmem:[%s2084 + $0x1c] sm:$0xf]
      %v2093 = vld [vmem:[%s2084 + $0x20] sm:$0xf]
      %v2094 = vld [vmem:[%s2084 + $0x24] sm:$0xf]
      %v2095 = vld [vmem:[%s2084 + $0x28] sm:$0xf]
      %v2096 = vld [vmem:[%s2084 + $0x2c] sm:$0xf]
      %v2097 = vld [vmem:[%s2084 + $0x30] sm:$0xf]
      %v2098 = vld [vmem:[%s2084 + $0x34] sm:$0xf]
      %v2099 = vld [vmem:[%s2084 + $0x38] sm:$0xf]
      %v2100 = vld [vmem:[%s2084 + $0x3c] sm:$0xf]
      %v2117 = vunpack.c.l.b16 %v2085
      %v2118 = vunpack.c.l.b16 %v2086
      %v2119 = vunpack.c.l.b16 %v2087
      %v2120 = vunpack.c.l.b16 %v2088
      %v2121 = vunpack.c.l.b16 %v2089
      %v2122 = vunpack.c.l.b16 %v2090
      %v2123 = vunpack.c.l.b16 %v2091
      %v2124 = vunpack.c.l.b16 %v2092
      %v2125 = vunpack.c.l.b16 %v2093
      %v2126 = vunpack.c.l.b16 %v2094
      %v2127 = vunpack.c.l.b16 %v2095
      %v2128 = vunpack.c.l.b16 %v2096
      %v2129 = vunpack.c.l.b16 %v2097
      %v2130 = vunpack.c.l.b16 %v2098
      %v2131 = vunpack.c.l.b16 %v2099
      %v2132 = vunpack.c.l.b16 %v2100
      %v2133 = vpack.c.b16 %v2118, %v2117
      %v2134 = vpack.c.b16 %v2120, %v2119
      %v2135 = vpack.c.b16 %v2122, %v2121
      %v2136 = vpack.c.b16 %v2124, %v2123
      %v2137 = vpack.c.b16 %v2126, %v2125
      %v2138 = vpack.c.b16 %v2128, %v2127
      %v2139 = vpack.c.b16 %v2130, %v2129
      %v2140 = vpack.c.b16 %v2132, %v2131
      %2149 = vmatprep.subr.bf16.mxu0 0
      %2150 = vmatpush1.bf16.msra.mxu0 %v2140
      %2151 = vmatprep.subr.bf16.mxu0 0
      %2152 = vmatpush1.bf16.msra.mxu0 %v2139
      %2153 = vmatprep.subr.bf16.mxu0 0
      %2154 = vmatpush1.bf16.msra.mxu0 %v2138
      %2155 = vmatprep.subr.bf16.mxu0 0
      %2156 = vmatpush1.bf16.msra.mxu0 %v2137
      %2157 = vmatprep.subr.bf16.mxu0 0
      %2158 = vmatpush1.bf16.msra.mxu0 %v2136
      %2159 = vmatprep.subr.bf16.mxu0 0
      %2160 = vmatpush1.bf16.msra.mxu0 %v2135
      %2161 = vmatprep.subr.bf16.mxu0 0
      %2162 = vmatpush1.bf16.msra.mxu0 %v2134
      %2163 = vmatprep.subr.bf16.mxu0 0
      %2164 = vmatpush1.bf16.msra.mxu0 %v2133
      %2165 = vmatprep.subr.bf16.mxu0 0
      %2166 = vmatpush2.bf16.msra.mxu0 0
      %2167 = vmatprep.subr.bf16.mxu0 0
      %2168 = vmatpush2.bf16.msra.mxu0 0
      %2169 = vmatprep.subr.bf16.mxu0 0
      %2170 = vmatpush2.bf16.msra.mxu0 0
      %2171 = vmatprep.subr.bf16.mxu0 0
      %2172 = vmatpush2.bf16.msra.mxu0 0
      %2173 = vmatprep.subr.bf16.mxu0 0
      %2174 = vmatpush2.bf16.msra.mxu0 0
      %2175 = vmatprep.subr.bf16.mxu0 0
      %2176 = vmatpush2.bf16.msra.mxu0 0
      %2177 = vmatprep.subr.bf16.mxu0 0
      %2178 = vmatpush2.bf16.msra.mxu0 0
      %2179 = vmatprep.subr.bf16.mxu0 0
      %2180 = vmatpush2.bf16.msra.mxu0 0
      %2181 = vmatprep.mubr.bf16.mxu0 0
      %2182 = vmatmul.mubr.bf16.gmra.mxu0 %v989
      %v2183 = vpop.f32.mrf.mxu0
      %v2184 = vadd.f32 0.0, %v2183
      %v2185 = vpop.f32.mrf.mxu0
      %v2186 = vpop.f32.mrf.mxu0
      %v2187 = vadd.f32 0.0, %v2186
      %v2188 = vpop.f32.mrf.mxu0
      %2189 = vmatprep.mubr.bf16.mxu0 0
      %2190 = vmatmul.mubr.bf16.gmra.mxu0 %v990
      %v2191 = vpop.f32.mrf.mxu0
      %v2192 = vadd.f32 0.0, %v2191
      %v2193 = vpop.f32.mrf.mxu0
      %v2194 = vpop.f32.mrf.mxu0
      %v2195 = vadd.f32 0.0, %v2194
      %v2196 = vpop.f32.mrf.mxu0
      %2197 = vmatprep.mubr.bf16.mxu0 0
      %2198 = vmatmul.mubr.bf16.gmra.mxu0 %v991
      %v2199 = vpop.f32.mrf.mxu0
      %v2200 = vadd.f32 0.0, %v2199
      %v2201 = vpop.f32.mrf.mxu0
      %v2202 = vpop.f32.mrf.mxu0
      %v2203 = vadd.f32 0.0, %v2202
      %v2204 = vpop.f32.mrf.mxu0
      %2205 = vmatprep.mubr.bf16.mxu0 0
      %2206 = vmatmul.mubr.bf16.gmra.mxu0 %v992
      %v2207 = vpop.f32.mrf.mxu0
      %v2208 = vadd.f32 0.0, %v2207
      %v2209 = vpop.f32.mrf.mxu0
      %v2210 = vpop.f32.mrf.mxu0
      %v2211 = vadd.f32 0.0, %v2210
      %v2212 = vpop.f32.mrf.mxu0
      %2213 = vmatprep.mubr.bf16.mxu0 0
      %2214 = vmatmul.mubr.bf16.gmra.mxu0 %v993
      %v2215 = vpop.f32.mrf.mxu0
      %v2216 = vadd.f32 0.0, %v2215
      %v2217 = vpop.f32.mrf.mxu0
      %v2218 = vpop.f32.mrf.mxu0
      %v2219 = vadd.f32 0.0, %v2218
      %v2220 = vpop.f32.mrf.mxu0
      %2221 = vmatprep.mubr.bf16.mxu0 0
      %2222 = vmatmul.mubr.bf16.gmra.mxu0 %v994
      %v2223 = vpop.f32.mrf.mxu0
      %v2224 = vadd.f32 0.0, %v2223
      %v2225 = vpop.f32.mrf.mxu0
      %v2226 = vpop.f32.mrf.mxu0
      %v2227 = vadd.f32 0.0, %v2226
      %v2228 = vpop.f32.mrf.mxu0
      %2229 = vmatprep.mubr.bf16.mxu0 0
      %2230 = vmatmul.mubr.bf16.gmra.mxu0 %v995
      %v2231 = vpop.f32.mrf.mxu0
      %v2232 = vadd.f32 0.0, %v2231
      %v2233 = vpop.f32.mrf.mxu0
      %v2234 = vpop.f32.mrf.mxu0
      %v2235 = vadd.f32 0.0, %v2234
      %v2236 = vpop.f32.mrf.mxu0
      %2237 = vmatprep.mubr.bf16.mxu0 0
      %2238 = vmatmul.mubr.bf16.gmra.mxu0 %v996
      %v2239 = vpop.f32.mrf.mxu0
      %v2240 = vadd.f32 0.0, %v2239
      %v2241 = vpop.f32.mrf.mxu0
      %v2242 = vpop.f32.mrf.mxu0
      %v2243 = vadd.f32 0.0, %v2242
      %v2244 = vpop.f32.mrf.mxu0
      %2245 = vdwg.mxu0
      %v2246 = vadd.f32 %v2068, %v2184
      %v2247 = vadd.f32 %v2069, %v2187
      %v2248 = vadd.f32 %v2070, %v2192
      %v2249 = vadd.f32 %v2071, %v2195
      %v2250 = vadd.f32 %v2072, %v2200
      %v2251 = vadd.f32 %v2073, %v2203
      %v2252 = vadd.f32 %v2074, %v2208
      %v2253 = vadd.f32 %v2075, %v2211
      %v2254 = vadd.f32 %v2076, %v2216
      %v2255 = vadd.f32 %v2077, %v2219
      %v2256 = vadd.f32 %v2078, %v2224
      %v2257 = vadd.f32 %v2079, %v2227
      %v2258 = vadd.f32 %v2080, %v2232
      %v2259 = vadd.f32 %v2081, %v2235
      %v2260 = vadd.f32 %v2082, %v2240
      %v2261 = vadd.f32 %v2083, %v2243
      %s2262 = scalar_lea.vmem %s5, 448
      %v2263 = vld [vmem:[%s2262] sm:$0xf]
      %v2264 = vld [vmem:[%s2262 + $0x4] sm:$0xf]
      %v2265 = vld [vmem:[%s2262 + $0x8] sm:$0xf]
      %v2266 = vld [vmem:[%s2262 + $0xc] sm:$0xf]
      %v2267 = vld [vmem:[%s2262 + $0x10] sm:$0xf]
      %v2268 = vld [vmem:[%s2262 + $0x14] sm:$0xf]
      %v2269 = vld [vmem:[%s2262 + $0x18] sm:$0xf]
      %v2270 = vld [vmem:[%s2262 + $0x1c] sm:$0xf]
      %v2271 = vld [vmem:[%s2262 + $0x20] sm:$0xf]
      %v2272 = vld [vmem:[%s2262 + $0x24] sm:$0xf]
      %v2273 = vld [vmem:[%s2262 + $0x28] sm:$0xf]
      %v2274 = vld [vmem:[%s2262 + $0x2c] sm:$0xf]
      %v2275 = vld [vmem:[%s2262 + $0x30] sm:$0xf]
      %v2276 = vld [vmem:[%s2262 + $0x34] sm:$0xf]
      %v2277 = vld [vmem:[%s2262 + $0x38] sm:$0xf]
      %v2278 = vld [vmem:[%s2262 + $0x3c] sm:$0xf]
      %v2296 = vunpack.c.l.b16 %v2263
      %v2297 = vunpack.c.l.b16 %v2264
      %v2298 = vunpack.c.l.b16 %v2265
      %v2299 = vunpack.c.l.b16 %v2266
      %v2300 = vunpack.c.l.b16 %v2267
      %v2301 = vunpack.c.l.b16 %v2268
      %v2302 = vunpack.c.l.b16 %v2269
      %v2303 = vunpack.c.l.b16 %v2270
      %v2304 = vunpack.c.l.b16 %v2271
      %v2305 = vunpack.c.l.b16 %v2272
      %v2306 = vunpack.c.l.b16 %v2273
      %v2307 = vunpack.c.l.b16 %v2274
      %v2308 = vunpack.c.l.b16 %v2275
      %v2309 = vunpack.c.l.b16 %v2276
      %v2310 = vunpack.c.l.b16 %v2277
      %v2311 = vunpack.c.l.b16 %v2278
      %v2312 = vpack.c.b16 %v2297, %v2296
      %v2313 = vpack.c.b16 %v2299, %v2298
      %v2314 = vpack.c.b16 %v2301, %v2300
      %v2315 = vpack.c.b16 %v2303, %v2302
      %v2316 = vpack.c.b16 %v2305, %v2304
      %v2317 = vpack.c.b16 %v2307, %v2306
      %v2318 = vpack.c.b16 %v2309, %v2308
      %v2319 = vpack.c.b16 %v2311, %v2310
      %2328 = vmatprep.subr.bf16.mxu0 0
      %2329 = vmatpush1.bf16.msra.mxu0 %v2319
      %2330 = vmatprep.subr.bf16.mxu0 0
      %2331 = vmatpush1.bf16.msra.mxu0 %v2318
      %2332 = vmatprep.subr.bf16.mxu0 0
      %2333 = vmatpush1.bf16.msra.mxu0 %v2317
      %2334 = vmatprep.subr.bf16.mxu0 0
      %2335 = vmatpush1.bf16.msra.mxu0 %v2316
      %2336 = vmatprep.subr.bf16.mxu0 0
      %2337 = vmatpush1.bf16.msra.mxu0 %v2315
      %2338 = vmatprep.subr.bf16.mxu0 0
      %2339 = vmatpush1.bf16.msra.mxu0 %v2314
      %2340 = vmatprep.subr.bf16.mxu0 0
      %2341 = vmatpush1.bf16.msra.mxu0 %v2313
      %2342 = vmatprep.subr.bf16.mxu0 0
      %2343 = vmatpush1.bf16.msra.mxu0 %v2312
      %2344 = vmatprep.subr.bf16.mxu0 0
      %2345 = vmatpush2.bf16.msra.mxu0 0
      %2346 = vmatprep.subr.bf16.mxu0 0
      %2347 = vmatpush2.bf16.msra.mxu0 0
      %2348 = vmatprep.subr.bf16.mxu0 0
      %2349 = vmatpush2.bf16.msra.mxu0 0
      %2350 = vmatprep.subr.bf16.mxu0 0
      %2351 = vmatpush2.bf16.msra.mxu0 0
      %2352 = vmatprep.subr.bf16.mxu0 0
      %2353 = vmatpush2.bf16.msra.mxu0 0
      %2354 = vmatprep.subr.bf16.mxu0 0
      %2355 = vmatpush2.bf16.msra.mxu0 0
      %2356 = vmatprep.subr.bf16.mxu0 0
      %2357 = vmatpush2.bf16.msra.mxu0 0
      %2358 = vmatprep.subr.bf16.mxu0 0
      %2359 = vmatpush2.bf16.msra.mxu0 0
      %2360 = vmatprep.mubr.bf16.mxu0 0
      %2361 = vmatmul.mubr.bf16.gmra.mxu0 %v896
      %v2362 = vpop.f32.mrf.mxu0
      %v2363 = vadd.f32 0.0, %v2362
      %v2364 = vpop.f32.mrf.mxu0
      %v2365 = vpop.f32.mrf.mxu0
      %v2366 = vadd.f32 0.0, %v2365
      %v2367 = vpop.f32.mrf.mxu0
      %2368 = vmatprep.mubr.bf16.mxu0 0
      %2369 = vmatmul.mubr.bf16.gmra.mxu0 %v897
      %v2370 = vpop.f32.mrf.mxu0
      %v2371 = vadd.f32 0.0, %v2370
      %v2372 = vpop.f32.mrf.mxu0
      %v2373 = vpop.f32.mrf.mxu0
      %v2374 = vadd.f32 0.0, %v2373
      %v2375 = vpop.f32.mrf.mxu0
      %2376 = vmatprep.mubr.bf16.mxu0 0
      %2377 = vmatmul.mubr.bf16.gmra.mxu0 %v898
      %v2378 = vpop.f32.mrf.mxu0
      %v2379 = vadd.f32 0.0, %v2378
      %v2380 = vpop.f32.mrf.mxu0
      %v2381 = vpop.f32.mrf.mxu0
      %v2382 = vadd.f32 0.0, %v2381
      %v2383 = vpop.f32.mrf.mxu0
      %2384 = vmatprep.mubr.bf16.mxu0 0
      %2385 = vmatmul.mubr.bf16.gmra.mxu0 %v899
      %v2386 = vpop.f32.mrf.mxu0
      %v2387 = vadd.f32 0.0, %v2386
      %v2388 = vpop.f32.mrf.mxu0
      %v2389 = vpop.f32.mrf.mxu0
      %v2390 = vadd.f32 0.0, %v2389
      %v2391 = vpop.f32.mrf.mxu0
      %2392 = vmatprep.mubr.bf16.mxu0 0
      %2393 = vmatmul.mubr.bf16.gmra.mxu0 %v900
      %v2394 = vpop.f32.mrf.mxu0
      %v2395 = vadd.f32 0.0, %v2394
      %v2396 = vpop.f32.mrf.mxu0
      %v2397 = vpop.f32.mrf.mxu0
      %v2398 = vadd.f32 0.0, %v2397
      %v2399 = vpop.f32.mrf.mxu0
      %2400 = vmatprep.mubr.bf16.mxu0 0
      %2401 = vmatmul.mubr.bf16.gmra.mxu0 %v901
      %v2402 = vpop.f32.mrf.mxu0
      %v2403 = vadd.f32 0.0, %v2402
      %v2404 = vpop.f32.mrf.mxu0
      %v2405 = vpop.f32.mrf.mxu0
      %v2406 = vadd.f32 0.0, %v2405
      %v2407 = vpop.f32.mrf.mxu0
      %2408 = vmatprep.mubr.bf16.mxu0 0
      %2409 = vmatmul.mubr.bf16.gmra.mxu0 %v902
      %v2410 = vpop.f32.mrf.mxu0
      %v2411 = vadd.f32 0.0, %v2410
      %v2412 = vpop.f32.mrf.mxu0
      %v2413 = vpop.f32.mrf.mxu0
      %v2414 = vadd.f32 0.0, %v2413
      %v2415 = vpop.f32.mrf.mxu0
      %2416 = vmatprep.mubr.bf16.mxu0 0
      %2417 = vmatmul.mubr.bf16.gmra.mxu0 %v903
      %v2418 = vpop.f32.mrf.mxu0
      %v2419 = vadd.f32 0.0, %v2418
      %v2420 = vpop.f32.mrf.mxu0
      %v2421 = vpop.f32.mrf.mxu0
      %v2422 = vadd.f32 0.0, %v2421
      %v2423 = vpop.f32.mrf.mxu0
      %2424 = vdwg.mxu0
      %v2425 = vadd.f32 %v2246, %v2363
      %v2426 = vadd.f32 %v2247, %v2366
      %v2427 = vadd.f32 %v2248, %v2371
      %v2428 = vadd.f32 %v2249, %v2374
      %v2429 = vadd.f32 %v2250, %v2379
      %v2430 = vadd.f32 %v2251, %v2382
      %v2431 = vadd.f32 %v2252, %v2387
      %v2432 = vadd.f32 %v2253, %v2390
      %v2433 = vadd.f32 %v2254, %v2395
      %v2434 = vadd.f32 %v2255, %v2398
      %v2435 = vadd.f32 %v2256, %v2403
      %v2436 = vadd.f32 %v2257, %v2406
      %v2437 = vadd.f32 %v2258, %v2411
      %v2438 = vadd.f32 %v2259, %v2414
      %v2439 = vadd.f32 %v2260, %v2419
      %v2440 = vadd.f32 %v2261, %v2422
      %s2441 = scalar_lea.vmem %s5, 512
      %v2442 = vld [vmem:[%s2441] sm:$0xf]
      %v2443 = vld [vmem:[%s2441 + $0x4] sm:$0xf]
      %v2444 = vld [vmem:[%s2441 + $0x8] sm:$0xf]
      %v2445 = vld [vmem:[%s2441 + $0xc] sm:$0xf]
      %v2446 = vld [vmem:[%s2441 + $0x10] sm:$0xf]
      %v2447 = vld [vmem:[%s2441 + $0x14] sm:$0xf]
      %v2448 = vld [vmem:[%s2441 + $0x18] sm:$0xf]
      %v2449 = vld [vmem:[%s2441 + $0x1c] sm:$0xf]
      %v2450 = vld [vmem:[%s2441 + $0x20] sm:$0xf]
      %v2451 = vld [vmem:[%s2441 + $0x24] sm:$0xf]
      %v2452 = vld [vmem:[%s2441 + $0x28] sm:$0xf]
      %v2453 = vld [vmem:[%s2441 + $0x2c] sm:$0xf]
      %v2454 = vld [vmem:[%s2441 + $0x30] sm:$0xf]
      %v2455 = vld [vmem:[%s2441 + $0x34] sm:$0xf]
      %v2456 = vld [vmem:[%s2441 + $0x38] sm:$0xf]
      %v2457 = vld [vmem:[%s2441 + $0x3c] sm:$0xf]
      %v2474 = vunpack.c.l.b16 %v2442
      %v2475 = vunpack.c.l.b16 %v2443
      %v2476 = vunpack.c.l.b16 %v2444
      %v2477 = vunpack.c.l.b16 %v2445
      %v2478 = vunpack.c.l.b16 %v2446
      %v2479 = vunpack.c.l.b16 %v2447
      %v2480 = vunpack.c.l.b16 %v2448
      %v2481 = vunpack.c.l.b16 %v2449
      %v2482 = vunpack.c.l.b16 %v2450
      %v2483 = vunpack.c.l.b16 %v2451
      %v2484 = vunpack.c.l.b16 %v2452
      %v2485 = vunpack.c.l.b16 %v2453
      %v2486 = vunpack.c.l.b16 %v2454
      %v2487 = vunpack.c.l.b16 %v2455
      %v2488 = vunpack.c.l.b16 %v2456
      %v2489 = vunpack.c.l.b16 %v2457
      %v2490 = vpack.c.b16 %v2475, %v2474
      %v2491 = vpack.c.b16 %v2477, %v2476
      %v2492 = vpack.c.b16 %v2479, %v2478
      %v2493 = vpack.c.b16 %v2481, %v2480
      %v2494 = vpack.c.b16 %v2483, %v2482
      %v2495 = vpack.c.b16 %v2485, %v2484
      %v2496 = vpack.c.b16 %v2487, %v2486
      %v2497 = vpack.c.b16 %v2489, %v2488
      %2506 = vmatprep.subr.bf16.mxu0 0
      %2507 = vmatpush1.bf16.msra.mxu0 %v2497
      %2508 = vmatprep.subr.bf16.mxu0 0
      %2509 = vmatpush1.bf16.msra.mxu0 %v2496
      %2510 = vmatprep.subr.bf16.mxu0 0
      %2511 = vmatpush1.bf16.msra.mxu0 %v2495
      %2512 = vmatprep.subr.bf16.mxu0 0
      %2513 = vmatpush1.bf16.msra.mxu0 %v2494
      %2514 = vmatprep.subr.bf16.mxu0 0
      %2515 = vmatpush1.bf16.msra.mxu0 %v2493
      %2516 = vmatprep.subr.bf16.mxu0 0
      %2517 = vmatpush1.bf16.msra.mxu0 %v2492
      %2518 = vmatprep.subr.bf16.mxu0 0
      %2519 = vmatpush1.bf16.msra.mxu0 %v2491
      %2520 = vmatprep.subr.bf16.mxu0 0
      %2521 = vmatpush1.bf16.msra.mxu0 %v2490
      %2522 = vmatprep.subr.bf16.mxu0 0
      %2523 = vmatpush2.bf16.msra.mxu0 0
      %2524 = vmatprep.subr.bf16.mxu0 0
      %2525 = vmatpush2.bf16.msra.mxu0 0
      %2526 = vmatprep.subr.bf16.mxu0 0
      %2527 = vmatpush2.bf16.msra.mxu0 0
      %2528 = vmatprep.subr.bf16.mxu0 0
      %2529 = vmatpush2.bf16.msra.mxu0 0
      %2530 = vmatprep.subr.bf16.mxu0 0
      %2531 = vmatpush2.bf16.msra.mxu0 0
      %2532 = vmatprep.subr.bf16.mxu0 0
      %2533 = vmatpush2.bf16.msra.mxu0 0
      %2534 = vmatprep.subr.bf16.mxu0 0
      %2535 = vmatpush2.bf16.msra.mxu0 0
      %2536 = vmatprep.subr.bf16.mxu0 0
      %2537 = vmatpush2.bf16.msra.mxu0 0
      %2538 = vmatprep.mubr.bf16.mxu0 0
      %2539 = vmatmul.mubr.bf16.gmra.mxu0 %v1032
      %v2540 = vpop.f32.mrf.mxu0
      %v2541 = vadd.f32 0.0, %v2540
      %v2542 = vpop.f32.mrf.mxu0
      %v2543 = vpop.f32.mrf.mxu0
      %v2544 = vadd.f32 0.0, %v2543
      %v2545 = vpop.f32.mrf.mxu0
      %2546 = vmatprep.mubr.bf16.mxu0 0
      %2547 = vmatmul.mubr.bf16.gmra.mxu0 %v1033
      %v2548 = vpop.f32.mrf.mxu0
      %v2549 = vadd.f32 0.0, %v2548
      %v2550 = vpop.f32.mrf.mxu0
      %v2551 = vpop.f32.mrf.mxu0
      %v2552 = vadd.f32 0.0, %v2551
      %v2553 = vpop.f32.mrf.mxu0
      %2554 = vmatprep.mubr.bf16.mxu0 0
      %2555 = vmatmul.mubr.bf16.gmra.mxu0 %v1034
      %v2556 = vpop.f32.mrf.mxu0
      %v2557 = vadd.f32 0.0, %v2556
      %v2558 = vpop.f32.mrf.mxu0
      %v2559 = vpop.f32.mrf.mxu0
      %v2560 = vadd.f32 0.0, %v2559
      %v2561 = vpop.f32.mrf.mxu0
      %2562 = vmatprep.mubr.bf16.mxu0 0
      %2563 = vmatmul.mubr.bf16.gmra.mxu0 %v1035
      %v2564 = vpop.f32.mrf.mxu0
      %v2565 = vadd.f32 0.0, %v2564
      %v2566 = vpop.f32.mrf.mxu0
      %v2567 = vpop.f32.mrf.mxu0
      %v2568 = vadd.f32 0.0, %v2567
      %v2569 = vpop.f32.mrf.mxu0
      %2570 = vmatprep.mubr.bf16.mxu0 0
      %2571 = vmatmul.mubr.bf16.gmra.mxu0 %v1036
      %v2572 = vpop.f32.mrf.mxu0
      %v2573 = vadd.f32 0.0, %v2572
      %v2574 = vpop.f32.mrf.mxu0
      %v2575 = vpop.f32.mrf.mxu0
      %v2576 = vadd.f32 0.0, %v2575
      %v2577 = vpop.f32.mrf.mxu0
      %2578 = vmatprep.mubr.bf16.mxu0 0
      %2579 = vmatmul.mubr.bf16.gmra.mxu0 %v1037
      %v2580 = vpop.f32.mrf.mxu0
      %v2581 = vadd.f32 0.0, %v2580
      %v2582 = vpop.f32.mrf.mxu0
      %v2583 = vpop.f32.mrf.mxu0
      %v2584 = vadd.f32 0.0, %v2583
      %v2585 = vpop.f32.mrf.mxu0
      %2586 = vmatprep.mubr.bf16.mxu0 0
      %2587 = vmatmul.mubr.bf16.gmra.mxu0 %v1038
      %v2588 = vpop.f32.mrf.mxu0
      %v2589 = vadd.f32 0.0, %v2588
      %v2590 = vpop.f32.mrf.mxu0
      %v2591 = vpop.f32.mrf.mxu0
      %v2592 = vadd.f32 0.0, %v2591
      %v2593 = vpop.f32.mrf.mxu0
      %2594 = vmatprep.mubr.bf16.mxu0 0
      %2595 = vmatmul.mubr.bf16.gmra.mxu0 %v1039
      %v2596 = vpop.f32.mrf.mxu0
      %v2597 = vadd.f32 0.0, %v2596
      %v2598 = vpop.f32.mrf.mxu0
      %v2599 = vpop.f32.mrf.mxu0
      %v2600 = vadd.f32 0.0, %v2599
      %v2601 = vpop.f32.mrf.mxu0
      %2602 = vdwg.mxu0
      %v2603 = vadd.f32 %v2425, %v2541
      %v2604 = vadd.f32 %v2426, %v2544
      %v2605 = vadd.f32 %v2427, %v2549
      %v2606 = vadd.f32 %v2428, %v2552
      %v2607 = vadd.f32 %v2429, %v2557
      %v2608 = vadd.f32 %v2430, %v2560
      %v2609 = vadd.f32 %v2431, %v2565
      %v2610 = vadd.f32 %v2432, %v2568
      %v2611 = vadd.f32 %v2433, %v2573
      %v2612 = vadd.f32 %v2434, %v2576
      %v2613 = vadd.f32 %v2435, %v2581
      %v2614 = vadd.f32 %v2436, %v2584
      %v2615 = vadd.f32 %v2437, %v2589
      %v2616 = vadd.f32 %v2438, %v2592
      %v2617 = vadd.f32 %v2439, %v2597
      %v2618 = vadd.f32 %v2440, %v2600
      %v2619 = vld [vmem:[%s6] sm:$0x1]
      %v2621 = vlaneseq
      %v2622 = vshrl.u32 %v2621, 7
      %v2623 = vsub.s32 0, %v2622
      %v2624 = vrot.slane %v2619, %v2623
      %v2626 = vadd.f32 %v2603, %v2624
      %v2627 = vadd.f32 %v2604, %v2624
      %v2628 = vadd.f32 %v2605, %v2624
      %v2629 = vadd.f32 %v2606, %v2624
      %v2630 = vadd.f32 %v2607, %v2624
      %v2631 = vadd.f32 %v2608, %v2624
      %v2632 = vadd.f32 %v2609, %v2624
      %v2633 = vadd.f32 %v2610, %v2624
      %v2634 = vadd.f32 %v2611, %v2624
      %v2635 = vadd.f32 %v2612, %v2624
      %v2636 = vadd.f32 %v2613, %v2624
      %v2637 = vadd.f32 %v2614, %v2624
      %v2638 = vadd.f32 %v2615, %v2624
      %v2639 = vadd.f32 %v2616, %v2624
      %v2640 = vadd.f32 %v2617, %v2624
      %v2641 = vadd.f32 %v2618, %v2624
      %v2642 = vmax.f32 %v2626, 0.0
      %v2643 = vmax.f32 %v2627, 0.0
      %v2644 = vmax.f32 %v2628, 0.0
      %v2645 = vmax.f32 %v2629, 0.0
      %v2646 = vmax.f32 %v2630, 0.0
      %v2647 = vmax.f32 %v2631, 0.0
      %v2648 = vmax.f32 %v2632, 0.0
      %v2649 = vmax.f32 %v2633, 0.0
      %v2650 = vmax.f32 %v2634, 0.0
      %v2651 = vmax.f32 %v2635, 0.0
      %v2652 = vmax.f32 %v2636, 0.0
      %v2653 = vmax.f32 %v2637, 0.0
      %v2654 = vmax.f32 %v2638, 0.0
      %v2655 = vmax.f32 %v2639, 0.0
      %v2656 = vmax.f32 %v2640, 0.0
      %v2657 = vmax.f32 %v2641, 0.0
      %v2658 = vadd.f32 %v2642, %v448
      %v2659 = vadd.f32 %v2643, %v449
      %v2660 = vadd.f32 %v2644, %v450
      %v2661 = vadd.f32 %v2645, %v451
      %v2662 = vadd.f32 %v2646, %v452
      %v2663 = vadd.f32 %v2647, %v453
      %v2664 = vadd.f32 %v2648, %v454
      %v2665 = vadd.f32 %v2649, %v455
      %v2666 = vadd.f32 %v2650, %v456
      %v2667 = vadd.f32 %v2651, %v457
      %v2668 = vadd.f32 %v2652, %v458
      %v2669 = vadd.f32 %v2653, %v459
      %v2670 = vadd.f32 %v2654, %v460
      %v2671 = vadd.f32 %v2655, %v461
      %v2672 = vadd.f32 %v2656, %v462
      %v2673 = vadd.f32 %v2657, %v463
      %2674 = vst.msk [vmem:[%s445] sm:$0xff] %vm480, %v2658
      %2675 = vst.msk [vmem:[%s445 + $0x8] sm:$0xff] %vm480, %v2659
      %2676 = vst.msk [vmem:[%s445 + $0x10] sm:$0xff] %vm480, %v2660
      %2677 = vst.msk [vmem:[%s445 + $0x18] sm:$0xff] %vm480, %v2661
      %2678 = vst.msk [vmem:[%s445 + $0x20] sm:$0xff] %vm480, %v2662
      %2679 = vst.msk [vmem:[%s445 + $0x28] sm:$0xff] %vm480, %v2663
      %2680 = vst.msk [vmem:[%s445 + $0x30] sm:$0xff] %vm480, %v2664
      %2681 = vst.msk [vmem:[%s445 + $0x38] sm:$0xff] %vm480, %v2665
      %2682 = vst.msk [vmem:[%s445 + $0x40] sm:$0xff] %vm480, %v2666
      %2683 = vst.msk [vmem:[%s445 + $0x48] sm:$0xff] %vm480, %v2667
      %2684 = vst.msk [vmem:[%s445 + $0x50] sm:$0xff] %vm480, %v2668
      %2685 = vst.msk [vmem:[%s445 + $0x58] sm:$0xff] %vm480, %v2669
      %2686 = vst.msk [vmem:[%s445 + $0x60] sm:$0xff] %vm480, %v2670
      %2687 = vst.msk [vmem:[%s445 + $0x68] sm:$0xff] %vm480, %v2671
      %2688 = vst.msk [vmem:[%s445 + $0x70] sm:$0xff] %vm480, %v2672
      %2689 = vst.msk [vmem:[%s445 + $0x78] sm:$0xff] %vm480, %v2673
      %s2690 = smul.u32 8, %s23
      %p2691 = scmp.lt.s32.totalorder %s22, 1
      %s2692 = scalar_select %p2691, %s22, 1
      %p2693 = scmp.lt.s32.totalorder %s2690, 15
      %s2694 = scalar_select %p2693, %s2690, 15
      %s2695 = smul.addr %s2694, 2
      %s2696 = smul.addr %s2692, 32
      %s2697 = sadd.s32 %s2695, %s2696
      %s2698 = smul.addr %s2697, 8
      %s2699 = scalar_lea.vmem %s7, %s2698
      // Predicated region
      $region49: #{tpu_custom_call.1} parent=47 // pred_check
        %p2700 = pneg %p234
      $region50: #{tpu_custom_call.1} parent=47 // pred_check_branch
        %2702 = sbr.rel (%p2700) target = $region52
      $region51: #{tpu_custom_call.1} parent=47 // pred_region
        %s2703 = smul.u32 8, %s23
      $region52: #{tpu_custom_call.1} parent=47 // pred_fallthru
        _
    $region48: #{tpu_custom_call.1} parent=5 // pred_fallthru
      _
    %p2704 = scmp.le.s32.totalorder 2, %s13
    // Predicated region
    $region53: #{tpu_custom_call.1} parent=5 // pred_check
      %p2705 = pneg %p2704
    $region54: #{tpu_custom_call.1} parent=5 // pred_check_branch
      %2707 = sbr.rel (%p2705) target = $region56
    $region55: #{tpu_custom_call.1} parent=5 // pred_region
      %s2708 = ssub.s32 %s13, 2
      // Predicated region
      $region57: #{tpu_custom_call.1} parent=55 // pred_check
        %p2709 = pneg %p240
      $region58: #{tpu_custom_call.1} parent=55 // pred_check_branch
        %2711 = sbr.rel (%p2709) target = $region60
      $region59: #{tpu_custom_call.1} parent=55 // pred_region
        %s2712 = smul.u32 8, %s25
        %p2713 = scmp.lt.s32.totalorder %s24, 1
        %s2714 = scalar_select %p2713, %s24, 1
        %p2715 = scmp.lt.s32.totalorder %s2712, 15
        %s2716 = scalar_select %p2715, %s2712, 15
        %s2717 = smul.addr %s2716, 2
        %s2718 = smul.addr %s2714, 32
        %s2719 = sadd.s32 %s2717, %s2718
        %s2720 = smul.addr %s2719, 8
        %s2721 = scalar_lea.vmem %s7, %s2720
      $region60: #{tpu_custom_call.1} parent=55 // pred_fallthru
        _
    $region56: #{tpu_custom_call.1} parent=5 // pred_fallthru
      _
  $region6: #{tpu_custom_call.1} parent=0 // loop_footer
    %s17 = sadd.s32 1, %s13
  $region7: #{tpu_custom_call.1} parent=0 // loop_footer_branch
    %12 = sbr.rel target = $region3
  $region8: #{tpu_custom_call.1} parent=0 // loop_exit
    _

</llo_original>
